<compile_context>
chip_gen: v6e
topology: v6e:2x2x1
jax: 0.10.0
libtpu: 0.0.40
codegen_flags: <defaults>
</compile_context>

<pallas_src>
import functools

import numpy as np

import jax
import jax.numpy as jnp
from jax import lax
from jax.experimental import pallas as pl
from jax.experimental.pallas import tpu as pltpu

_EPS = 1e-5


def _round_up(x, m):
    return (x + m - 1) // m * m


def _device_kind():
    try:
        return jax.devices()[0].device_kind.lower()
    except Exception:
        return ""


def _padded_block_bytes(shape, dtype):
    """Rough VMEM footprint of one block with (sublane, lane) tile padding."""
    dt = jnp.dtype(dtype)
    s = [int(d) for d in shape]
    if len(s) >= 1:
        s[-1] = _round_up(s[-1], 128)
    if len(s) >= 2:
        s[-2] = _round_up(s[-2], 8 * (4 // dt.itemsize))
    n = 1
    for d in s:
        n *= d
    return n * dt.itemsize


# --------------------------- Pallas kernel ----------------------------------

def _conv_bias_relu_stats_kernel(width, racc, x0_ref, x1_ref, x2_ref,
                                 w_ref, b_ref, mask_ref,
                                 y_ref, sum_ref, sq_ref):
    """One (n, d) output plane: 3x3x3 conv + bias + ReLU + per-plane BN stats.

    x{0,1,2}_ref : (1, 1, Rp_pad, Cin) bf16  padded planes d, d+1, d+2, rows
                                             flattened as r = h*(W+2) + w.
    w_ref        : (27, Cin, Cp)       bf16  taps flattened as kd*9 + kh*3 + kw.
    b_ref        : (1, Cp)             f32
    mask_ref     : (Racc, 1)           f32   1.0 where (r mod (W+2)) < W.
    y_ref        : (1, 1, Racc, Cp)    bf16  conv+bias+ReLU, flattened-row
                                             layout (columns >= W are garbage).
    sum_ref/sq_ref: (1, 1, 1, Cp)      f32   masked sum / sum-of-squares.
    """
    wp2 = width + 2
    cp = w_ref.shape[-1]
    planes = (x0_ref[0, 0], x1_ref[0, 0], x2_ref[0, 0])   # (Rp_pad, Cin) bf16

    acc = jnp.zeros((racc, cp), jnp.float32)
    for kd in range(3):
        plane = planes[kd]
        for kh in range(3):
            for kw in range(3):
                t = (kd * 3 + kh) * 3 + kw
                s = kh * wp2 + kw
                # Full-height matmul, then an aligned-dtype f32 row shift:
                # acc[r] += plane[r + s] @ W[tap]
                q = jnp.dot(plane, w_ref[t],
                            preferred_element_type=jnp.float32)
                acc = acc + q[s:s + racc, :]

    acc = jnp.maximum(acc + b_ref[...], 0.0)
    y_ref[0, 0] = acc.astype(y_ref.dtype)

    av = acc * mask_ref[...]                   # zero the w >= W garbage columns
    sum_ref[0, 0] = jnp.sum(av, axis=0, keepdims=True)
    sq_ref[0, 0] = jnp.sum(av * av, axis=0, keepdims=True)


# --------------------------- block wrapper -----------------------------------

def conv_norm_nonlin_block(x_ndhwc, w, b, gamma, beta):
    """One ConvNormNonlin block.

    x_ndhwc: (N, D, H, W, Cin) float;  w: (3, 3, 3, Cin, Cout) (DHWIO; permute
    PyTorch's (Cout, Cin, kD, kH, kW) with .permute(2, 3, 4, 1, 0) on import).
    """
    N, D, H, W, Cin = x_ndhwc.shape
    Cout = w.shape[-1]
    Cp = _round_up(Cout, 128)
    Wp2 = W + 2
    Rp = (H + 2) * Wp2                  # rows of one flattened padded plane
    Racc = H * Wp2                      # rows holding every valid output
    Rp_pad = _round_up(Rp + 2, 8)       # every tap slice [s, s+Racc) fits

    # ---- JAX glue: zero-pad, flatten (H+2, W+2) -> rows, bf16 operands -----
    xp = jnp.pad(x_ndhwc.astype(jnp.float32),
                 ((0, 0), (1, 1), (1, 1), (1, 1), (0, 0)))
    xrows = xp.reshape(N, D + 2, Rp, Cin)
    xrows = jnp.pad(xrows, ((0, 0), (0, 0), (0, Rp_pad - Rp), (0, 0)))
    xrows = xrows.astype(jnp.bfloat16)

    w_col = jnp.pad(w.astype(jnp.float32).reshape(27, Cin, Cout),
                    ((0, 0), (0, 0), (0, Cp - Cout))).astype(jnp.bfloat16)
    b_p = jnp.pad(b.astype(jnp.float32), (0, Cp - Cout)).reshape(1, Cp)

    # Static validity mask over flattened rows (only columns w < W are real).
    mask = jnp.asarray(
        (np.arange(Racc) % Wp2 < W).astype(np.float32).reshape(Racc, 1))

    # ---- block specs --------------------------------------------------------
    def _xspec(kd):
        return pl.BlockSpec((1, 1, Rp_pad, Cin),
                            lambda n, d, _kd=kd: (n, d + _kd, 0, 0))

    in_specs = [
        _xspec(0), _xspec(1), _xspec(2),
        pl.BlockSpec((27, Cin, Cp), lambda n, d: (0, 0, 0)),   # VMEM-resident
        pl.BlockSpec((1, Cp), lambda n, d: (0, 0)),            # VMEM-resident
        pl.BlockSpec((Racc, 1), lambda n, d: (0, 0)),          # VMEM-resident
    ]
    out_specs = (
        pl.BlockSpec((1, 1, Racc, Cp), lambda n, d: (n, d, 0, 0)),
        pl.BlockSpec((1, 1, 1, Cp), lambda n, d: (n, d, 0, 0)),
        pl.BlockSpec((1, 1, 1, Cp), lambda n, d: (n, d, 0, 0)),
    )
    out_shape = (
        jax.ShapeDtypeStruct((N, D, Racc, Cp), jnp.bfloat16),
        jax.ShapeDtypeStruct((N, D, 1, Cp), jnp.float32),
        jax.ShapeDtypeStruct((N, D, 1, Cp), jnp.float32),
    )

    # ---- VMEM budget derived from actual block footprints ------------------
    vmem_needed = (
        2 * (3 * _padded_block_bytes((Rp_pad, Cin), jnp.bfloat16)
             + _padded_block_bytes((27, Cin, Cp), jnp.bfloat16)
             + _padded_block_bytes((1, Cp), jnp.float32)
             + _padded_block_bytes((Racc, 1), jnp.float32)
             + _padded_block_bytes((Racc, Cp), jnp.bfloat16)
             + 2 * _padded_block_bytes((1, Cp), jnp.float32))
        + 3 * _padded_block_bytes((Rp_pad, Cp), jnp.float32))   # f32 acc/temps
    cap = (48 if "v7" in _device_kind() else 100) * 1024 * 1024
    vmem_limit = int(min(cap, max(vmem_needed + (8 << 20), 32 << 20)))

    flops = 2 * N * D * 27 * Rp_pad * Cin * Cp
    bytes_accessed = (N * D * (3 * Rp_pad * Cin * 2 + Racc * Cp * 2 + 2 * Cp * 4)
                      + 27 * Cin * Cp * 2 + Cp * 4 + Racc * 4)

    kernel = functools.partial(_conv_bias_relu_stats_kernel, W, Racc)
    y, tsum, tsq = pl.pallas_call(
        kernel,
        grid=(N, D),
        in_specs=in_specs,
        out_specs=out_specs,
        out_shape=out_shape,
        compiler_params=pltpu.CompilerParams(
            dimension_semantics=("parallel", "parallel"),
            vmem_limit_bytes=vmem_limit),
        cost_estimate=pl.CostEstimate(
            flops=flops, transcendentals=0, bytes_accessed=bytes_accessed),
    )(xrows, xrows, xrows, w_col, b_p, mask)

    # ---- BN statistics (tiny reduction) + affine, plain JAX -----------------
    cnt = N * D * H * W
    tot = jnp.sum(tsum, axis=(0, 1)).reshape(Cp)[:Cout]
    tot2 = jnp.sum(tsq, axis=(0, 1)).reshape(Cp)[:Cout]
    mean = tot / cnt
    var = jnp.maximum(tot2 / cnt - mean * mean, 0.0)       # biased (training BN)
    scale = gamma * lax.rsqrt(var + _EPS)
    shift = beta - mean * scale

    # Crop the flattened-row layout back to (N, D, H, W, Cout) and apply the
    # affine here; XLA fuses this with the next block's pad/flatten/bf16 cast
    # (or the final transpose), so no extra Pallas streaming pass is needed.
    y_c = y.reshape(N, D, H, Wp2, Cp)[:, :, :, :W, :Cout].astype(jnp.float32)
    return y_c * scale + shift


def stack_conv_norm_nonlin(x_ncdhw, params):
    """Forward of StackConvNormNonlin (num_convs=2, short_cut=False).
    x_ncdhw: (N, C_in, D, H, W) as in PyTorch.  Returns (N, C_out, D, H, W)."""
    x = jnp.transpose(x_ncdhw, (0, 2, 3, 4, 1))     # NCDHW -> NDHWC
    for (w, b, g, be) in params:
        x = conv_norm_nonlin_block(x, w, b, g, be)
    return jnp.transpose(x, (0, 4, 1, 2, 3))        # NDHWC -> NCDHW


# ---------------- pure-JAX reference (for correctness check) ----------------
def _ref_block(x_ndhwc, w, b, gamma, beta):
    y = lax.conv_general_dilated(
        x_ndhwc, w, window_strides=(1, 1, 1),
        padding=[(1, 1), (1, 1), (1, 1)],
        dimension_numbers=("NDHWC", "DHWIO", "NDHWC"))
    y = jnp.maximum(y + b, 0.0)
    mean = jnp.mean(y, axis=(0, 1, 2, 3), keepdims=True)
    var = jnp.mean((y - mean) ** 2, axis=(0, 1, 2, 3), keepdims=True)
    return (y - mean) * lax.rsqrt(var + _EPS) * gamma + beta


def _ref_forward(x_ncdhw, params):
    x = jnp.transpose(x_ncdhw, (0, 2, 3, 4, 1))
    for (w, b, g, be) in params:
        x = _ref_block(x, w, b, g, be)
    return jnp.transpose(x, (0, 4, 1, 2, 3))


if __name__ == "__main__":
    # Small but non-trivial shapes: grid = (N=2, D=10) = 20 parallel steps,
    # Cout=8 padded to 128 lanes, W+2-column garbage masking exercised.
    N, Cin, Cout, D, H, W = 2, 4, 8, 10, 10, 10

    key = jax.random.PRNGKey(0)
    kx, kw1, kb1, kg1, kbe1, kw2, kb2, kg2, kbe2 = jax.random.split(key, 9)

    x = jax.random.normal(kx, (N, Cin, D, H, W), jnp.float32)   # NCDHW

    # Synthetic parameters (Conv3d weights in DHWIO layout; see docstring).
    w1 = 0.1 * jax.random.normal(kw1, (3, 3, 3, Cin, Cout), jnp.float32)
    b1 = 0.1 * jax.random.normal(kb1, (Cout,), jnp.float32)
    g1 = 1.0 + 0.1 * jax.random.normal(kg1, (Cout,), jnp.float32)
    be1 = 0.1 * jax.random.normal(kbe1, (Cout,), jnp.float32)

    w2 = 0.1 * jax.random.normal(kw2, (3, 3, 3, Cout, Cout), jnp.float32)
    b2 = 0.1 * jax.random.normal(kb2, (Cout,), jnp.float32)
    g2 = 1.0 + 0.1 * jax.random.normal(kg2, (Cout,), jnp.float32)
    be2 = 0.1 * jax.random.normal(kbe2, (Cout,), jnp.float32)

    params = [(w1, b1, g1, be1), (w2, b2, g2, be2)]

    fwd = jax.jit(stack_conv_norm_nonlin)
    out = jax.block_until_ready(fwd(x, params))
    ref = jax.block_until_ready(jax.jit(_ref_forward)(x, params))

    assert out.shape == (N, Cout, D, H, W), out.shape
    max_diff = float(jnp.max(jnp.abs(out - ref)))
    mean_diff = float(jnp.mean(jnp.abs(out - ref)))
    # bf16 conv operands / bf16 y intermediate vs the all-f32 reference give
    # ~1e-2-level deviations on BN-normalized (O(1)) outputs; real indexing or
    # statistics bugs would show up as O(0.1..1) errors.
    assert max_diff < 8e-2 and mean_diff < 1.2e-2, (max_diff, mean_diff)

    print("KERNEL_OK")
</pallas_src>

<mosaic_0001>
module attributes {stable_mosaic.version = 11 : i64} {
  func.func @_conv_bias_relu_stats_kernel(%arg0: i32, %arg1: i32, %arg2: memref<1x1x152x4xbf16, #tpu.memory_space<vmem>>, %arg3: memref<1x1x152x4xbf16, #tpu.memory_space<vmem>>, %arg4: memref<1x1x152x4xbf16, #tpu.memory_space<vmem>>, %arg5: memref<27x4x128xbf16, #tpu.memory_space<vmem>>, %arg6: memref<1x128xf32, #tpu.memory_space<vmem>>, %arg7: memref<120x1xf32, #tpu.memory_space<vmem>>, %arg8: memref<1x1x120x128xbf16, #tpu.memory_space<vmem>>, %arg9: memref<1x1x1x128xf32, #tpu.memory_space<vmem>>, %arg10: memref<1x1x1x128xf32, #tpu.memory_space<vmem>>) attributes {dimension_semantics = [#tpu.dimension_semantics<parallel>, #tpu.dimension_semantics<parallel>], iteration_bounds = array<i64: 2, 10>, scalar_prefetch = 0 : i64, scratch_operands = 0 : i64, tpu.core_type = #tpu.core_type<tc>, window_params = [{transform_indices = @transform_0, window_bounds = array<i64: 1, 1, 152, 4>}, {transform_indices = @transform_1, window_bounds = array<i64: 1, 1, 152, 4>}, {transform_indices = @transform_2, window_bounds = array<i64: 1, 1, 152, 4>}, {pipeline_mode = #tpu.pipeline_mode<synchronous>, transform_indices = @transform_3, window_bounds = array<i64: 27, 4, 128>}, {pipeline_mode = #tpu.pipeline_mode<synchronous>, transform_indices = @transform_4, window_bounds = array<i64: 1, 128>}, {pipeline_mode = #tpu.pipeline_mode<synchronous>, transform_indices = @transform_5, window_bounds = array<i64: 120, 1>}, {transform_indices = @transform_6, window_bounds = array<i64: 1, 1, 120, 128>}, {transform_indices = @transform_7, window_bounds = array<i64: 1, 1, 1, 128>}, {transform_indices = @transform_8, window_bounds = array<i64: 1, 1, 1, 128>}]} {
    %c0 = arith.constant 0 : index
    %c0_0 = arith.constant 0 : index
    %c0_1 = arith.constant 0 : index
    %c0_2 = arith.constant 0 : index
    %0 = vector.load %arg2[%c0, %c0_0, %c0_1, %c0_2] : memref<1x1x152x4xbf16, #tpu.memory_space<vmem>>, vector<1x1x152x4xbf16>
    %1 = vector.shape_cast %0 : vector<1x1x152x4xbf16> to vector<152x4xbf16>
    %c0_3 = arith.constant 0 : index
    %c0_4 = arith.constant 0 : index
    %c0_5 = arith.constant 0 : index
    %c0_6 = arith.constant 0 : index
    %2 = vector.load %arg3[%c0_3, %c0_4, %c0_5, %c0_6] : memref<1x1x152x4xbf16, #tpu.memory_space<vmem>>, vector<1x1x152x4xbf16>
    %3 = vector.shape_cast %2 : vector<1x1x152x4xbf16> to vector<152x4xbf16>
    %c0_7 = arith.constant 0 : index
    %c0_8 = arith.constant 0 : index
    %c0_9 = arith.constant 0 : index
    %c0_10 = arith.constant 0 : index
    %4 = vector.load %arg4[%c0_7, %c0_8, %c0_9, %c0_10] : memref<1x1x152x4xbf16, #tpu.memory_space<vmem>>, vector<1x1x152x4xbf16>
    %5 = vector.shape_cast %4 : vector<1x1x152x4xbf16> to vector<152x4xbf16>
    %cst = arith.constant 0.000000e+00 : f32
    %6 = vector.broadcast %cst : f32 to vector<120x128xf32>
    %c0_11 = arith.constant 0 : index
    %c0_12 = arith.constant 0 : index
    %c0_13 = arith.constant 0 : index
    %7 = vector.load %arg5[%c0_11, %c0_12, %c0_13] : memref<27x4x128xbf16, #tpu.memory_space<vmem>>, vector<1x4x128xbf16>
    %8 = vector.shape_cast %7 : vector<1x4x128xbf16> to vector<4x128xbf16>
    %cst_14 = arith.constant dense<0.000000e+00> : vector<152x128xf32>
    %9 = tpu.matmul %1, %8, %cst_14 {dimension_numbers = #tpu.dot_dimension_numbers<[1], [0], [0], [1], [0, 0, 1, 1], [], []>} : vector<152x4xbf16>, vector<4x128xbf16>, vector<152x128xf32> -> vector<152x128xf32>
    %10 = vector.extract_strided_slice %9 {offsets = [0, 0], sizes = [120, 128], strides = [1, 1]} : vector<152x128xf32> to vector<120x128xf32>
    %11 = arith.addf %6, %10 : vector<120x128xf32>
    %c1 = arith.constant 1 : index
    %c0_15 = arith.constant 0 : index
    %c0_16 = arith.constant 0 : index
    %12 = vector.load %arg5[%c1, %c0_15, %c0_16] : memref<27x4x128xbf16, #tpu.memory_space<vmem>>, vector<1x4x128xbf16>
    %13 = vector.shape_cast %12 : vector<1x4x128xbf16> to vector<4x128xbf16>
    %cst_17 = arith.constant dense<0.000000e+00> : vector<152x128xf32>
    %14 = tpu.matmul %1, %13, %cst_17 {dimension_numbers = #tpu.dot_dimension_numbers<[1], [0], [0], [1], [0, 0, 1, 1], [], []>} : vector<152x4xbf16>, vector<4x128xbf16>, vector<152x128xf32> -> vector<152x128xf32>
    %15 = vector.extract_strided_slice %14 {offsets = [1, 0], sizes = [120, 128], strides = [1, 1]} : vector<152x128xf32> to vector<120x128xf32>
    %16 = arith.addf %11, %15 : vector<120x128xf32>
    %c2 = arith.constant 2 : index
    %c0_18 = arith.constant 0 : index
    %c0_19 = arith.constant 0 : index
    %17 = vector.load %arg5[%c2, %c0_18, %c0_19] : memref<27x4x128xbf16, #tpu.memory_space<vmem>>, vector<1x4x128xbf16>
    %18 = vector.shape_cast %17 : vector<1x4x128xbf16> to vector<4x128xbf16>
    %cst_20 = arith.constant dense<0.000000e+00> : vector<152x128xf32>
    %19 = tpu.matmul %1, %18, %cst_20 {dimension_numbers = #tpu.dot_dimension_numbers<[1], [0], [0], [1], [0, 0, 1, 1], [], []>} : vector<152x4xbf16>, vector<4x128xbf16>, vector<152x128xf32> -> vector<152x128xf32>
    %20 = vector.extract_strided_slice %19 {offsets = [2, 0], sizes = [120, 128], strides = [1, 1]} : vector<152x128xf32> to vector<120x128xf32>
    %21 = arith.addf %16, %20 : vector<120x128xf32>
    %c3 = arith.constant 3 : index
    %c0_21 = arith.constant 0 : index
    %c0_22 = arith.constant 0 : index
    %22 = vector.load %arg5[%c3, %c0_21, %c0_22] : memref<27x4x128xbf16, #tpu.memory_space<vmem>>, vector<1x4x128xbf16>
    %23 = vector.shape_cast %22 : vector<1x4x128xbf16> to vector<4x128xbf16>
    %cst_23 = arith.constant dense<0.000000e+00> : vector<152x128xf32>
    %24 = tpu.matmul %1, %23, %cst_23 {dimension_numbers = #tpu.dot_dimension_numbers<[1], [0], [0], [1], [0, 0, 1, 1], [], []>} : vector<152x4xbf16>, vector<4x128xbf16>, vector<152x128xf32> -> vector<152x128xf32>
    %25 = vector.extract_strided_slice %24 {offsets = [12, 0], sizes = [120, 128], strides = [1, 1]} : vector<152x128xf32> to vector<120x128xf32>
    %26 = arith.addf %21, %25 : vector<120x128xf32>
    %c4 = arith.constant 4 : index
    %c0_24 = arith.constant 0 : index
    %c0_25 = arith.constant 0 : index
    %27 = vector.load %arg5[%c4, %c0_24, %c0_25] : memref<27x4x128xbf16, #tpu.memory_space<vmem>>, vector<1x4x128xbf16>
    %28 = vector.shape_cast %27 : vector<1x4x128xbf16> to vector<4x128xbf16>
    %cst_26 = arith.constant dense<0.000000e+00> : vector<152x128xf32>
    %29 = tpu.matmul %1, %28, %cst_26 {dimension_numbers = #tpu.dot_dimension_numbers<[1], [0], [0], [1], [0, 0, 1, 1], [], []>} : vector<152x4xbf16>, vector<4x128xbf16>, vector<152x128xf32> -> vector<152x128xf32>
    %30 = vector.extract_strided_slice %29 {offsets = [13, 0], sizes = [120, 128], strides = [1, 1]} : vector<152x128xf32> to vector<120x128xf32>
    %31 = arith.addf %26, %30 : vector<120x128xf32>
    %c5 = arith.constant 5 : index
    %c0_27 = arith.constant 0 : index
    %c0_28 = arith.constant 0 : index
    %32 = vector.load %arg5[%c5, %c0_27, %c0_28] : memref<27x4x128xbf16, #tpu.memory_space<vmem>>, vector<1x4x128xbf16>
    %33 = vector.shape_cast %32 : vector<1x4x128xbf16> to vector<4x128xbf16>
    %cst_29 = arith.constant dense<0.000000e+00> : vector<152x128xf32>
    %34 = tpu.matmul %1, %33, %cst_29 {dimension_numbers = #tpu.dot_dimension_numbers<[1], [0], [0], [1], [0, 0, 1, 1], [], []>} : vector<152x4xbf16>, vector<4x128xbf16>, vector<152x128xf32> -> vector<152x128xf32>
    %35 = vector.extract_strided_slice %34 {offsets = [14, 0], sizes = [120, 128], strides = [1, 1]} : vector<152x128xf32> to vector<120x128xf32>
    %36 = arith.addf %31, %35 : vector<120x128xf32>
    %c6 = arith.constant 6 : index
    %c0_30 = arith.constant 0 : index
    %c0_31 = arith.constant 0 : index
    %37 = vector.load %arg5[%c6, %c0_30, %c0_31] : memref<27x4x128xbf16, #tpu.memory_space<vmem>>, vector<1x4x128xbf16>
    %38 = vector.shape_cast %37 : vector<1x4x128xbf16> to vector<4x128xbf16>
    %cst_32 = arith.constant dense<0.000000e+00> : vector<152x128xf32>
    %39 = tpu.matmul %1, %38, %cst_32 {dimension_numbers = #tpu.dot_dimension_numbers<[1], [0], [0], [1], [0, 0, 1, 1], [], []>} : vector<152x4xbf16>, vector<4x128xbf16>, vector<152x128xf32> -> vector<152x128xf32>
    %40 = vector.extract_strided_slice %39 {offsets = [24, 0], sizes = [120, 128], strides = [1, 1]} : vector<152x128xf32> to vector<120x128xf32>
    %41 = arith.addf %36, %40 : vector<120x128xf32>
    %c7 = arith.constant 7 : index
    %c0_33 = arith.constant 0 : index
    %c0_34 = arith.constant 0 : index
    %42 = vector.load %arg5[%c7, %c0_33, %c0_34] : memref<27x4x128xbf16, #tpu.memory_space<vmem>>, vector<1x4x128xbf16>
    %43 = vector.shape_cast %42 : vector<1x4x128xbf16> to vector<4x128xbf16>
    %cst_35 = arith.constant dense<0.000000e+00> : vector<152x128xf32>
    %44 = tpu.matmul %1, %43, %cst_35 {dimension_numbers = #tpu.dot_dimension_numbers<[1], [0], [0], [1], [0, 0, 1, 1], [], []>} : vector<152x4xbf16>, vector<4x128xbf16>, vector<152x128xf32> -> vector<152x128xf32>
    %45 = vector.extract_strided_slice %44 {offsets = [25, 0], sizes = [120, 128], strides = [1, 1]} : vector<152x128xf32> to vector<120x128xf32>
    %46 = arith.addf %41, %45 : vector<120x128xf32>
    %c8 = arith.constant 8 : index
    %c0_36 = arith.constant 0 : index
    %c0_37 = arith.constant 0 : index
    %47 = vector.load %arg5[%c8, %c0_36, %c0_37] : memref<27x4x128xbf16, #tpu.memory_space<vmem>>, vector<1x4x128xbf16>
    %48 = vector.shape_cast %47 : vector<1x4x128xbf16> to vector<4x128xbf16>
    %cst_38 = arith.constant dense<0.000000e+00> : vector<152x128xf32>
    %49 = tpu.matmul %1, %48, %cst_38 {dimension_numbers = #tpu.dot_dimension_numbers<[1], [0], [0], [1], [0, 0, 1, 1], [], []>} : vector<152x4xbf16>, vector<4x128xbf16>, vector<152x128xf32> -> vector<152x128xf32>
    %50 = vector.extract_strided_slice %49 {offsets = [26, 0], sizes = [120, 128], strides = [1, 1]} : vector<152x128xf32> to vector<120x128xf32>
    %51 = arith.addf %46, %50 : vector<120x128xf32>
    %c9 = arith.constant 9 : index
    %c0_39 = arith.constant 0 : index
    %c0_40 = arith.constant 0 : index
    %52 = vector.load %arg5[%c9, %c0_39, %c0_40] : memref<27x4x128xbf16, #tpu.memory_space<vmem>>, vector<1x4x128xbf16>
    %53 = vector.shape_cast %52 : vector<1x4x128xbf16> to vector<4x128xbf16>
    %cst_41 = arith.constant dense<0.000000e+00> : vector<152x128xf32>
    %54 = tpu.matmul %3, %53, %cst_41 {dimension_numbers = #tpu.dot_dimension_numbers<[1], [0], [0], [1], [0, 0, 1, 1], [], []>} : vector<152x4xbf16>, vector<4x128xbf16>, vector<152x128xf32> -> vector<152x128xf32>
    %55 = vector.extract_strided_slice %54 {offsets = [0, 0], sizes = [120, 128], strides = [1, 1]} : vector<152x128xf32> to vector<120x128xf32>
    %56 = arith.addf %51, %55 : vector<120x128xf32>
    %c10 = arith.constant 10 : index
    %c0_42 = arith.constant 0 : index
    %c0_43 = arith.constant 0 : index
    %57 = vector.load %arg5[%c10, %c0_42, %c0_43] : memref<27x4x128xbf16, #tpu.memory_space<vmem>>, vector<1x4x128xbf16>
    %58 = vector.shape_cast %57 : vector<1x4x128xbf16> to vector<4x128xbf16>
    %cst_44 = arith.constant dense<0.000000e+00> : vector<152x128xf32>
    %59 = tpu.matmul %3, %58, %cst_44 {dimension_numbers = #tpu.dot_dimension_numbers<[1], [0], [0], [1], [0, 0, 1, 1], [], []>} : vector<152x4xbf16>, vector<4x128xbf16>, vector<152x128xf32> -> vector<152x128xf32>
    %60 = vector.extract_strided_slice %59 {offsets = [1, 0], sizes = [120, 128], strides = [1, 1]} : vector<152x128xf32> to vector<120x128xf32>
    %61 = arith.addf %56, %60 : vector<120x128xf32>
    %c11 = arith.constant 11 : index
    %c0_45 = arith.constant 0 : index
    %c0_46 = arith.constant 0 : index
    %62 = vector.load %arg5[%c11, %c0_45, %c0_46] : memref<27x4x128xbf16, #tpu.memory_space<vmem>>, vector<1x4x128xbf16>
    %63 = vector.shape_cast %62 : vector<1x4x128xbf16> to vector<4x128xbf16>
    %cst_47 = arith.constant dense<0.000000e+00> : vector<152x128xf32>
    %64 = tpu.matmul %3, %63, %cst_47 {dimension_numbers = #tpu.dot_dimension_numbers<[1], [0], [0], [1], [0, 0, 1, 1], [], []>} : vector<152x4xbf16>, vector<4x128xbf16>, vector<152x128xf32> -> vector<152x128xf32>
    %65 = vector.extract_strided_slice %64 {offsets = [2, 0], sizes = [120, 128], strides = [1, 1]} : vector<152x128xf32> to vector<120x128xf32>
    %66 = arith.addf %61, %65 : vector<120x128xf32>
    %c12 = arith.constant 12 : index
    %c0_48 = arith.constant 0 : index
    %c0_49 = arith.constant 0 : index
    %67 = vector.load %arg5[%c12, %c0_48, %c0_49] : memref<27x4x128xbf16, #tpu.memory_space<vmem>>, vector<1x4x128xbf16>
    %68 = vector.shape_cast %67 : vector<1x4x128xbf16> to vector<4x128xbf16>
    %cst_50 = arith.constant dense<0.000000e+00> : vector<152x128xf32>
    %69 = tpu.matmul %3, %68, %cst_50 {dimension_numbers = #tpu.dot_dimension_numbers<[1], [0], [0], [1], [0, 0, 1, 1], [], []>} : vector<152x4xbf16>, vector<4x128xbf16>, vector<152x128xf32> -> vector<152x128xf32>
    %70 = vector.extract_strided_slice %69 {offsets = [12, 0], sizes = [120, 128], strides = [1, 1]} : vector<152x128xf32> to vector<120x128xf32>
    %71 = arith.addf %66, %70 : vector<120x128xf32>
    %c13 = arith.constant 13 : index
    %c0_51 = arith.constant 0 : index
    %c0_52 = arith.constant 0 : index
    %72 = vector.load %arg5[%c13, %c0_51, %c0_52] : memref<27x4x128xbf16, #tpu.memory_space<vmem>>, vector<1x4x128xbf16>
    %73 = vector.shape_cast %72 : vector<1x4x128xbf16> to vector<4x128xbf16>
    %cst_53 = arith.constant dense<0.000000e+00> : vector<152x128xf32>
    %74 = tpu.matmul %3, %73, %cst_53 {dimension_numbers = #tpu.dot_dimension_numbers<[1], [0], [0], [1], [0, 0, 1, 1], [], []>} : vector<152x4xbf16>, vector<4x128xbf16>, vector<152x128xf32> -> vector<152x128xf32>
    %75 = vector.extract_strided_slice %74 {offsets = [13, 0], sizes = [120, 128], strides = [1, 1]} : vector<152x128xf32> to vector<120x128xf32>
    %76 = arith.addf %71, %75 : vector<120x128xf32>
    %c14 = arith.constant 14 : index
    %c0_54 = arith.constant 0 : index
    %c0_55 = arith.constant 0 : index
    %77 = vector.load %arg5[%c14, %c0_54, %c0_55] : memref<27x4x128xbf16, #tpu.memory_space<vmem>>, vector<1x4x128xbf16>
    %78 = vector.shape_cast %77 : vector<1x4x128xbf16> to vector<4x128xbf16>
    %cst_56 = arith.constant dense<0.000000e+00> : vector<152x128xf32>
    %79 = tpu.matmul %3, %78, %cst_56 {dimension_numbers = #tpu.dot_dimension_numbers<[1], [0], [0], [1], [0, 0, 1, 1], [], []>} : vector<152x4xbf16>, vector<4x128xbf16>, vector<152x128xf32> -> vector<152x128xf32>
    %80 = vector.extract_strided_slice %79 {offsets = [14, 0], sizes = [120, 128], strides = [1, 1]} : vector<152x128xf32> to vector<120x128xf32>
    %81 = arith.addf %76, %80 : vector<120x128xf32>
    %c15 = arith.constant 15 : index
    %c0_57 = arith.constant 0 : index
    %c0_58 = arith.constant 0 : index
    %82 = vector.load %arg5[%c15, %c0_57, %c0_58] : memref<27x4x128xbf16, #tpu.memory_space<vmem>>, vector<1x4x128xbf16>
    %83 = vector.shape_cast %82 : vector<1x4x128xbf16> to vector<4x128xbf16>
    %cst_59 = arith.constant dense<0.000000e+00> : vector<152x128xf32>
    %84 = tpu.matmul %3, %83, %cst_59 {dimension_numbers = #tpu.dot_dimension_numbers<[1], [0], [0], [1], [0, 0, 1, 1], [], []>} : vector<152x4xbf16>, vector<4x128xbf16>, vector<152x128xf32> -> vector<152x128xf32>
    %85 = vector.extract_strided_slice %84 {offsets = [24, 0], sizes = [120, 128], strides = [1, 1]} : vector<152x128xf32> to vector<120x128xf32>
    %86 = arith.addf %81, %85 : vector<120x128xf32>
    %c16 = arith.constant 16 : index
    %c0_60 = arith.constant 0 : index
    %c0_61 = arith.constant 0 : index
    %87 = vector.load %arg5[%c16, %c0_60, %c0_61] : memref<27x4x128xbf16, #tpu.memory_space<vmem>>, vector<1x4x128xbf16>
    %88 = vector.shape_cast %87 : vector<1x4x128xbf16> to vector<4x128xbf16>
    %cst_62 = arith.constant dense<0.000000e+00> : vector<152x128xf32>
    %89 = tpu.matmul %3, %88, %cst_62 {dimension_numbers = #tpu.dot_dimension_numbers<[1], [0], [0], [1], [0, 0, 1, 1], [], []>} : vector<152x4xbf16>, vector<4x128xbf16>, vector<152x128xf32> -> vector<152x128xf32>
    %90 = vector.extract_strided_slice %89 {offsets = [25, 0], sizes = [120, 128], strides = [1, 1]} : vector<152x128xf32> to vector<120x128xf32>
    %91 = arith.addf %86, %90 : vector<120x128xf32>
    %c17 = arith.constant 17 : index
    %c0_63 = arith.constant 0 : index
    %c0_64 = arith.constant 0 : index
    %92 = vector.load %arg5[%c17, %c0_63, %c0_64] : memref<27x4x128xbf16, #tpu.memory_space<vmem>>, vector<1x4x128xbf16>
    %93 = vector.shape_cast %92 : vector<1x4x128xbf16> to vector<4x128xbf16>
    %cst_65 = arith.constant dense<0.000000e+00> : vector<152x128xf32>
    %94 = tpu.matmul %3, %93, %cst_65 {dimension_numbers = #tpu.dot_dimension_numbers<[1], [0], [0], [1], [0, 0, 1, 1], [], []>} : vector<152x4xbf16>, vector<4x128xbf16>, vector<152x128xf32> -> vector<152x128xf32>
    %95 = vector.extract_strided_slice %94 {offsets = [26, 0], sizes = [120, 128], strides = [1, 1]} : vector<152x128xf32> to vector<120x128xf32>
    %96 = arith.addf %91, %95 : vector<120x128xf32>
    %c18 = arith.constant 18 : index
    %c0_66 = arith.constant 0 : index
    %c0_67 = arith.constant 0 : index
    %97 = vector.load %arg5[%c18, %c0_66, %c0_67] : memref<27x4x128xbf16, #tpu.memory_space<vmem>>, vector<1x4x128xbf16>
    %98 = vector.shape_cast %97 : vector<1x4x128xbf16> to vector<4x128xbf16>
    %cst_68 = arith.constant dense<0.000000e+00> : vector<152x128xf32>
    %99 = tpu.matmul %5, %98, %cst_68 {dimension_numbers = #tpu.dot_dimension_numbers<[1], [0], [0], [1], [0, 0, 1, 1], [], []>} : vector<152x4xbf16>, vector<4x128xbf16>, vector<152x128xf32> -> vector<152x128xf32>
    %100 = vector.extract_strided_slice %99 {offsets = [0, 0], sizes = [120, 128], strides = [1, 1]} : vector<152x128xf32> to vector<120x128xf32>
    %101 = arith.addf %96, %100 : vector<120x128xf32>
    %c19 = arith.constant 19 : index
    %c0_69 = arith.constant 0 : index
    %c0_70 = arith.constant 0 : index
    %102 = vector.load %arg5[%c19, %c0_69, %c0_70] : memref<27x4x128xbf16, #tpu.memory_space<vmem>>, vector<1x4x128xbf16>
    %103 = vector.shape_cast %102 : vector<1x4x128xbf16> to vector<4x128xbf16>
    %cst_71 = arith.constant dense<0.000000e+00> : vector<152x128xf32>
    %104 = tpu.matmul %5, %103, %cst_71 {dimension_numbers = #tpu.dot_dimension_numbers<[1], [0], [0], [1], [0, 0, 1, 1], [], []>} : vector<152x4xbf16>, vector<4x128xbf16>, vector<152x128xf32> -> vector<152x128xf32>
    %105 = vector.extract_strided_slice %104 {offsets = [1, 0], sizes = [120, 128], strides = [1, 1]} : vector<152x128xf32> to vector<120x128xf32>
    %106 = arith.addf %101, %105 : vector<120x128xf32>
    %c20 = arith.constant 20 : index
    %c0_72 = arith.constant 0 : index
    %c0_73 = arith.constant 0 : index
    %107 = vector.load %arg5[%c20, %c0_72, %c0_73] : memref<27x4x128xbf16, #tpu.memory_space<vmem>>, vector<1x4x128xbf16>
    %108 = vector.shape_cast %107 : vector<1x4x128xbf16> to vector<4x128xbf16>
    %cst_74 = arith.constant dense<0.000000e+00> : vector<152x128xf32>
    %109 = tpu.matmul %5, %108, %cst_74 {dimension_numbers = #tpu.dot_dimension_numbers<[1], [0], [0], [1], [0, 0, 1, 1], [], []>} : vector<152x4xbf16>, vector<4x128xbf16>, vector<152x128xf32> -> vector<152x128xf32>
    %110 = vector.extract_strided_slice %109 {offsets = [2, 0], sizes = [120, 128], strides = [1, 1]} : vector<152x128xf32> to vector<120x128xf32>
    %111 = arith.addf %106, %110 : vector<120x128xf32>
    %c21 = arith.constant 21 : index
    %c0_75 = arith.constant 0 : index
    %c0_76 = arith.constant 0 : index
    %112 = vector.load %arg5[%c21, %c0_75, %c0_76] : memref<27x4x128xbf16, #tpu.memory_space<vmem>>, vector<1x4x128xbf16>
    %113 = vector.shape_cast %112 : vector<1x4x128xbf16> to vector<4x128xbf16>
    %cst_77 = arith.constant dense<0.000000e+00> : vector<152x128xf32>
    %114 = tpu.matmul %5, %113, %cst_77 {dimension_numbers = #tpu.dot_dimension_numbers<[1], [0], [0], [1], [0, 0, 1, 1], [], []>} : vector<152x4xbf16>, vector<4x128xbf16>, vector<152x128xf32> -> vector<152x128xf32>
    %115 = vector.extract_strided_slice %114 {offsets = [12, 0], sizes = [120, 128], strides = [1, 1]} : vector<152x128xf32> to vector<120x128xf32>
    %116 = arith.addf %111, %115 : vector<120x128xf32>
    %c22 = arith.constant 22 : index
    %c0_78 = arith.constant 0 : index
    %c0_79 = arith.constant 0 : index
    %117 = vector.load %arg5[%c22, %c0_78, %c0_79] : memref<27x4x128xbf16, #tpu.memory_space<vmem>>, vector<1x4x128xbf16>
    %118 = vector.shape_cast %117 : vector<1x4x128xbf16> to vector<4x128xbf16>
    %cst_80 = arith.constant dense<0.000000e+00> : vector<152x128xf32>
    %119 = tpu.matmul %5, %118, %cst_80 {dimension_numbers = #tpu.dot_dimension_numbers<[1], [0], [0], [1], [0, 0, 1, 1], [], []>} : vector<152x4xbf16>, vector<4x128xbf16>, vector<152x128xf32> -> vector<152x128xf32>
    %120 = vector.extract_strided_slice %119 {offsets = [13, 0], sizes = [120, 128], strides = [1, 1]} : vector<152x128xf32> to vector<120x128xf32>
    %121 = arith.addf %116, %120 : vector<120x128xf32>
    %c23 = arith.constant 23 : index
    %c0_81 = arith.constant 0 : index
    %c0_82 = arith.constant 0 : index
    %122 = vector.load %arg5[%c23, %c0_81, %c0_82] : memref<27x4x128xbf16, #tpu.memory_space<vmem>>, vector<1x4x128xbf16>
    %123 = vector.shape_cast %122 : vector<1x4x128xbf16> to vector<4x128xbf16>
    %cst_83 = arith.constant dense<0.000000e+00> : vector<152x128xf32>
    %124 = tpu.matmul %5, %123, %cst_83 {dimension_numbers = #tpu.dot_dimension_numbers<[1], [0], [0], [1], [0, 0, 1, 1], [], []>} : vector<152x4xbf16>, vector<4x128xbf16>, vector<152x128xf32> -> vector<152x128xf32>
    %125 = vector.extract_strided_slice %124 {offsets = [14, 0], sizes = [120, 128], strides = [1, 1]} : vector<152x128xf32> to vector<120x128xf32>
    %126 = arith.addf %121, %125 : vector<120x128xf32>
    %c24 = arith.constant 24 : index
    %c0_84 = arith.constant 0 : index
    %c0_85 = arith.constant 0 : index
    %127 = vector.load %arg5[%c24, %c0_84, %c0_85] : memref<27x4x128xbf16, #tpu.memory_space<vmem>>, vector<1x4x128xbf16>
    %128 = vector.shape_cast %127 : vector<1x4x128xbf16> to vector<4x128xbf16>
    %cst_86 = arith.constant dense<0.000000e+00> : vector<152x128xf32>
    %129 = tpu.matmul %5, %128, %cst_86 {dimension_numbers = #tpu.dot_dimension_numbers<[1], [0], [0], [1], [0, 0, 1, 1], [], []>} : vector<152x4xbf16>, vector<4x128xbf16>, vector<152x128xf32> -> vector<152x128xf32>
    %130 = vector.extract_strided_slice %129 {offsets = [24, 0], sizes = [120, 128], strides = [1, 1]} : vector<152x128xf32> to vector<120x128xf32>
    %131 = arith.addf %126, %130 : vector<120x128xf32>
    %c25 = arith.constant 25 : index
    %c0_87 = arith.constant 0 : index
    %c0_88 = arith.constant 0 : index
    %132 = vector.load %arg5[%c25, %c0_87, %c0_88] : memref<27x4x128xbf16, #tpu.memory_space<vmem>>, vector<1x4x128xbf16>
    %133 = vector.shape_cast %132 : vector<1x4x128xbf16> to vector<4x128xbf16>
    %cst_89 = arith.constant dense<0.000000e+00> : vector<152x128xf32>
    %134 = tpu.matmul %5, %133, %cst_89 {dimension_numbers = #tpu.dot_dimension_numbers<[1], [0], [0], [1], [0, 0, 1, 1], [], []>} : vector<152x4xbf16>, vector<4x128xbf16>, vector<152x128xf32> -> vector<152x128xf32>
    %135 = vector.extract_strided_slice %134 {offsets = [25, 0], sizes = [120, 128], strides = [1, 1]} : vector<152x128xf32> to vector<120x128xf32>
    %136 = arith.addf %131, %135 : vector<120x128xf32>
    %c26 = arith.constant 26 : index
    %c0_90 = arith.constant 0 : index
    %c0_91 = arith.constant 0 : index
    %137 = vector.load %arg5[%c26, %c0_90, %c0_91] : memref<27x4x128xbf16, #tpu.memory_space<vmem>>, vector<1x4x128xbf16>
    %138 = vector.shape_cast %137 : vector<1x4x128xbf16> to vector<4x128xbf16>
    %cst_92 = arith.constant dense<0.000000e+00> : vector<152x128xf32>
    %139 = tpu.matmul %5, %138, %cst_92 {dimension_numbers = #tpu.dot_dimension_numbers<[1], [0], [0], [1], [0, 0, 1, 1], [], []>} : vector<152x4xbf16>, vector<4x128xbf16>, vector<152x128xf32> -> vector<152x128xf32>
    %140 = vector.extract_strided_slice %139 {offsets = [26, 0], sizes = [120, 128], strides = [1, 1]} : vector<152x128xf32> to vector<120x128xf32>
    %141 = arith.addf %136, %140 : vector<120x128xf32>
    %c0_93 = arith.constant 0 : index
    %c0_94 = arith.constant 0 : index
    %142 = vector.load %arg6[%c0_93, %c0_94] : memref<1x128xf32, #tpu.memory_space<vmem>>, vector<1x128xf32>
    %143 = vector.broadcast %142 : vector<1x128xf32> to vector<120x128xf32>
    %144 = arith.addf %141, %143 : vector<120x128xf32>
    %cst_95 = arith.constant 0.000000e+00 : f32
    %145 = vector.broadcast %cst_95 : f32 to vector<120x128xf32>
    %146 = arith.maximumf %144, %145 : vector<120x128xf32>
    %147 = arith.truncf %146 : vector<120x128xf32> to vector<120x128xbf16>
    %c0_96 = arith.constant 0 : index
    %c0_97 = arith.constant 0 : index
    %c0_98 = arith.constant 0 : index
    %c0_99 = arith.constant 0 : index
    %148 = vector.load %arg8[%c0_96, %c0_97, %c0_98, %c0_99] : memref<1x1x120x128xbf16, #tpu.memory_space<vmem>>, vector<1x1x120x128xbf16>
    %149 = vector.shape_cast %148 : vector<1x1x120x128xbf16> to vector<120x128xbf16>
    %150 = vector.shape_cast %147 : vector<120x128xbf16> to vector<1x1x120x128xbf16>
    tpu.vector_store %arg8[%c0_96, %c0_97, %c0_98, %c0_99], %150 {strides = array<i32>} : memref<1x1x120x128xbf16, #tpu.memory_space<vmem>>, vector<1x1x120x128xbf16>,
    %c0_100 = arith.constant 0 : index
    %c0_101 = arith.constant 0 : index
    %151 = vector.load %arg7[%c0_100, %c0_101] : memref<120x1xf32, #tpu.memory_space<vmem>>, vector<120x1xf32>
    %152 = vector.broadcast %151 : vector<120x1xf32> to vector<120x128xf32>
    %153 = arith.mulf %146, %152 : vector<120x128xf32>
    %cst_102 = arith.constant dense<0.000000e+00> : vector<128xf32>
    %154 = vector.multi_reduction <add>, %153, %cst_102 [0] : vector<120x128xf32> to vector<128xf32>
    %155 = vector.shape_cast %154 : vector<128xf32> to vector<1x128xf32>
    %c0_103 = arith.constant 0 : index
    %c0_104 = arith.constant 0 : index
    %c0_105 = arith.constant 0 : index
    %c0_106 = arith.constant 0 : index
    %156 = vector.load %arg9[%c0_103, %c0_104, %c0_105, %c0_106] : memref<1x1x1x128xf32, #tpu.memory_space<vmem>>, vector<1x1x1x128xf32>
    %157 = vector.shape_cast %156 : vector<1x1x1x128xf32> to vector<1x128xf32>
    %158 = vector.shape_cast %155 : vector<1x128xf32> to vector<1x1x1x128xf32>
    tpu.vector_store %arg9[%c0_103, %c0_104, %c0_105, %c0_106], %158 {strides = array<i32>} : memref<1x1x1x128xf32, #tpu.memory_space<vmem>>, vector<1x1x1x128xf32>,
    %159 = arith.mulf %153, %153 : vector<120x128xf32>
    %cst_107 = arith.constant dense<0.000000e+00> : vector<128xf32>
    %160 = vector.multi_reduction <add>, %159, %cst_107 [0] : vector<120x128xf32> to vector<128xf32>
    %161 = vector.shape_cast %160 : vector<128xf32> to vector<1x128xf32>
    %c0_108 = arith.constant 0 : index
    %c0_109 = arith.constant 0 : index
    %c0_110 = arith.constant 0 : index
    %c0_111 = arith.constant 0 : index
    %162 = vector.load %arg10[%c0_108, %c0_109, %c0_110, %c0_111] : memref<1x1x1x128xf32, #tpu.memory_space<vmem>>, vector<1x1x1x128xf32>
    %163 = vector.shape_cast %162 : vector<1x1x1x128xf32> to vector<1x128xf32>
    %164 = vector.shape_cast %161 : vector<1x128xf32> to vector<1x1x1x128xf32>
    tpu.vector_store %arg10[%c0_108, %c0_109, %c0_110, %c0_111], %164 {strides = array<i32>} : memref<1x1x1x128xf32, #tpu.memory_space<vmem>>, vector<1x1x1x128xf32>,
    return
  }
  func.func @transform_0(%arg0: i32, %arg1: i32) -> (i32, i32, i32, i32) {
    %c0_i32 = arith.constant 0 : i32
    %0 = arith.addi %arg1, %c0_i32 : i32
    %c0_i32_0 = arith.constant 0 : i32
    %c0_i32_1 = arith.constant 0 : i32
    %c0_i32_2 = arith.constant 0 : i32
    return %arg0, %0, %c0_i32_0, %c0_i32_1 : i32, i32, i32, i32
  }
  func.func @transform_1(%arg0: i32, %arg1: i32) -> (i32, i32, i32, i32) {
    %c1_i32 = arith.constant 1 : i32
    %0 = arith.addi %arg1, %c1_i32 : i32
    %c0_i32 = arith.constant 0 : i32
    %c0_i32_0 = arith.constant 0 : i32
    %c0_i32_1 = arith.constant 0 : i32
    return %arg0, %0, %c0_i32, %c0_i32_0 : i32, i32, i32, i32
  }
  func.func @transform_2(%arg0: i32, %arg1: i32) -> (i32, i32, i32, i32) {
    %c2_i32 = arith.constant 2 : i32
    %0 = arith.addi %arg1, %c2_i32 : i32
    %c0_i32 = arith.constant 0 : i32
    %c0_i32_0 = arith.constant 0 : i32
    %c0_i32_1 = arith.constant 0 : i32
    return %arg0, %0, %c0_i32, %c0_i32_0 : i32, i32, i32, i32
  }
  func.func @transform_3(%arg0: i32, %arg1: i32) -> (i32, i32, i32) {
    %c0_i32 = arith.constant 0 : i32
    %c0_i32_0 = arith.constant 0 : i32
    %c0_i32_1 = arith.constant 0 : i32
    %c0_i32_2 = arith.constant 0 : i32
    return %c0_i32, %c0_i32_0, %c0_i32_1 : i32, i32, i32
  }
  func.func @transform_4(%arg0: i32, %arg1: i32) -> (i32, i32) {
    %c0_i32 = arith.constant 0 : i32
    %c0_i32_0 = arith.constant 0 : i32
    %c0_i32_1 = arith.constant 0 : i32
    return %c0_i32, %c0_i32_0 : i32, i32
  }
  func.func @transform_5(%arg0: i32, %arg1: i32) -> (i32, i32) {
    %c0_i32 = arith.constant 0 : i32
    %c0_i32_0 = arith.constant 0 : i32
    %c0_i32_1 = arith.constant 0 : i32
    return %c0_i32, %c0_i32_0 : i32, i32
  }
  func.func @transform_6(%arg0: i32, %arg1: i32) -> (i32, i32, i32, i32) {
    %c0_i32 = arith.constant 0 : i32
    %c0_i32_0 = arith.constant 0 : i32
    %c0_i32_1 = arith.constant 0 : i32
    return %arg0, %arg1, %c0_i32, %c0_i32_0 : i32, i32, i32, i32
  }
  func.func @transform_7(%arg0: i32, %arg1: i32) -> (i32, i32, i32, i32) {
    %c0_i32 = arith.constant 0 : i32
    %c0_i32_0 = arith.constant 0 : i32
    %c0_i32_1 = arith.constant 0 : i32
    return %arg0, %arg1, %c0_i32, %c0_i32_0 : i32, i32, i32, i32
  }
  func.func @transform_8(%arg0: i32, %arg1: i32) -> (i32, i32, i32, i32) {
    %c0_i32 = arith.constant 0 : i32
    %c0_i32_0 = arith.constant 0 : i32
    %c0_i32_1 = arith.constant 0 : i32
    return %arg0, %arg1, %c0_i32, %c0_i32_0 : i32, i32, i32, i32
  }
}

module attributes {stable_mosaic.version = 11 : i64} {
  func.func @_conv_bias_relu_stats_kernel(%arg0: i32, %arg1: i32, %arg2: memref<1x1x152x8xbf16, #tpu.memory_space<vmem>>, %arg3: memref<1x1x152x8xbf16, #tpu.memory_space<vmem>>, %arg4: memref<1x1x152x8xbf16, #tpu.memory_space<vmem>>, %arg5: memref<27x8x128xbf16, #tpu.memory_space<vmem>>, %arg6: memref<1x128xf32, #tpu.memory_space<vmem>>, %arg7: memref<120x1xf32, #tpu.memory_space<vmem>>, %arg8: memref<1x1x120x128xbf16, #tpu.memory_space<vmem>>, %arg9: memref<1x1x1x128xf32, #tpu.memory_space<vmem>>, %arg10: memref<1x1x1x128xf32, #tpu.memory_space<vmem>>) attributes {dimension_semantics = [#tpu.dimension_semantics<parallel>, #tpu.dimension_semantics<parallel>], iteration_bounds = array<i64: 2, 10>, scalar_prefetch = 0 : i64, scratch_operands = 0 : i64, tpu.core_type = #tpu.core_type<tc>, window_params = [{transform_indices = @transform_0, window_bounds = array<i64: 1, 1, 152, 8>}, {transform_indices = @transform_1, window_bounds = array<i64: 1, 1, 152, 8>}, {transform_indices = @transform_2, window_bounds = array<i64: 1, 1, 152, 8>}, {pipeline_mode = #tpu.pipeline_mode<synchronous>, transform_indices = @transform_3, window_bounds = array<i64: 27, 8, 128>}, {pipeline_mode = #tpu.pipeline_mode<synchronous>, transform_indices = @transform_4, window_bounds = array<i64: 1, 128>}, {pipeline_mode = #tpu.pipeline_mode<synchronous>, transform_indices = @transform_5, window_bounds = array<i64: 120, 1>}, {transform_indices = @transform_6, window_bounds = array<i64: 1, 1, 120, 128>}, {transform_indices = @transform_7, window_bounds = array<i64: 1, 1, 1, 128>}, {transform_indices = @transform_8, window_bounds = array<i64: 1, 1, 1, 128>}]} {
    %c0 = arith.constant 0 : index
    %c0_0 = arith.constant 0 : index
    %c0_1 = arith.constant 0 : index
    %c0_2 = arith.constant 0 : index
    %0 = vector.load %arg2[%c0, %c0_0, %c0_1, %c0_2] : memref<1x1x152x8xbf16, #tpu.memory_space<vmem>>, vector<1x1x152x8xbf16>
    %1 = vector.shape_cast %0 : vector<1x1x152x8xbf16> to vector<152x8xbf16>
    %c0_3 = arith.constant 0 : index
    %c0_4 = arith.constant 0 : index
    %c0_5 = arith.constant 0 : index
    %c0_6 = arith.constant 0 : index
    %2 = vector.load %arg3[%c0_3, %c0_4, %c0_5, %c0_6] : memref<1x1x152x8xbf16, #tpu.memory_space<vmem>>, vector<1x1x152x8xbf16>
    %3 = vector.shape_cast %2 : vector<1x1x152x8xbf16> to vector<152x8xbf16>
    %c0_7 = arith.constant 0 : index
    %c0_8 = arith.constant 0 : index
    %c0_9 = arith.constant 0 : index
    %c0_10 = arith.constant 0 : index
    %4 = vector.load %arg4[%c0_7, %c0_8, %c0_9, %c0_10] : memref<1x1x152x8xbf16, #tpu.memory_space<vmem>>, vector<1x1x152x8xbf16>
    %5 = vector.shape_cast %4 : vector<1x1x152x8xbf16> to vector<152x8xbf16>
    %cst = arith.constant 0.000000e+00 : f32
    %6 = vector.broadcast %cst : f32 to vector<120x128xf32>
    %c0_11 = arith.constant 0 : index
    %c0_12 = arith.constant 0 : index
    %c0_13 = arith.constant 0 : index
    %7 = vector.load %arg5[%c0_11, %c0_12, %c0_13] : memref<27x8x128xbf16, #tpu.memory_space<vmem>>, vector<1x8x128xbf16>
    %8 = vector.shape_cast %7 : vector<1x8x128xbf16> to vector<8x128xbf16>
    %cst_14 = arith.constant dense<0.000000e+00> : vector<152x128xf32>
    %9 = tpu.matmul %1, %8, %cst_14 {dimension_numbers = #tpu.dot_dimension_numbers<[1], [0], [0], [1], [0, 0, 1, 1], [], []>} : vector<152x8xbf16>, vector<8x128xbf16>, vector<152x128xf32> -> vector<152x128xf32>
    %10 = vector.extract_strided_slice %9 {offsets = [0, 0], sizes = [120, 128], strides = [1, 1]} : vector<152x128xf32> to vector<120x128xf32>
    %11 = arith.addf %6, %10 : vector<120x128xf32>
    %c1 = arith.constant 1 : index
    %c0_15 = arith.constant 0 : index
    %c0_16 = arith.constant 0 : index
    %12 = vector.load %arg5[%c1, %c0_15, %c0_16] : memref<27x8x128xbf16, #tpu.memory_space<vmem>>, vector<1x8x128xbf16>
    %13 = vector.shape_cast %12 : vector<1x8x128xbf16> to vector<8x128xbf16>
    %cst_17 = arith.constant dense<0.000000e+00> : vector<152x128xf32>
    %14 = tpu.matmul %1, %13, %cst_17 {dimension_numbers = #tpu.dot_dimension_numbers<[1], [0], [0], [1], [0, 0, 1, 1], [], []>} : vector<152x8xbf16>, vector<8x128xbf16>, vector<152x128xf32> -> vector<152x128xf32>
    %15 = vector.extract_strided_slice %14 {offsets = [1, 0], sizes = [120, 128], strides = [1, 1]} : vector<152x128xf32> to vector<120x128xf32>
    %16 = arith.addf %11, %15 : vector<120x128xf32>
    %c2 = arith.constant 2 : index
    %c0_18 = arith.constant 0 : index
    %c0_19 = arith.constant 0 : index
    %17 = vector.load %arg5[%c2, %c0_18, %c0_19] : memref<27x8x128xbf16, #tpu.memory_space<vmem>>, vector<1x8x128xbf16>
    %18 = vector.shape_cast %17 : vector<1x8x128xbf16> to vector<8x128xbf16>
    %cst_20 = arith.constant dense<0.000000e+00> : vector<152x128xf32>
    %19 = tpu.matmul %1, %18, %cst_20 {dimension_numbers = #tpu.dot_dimension_numbers<[1], [0], [0], [1], [0, 0, 1, 1], [], []>} : vector<152x8xbf16>, vector<8x128xbf16>, vector<152x128xf32> -> vector<152x128xf32>
    %20 = vector.extract_strided_slice %19 {offsets = [2, 0], sizes = [120, 128], strides = [1, 1]} : vector<152x128xf32> to vector<120x128xf32>
    %21 = arith.addf %16, %20 : vector<120x128xf32>
    %c3 = arith.constant 3 : index
    %c0_21 = arith.constant 0 : index
    %c0_22 = arith.constant 0 : index
    %22 = vector.load %arg5[%c3, %c0_21, %c0_22] : memref<27x8x128xbf16, #tpu.memory_space<vmem>>, vector<1x8x128xbf16>
    %23 = vector.shape_cast %22 : vector<1x8x128xbf16> to vector<8x128xbf16>
    %cst_23 = arith.constant dense<0.000000e+00> : vector<152x128xf32>
    %24 = tpu.matmul %1, %23, %cst_23 {dimension_numbers = #tpu.dot_dimension_numbers<[1], [0], [0], [1], [0, 0, 1, 1], [], []>} : vector<152x8xbf16>, vector<8x128xbf16>, vector<152x128xf32> -> vector<152x128xf32>
    %25 = vector.extract_strided_slice %24 {offsets = [12, 0], sizes = [120, 128], strides = [1, 1]} : vector<152x128xf32> to vector<120x128xf32>
    %26 = arith.addf %21, %25 : vector<120x128xf32>
    %c4 = arith.constant 4 : index
    %c0_24 = arith.constant 0 : index
    %c0_25 = arith.constant 0 : index
    %27 = vector.load %arg5[%c4, %c0_24, %c0_25] : memref<27x8x128xbf16, #tpu.memory_space<vmem>>, vector<1x8x128xbf16>
    %28 = vector.shape_cast %27 : vector<1x8x128xbf16> to vector<8x128xbf16>
    %cst_26 = arith.constant dense<0.000000e+00> : vector<152x128xf32>
    %29 = tpu.matmul %1, %28, %cst_26 {dimension_numbers = #tpu.dot_dimension_numbers<[1], [0], [0], [1], [0, 0, 1, 1], [], []>} : vector<152x8xbf16>, vector<8x128xbf16>, vector<152x128xf32> -> vector<152x128xf32>
    %30 = vector.extract_strided_slice %29 {offsets = [13, 0], sizes = [120, 128], strides = [1, 1]} : vector<152x128xf32> to vector<120x128xf32>
    %31 = arith.addf %26, %30 : vector<120x128xf32>
    %c5 = arith.constant 5 : index
    %c0_27 = arith.constant 0 : index
    %c0_28 = arith.constant 0 : index
    %32 = vector.load %arg5[%c5, %c0_27, %c0_28] : memref<27x8x128xbf16, #tpu.memory_space<vmem>>, vector<1x8x128xbf16>
    %33 = vector.shape_cast %32 : vector<1x8x128xbf16> to vector<8x128xbf16>
    %cst_29 = arith.constant dense<0.000000e+00> : vector<152x128xf32>
    %34 = tpu.matmul %1, %33, %cst_29 {dimension_numbers = #tpu.dot_dimension_numbers<[1], [0], [0], [1], [0, 0, 1, 1], [], []>} : vector<152x8xbf16>, vector<8x128xbf16>, vector<152x128xf32> -> vector<152x128xf32>
    %35 = vector.extract_strided_slice %34 {offsets = [14, 0], sizes = [120, 128], strides = [1, 1]} : vector<152x128xf32> to vector<120x128xf32>
    %36 = arith.addf %31, %35 : vector<120x128xf32>
    %c6 = arith.constant 6 : index
    %c0_30 = arith.constant 0 : index
    %c0_31 = arith.constant 0 : index
    %37 = vector.load %arg5[%c6, %c0_30, %c0_31] : memref<27x8x128xbf16, #tpu.memory_space<vmem>>, vector<1x8x128xbf16>
    %38 = vector.shape_cast %37 : vector<1x8x128xbf16> to vector<8x128xbf16>
    %cst_32 = arith.constant dense<0.000000e+00> : vector<152x128xf32>
    %39 = tpu.matmul %1, %38, %cst_32 {dimension_numbers = #tpu.dot_dimension_numbers<[1], [0], [0], [1], [0, 0, 1, 1], [], []>} : vector<152x8xbf16>, vector<8x128xbf16>, vector<152x128xf32> -> vector<152x128xf32>
    %40 = vector.extract_strided_slice %39 {offsets = [24, 0], sizes = [120, 128], strides = [1, 1]} : vector<152x128xf32> to vector<120x128xf32>
    %41 = arith.addf %36, %40 : vector<120x128xf32>
    %c7 = arith.constant 7 : index
    %c0_33 = arith.constant 0 : index
    %c0_34 = arith.constant 0 : index
    %42 = vector.load %arg5[%c7, %c0_33, %c0_34] : memref<27x8x128xbf16, #tpu.memory_space<vmem>>, vector<1x8x128xbf16>
    %43 = vector.shape_cast %42 : vector<1x8x128xbf16> to vector<8x128xbf16>
    %cst_35 = arith.constant dense<0.000000e+00> : vector<152x128xf32>
    %44 = tpu.matmul %1, %43, %cst_35 {dimension_numbers = #tpu.dot_dimension_numbers<[1], [0], [0], [1], [0, 0, 1, 1], [], []>} : vector<152x8xbf16>, vector<8x128xbf16>, vector<152x128xf32> -> vector<152x128xf32>
    %45 = vector.extract_strided_slice %44 {offsets = [25, 0], sizes = [120, 128], strides = [1, 1]} : vector<152x128xf32> to vector<120x128xf32>
    %46 = arith.addf %41, %45 : vector<120x128xf32>
    %c8 = arith.constant 8 : index
    %c0_36 = arith.constant 0 : index
    %c0_37 = arith.constant 0 : index
    %47 = vector.load %arg5[%c8, %c0_36, %c0_37] : memref<27x8x128xbf16, #tpu.memory_space<vmem>>, vector<1x8x128xbf16>
    %48 = vector.shape_cast %47 : vector<1x8x128xbf16> to vector<8x128xbf16>
    %cst_38 = arith.constant dense<0.000000e+00> : vector<152x128xf32>
    %49 = tpu.matmul %1, %48, %cst_38 {dimension_numbers = #tpu.dot_dimension_numbers<[1], [0], [0], [1], [0, 0, 1, 1], [], []>} : vector<152x8xbf16>, vector<8x128xbf16>, vector<152x128xf32> -> vector<152x128xf32>
    %50 = vector.extract_strided_slice %49 {offsets = [26, 0], sizes = [120, 128], strides = [1, 1]} : vector<152x128xf32> to vector<120x128xf32>
    %51 = arith.addf %46, %50 : vector<120x128xf32>
    %c9 = arith.constant 9 : index
    %c0_39 = arith.constant 0 : index
    %c0_40 = arith.constant 0 : index
    %52 = vector.load %arg5[%c9, %c0_39, %c0_40] : memref<27x8x128xbf16, #tpu.memory_space<vmem>>, vector<1x8x128xbf16>
    %53 = vector.shape_cast %52 : vector<1x8x128xbf16> to vector<8x128xbf16>
    %cst_41 = arith.constant dense<0.000000e+00> : vector<152x128xf32>
    %54 = tpu.matmul %3, %53, %cst_41 {dimension_numbers = #tpu.dot_dimension_numbers<[1], [0], [0], [1], [0, 0, 1, 1], [], []>} : vector<152x8xbf16>, vector<8x128xbf16>, vector<152x128xf32> -> vector<152x128xf32>
    %55 = vector.extract_strided_slice %54 {offsets = [0, 0], sizes = [120, 128], strides = [1, 1]} : vector<152x128xf32> to vector<120x128xf32>
    %56 = arith.addf %51, %55 : vector<120x128xf32>
    %c10 = arith.constant 10 : index
    %c0_42 = arith.constant 0 : index
    %c0_43 = arith.constant 0 : index
    %57 = vector.load %arg5[%c10, %c0_42, %c0_43] : memref<27x8x128xbf16, #tpu.memory_space<vmem>>, vector<1x8x128xbf16>
    %58 = vector.shape_cast %57 : vector<1x8x128xbf16> to vector<8x128xbf16>
    %cst_44 = arith.constant dense<0.000000e+00> : vector<152x128xf32>
    %59 = tpu.matmul %3, %58, %cst_44 {dimension_numbers = #tpu.dot_dimension_numbers<[1], [0], [0], [1], [0, 0, 1, 1], [], []>} : vector<152x8xbf16>, vector<8x128xbf16>, vector<152x128xf32> -> vector<152x128xf32>
    %60 = vector.extract_strided_slice %59 {offsets = [1, 0], sizes = [120, 128], strides = [1, 1]} : vector<152x128xf32> to vector<120x128xf32>
    %61 = arith.addf %56, %60 : vector<120x128xf32>
    %c11 = arith.constant 11 : index
    %c0_45 = arith.constant 0 : index
    %c0_46 = arith.constant 0 : index
    %62 = vector.load %arg5[%c11, %c0_45, %c0_46] : memref<27x8x128xbf16, #tpu.memory_space<vmem>>, vector<1x8x128xbf16>
    %63 = vector.shape_cast %62 : vector<1x8x128xbf16> to vector<8x128xbf16>
    %cst_47 = arith.constant dense<0.000000e+00> : vector<152x128xf32>
    %64 = tpu.matmul %3, %63, %cst_47 {dimension_numbers = #tpu.dot_dimension_numbers<[1], [0], [0], [1], [0, 0, 1, 1], [], []>} : vector<152x8xbf16>, vector<8x128xbf16>, vector<152x128xf32> -> vector<152x128xf32>
    %65 = vector.extract_strided_slice %64 {offsets = [2, 0], sizes = [120, 128], strides = [1, 1]} : vector<152x128xf32> to vector<120x128xf32>
    %66 = arith.addf %61, %65 : vector<120x128xf32>
    %c12 = arith.constant 12 : index
    %c0_48 = arith.constant 0 : index
    %c0_49 = arith.constant 0 : index
    %67 = vector.load %arg5[%c12, %c0_48, %c0_49] : memref<27x8x128xbf16, #tpu.memory_space<vmem>>, vector<1x8x128xbf16>
    %68 = vector.shape_cast %67 : vector<1x8x128xbf16> to vector<8x128xbf16>
    %cst_50 = arith.constant dense<0.000000e+00> : vector<152x128xf32>
    %69 = tpu.matmul %3, %68, %cst_50 {dimension_numbers = #tpu.dot_dimension_numbers<[1], [0], [0], [1], [0, 0, 1, 1], [], []>} : vector<152x8xbf16>, vector<8x128xbf16>, vector<152x128xf32> -> vector<152x128xf32>
    %70 = vector.extract_strided_slice %69 {offsets = [12, 0], sizes = [120, 128], strides = [1, 1]} : vector<152x128xf32> to vector<120x128xf32>
    %71 = arith.addf %66, %70 : vector<120x128xf32>
    %c13 = arith.constant 13 : index
    %c0_51 = arith.constant 0 : index
    %c0_52 = arith.constant 0 : index
    %72 = vector.load %arg5[%c13, %c0_51, %c0_52] : memref<27x8x128xbf16, #tpu.memory_space<vmem>>, vector<1x8x128xbf16>
    %73 = vector.shape_cast %72 : vector<1x8x128xbf16> to vector<8x128xbf16>
    %cst_53 = arith.constant dense<0.000000e+00> : vector<152x128xf32>
    %74 = tpu.matmul %3, %73, %cst_53 {dimension_numbers = #tpu.dot_dimension_numbers<[1], [0], [0], [1], [0, 0, 1, 1], [], []>} : vector<152x8xbf16>, vector<8x128xbf16>, vector<152x128xf32> -> vector<152x128xf32>
    %75 = vector.extract_strided_slice %74 {offsets = [13, 0], sizes = [120, 128], strides = [1, 1]} : vector<152x128xf32> to vector<120x128xf32>
    %76 = arith.addf %71, %75 : vector<120x128xf32>
    %c14 = arith.constant 14 : index
    %c0_54 = arith.constant 0 : index
    %c0_55 = arith.constant 0 : index
    %77 = vector.load %arg5[%c14, %c0_54, %c0_55] : memref<27x8x128xbf16, #tpu.memory_space<vmem>>, vector<1x8x128xbf16>
    %78 = vector.shape_cast %77 : vector<1x8x128xbf16> to vector<8x128xbf16>
    %cst_56 = arith.constant dense<0.000000e+00> : vector<152x128xf32>
    %79 = tpu.matmul %3, %78, %cst_56 {dimension_numbers = #tpu.dot_dimension_numbers<[1], [0], [0], [1], [0, 0, 1, 1], [], []>} : vector<152x8xbf16>, vector<8x128xbf16>, vector<152x128xf32> -> vector<152x128xf32>
    %80 = vector.extract_strided_slice %79 {offsets = [14, 0], sizes = [120, 128], strides = [1, 1]} : vector<152x128xf32> to vector<120x128xf32>
    %81 = arith.addf %76, %80 : vector<120x128xf32>
    %c15 = arith.constant 15 : index
    %c0_57 = arith.constant 0 : index
    %c0_58 = arith.constant 0 : index
    %82 = vector.load %arg5[%c15, %c0_57, %c0_58] : memref<27x8x128xbf16, #tpu.memory_space<vmem>>, vector<1x8x128xbf16>
    %83 = vector.shape_cast %82 : vector<1x8x128xbf16> to vector<8x128xbf16>
    %cst_59 = arith.constant dense<0.000000e+00> : vector<152x128xf32>
    %84 = tpu.matmul %3, %83, %cst_59 {dimension_numbers = #tpu.dot_dimension_numbers<[1], [0], [0], [1], [0, 0, 1, 1], [], []>} : vector<152x8xbf16>, vector<8x128xbf16>, vector<152x128xf32> -> vector<152x128xf32>
    %85 = vector.extract_strided_slice %84 {offsets = [24, 0], sizes = [120, 128], strides = [1, 1]} : vector<152x128xf32> to vector<120x128xf32>
    %86 = arith.addf %81, %85 : vector<120x128xf32>
    %c16 = arith.constant 16 : index
    %c0_60 = arith.constant 0 : index
    %c0_61 = arith.constant 0 : index
    %87 = vector.load %arg5[%c16, %c0_60, %c0_61] : memref<27x8x128xbf16, #tpu.memory_space<vmem>>, vector<1x8x128xbf16>
    %88 = vector.shape_cast %87 : vector<1x8x128xbf16> to vector<8x128xbf16>
    %cst_62 = arith.constant dense<0.000000e+00> : vector<152x128xf32>
    %89 = tpu.matmul %3, %88, %cst_62 {dimension_numbers = #tpu.dot_dimension_numbers<[1], [0], [0], [1], [0, 0, 1, 1], [], []>} : vector<152x8xbf16>, vector<8x128xbf16>, vector<152x128xf32> -> vector<152x128xf32>
    %90 = vector.extract_strided_slice %89 {offsets = [25, 0], sizes = [120, 128], strides = [1, 1]} : vector<152x128xf32> to vector<120x128xf32>
    %91 = arith.addf %86, %90 : vector<120x128xf32>
    %c17 = arith.constant 17 : index
    %c0_63 = arith.constant 0 : index
    %c0_64 = arith.constant 0 : index
    %92 = vector.load %arg5[%c17, %c0_63, %c0_64] : memref<27x8x128xbf16, #tpu.memory_space<vmem>>, vector<1x8x128xbf16>
    %93 = vector.shape_cast %92 : vector<1x8x128xbf16> to vector<8x128xbf16>
    %cst_65 = arith.constant dense<0.000000e+00> : vector<152x128xf32>
    %94 = tpu.matmul %3, %93, %cst_65 {dimension_numbers = #tpu.dot_dimension_numbers<[1], [0], [0], [1], [0, 0, 1, 1], [], []>} : vector<152x8xbf16>, vector<8x128xbf16>, vector<152x128xf32> -> vector<152x128xf32>
    %95 = vector.extract_strided_slice %94 {offsets = [26, 0], sizes = [120, 128], strides = [1, 1]} : vector<152x128xf32> to vector<120x128xf32>
    %96 = arith.addf %91, %95 : vector<120x128xf32>
    %c18 = arith.constant 18 : index
    %c0_66 = arith.constant 0 : index
    %c0_67 = arith.constant 0 : index
    %97 = vector.load %arg5[%c18, %c0_66, %c0_67] : memref<27x8x128xbf16, #tpu.memory_space<vmem>>, vector<1x8x128xbf16>
    %98 = vector.shape_cast %97 : vector<1x8x128xbf16> to vector<8x128xbf16>
    %cst_68 = arith.constant dense<0.000000e+00> : vector<152x128xf32>
    %99 = tpu.matmul %5, %98, %cst_68 {dimension_numbers = #tpu.dot_dimension_numbers<[1], [0], [0], [1], [0, 0, 1, 1], [], []>} : vector<152x8xbf16>, vector<8x128xbf16>, vector<152x128xf32> -> vector<152x128xf32>
    %100 = vector.extract_strided_slice %99 {offsets = [0, 0], sizes = [120, 128], strides = [1, 1]} : vector<152x128xf32> to vector<120x128xf32>
    %101 = arith.addf %96, %100 : vector<120x128xf32>
    %c19 = arith.constant 19 : index
    %c0_69 = arith.constant 0 : index
    %c0_70 = arith.constant 0 : index
    %102 = vector.load %arg5[%c19, %c0_69, %c0_70] : memref<27x8x128xbf16, #tpu.memory_space<vmem>>, vector<1x8x128xbf16>
    %103 = vector.shape_cast %102 : vector<1x8x128xbf16> to vector<8x128xbf16>
    %cst_71 = arith.constant dense<0.000000e+00> : vector<152x128xf32>
    %104 = tpu.matmul %5, %103, %cst_71 {dimension_numbers = #tpu.dot_dimension_numbers<[1], [0], [0], [1], [0, 0, 1, 1], [], []>} : vector<152x8xbf16>, vector<8x128xbf16>, vector<152x128xf32> -> vector<152x128xf32>
    %105 = vector.extract_strided_slice %104 {offsets = [1, 0], sizes = [120, 128], strides = [1, 1]} : vector<152x128xf32> to vector<120x128xf32>
    %106 = arith.addf %101, %105 : vector<120x128xf32>
    %c20 = arith.constant 20 : index
    %c0_72 = arith.constant 0 : index
    %c0_73 = arith.constant 0 : index
    %107 = vector.load %arg5[%c20, %c0_72, %c0_73] : memref<27x8x128xbf16, #tpu.memory_space<vmem>>, vector<1x8x128xbf16>
    %108 = vector.shape_cast %107 : vector<1x8x128xbf16> to vector<8x128xbf16>
    %cst_74 = arith.constant dense<0.000000e+00> : vector<152x128xf32>
    %109 = tpu.matmul %5, %108, %cst_74 {dimension_numbers = #tpu.dot_dimension_numbers<[1], [0], [0], [1], [0, 0, 1, 1], [], []>} : vector<152x8xbf16>, vector<8x128xbf16>, vector<152x128xf32> -> vector<152x128xf32>
    %110 = vector.extract_strided_slice %109 {offsets = [2, 0], sizes = [120, 128], strides = [1, 1]} : vector<152x128xf32> to vector<120x128xf32>
    %111 = arith.addf %106, %110 : vector<120x128xf32>
    %c21 = arith.constant 21 : index
    %c0_75 = arith.constant 0 : index
    %c0_76 = arith.constant 0 : index
    %112 = vector.load %arg5[%c21, %c0_75, %c0_76] : memref<27x8x128xbf16, #tpu.memory_space<vmem>>, vector<1x8x128xbf16>
    %113 = vector.shape_cast %112 : vector<1x8x128xbf16> to vector<8x128xbf16>
    %cst_77 = arith.constant dense<0.000000e+00> : vector<152x128xf32>
    %114 = tpu.matmul %5, %113, %cst_77 {dimension_numbers = #tpu.dot_dimension_numbers<[1], [0], [0], [1], [0, 0, 1, 1], [], []>} : vector<152x8xbf16>, vector<8x128xbf16>, vector<152x128xf32> -> vector<152x128xf32>
    %115 = vector.extract_strided_slice %114 {offsets = [12, 0], sizes = [120, 128], strides = [1, 1]} : vector<152x128xf32> to vector<120x128xf32>
    %116 = arith.addf %111, %115 : vector<120x128xf32>
    %c22 = arith.constant 22 : index
    %c0_78 = arith.constant 0 : index
    %c0_79 = arith.constant 0 : index
    %117 = vector.load %arg5[%c22, %c0_78, %c0_79] : memref<27x8x128xbf16, #tpu.memory_space<vmem>>, vector<1x8x128xbf16>
    %118 = vector.shape_cast %117 : vector<1x8x128xbf16> to vector<8x128xbf16>
    %cst_80 = arith.constant dense<0.000000e+00> : vector<152x128xf32>
    %119 = tpu.matmul %5, %118, %cst_80 {dimension_numbers = #tpu.dot_dimension_numbers<[1], [0], [0], [1], [0, 0, 1, 1], [], []>} : vector<152x8xbf16>, vector<8x128xbf16>, vector<152x128xf32> -> vector<152x128xf32>
    %120 = vector.extract_strided_slice %119 {offsets = [13, 0], sizes = [120, 128], strides = [1, 1]} : vector<152x128xf32> to vector<120x128xf32>
    %121 = arith.addf %116, %120 : vector<120x128xf32>
    %c23 = arith.constant 23 : index
    %c0_81 = arith.constant 0 : index
    %c0_82 = arith.constant 0 : index
    %122 = vector.load %arg5[%c23, %c0_81, %c0_82] : memref<27x8x128xbf16, #tpu.memory_space<vmem>>, vector<1x8x128xbf16>
    %123 = vector.shape_cast %122 : vector<1x8x128xbf16> to vector<8x128xbf16>
    %cst_83 = arith.constant dense<0.000000e+00> : vector<152x128xf32>
    %124 = tpu.matmul %5, %123, %cst_83 {dimension_numbers = #tpu.dot_dimension_numbers<[1], [0], [0], [1], [0, 0, 1, 1], [], []>} : vector<152x8xbf16>, vector<8x128xbf16>, vector<152x128xf32> -> vector<152x128xf32>
    %125 = vector.extract_strided_slice %124 {offsets = [14, 0], sizes = [120, 128], strides = [1, 1]} : vector<152x128xf32> to vector<120x128xf32>
    %126 = arith.addf %121, %125 : vector<120x128xf32>
    %c24 = arith.constant 24 : index
    %c0_84 = arith.constant 0 : index
    %c0_85 = arith.constant 0 : index
    %127 = vector.load %arg5[%c24, %c0_84, %c0_85] : memref<27x8x128xbf16, #tpu.memory_space<vmem>>, vector<1x8x128xbf16>
    %128 = vector.shape_cast %127 : vector<1x8x128xbf16> to vector<8x128xbf16>
    %cst_86 = arith.constant dense<0.000000e+00> : vector<152x128xf32>
    %129 = tpu.matmul %5, %128, %cst_86 {dimension_numbers = #tpu.dot_dimension_numbers<[1], [0], [0], [1], [0, 0, 1, 1], [], []>} : vector<152x8xbf16>, vector<8x128xbf16>, vector<152x128xf32> -> vector<152x128xf32>
    %130 = vector.extract_strided_slice %129 {offsets = [24, 0], sizes = [120, 128], strides = [1, 1]} : vector<152x128xf32> to vector<120x128xf32>
    %131 = arith.addf %126, %130 : vector<120x128xf32>
    %c25 = arith.constant 25 : index
    %c0_87 = arith.constant 0 : index
    %c0_88 = arith.constant 0 : index
    %132 = vector.load %arg5[%c25, %c0_87, %c0_88] : memref<27x8x128xbf16, #tpu.memory_space<vmem>>, vector<1x8x128xbf16>
    %133 = vector.shape_cast %132 : vector<1x8x128xbf16> to vector<8x128xbf16>
    %cst_89 = arith.constant dense<0.000000e+00> : vector<152x128xf32>
    %134 = tpu.matmul %5, %133, %cst_89 {dimension_numbers = #tpu.dot_dimension_numbers<[1], [0], [0], [1], [0, 0, 1, 1], [], []>} : vector<152x8xbf16>, vector<8x128xbf16>, vector<152x128xf32> -> vector<152x128xf32>
    %135 = vector.extract_strided_slice %134 {offsets = [25, 0], sizes = [120, 128], strides = [1, 1]} : vector<152x128xf32> to vector<120x128xf32>
    %136 = arith.addf %131, %135 : vector<120x128xf32>
    %c26 = arith.constant 26 : index
    %c0_90 = arith.constant 0 : index
    %c0_91 = arith.constant 0 : index
    %137 = vector.load %arg5[%c26, %c0_90, %c0_91] : memref<27x8x128xbf16, #tpu.memory_space<vmem>>, vector<1x8x128xbf16>
    %138 = vector.shape_cast %137 : vector<1x8x128xbf16> to vector<8x128xbf16>
    %cst_92 = arith.constant dense<0.000000e+00> : vector<152x128xf32>
    %139 = tpu.matmul %5, %138, %cst_92 {dimension_numbers = #tpu.dot_dimension_numbers<[1], [0], [0], [1], [0, 0, 1, 1], [], []>} : vector<152x8xbf16>, vector<8x128xbf16>, vector<152x128xf32> -> vector<152x128xf32>
    %140 = vector.extract_strided_slice %139 {offsets = [26, 0], sizes = [120, 128], strides = [1, 1]} : vector<152x128xf32> to vector<120x128xf32>
    %141 = arith.addf %136, %140 : vector<120x128xf32>
    %c0_93 = arith.constant 0 : index
    %c0_94 = arith.constant 0 : index
    %142 = vector.load %arg6[%c0_93, %c0_94] : memref<1x128xf32, #tpu.memory_space<vmem>>, vector<1x128xf32>
    %143 = vector.broadcast %142 : vector<1x128xf32> to vector<120x128xf32>
    %144 = arith.addf %141, %143 : vector<120x128xf32>
    %cst_95 = arith.constant 0.000000e+00 : f32
    %145 = vector.broadcast %cst_95 : f32 to vector<120x128xf32>
    %146 = arith.maximumf %144, %145 : vector<120x128xf32>
    %147 = arith.truncf %146 : vector<120x128xf32> to vector<120x128xbf16>
    %c0_96 = arith.constant 0 : index
    %c0_97 = arith.constant 0 : index
    %c0_98 = arith.constant 0 : index
    %c0_99 = arith.constant 0 : index
    %148 = vector.load %arg8[%c0_96, %c0_97, %c0_98, %c0_99] : memref<1x1x120x128xbf16, #tpu.memory_space<vmem>>, vector<1x1x120x128xbf16>
    %149 = vector.shape_cast %148 : vector<1x1x120x128xbf16> to vector<120x128xbf16>
    %150 = vector.shape_cast %147 : vector<120x128xbf16> to vector<1x1x120x128xbf16>
    tpu.vector_store %arg8[%c0_96, %c0_97, %c0_98, %c0_99], %150 {strides = array<i32>} : memref<1x1x120x128xbf16, #tpu.memory_space<vmem>>, vector<1x1x120x128xbf16>,
    %c0_100 = arith.constant 0 : index
    %c0_101 = arith.constant 0 : index
    %151 = vector.load %arg7[%c0_100, %c0_101] : memref<120x1xf32, #tpu.memory_space<vmem>>, vector<120x1xf32>
    %152 = vector.broadcast %151 : vector<120x1xf32> to vector<120x128xf32>
    %153 = arith.mulf %146, %152 : vector<120x128xf32>
    %cst_102 = arith.constant dense<0.000000e+00> : vector<128xf32>
    %154 = vector.multi_reduction <add>, %153, %cst_102 [0] : vector<120x128xf32> to vector<128xf32>
    %155 = vector.shape_cast %154 : vector<128xf32> to vector<1x128xf32>
    %c0_103 = arith.constant 0 : index
    %c0_104 = arith.constant 0 : index
    %c0_105 = arith.constant 0 : index
    %c0_106 = arith.constant 0 : index
    %156 = vector.load %arg9[%c0_103, %c0_104, %c0_105, %c0_106] : memref<1x1x1x128xf32, #tpu.memory_space<vmem>>, vector<1x1x1x128xf32>
    %157 = vector.shape_cast %156 : vector<1x1x1x128xf32> to vector<1x128xf32>
    %158 = vector.shape_cast %155 : vector<1x128xf32> to vector<1x1x1x128xf32>
    tpu.vector_store %arg9[%c0_103, %c0_104, %c0_105, %c0_106], %158 {strides = array<i32>} : memref<1x1x1x128xf32, #tpu.memory_space<vmem>>, vector<1x1x1x128xf32>,
    %159 = arith.mulf %153, %153 : vector<120x128xf32>
    %cst_107 = arith.constant dense<0.000000e+00> : vector<128xf32>
    %160 = vector.multi_reduction <add>, %159, %cst_107 [0] : vector<120x128xf32> to vector<128xf32>
    %161 = vector.shape_cast %160 : vector<128xf32> to vector<1x128xf32>
    %c0_108 = arith.constant 0 : index
    %c0_109 = arith.constant 0 : index
    %c0_110 = arith.constant 0 : index
    %c0_111 = arith.constant 0 : index
    %162 = vector.load %arg10[%c0_108, %c0_109, %c0_110, %c0_111] : memref<1x1x1x128xf32, #tpu.memory_space<vmem>>, vector<1x1x1x128xf32>
    %163 = vector.shape_cast %162 : vector<1x1x1x128xf32> to vector<1x128xf32>
    %164 = vector.shape_cast %161 : vector<1x128xf32> to vector<1x1x1x128xf32>
    tpu.vector_store %arg10[%c0_108, %c0_109, %c0_110, %c0_111], %164 {strides = array<i32>} : memref<1x1x1x128xf32, #tpu.memory_space<vmem>>, vector<1x1x1x128xf32>,
    return
  }
  func.func @transform_0(%arg0: i32, %arg1: i32) -> (i32, i32, i32, i32) {
    %c0_i32 = arith.constant 0 : i32
    %0 = arith.addi %arg1, %c0_i32 : i32
    %c0_i32_0 = arith.constant 0 : i32
    %c0_i32_1 = arith.constant 0 : i32
    %c0_i32_2 = arith.constant 0 : i32
    return %arg0, %0, %c0_i32_0, %c0_i32_1 : i32, i32, i32, i32
  }
  func.func @transform_1(%arg0: i32, %arg1: i32) -> (i32, i32, i32, i32) {
    %c1_i32 = arith.constant 1 : i32
    %0 = arith.addi %arg1, %c1_i32 : i32
    %c0_i32 = arith.constant 0 : i32
    %c0_i32_0 = arith.constant 0 : i32
    %c0_i32_1 = arith.constant 0 : i32
    return %arg0, %0, %c0_i32, %c0_i32_0 : i32, i32, i32, i32
  }
  func.func @transform_2(%arg0: i32, %arg1: i32) -> (i32, i32, i32, i32) {
    %c2_i32 = arith.constant 2 : i32
    %0 = arith.addi %arg1, %c2_i32 : i32
    %c0_i32 = arith.constant 0 : i32
    %c0_i32_0 = arith.constant 0 : i32
    %c0_i32_1 = arith.constant 0 : i32
    return %arg0, %0, %c0_i32, %c0_i32_0 : i32, i32, i32, i32
  }
  func.func @transform_3(%arg0: i32, %arg1: i32) -> (i32, i32, i32) {
    %c0_i32 = arith.constant 0 : i32
    %c0_i32_0 = arith.constant 0 : i32
    %c0_i32_1 = arith.constant 0 : i32
    %c0_i32_2 = arith.constant 0 : i32
    return %c0_i32, %c0_i32_0, %c0_i32_1 : i32, i32, i32
  }
  func.func @transform_4(%arg0: i32, %arg1: i32) -> (i32, i32) {
    %c0_i32 = arith.constant 0 : i32
    %c0_i32_0 = arith.constant 0 : i32
    %c0_i32_1 = arith.constant 0 : i32
    return %c0_i32, %c0_i32_0 : i32, i32
  }
  func.func @transform_5(%arg0: i32, %arg1: i32) -> (i32, i32) {
    %c0_i32 = arith.constant 0 : i32
    %c0_i32_0 = arith.constant 0 : i32
    %c0_i32_1 = arith.constant 0 : i32
    return %c0_i32, %c0_i32_0 : i32, i32
  }
  func.func @transform_6(%arg0: i32, %arg1: i32) -> (i32, i32, i32, i32) {
    %c0_i32 = arith.constant 0 : i32
    %c0_i32_0 = arith.constant 0 : i32
    %c0_i32_1 = arith.constant 0 : i32
    return %arg0, %arg1, %c0_i32, %c0_i32_0 : i32, i32, i32, i32
  }
  func.func @transform_7(%arg0: i32, %arg1: i32) -> (i32, i32, i32, i32) {
    %c0_i32 = arith.constant 0 : i32
    %c0_i32_0 = arith.constant 0 : i32
    %c0_i32_1 = arith.constant 0 : i32
    return %arg0, %arg1, %c0_i32, %c0_i32_0 : i32, i32, i32, i32
  }
  func.func @transform_8(%arg0: i32, %arg1: i32) -> (i32, i32, i32, i32) {
    %c0_i32 = arith.constant 0 : i32
    %c0_i32_0 = arith.constant 0 : i32
    %c0_i32_1 = arith.constant 0 : i32
    return %arg0, %arg1, %c0_i32, %c0_i32_0 : i32, i32, i32, i32
  }
}

</mosaic_0001>

<llo_original>
// kernel: stack_conv_norm_nonlin.2
$region0: #{stack_conv_norm_nonlin.2}
  #allocation0 [shape = 'u32[]', space=smem, size = 0x4, offset = 0x4, fixed_abs, tag = 'smem constant byte address 0x4 - core index']
  #allocation1 [shape = 'u32[144,128]{1,0:T(1,128)}', space=vmem, size = 0x12000, scoped, tag = 'internal scratch']
  %s0 = inlined_call_operand.vmem [shape: bf16[2,12,152,4], index: 0, kind: input, shape index: {}, may-alias: {0,1,2}]
  %s1 = inlined_call_operand.vmem [shape: bf16[2,12,152,4], index: 1, kind: input, shape index: {}, may-alias: {0,1,2}]
  %s2 = inlined_call_operand.vmem [shape: bf16[2,12,152,4], index: 2, kind: input, shape index: {}, may-alias: {0,1,2}]
  %s3 = inlined_call_operand.vmem [shape: bf16[27,4,128], index: 3, kind: input, shape index: {}]
  %s4 = inlined_call_operand.vmem [shape: f32[1,128], index: 4, kind: input, shape index: {}]
  %s5 = inlined_call_operand.vmem [shape: f32[120,1], index: 5, kind: input, shape index: {}]
  %s6 = inlined_call_operand.vmem [shape: bf16[2,10,120,128], index: 6, kind: output, shape index: {0}]
  %s7 = inlined_call_operand.vmem [shape: f32[2,10,1,128], index: 7, kind: output, shape index: {1}]
  %s8 = inlined_call_operand.vmem [shape: f32[2,10,1,128], index: 8, kind: output, shape index: {2}]
  %9 = xla_tuple %s6, %s7, %s8
  %s10 = sld [smem:[#allocation0]]
  $region73: #{stack_conv_norm_nonlin.2} parent=0
    _
  %s12 = ssub.s32 1, %s10
  %s13 = scalar_select 0, %s12, %s10
  loop: start=0, step=1, limit=22
  $region2: #{stack_conv_norm_nonlin.2} parent=0 // loop_pre_header
    _
  $region3: #{stack_conv_norm_nonlin.2} parent=0 // loop_header
    %s15 = sphi 0, %s19
    %p16 = scmp.ge.s32.totalorder %s15, 22
    %s22 = sphi 0, %s34
    %s23 = sphi 0, %s30
    %s24 = sphi 0, %s22
    %s25 = sphi 0, %s23
    %s26 = sphi 0, %s24
    %s27 = sphi 0, %s25
    %s39 = sphi 0, %s41
    %s42 = sphi 0, %s39
    %s43 = sphi 0, %s42
    %s59 = sphi 0, %s43
    %s69 = sphi 0, %s71
    %s72 = sphi 0, %s69
    %s73 = sphi 0, %s72
    %s89 = sphi 0, %s73
    %s99 = sphi 0, %s101
    %s102 = sphi 0, %s99
    %s103 = sphi 0, %s102
    %s119 = sphi 0, %s103
    %s123 = sphi 0, %s123
    %s125 = sphi 0, %s123
    %s126 = sphi 0, %s125
    %s140 = sphi 0, %s126
    %s144 = sphi 0, %s144
    %s146 = sphi 0, %s144
    %s147 = sphi 0, %s146
    %s161 = sphi 0, %s147
    %s165 = sphi 0, %s165
    %s167 = sphi 0, %s165
    %s168 = sphi 0, %s167
    %s182 = sphi 0, %s168
    %s190 = sphi 0, %s192
    %s193 = sphi 0, %s190
    %s194 = sphi 0, %s193
    %s210 = sphi 0, %s194
    %s218 = sphi 0, %s220
    %s221 = sphi 0, %s218
    %s222 = sphi 0, %s221
    %s238 = sphi 0, %s222
    %s246 = sphi 0, %s248
    %s249 = sphi 0, %s246
    %s250 = sphi 0, %s249
    %s266 = sphi 0, %s250
  $region4: #{stack_conv_norm_nonlin.2} parent=0 // loop_header_branch
    %18 = sbr.rel (%p16) target = $region8
  $region5: #{stack_conv_norm_nonlin.2} parent=0 // loop_body
    %s20 = ssub.s32 %s15, 1
    %s21 = ssub.s32 %s15, 2
    %s28 = sadd.s32 1, %s23
    %p29 = scmp.ge.s32.totalorder %s28, 10
    %s30 = scalar_select %p29, 0, %s28
    %s31 = sadd.s32 1, %s22
    %s32 = scalar_select %p29, %s31, %s22
    %p33 = scmp.ge.s32.totalorder %s32, 2
    %s34 = scalar_select %p33, 0, %s32
    %s35 = ssub.s32 %s22, %s34
    %s36 = ssub.s32 %s23, %s30
    %s37 = sor.u32 %s35, %s36
    %p38 = scmp.eq.s32.totalorder %s37, 0
    %s40 = sadd.s32 %s39, 1
    %s41 = scalar_select %p38, %s39, %s40
    %p44 = pneg %p38
    %p45 = scmp.eq.s32.totalorder %s15, 19
    %p46 = por %p44, %p45
    %p47 = scmp.ne.s32.totalorder %s39, %s42
    %p48 = scmp.eq.s32.totalorder %s15, 0
    %p49 = por %p47, %p48
    %p50 = scmp.ne.s32.totalorder %s39, %s42
    %p51 = scmp.eq.s32.totalorder %s20, 19
    %p52 = por %p50, %p51
    %p53 = scmp.ne.s32.totalorder %s42, %s43
    %p54 = scmp.eq.s32.totalorder %s20, 0
    %p55 = por %p53, %p54
    %p56 = scmp.ne.s32.totalorder %s42, %s43
    %p57 = scmp.eq.s32.totalorder %s21, 19
    %p58 = por %p56, %p57
    %p60 = scmp.ne.s32.totalorder %s43, %s59
    %p61 = scmp.eq.s32.totalorder %s21, 0
    %p62 = por %p60, %p61
    %s63 = sadd.s32 %s23, 1
    %s64 = sadd.s32 %s30, 1
    %s65 = ssub.s32 %s22, %s34
    %s66 = ssub.s32 %s63, %s64
    %s67 = sor.u32 %s65, %s66
    %p68 = scmp.eq.s32.totalorder %s67, 0
    %s70 = sadd.s32 %s69, 1
    %s71 = scalar_select %p68, %s69, %s70
    %p74 = pneg %p68
    %p75 = scmp.eq.s32.totalorder %s15, 19
    %p76 = por %p74, %p75
    %p77 = scmp.ne.s32.totalorder %s69, %s72
    %p78 = scmp.eq.s32.totalorder %s15, 0
    %p79 = por %p77, %p78
    %p80 = scmp.ne.s32.totalorder %s69, %s72
    %p81 = scmp.eq.s32.totalorder %s20, 19
    %p82 = por %p80, %p81
    %p83 = scmp.ne.s32.totalorder %s72, %s73
    %p84 = scmp.eq.s32.totalorder %s20, 0
    %p85 = por %p83, %p84
    %p86 = scmp.ne.s32.totalorder %s72, %s73
    %p87 = scmp.eq.s32.totalorder %s21, 19
    %p88 = por %p86, %p87
    %p90 = scmp.ne.s32.totalorder %s73, %s89
    %p91 = scmp.eq.s32.totalorder %s21, 0
    %p92 = por %p90, %p91
    %s93 = sadd.s32 %s23, 2
    %s94 = sadd.s32 %s30, 2
    %s95 = ssub.s32 %s22, %s34
    %s96 = ssub.s32 %s93, %s94
    %s97 = sor.u32 %s95, %s96
    %p98 = scmp.eq.s32.totalorder %s97, 0
    %s100 = sadd.s32 %s99, 1
    %s101 = scalar_select %p98, %s99, %s100
    %p104 = pneg %p98
    %p105 = scmp.eq.s32.totalorder %s15, 19
    %p106 = por %p104, %p105
    %p107 = scmp.ne.s32.totalorder %s99, %s102
    %p108 = scmp.eq.s32.totalorder %s15, 0
    %p109 = por %p107, %p108
    %p110 = scmp.ne.s32.totalorder %s99, %s102
    %p111 = scmp.eq.s32.totalorder %s20, 19
    %p112 = por %p110, %p111
    %p113 = scmp.ne.s32.totalorder %s102, %s103
    %p114 = scmp.eq.s32.totalorder %s20, 0
    %p115 = por %p113, %p114
    %p116 = scmp.ne.s32.totalorder %s102, %s103
    %p117 = scmp.eq.s32.totalorder %s21, 19
    %p118 = por %p116, %p117
    %p120 = scmp.ne.s32.totalorder %s103, %s119
    %p121 = scmp.eq.s32.totalorder %s21, 0
    %p122 = por %p120, %p121
    %s124 = sadd.s32 %s123, 1
    %p127 = scmp.eq.s32.totalorder %s15, 19
    %p128 = scmp.ne.s32.totalorder %s123, %s125
    %p129 = scmp.eq.s32.totalorder %s15, 0
    %p130 = por %p128, %p129
    %p131 = scmp.ne.s32.totalorder %s123, %s125
    %p132 = scmp.eq.s32.totalorder %s20, 19
    %p133 = por %p131, %p132
    %p134 = scmp.ne.s32.totalorder %s125, %s126
    %p135 = scmp.eq.s32.totalorder %s20, 0
    %p136 = por %p134, %p135
    %p137 = scmp.ne.s32.totalorder %s125, %s126
    %p138 = scmp.eq.s32.totalorder %s21, 19
    %p139 = por %p137, %p138
    %p141 = scmp.ne.s32.totalorder %s126, %s140
    %p142 = scmp.eq.s32.totalorder %s21, 0
    %p143 = por %p141, %p142
    %s145 = sadd.s32 %s144, 1
    %p148 = scmp.eq.s32.totalorder %s15, 19
    %p149 = scmp.ne.s32.totalorder %s144, %s146
    %p150 = scmp.eq.s32.totalorder %s15, 0
    %p151 = por %p149, %p150
    %p152 = scmp.ne.s32.totalorder %s144, %s146
    %p153 = scmp.eq.s32.totalorder %s20, 19
    %p154 = por %p152, %p153
    %p155 = scmp.ne.s32.totalorder %s146, %s147
    %p156 = scmp.eq.s32.totalorder %s20, 0
    %p157 = por %p155, %p156
    %p158 = scmp.ne.s32.totalorder %s146, %s147
    %p159 = scmp.eq.s32.totalorder %s21, 19
    %p160 = por %p158, %p159
    %p162 = scmp.ne.s32.totalorder %s147, %s161
    %p163 = scmp.eq.s32.totalorder %s21, 0
    %p164 = por %p162, %p163
    %s166 = sadd.s32 %s165, 1
    %p169 = scmp.eq.s32.totalorder %s15, 19
    %p170 = scmp.ne.s32.totalorder %s165, %s167
    %p171 = scmp.eq.s32.totalorder %s15, 0
    %p172 = por %p170, %p171
    %p173 = scmp.ne.s32.totalorder %s165, %s167
    %p174 = scmp.eq.s32.totalorder %s20, 19
    %p175 = por %p173, %p174
    %p176 = scmp.ne.s32.totalorder %s167, %s168
    %p177 = scmp.eq.s32.totalorder %s20, 0
    %p178 = por %p176, %p177
    %p179 = scmp.ne.s32.totalorder %s167, %s168
    %p180 = scmp.eq.s32.totalorder %s21, 19
    %p181 = por %p179, %p180
    %p183 = scmp.ne.s32.totalorder %s168, %s182
    %p184 = scmp.eq.s32.totalorder %s21, 0
    %p185 = por %p183, %p184
    %s186 = ssub.s32 %s22, %s34
    %s187 = ssub.s32 %s23, %s30
    %s188 = sor.u32 %s186, %s187
    %p189 = scmp.eq.s32.totalorder %s188, 0
    %s191 = sadd.s32 %s190, 1
    %s192 = scalar_select %p189, %s190, %s191
    %p195 = pneg %p189
    %p196 = scmp.eq.s32.totalorder %s15, 19
    %p197 = por %p195, %p196
    %p198 = scmp.ne.s32.totalorder %s190, %s193
    %p199 = scmp.eq.s32.totalorder %s15, 0
    %p200 = por %p198, %p199
    %p201 = scmp.ne.s32.totalorder %s190, %s193
    %p202 = scmp.eq.s32.totalorder %s20, 19
    %p203 = por %p201, %p202
    %p204 = scmp.ne.s32.totalorder %s193, %s194
    %p205 = scmp.eq.s32.totalorder %s20, 0
    %p206 = por %p204, %p205
    %p207 = scmp.ne.s32.totalorder %s193, %s194
    %p208 = scmp.eq.s32.totalorder %s21, 19
    %p209 = por %p207, %p208
    %p211 = scmp.ne.s32.totalorder %s194, %s210
    %p212 = scmp.eq.s32.totalorder %s21, 0
    %p213 = por %p211, %p212
    %s214 = ssub.s32 %s22, %s34
    %s215 = ssub.s32 %s23, %s30
    %s216 = sor.u32 %s214, %s215
    %p217 = scmp.eq.s32.totalorder %s216, 0
    %s219 = sadd.s32 %s218, 1
    %s220 = scalar_select %p217, %s218, %s219
    %p223 = pneg %p217
    %p224 = scmp.eq.s32.totalorder %s15, 19
    %p225 = por %p223, %p224
    %p226 = scmp.ne.s32.totalorder %s218, %s221
    %p227 = scmp.eq.s32.totalorder %s15, 0
    %p228 = por %p226, %p227
    %p229 = scmp.ne.s32.totalorder %s218, %s221
    %p230 = scmp.eq.s32.totalorder %s20, 19
    %p231 = por %p229, %p230
    %p232 = scmp.ne.s32.totalorder %s221, %s222
    %p233 = scmp.eq.s32.totalorder %s20, 0
    %p234 = por %p232, %p233
    %p235 = scmp.ne.s32.totalorder %s221, %s222
    %p236 = scmp.eq.s32.totalorder %s21, 19
    %p237 = por %p235, %p236
    %p239 = scmp.ne.s32.totalorder %s222, %s238
    %p240 = scmp.eq.s32.totalorder %s21, 0
    %p241 = por %p239, %p240
    %s242 = ssub.s32 %s22, %s34
    %s243 = ssub.s32 %s23, %s30
    %s244 = sor.u32 %s242, %s243
    %p245 = scmp.eq.s32.totalorder %s244, 0
    %s247 = sadd.s32 %s246, 1
    %s248 = scalar_select %p245, %s246, %s247
    %p251 = pneg %p245
    %p252 = scmp.eq.s32.totalorder %s15, 19
    %p253 = por %p251, %p252
    %p254 = scmp.ne.s32.totalorder %s246, %s249
    %p255 = scmp.eq.s32.totalorder %s15, 0
    %p256 = por %p254, %p255
    %p257 = scmp.ne.s32.totalorder %s246, %s249
    %p258 = scmp.eq.s32.totalorder %s20, 19
    %p259 = por %p257, %p258
    %p260 = scmp.ne.s32.totalorder %s249, %s250
    %p261 = scmp.eq.s32.totalorder %s20, 0
    %p262 = por %p260, %p261
    %p263 = scmp.ne.s32.totalorder %s249, %s250
    %p264 = scmp.eq.s32.totalorder %s21, 19
    %p265 = por %p263, %p264
    %p267 = scmp.ne.s32.totalorder %s250, %s266
    %p268 = scmp.eq.s32.totalorder %s21, 0
    %p269 = por %p267, %p268
    %p270 = scmp.le.s32.totalorder 1, %s15
    %p271 = scmp.lt.s32.totalorder %s15, 21
    %p272 = pnand %p270, %p271
    %p273 = pneg %p272
    // Predicated region
    $region9: #{stack_conv_norm_nonlin.2} parent=5 // pred_check
      _
    $region10: #{stack_conv_norm_nonlin.2} parent=5 // pred_check_branch
      %275 = sbr.rel (%p272) target = $region12
    $region11: #{stack_conv_norm_nonlin.2} parent=5 // pred_region
      %s276 = ssub.s32 %s15, 1
      // Predicated region
      $region13: #{stack_conv_norm_nonlin.2} parent=11 // pred_check
        %p277 = pneg %p136
      $region14: #{stack_conv_norm_nonlin.2} parent=11 // pred_check_branch
        %279 = sbr.rel (%p277) target = $region16
      $region15: #{stack_conv_norm_nonlin.2} parent=11 // pred_region
        _
      $region16: #{stack_conv_norm_nonlin.2} parent=11 // pred_fallthru
        _
      // Predicated region
      $region17: #{stack_conv_norm_nonlin.2} parent=11 // pred_check
        %p280 = pneg %p157
      $region18: #{stack_conv_norm_nonlin.2} parent=11 // pred_check_branch
        %282 = sbr.rel (%p280) target = $region20
      $region19: #{stack_conv_norm_nonlin.2} parent=11 // pred_region
        _
      $region20: #{stack_conv_norm_nonlin.2} parent=11 // pred_fallthru
        _
      // Predicated region
      $region21: #{stack_conv_norm_nonlin.2} parent=11 // pred_check
        %p283 = pneg %p178
      $region22: #{stack_conv_norm_nonlin.2} parent=11 // pred_check_branch
        %285 = sbr.rel (%p283) target = $region24
      $region23: #{stack_conv_norm_nonlin.2} parent=11 // pred_region
        _
      $region24: #{stack_conv_norm_nonlin.2} parent=11 // pred_fallthru
        _
    $region12: #{stack_conv_norm_nonlin.2} parent=5 // pred_fallthru
      _
    %p286 = scmp.lt.s32.totalorder %s15, 20
    // Predicated region
    $region25: #{stack_conv_norm_nonlin.2} parent=5 // pred_check
      %p287 = pneg %p286
    $region26: #{stack_conv_norm_nonlin.2} parent=5 // pred_check_branch
      %289 = sbr.rel (%p287) target = $region28
    $region27: #{stack_conv_norm_nonlin.2} parent=5 // pred_region
      // Predicated region
      $region29: #{stack_conv_norm_nonlin.2} parent=27 // pred_check
        %p290 = pneg %p49
      $region30: #{stack_conv_norm_nonlin.2} parent=27 // pred_check_branch
        %292 = sbr.rel (%p290) target = $region32
      $region31: #{stack_conv_norm_nonlin.2} parent=27 // pred_region
        %p293 = scmp.lt.s32.totalorder %s22, 1
        %s294 = scalar_select %p293, %s22, 1
        %p295 = scmp.lt.s32.totalorder %s23, 11
        %s296 = scalar_select %p295, %s23, 11
        %s297 = smul.addr %s296, 19
        %s298 = smul.addr %s294, 228
        %s299 = sadd.s32 %s297, %s298
        %s300 = smul.addr %s299, 4
        %s301 = scalar_lea.vmem %s0, %s300
      $region32: #{stack_conv_norm_nonlin.2} parent=27 // pred_fallthru
        _
      // Predicated region
      $region33: #{stack_conv_norm_nonlin.2} parent=27 // pred_check
        %p302 = pneg %p79
      $region34: #{stack_conv_norm_nonlin.2} parent=27 // pred_check_branch
        %304 = sbr.rel (%p302) target = $region36
      $region35: #{stack_conv_norm_nonlin.2} parent=27 // pred_region
        %s305 = sadd.s32 %s23, 1
        %p306 = scmp.lt.s32.totalorder %s22, 1
        %s307 = scalar_select %p306, %s22, 1
        %p308 = scmp.lt.s32.totalorder %s305, 11
        %s309 = scalar_select %p308, %s305, 11
        %s310 = smul.addr %s309, 19
        %s311 = smul.addr %s307, 228
        %s312 = sadd.s32 %s310, %s311
        %s313 = smul.addr %s312, 4
        %s314 = scalar_lea.vmem %s1, %s313
        %s315 = sadd.s32 %s23, 1
      $region36: #{stack_conv_norm_nonlin.2} parent=27 // pred_fallthru
        _
      // Predicated region
      $region37: #{stack_conv_norm_nonlin.2} parent=27 // pred_check
        %p316 = pneg %p109
      $region38: #{stack_conv_norm_nonlin.2} parent=27 // pred_check_branch
        %318 = sbr.rel (%p316) target = $region40
      $region39: #{stack_conv_norm_nonlin.2} parent=27 // pred_region
        %s319 = sadd.s32 %s23, 2
        %p320 = scmp.lt.s32.totalorder %s22, 1
        %s321 = scalar_select %p320, %s22, 1
        %p322 = scmp.lt.s32.totalorder %s319, 11
        %s323 = scalar_select %p322, %s319, 11
        %s324 = smul.addr %s323, 19
        %s325 = smul.addr %s321, 228
        %s326 = sadd.s32 %s324, %s325
        %s327 = smul.addr %s326, 4
        %s328 = scalar_lea.vmem %s2, %s327
        %s329 = sadd.s32 %s23, 2
      $region40: #{stack_conv_norm_nonlin.2} parent=27 // pred_fallthru
        _
    $region28: #{stack_conv_norm_nonlin.2} parent=5 // pred_fallthru
      _
    %p330 = scmp.le.s32.totalorder 1, %s15
    %p331 = scmp.lt.s32.totalorder %s15, 21
    %p332 = pnand %p330, %p331
    %p333 = pneg %p332
    // Predicated region
    $region41: #{stack_conv_norm_nonlin.2} parent=5 // pred_check
      _
    $region42: #{stack_conv_norm_nonlin.2} parent=5 // pred_check_branch
      %335 = sbr.rel (%p332) target = $region44
    $region43: #{stack_conv_norm_nonlin.2} parent=5 // pred_region
      %s336 = ssub.s32 %s15, 1
      %p337 = scmp.lt.s32.totalorder %s24, 1
      %s338 = scalar_select %p337, %s24, 1
      %p339 = scmp.lt.s32.totalorder %s25, 11
      %s340 = scalar_select %p339, %s25, 11
      %s341 = smul.addr %s340, 19
      %s342 = smul.addr %s338, 228
      %s343 = sadd.s32 %s341, %s342
      %s344 = smul.addr %s343, 4
      %s345 = scalar_lea.vmem %s0, %s344
      %p346 = pneg %p55
      %p347 = pneg %p52
      %s348 = sadd.s32 %s25, 1
      %p349 = scmp.lt.s32.totalorder %s24, 1
      %s350 = scalar_select %p349, %s24, 1
      %p351 = scmp.lt.s32.totalorder %s348, 11
      %s352 = scalar_select %p351, %s348, 11
      %s353 = smul.addr %s352, 19
      %s354 = smul.addr %s350, 228
      %s355 = sadd.s32 %s353, %s354
      %s356 = smul.addr %s355, 4
      %s357 = scalar_lea.vmem %s1, %s356
      %p358 = pneg %p85
      %p359 = pneg %p82
      %s360 = sadd.s32 %s25, 2
      %p361 = scmp.lt.s32.totalorder %s24, 1
      %s362 = scalar_select %p361, %s24, 1
      %p363 = scmp.lt.s32.totalorder %s360, 11
      %s364 = scalar_select %p363, %s360, 11
      %s365 = smul.addr %s364, 19
      %s366 = smul.addr %s362, 228
      %s367 = sadd.s32 %s365, %s366
      %s368 = smul.addr %s367, 4
      %s369 = scalar_lea.vmem %s2, %s368
      %p370 = pneg %p115
      %p371 = pneg %p112
      %p372 = pneg %p136
      %p373 = pneg %p133
      %p374 = pneg %p157
      %p375 = pneg %p154
      %p376 = pneg %p178
      %p377 = pneg %p175
      %p378 = pneg %p206
      %p379 = pneg %p203
      %p380 = scmp.lt.s32.totalorder %s24, 1
      %s381 = scalar_select %p380, %s24, 1
      %p382 = scmp.lt.s32.totalorder %s25, 9
      %s383 = scalar_select %p382, %s25, 9
      %s384 = smul.addr %s383, 15
      %s385 = smul.addr %s381, 150
      %s386 = sadd.s32 %s384, %s385
      %s387 = smul.addr %s386, 4
      %s388 = scalar_lea.vmem %s6, %s387
      %p389 = pneg %p234
      %p390 = pneg %p231
      %p391 = scmp.lt.s32.totalorder %s24, 1
      %s392 = scalar_select %p391, %s24, 1
      %p393 = scmp.lt.s32.totalorder %s25, 9
      %s394 = scalar_select %p393, %s25, 9
      %s395 = smul.addr %s392, 10
      %s396 = sadd.s32 %s394, %s395
      %s397 = scalar_lea.vmem %s7, %s396
      %p398 = pneg %p262
      %p399 = pneg %p259
      %p400 = scmp.lt.s32.totalorder %s24, 1
      %s401 = scalar_select %p400, %s24, 1
      %p402 = scmp.lt.s32.totalorder %s25, 9
      %s403 = scalar_select %p402, %s25, 9
      %s404 = smul.addr %s401, 10
      %s405 = sadd.s32 %s403, %s404
      %s406 = scalar_lea.vmem %s8, %s405
      %p407 = scmp.lt.s32.totalorder %s24, 1
      %s408 = scalar_select %p407, %s24, 1
      %p409 = scmp.lt.s32.totalorder %s25, 11
      %s410 = scalar_select %p409, %s25, 11
      %s411 = smul.addr %s410, 19
      %s412 = smul.addr %s408, 228
      %s413 = sadd.s32 %s411, %s412
      %s414 = smul.addr %s413, 4
      %s415 = scalar_lea.vmem %s0, %s414
      %s416 = sadd.s32 %s25, 1
      %p417 = scmp.lt.s32.totalorder %s24, 1
      %s418 = scalar_select %p417, %s24, 1
      %p419 = scmp.lt.s32.totalorder %s416, 11
      %s420 = scalar_select %p419, %s416, 11
      %s421 = smul.addr %s420, 19
      %s422 = smul.addr %s418, 228
      %s423 = sadd.s32 %s421, %s422
      %s424 = smul.addr %s423, 4
      %s425 = scalar_lea.vmem %s1, %s424
      %s426 = sadd.s32 %s25, 1
      %s427 = sadd.s32 %s25, 2
      %p428 = scmp.lt.s32.totalorder %s24, 1
      %s429 = scalar_select %p428, %s24, 1
      %p430 = scmp.lt.s32.totalorder %s427, 11
      %s431 = scalar_select %p430, %s427, 11
      %s432 = smul.addr %s431, 19
      %s433 = smul.addr %s429, 228
      %s434 = sadd.s32 %s432, %s433
      %s435 = smul.addr %s434, 4
      %s436 = scalar_lea.vmem %s2, %s435
      %s437 = sadd.s32 %s25, 2
      %p438 = scmp.lt.s32.totalorder %s24, 1
      %s439 = scalar_select %p438, %s24, 1
      %p440 = scmp.lt.s32.totalorder %s25, 9
      %s441 = scalar_select %p440, %s25, 9
      %s442 = smul.addr %s441, 15
      %s443 = smul.addr %s439, 150
      %s444 = sadd.s32 %s442, %s443
      %s445 = smul.addr %s444, 4
      %s446 = scalar_lea.vmem %s6, %s445
      %p447 = scmp.lt.s32.totalorder %s24, 1
      %s448 = scalar_select %p447, %s24, 1
      %p449 = scmp.lt.s32.totalorder %s25, 9
      %s450 = scalar_select %p449, %s25, 9
      %s451 = smul.addr %s448, 10
      %s452 = sadd.s32 %s450, %s451
      %s453 = scalar_lea.vmem %s7, %s452
      %p454 = scmp.lt.s32.totalorder %s24, 1
      %s455 = scalar_select %p454, %s24, 1
      %p456 = scmp.lt.s32.totalorder %s25, 9
      %s457 = scalar_select %p456, %s25, 9
      %s458 = smul.addr %s455, 10
      %s459 = sadd.s32 %s457, %s458
      %s460 = scalar_lea.vmem %s8, %s459
      %v462 = vld [vmem:[%s415] sm:$0xf]
      %v463 = vld [vmem:[%s415 + $0x4] sm:$0xf]
      %v464 = vld [vmem:[%s415 + $0x8] sm:$0xf]
      %v465 = vld [vmem:[%s415 + $0xc] sm:$0xf]
      %v466 = vld [vmem:[%s415 + $0x10] sm:$0xf]
      %v467 = vld [vmem:[%s415 + $0x14] sm:$0xf]
      %v468 = vld [vmem:[%s415 + $0x18] sm:$0xf]
      %v469 = vld [vmem:[%s415 + $0x1c] sm:$0xf]
      %v470 = vld [vmem:[%s415 + $0x20] sm:$0xf]
      %v471 = vld [vmem:[%s415 + $0x24] sm:$0xf]
      %v472 = vld [vmem:[%s415 + $0x28] sm:$0xf]
      %v473 = vld [vmem:[%s415 + $0x2c] sm:$0xf]
      %v474 = vld [vmem:[%s415 + $0x30] sm:$0xf]
      %v475 = vld [vmem:[%s415 + $0x34] sm:$0xf]
      %v476 = vld [vmem:[%s415 + $0x38] sm:$0xf]
      %v477 = vld [vmem:[%s415 + $0x3c] sm:$0xf]
      %v478 = vld [vmem:[%s415 + $0x40] sm:$0xf]
      %v479 = vld [vmem:[%s415 + $0x44] sm:$0xf]
      %v480 = vld [vmem:[%s415 + $0x48] sm:$0xf]
      %v481 = vld [vmem:[%s425] sm:$0xf]
      %v482 = vld [vmem:[%s425 + $0x4] sm:$0xf]
      %v483 = vld [vmem:[%s425 + $0x8] sm:$0xf]
      %v484 = vld [vmem:[%s425 + $0xc] sm:$0xf]
      %v485 = vld [vmem:[%s425 + $0x10] sm:$0xf]
      %v486 = vld [vmem:[%s425 + $0x14] sm:$0xf]
      %v487 = vld [vmem:[%s425 + $0x18] sm:$0xf]
      %v488 = vld [vmem:[%s425 + $0x1c] sm:$0xf]
      %v489 = vld [vmem:[%s425 + $0x20] sm:$0xf]
      %v490 = vld [vmem:[%s425 + $0x24] sm:$0xf]
      %v491 = vld [vmem:[%s425 + $0x28] sm:$0xf]
      %v492 = vld [vmem:[%s425 + $0x2c] sm:$0xf]
      %v493 = vld [vmem:[%s425 + $0x30] sm:$0xf]
      %v494 = vld [vmem:[%s425 + $0x34] sm:$0xf]
      %v495 = vld [vmem:[%s425 + $0x38] sm:$0xf]
      %v496 = vld [vmem:[%s425 + $0x3c] sm:$0xf]
      %v497 = vld [vmem:[%s425 + $0x40] sm:$0xf]
      %v498 = vld [vmem:[%s425 + $0x44] sm:$0xf]
      %v499 = vld [vmem:[%s425 + $0x48] sm:$0xf]
      %v500 = vld [vmem:[%s436] sm:$0xf]
      %v501 = vld [vmem:[%s436 + $0x4] sm:$0xf]
      %v502 = vld [vmem:[%s436 + $0x8] sm:$0xf]
      %v503 = vld [vmem:[%s436 + $0xc] sm:$0xf]
      %v504 = vld [vmem:[%s436 + $0x10] sm:$0xf]
      %v505 = vld [vmem:[%s436 + $0x14] sm:$0xf]
      %v506 = vld [vmem:[%s436 + $0x18] sm:$0xf]
      %v507 = vld [vmem:[%s436 + $0x1c] sm:$0xf]
      %v508 = vld [vmem:[%s436 + $0x20] sm:$0xf]
      %v509 = vld [vmem:[%s436 + $0x24] sm:$0xf]
      %v510 = vld [vmem:[%s436 + $0x28] sm:$0xf]
      %v511 = vld [vmem:[%s436 + $0x2c] sm:$0xf]
      %v512 = vld [vmem:[%s436 + $0x30] sm:$0xf]
      %v513 = vld [vmem:[%s436 + $0x34] sm:$0xf]
      %v514 = vld [vmem:[%s436 + $0x38] sm:$0xf]
      %v515 = vld [vmem:[%s436 + $0x3c] sm:$0xf]
      %v516 = vld [vmem:[%s436 + $0x40] sm:$0xf]
      %v517 = vld [vmem:[%s436 + $0x44] sm:$0xf]
      %v518 = vld [vmem:[%s436 + $0x48] sm:$0xf]
      %v519 = vld [vmem:[%s3] sm:$0x3]
      %v539 = vunpack.c.l.b16 %v462
      %v540 = vunpack.c.l.b16 %v463
      %v541 = vunpack.c.l.b16 %v464
      %v542 = vunpack.c.l.b16 %v465
      %v543 = vunpack.c.l.b16 %v466
      %v544 = vunpack.c.l.b16 %v467
      %v545 = vunpack.c.l.b16 %v468
      %v546 = vunpack.c.l.b16 %v469
      %v547 = vunpack.c.l.b16 %v470
      %v548 = vunpack.c.l.b16 %v471
      %v549 = vunpack.c.l.b16 %v472
      %v550 = vunpack.c.l.b16 %v473
      %v551 = vunpack.c.l.b16 %v474
      %v552 = vunpack.c.l.b16 %v475
      %v553 = vunpack.c.l.b16 %v476
      %v554 = vunpack.c.l.b16 %v477
      %v555 = vunpack.c.l.b16 %v478
      %v556 = vunpack.c.l.b16 %v479
      %v557 = vunpack.c.l.b16 %v480
      %v558 = vpack.c.b16 %v540, %v539
      %v559 = vpack.c.b16 %v542, %v541
      %v560 = vpack.c.b16 %v544, %v543
      %v561 = vpack.c.b16 %v546, %v545
      %v562 = vpack.c.b16 %v548, %v547
      %v563 = vpack.c.b16 %v550, %v549
      %v564 = vpack.c.b16 %v552, %v551
      %v565 = vpack.c.b16 %v554, %v553
      %v566 = vpack.c.b16 %v556, %v555
      %v567 = vpack.c.b16 %v557, %v557
      %vm568 = vcmask 31744
      %v570 = vsel %vm568, %v558, 0
      %v573 = vsel %vm568, %v559, 0
      %v576 = vsel %vm568, %v560, 0
      %v579 = vsel %vm568, %v561, 0
      %v582 = vsel %vm568, %v562, 0
      %v585 = vsel %vm568, %v563, 0
      %v588 = vsel %vm568, %v564, 0
      %v591 = vsel %vm568, %v565, 0
      %v594 = vsel %vm568, %v566, 0
      %v597 = vsel %vm568, %v567, 0
      %vm599 = vcmask 1041408
      %v601 = vsel %vm599, %v519, 0
      %603 = vmatprep.subr.bf16.mxu0 0
      %604 = vmatpush1.bf16.msra.mxu0 0
      %605 = vmatprep.subr.bf16.mxu0 0
      %606 = vmatpush1.bf16.msra.mxu0 0
      %607 = vmatprep.subr.bf16.mxu0 0
      %608 = vmatpush1.bf16.msra.mxu0 0
      %609 = vmatprep.subr.bf16.mxu0 0
      %610 = vmatpush1.bf16.msra.mxu0 0
      %611 = vmatprep.subr.bf16.mxu0 0
      %612 = vmatpush1.bf16.msra.mxu0 0
      %613 = vmatprep.subr.bf16.mxu0 0
      %614 = vmatpush1.bf16.msra.mxu0 0
      %615 = vmatprep.subr.bf16.mxu0 0
      %616 = vmatpush1.bf16.msra.mxu0 0
      %617 = vmatprep.subr.bf16.mxu0 0
      %618 = vmatpush1.bf16.msra.mxu0 %v601
      %619 = vmatprep.subr.bf16.mxu0 0
      %620 = vmatpush2.bf16.msra.mxu0 0
      %621 = vmatprep.subr.bf16.mxu0 0
      %622 = vmatpush2.bf16.msra.mxu0 0
      %623 = vmatprep.subr.bf16.mxu0 0
      %624 = vmatpush2.bf16.msra.mxu0 0
      %625 = vmatprep.subr.bf16.mxu0 0
      %626 = vmatpush2.bf16.msra.mxu0 0
      %627 = vmatprep.subr.bf16.mxu0 0
      %628 = vmatpush2.bf16.msra.mxu0 0
      %629 = vmatprep.subr.bf16.mxu0 0
      %630 = vmatpush2.bf16.msra.mxu0 0
      %631 = vmatprep.subr.bf16.mxu0 0
      %632 = vmatpush2.bf16.msra.mxu0 0
      %633 = vmatprep.subr.bf16.mxu0 0
      %634 = vmatpush2.bf16.msra.mxu0 0
      %635 = vmatprep.mubr.bf16.mxu0 0
      %636 = vmatmul.mubr.bf16.gmra.mxu0 %v570
      %v637 = vpop.f32.mrf.mxu0
      %v638 = vadd.f32 0.0, %v637
      %v639 = vpop.f32.mrf.mxu0
      %v640 = vpop.f32.mrf.mxu0
      %v641 = vadd.f32 0.0, %v640
      %v642 = vpop.f32.mrf.mxu0
      %643 = vmatprep.mubr.bf16.mxu0 0
      %644 = vmatmul.mubr.bf16.gmra.mxu0 %v573
      %v645 = vpop.f32.mrf.mxu0
      %v646 = vadd.f32 0.0, %v645
      %v647 = vpop.f32.mrf.mxu0
      %v648 = vpop.f32.mrf.mxu0
      %v649 = vadd.f32 0.0, %v648
      %v650 = vpop.f32.mrf.mxu0
      %651 = vmatprep.mubr.bf16.mxu0 0
      %652 = vmatmul.mubr.bf16.gmra.mxu0 %v576
      %v653 = vpop.f32.mrf.mxu0
      %v654 = vadd.f32 0.0, %v653
      %v655 = vpop.f32.mrf.mxu0
      %v656 = vpop.f32.mrf.mxu0
      %v657 = vadd.f32 0.0, %v656
      %v658 = vpop.f32.mrf.mxu0
      %659 = vmatprep.mubr.bf16.mxu0 0
      %660 = vmatmul.mubr.bf16.gmra.mxu0 %v579
      %v661 = vpop.f32.mrf.mxu0
      %v662 = vadd.f32 0.0, %v661
      %v663 = vpop.f32.mrf.mxu0
      %v664 = vpop.f32.mrf.mxu0
      %v665 = vadd.f32 0.0, %v664
      %v666 = vpop.f32.mrf.mxu0
      %667 = vmatprep.mubr.bf16.mxu0 0
      %668 = vmatmul.mubr.bf16.gmra.mxu0 %v582
      %v669 = vpop.f32.mrf.mxu0
      %v670 = vadd.f32 0.0, %v669
      %v671 = vpop.f32.mrf.mxu0
      %v672 = vpop.f32.mrf.mxu0
      %v673 = vadd.f32 0.0, %v672
      %v674 = vpop.f32.mrf.mxu0
      %675 = vmatprep.mubr.bf16.mxu0 0
      %676 = vmatmul.mubr.bf16.gmra.mxu0 %v585
      %v677 = vpop.f32.mrf.mxu0
      %v678 = vadd.f32 0.0, %v677
      %v679 = vpop.f32.mrf.mxu0
      %v680 = vpop.f32.mrf.mxu0
      %v681 = vadd.f32 0.0, %v680
      %v682 = vpop.f32.mrf.mxu0
      %683 = vmatprep.mubr.bf16.mxu0 0
      %684 = vmatmul.mubr.bf16.gmra.mxu0 %v588
      %v685 = vpop.f32.mrf.mxu0
      %v686 = vadd.f32 0.0, %v685
      %v687 = vpop.f32.mrf.mxu0
      %v688 = vpop.f32.mrf.mxu0
      %v689 = vadd.f32 0.0, %v688
      %v690 = vpop.f32.mrf.mxu0
      %691 = vmatprep.mubr.bf16.mxu0 0
      %692 = vmatmul.mubr.bf16.gmra.mxu0 %v591
      %v693 = vpop.f32.mrf.mxu0
      %v694 = vadd.f32 0.0, %v693
      %v695 = vpop.f32.mrf.mxu0
      %v696 = vpop.f32.mrf.mxu0
      %v697 = vpop.f32.mrf.mxu0
      %698 = vmatprep.mubr.bf16.mxu0 0
      %699 = vmatmul.mubr.bf16.gmra.mxu0 %v594
      %v700 = vpop.f32.mrf.mxu0
      %v701 = vpop.f32.mrf.mxu0
      %v702 = vpop.f32.mrf.mxu0
      %v703 = vpop.f32.mrf.mxu0
      %704 = vmatprep.mubr.bf16.mxu0 0
      %705 = vmatmul.mubr.bf16.gmra.mxu0 %v597
      %v706 = vpop.f32.mrf.mxu0
      %v707 = vpop.f32.mrf.mxu0
      %v708 = vpop.f32.mrf.mxu0
      %v709 = vpop.f32.mrf.mxu0
      %710 = vdwg.mxu0
      %v711 = vadd.f32 %v638, 0.0
      %v712 = vadd.f32 %v641, 0.0
      %v713 = vadd.f32 %v646, 0.0
      %v714 = vadd.f32 %v649, 0.0
      %v715 = vadd.f32 %v654, 0.0
      %v716 = vadd.f32 %v657, 0.0
      %v717 = vadd.f32 %v662, 0.0
      %v718 = vadd.f32 %v665, 0.0
      %v719 = vadd.f32 %v670, 0.0
      %v720 = vadd.f32 %v673, 0.0
      %v721 = vadd.f32 %v678, 0.0
      %v722 = vadd.f32 %v681, 0.0
      %v723 = vadd.f32 %v686, 0.0
      %v724 = vadd.f32 %v689, 0.0
      %v725 = vadd.f32 %v694, 0.0
      %s726 = scalar_lea.vmem %s3, 2
      %v727 = vld [vmem:[%s726] sm:$0x3]
      %v729 = vsel %vm599, %v727, 0
      %731 = vmatprep.subr.bf16.mxu0 0
      %732 = vmatpush1.bf16.msra.mxu0 0
      %733 = vmatprep.subr.bf16.mxu0 0
      %734 = vmatpush1.bf16.msra.mxu0 0
      %735 = vmatprep.subr.bf16.mxu0 0
      %736 = vmatpush1.bf16.msra.mxu0 0
      %737 = vmatprep.subr.bf16.mxu0 0
      %738 = vmatpush1.bf16.msra.mxu0 0
      %739 = vmatprep.subr.bf16.mxu0 0
      %740 = vmatpush1.bf16.msra.mxu0 0
      %741 = vmatprep.subr.bf16.mxu0 0
      %742 = vmatpush1.bf16.msra.mxu0 0
      %743 = vmatprep.subr.bf16.mxu0 0
      %744 = vmatpush1.bf16.msra.mxu0 0
      %745 = vmatprep.subr.bf16.mxu0 0
      %746 = vmatpush1.bf16.msra.mxu0 %v729
      %747 = vmatprep.subr.bf16.mxu0 0
      %748 = vmatpush2.bf16.msra.mxu0 0
      %749 = vmatprep.subr.bf16.mxu0 0
      %750 = vmatpush2.bf16.msra.mxu0 0
      %751 = vmatprep.subr.bf16.mxu0 0
      %752 = vmatpush2.bf16.msra.mxu0 0
      %753 = vmatprep.subr.bf16.mxu0 0
      %754 = vmatpush2.bf16.msra.mxu0 0
      %755 = vmatprep.subr.bf16.mxu0 0
      %756 = vmatpush2.bf16.msra.mxu0 0
      %757 = vmatprep.subr.bf16.mxu0 0
      %758 = vmatpush2.bf16.msra.mxu0 0
      %759 = vmatprep.subr.bf16.mxu0 0
      %760 = vmatpush2.bf16.msra.mxu0 0
      %761 = vmatprep.subr.bf16.mxu0 0
      %762 = vmatpush2.bf16.msra.mxu0 0
      %763 = vmatprep.mubr.bf16.mxu0 0
      %764 = vmatmul.mubr.bf16.gmra.mxu0 %v570
      %v765 = vpop.f32.mrf.mxu0
      %v766 = vadd.f32 0.0, %v765
      %v767 = vpop.f32.mrf.mxu0
      %v768 = vpop.f32.mrf.mxu0
      %v769 = vadd.f32 0.0, %v768
      %v770 = vpop.f32.mrf.mxu0
      %771 = vmatprep.mubr.bf16.mxu0 0
      %772 = vmatmul.mubr.bf16.gmra.mxu0 %v573
      %v773 = vpop.f32.mrf.mxu0
      %v774 = vadd.f32 0.0, %v773
      %v775 = vpop.f32.mrf.mxu0
      %v776 = vpop.f32.mrf.mxu0
      %v777 = vadd.f32 0.0, %v776
      %v778 = vpop.f32.mrf.mxu0
      %779 = vmatprep.mubr.bf16.mxu0 0
      %780 = vmatmul.mubr.bf16.gmra.mxu0 %v576
      %v781 = vpop.f32.mrf.mxu0
      %v782 = vadd.f32 0.0, %v781
      %v783 = vpop.f32.mrf.mxu0
      %v784 = vpop.f32.mrf.mxu0
      %v785 = vadd.f32 0.0, %v784
      %v786 = vpop.f32.mrf.mxu0
      %787 = vmatprep.mubr.bf16.mxu0 0
      %788 = vmatmul.mubr.bf16.gmra.mxu0 %v579
      %v789 = vpop.f32.mrf.mxu0
      %v790 = vadd.f32 0.0, %v789
      %v791 = vpop.f32.mrf.mxu0
      %v792 = vpop.f32.mrf.mxu0
      %v793 = vadd.f32 0.0, %v792
      %v794 = vpop.f32.mrf.mxu0
      %795 = vmatprep.mubr.bf16.mxu0 0
      %796 = vmatmul.mubr.bf16.gmra.mxu0 %v582
      %v797 = vpop.f32.mrf.mxu0
      %v798 = vadd.f32 0.0, %v797
      %v799 = vpop.f32.mrf.mxu0
      %v800 = vpop.f32.mrf.mxu0
      %v801 = vadd.f32 0.0, %v800
      %v802 = vpop.f32.mrf.mxu0
      %803 = vmatprep.mubr.bf16.mxu0 0
      %804 = vmatmul.mubr.bf16.gmra.mxu0 %v585
      %v805 = vpop.f32.mrf.mxu0
      %v806 = vadd.f32 0.0, %v805
      %v807 = vpop.f32.mrf.mxu0
      %v808 = vpop.f32.mrf.mxu0
      %v809 = vadd.f32 0.0, %v808
      %v810 = vpop.f32.mrf.mxu0
      %811 = vmatprep.mubr.bf16.mxu0 0
      %812 = vmatmul.mubr.bf16.gmra.mxu0 %v588
      %v813 = vpop.f32.mrf.mxu0
      %v814 = vadd.f32 0.0, %v813
      %v815 = vpop.f32.mrf.mxu0
      %v816 = vpop.f32.mrf.mxu0
      %v817 = vadd.f32 0.0, %v816
      %v818 = vpop.f32.mrf.mxu0
      %819 = vmatprep.mubr.bf16.mxu0 0
      %820 = vmatmul.mubr.bf16.gmra.mxu0 %v591
      %v821 = vpop.f32.mrf.mxu0
      %v822 = vadd.f32 0.0, %v821
      %v823 = vpop.f32.mrf.mxu0
      %v824 = vpop.f32.mrf.mxu0
      %v825 = vadd.f32 0.0, %v824
      %v826 = vpop.f32.mrf.mxu0
      %827 = vmatprep.mubr.bf16.mxu0 0
      %828 = vmatmul.mubr.bf16.gmra.mxu0 %v594
      %v829 = vpop.f32.mrf.mxu0
      %v830 = vpop.f32.mrf.mxu0
      %v831 = vpop.f32.mrf.mxu0
      %v832 = vpop.f32.mrf.mxu0
      %833 = vmatprep.mubr.bf16.mxu0 0
      %834 = vmatmul.mubr.bf16.gmra.mxu0 %v597
      %v835 = vpop.f32.mrf.mxu0
      %v836 = vpop.f32.mrf.mxu0
      %v837 = vpop.f32.mrf.mxu0
      %v838 = vpop.f32.mrf.mxu0
      %839 = vdwg.mxu0
      %vm856 = vcmask 1046528
      %v857 = vrot.slane %v766, 1
      %v858 = vrot.slane %v769, 1
      %v859 = vsel %vm856, %v857, %v858
      %v860 = vrot.slane %v774, 1
      %v861 = vsel %vm856, %v858, %v860
      %v862 = vrot.slane %v777, 1
      %v863 = vsel %vm856, %v860, %v862
      %v864 = vrot.slane %v782, 1
      %v865 = vsel %vm856, %v862, %v864
      %v866 = vrot.slane %v785, 1
      %v867 = vsel %vm856, %v864, %v866
      %v868 = vrot.slane %v790, 1
      %v869 = vsel %vm856, %v866, %v868
      %v870 = vrot.slane %v793, 1
      %v871 = vsel %vm856, %v868, %v870
      %v872 = vrot.slane %v798, 1
      %v873 = vsel %vm856, %v870, %v872
      %v874 = vrot.slane %v801, 1
      %v875 = vsel %vm856, %v872, %v874
      %v876 = vrot.slane %v806, 1
      %v877 = vsel %vm856, %v874, %v876
      %v878 = vrot.slane %v809, 1
      %v879 = vsel %vm856, %v876, %v878
      %v880 = vrot.slane %v814, 1
      %v881 = vsel %vm856, %v878, %v880
      %v882 = vrot.slane %v817, 1
      %v883 = vsel %vm856, %v880, %v882
      %v884 = vrot.slane %v822, 1
      %v885 = vsel %vm856, %v882, %v884
      %v886 = vrot.slane %v825, 1
      %v887 = vsel %vm856, %v884, %v886
      %v903 = vadd.f32 %v711, %v859
      %v904 = vadd.f32 %v712, %v861
      %v905 = vadd.f32 %v713, %v863
      %v906 = vadd.f32 %v714, %v865
      %v907 = vadd.f32 %v715, %v867
      %v908 = vadd.f32 %v716, %v869
      %v909 = vadd.f32 %v717, %v871
      %v910 = vadd.f32 %v718, %v873
      %v911 = vadd.f32 %v719, %v875
      %v912 = vadd.f32 %v720, %v877
      %v913 = vadd.f32 %v721, %v879
      %v914 = vadd.f32 %v722, %v881
      %v915 = vadd.f32 %v723, %v883
      %v916 = vadd.f32 %v724, %v885
      %v917 = vadd.f32 %v725, %v887
      %s918 = scalar_lea.vmem %s3, 4
      %v919 = vld [vmem:[%s918] sm:$0x3]
      %v921 = vsel %vm599, %v919, 0
      %923 = vmatprep.subr.bf16.mxu0 0
      %924 = vmatpush1.bf16.msra.mxu0 0
      %925 = vmatprep.subr.bf16.mxu0 0
      %926 = vmatpush1.bf16.msra.mxu0 0
      %927 = vmatprep.subr.bf16.mxu0 0
      %928 = vmatpush1.bf16.msra.mxu0 0
      %929 = vmatprep.subr.bf16.mxu0 0
      %930 = vmatpush1.bf16.msra.mxu0 0
      %931 = vmatprep.subr.bf16.mxu0 0
      %932 = vmatpush1.bf16.msra.mxu0 0
      %933 = vmatprep.subr.bf16.mxu0 0
      %934 = vmatpush1.bf16.msra.mxu0 0
      %935 = vmatprep.subr.bf16.mxu0 0
      %936 = vmatpush1.bf16.msra.mxu0 0
      %937 = vmatprep.subr.bf16.mxu0 0
      %938 = vmatpush1.bf16.msra.mxu0 %v921
      %939 = vmatprep.subr.bf16.mxu0 0
      %940 = vmatpush2.bf16.msra.mxu0 0
      %941 = vmatprep.subr.bf16.mxu0 0
      %942 = vmatpush2.bf16.msra.mxu0 0
      %943 = vmatprep.subr.bf16.mxu0 0
      %944 = vmatpush2.bf16.msra.mxu0 0
      %945 = vmatprep.subr.bf16.mxu0 0
      %946 = vmatpush2.bf16.msra.mxu0 0
      %947 = vmatprep.subr.bf16.mxu0 0
      %948 = vmatpush2.bf16.msra.mxu0 0
      %949 = vmatprep.subr.bf16.mxu0 0
      %950 = vmatpush2.bf16.msra.mxu0 0
      %951 = vmatprep.subr.bf16.mxu0 0
      %952 = vmatpush2.bf16.msra.mxu0 0
      %953 = vmatprep.subr.bf16.mxu0 0
      %954 = vmatpush2.bf16.msra.mxu0 0
      %955 = vmatprep.mubr.bf16.mxu0 0
      %956 = vmatmul.mubr.bf16.gmra.mxu0 %v570
      %v957 = vpop.f32.mrf.mxu0
      %v958 = vadd.f32 0.0, %v957
      %v959 = vpop.f32.mrf.mxu0
      %v960 = vpop.f32.mrf.mxu0
      %v961 = vadd.f32 0.0, %v960
      %v962 = vpop.f32.mrf.mxu0
      %963 = vmatprep.mubr.bf16.mxu0 0
      %964 = vmatmul.mubr.bf16.gmra.mxu0 %v573
      %v965 = vpop.f32.mrf.mxu0
      %v966 = vadd.f32 0.0, %v965
      %v967 = vpop.f32.mrf.mxu0
      %v968 = vpop.f32.mrf.mxu0
      %v969 = vadd.f32 0.0, %v968
      %v970 = vpop.f32.mrf.mxu0
      %971 = vmatprep.mubr.bf16.mxu0 0
      %972 = vmatmul.mubr.bf16.gmra.mxu0 %v576
      %v973 = vpop.f32.mrf.mxu0
      %v974 = vadd.f32 0.0, %v973
      %v975 = vpop.f32.mrf.mxu0
      %v976 = vpop.f32.mrf.mxu0
      %v977 = vadd.f32 0.0, %v976
      %v978 = vpop.f32.mrf.mxu0
      %979 = vmatprep.mubr.bf16.mxu0 0
      %980 = vmatmul.mubr.bf16.gmra.mxu0 %v579
      %v981 = vpop.f32.mrf.mxu0
      %v982 = vadd.f32 0.0, %v981
      %v983 = vpop.f32.mrf.mxu0
      %v984 = vpop.f32.mrf.mxu0
      %v985 = vadd.f32 0.0, %v984
      %v986 = vpop.f32.mrf.mxu0
      %987 = vmatprep.mubr.bf16.mxu0 0
      %988 = vmatmul.mubr.bf16.gmra.mxu0 %v582
      %v989 = vpop.f32.mrf.mxu0
      %v990 = vadd.f32 0.0, %v989
      %v991 = vpop.f32.mrf.mxu0
      %v992 = vpop.f32.mrf.mxu0
      %v993 = vadd.f32 0.0, %v992
      %v994 = vpop.f32.mrf.mxu0
      %995 = vmatprep.mubr.bf16.mxu0 0
      %996 = vmatmul.mubr.bf16.gmra.mxu0 %v585
      %v997 = vpop.f32.mrf.mxu0
      %v998 = vadd.f32 0.0, %v997
      %v999 = vpop.f32.mrf.mxu0
      %v1000 = vpop.f32.mrf.mxu0
      %v1001 = vadd.f32 0.0, %v1000
      %v1002 = vpop.f32.mrf.mxu0
      %1003 = vmatprep.mubr.bf16.mxu0 0
      %1004 = vmatmul.mubr.bf16.gmra.mxu0 %v588
      %v1005 = vpop.f32.mrf.mxu0
      %v1006 = vadd.f32 0.0, %v1005
      %v1007 = vpop.f32.mrf.mxu0
      %v1008 = vpop.f32.mrf.mxu0
      %v1009 = vadd.f32 0.0, %v1008
      %v1010 = vpop.f32.mrf.mxu0
      %1011 = vmatprep.mubr.bf16.mxu0 0
      %1012 = vmatmul.mubr.bf16.gmra.mxu0 %v591
      %v1013 = vpop.f32.mrf.mxu0
      %v1014 = vadd.f32 0.0, %v1013
      %v1015 = vpop.f32.mrf.mxu0
      %v1016 = vpop.f32.mrf.mxu0
      %v1017 = vadd.f32 0.0, %v1016
      %v1018 = vpop.f32.mrf.mxu0
      %1019 = vmatprep.mubr.bf16.mxu0 0
      %1020 = vmatmul.mubr.bf16.gmra.mxu0 %v594
      %v1021 = vpop.f32.mrf.mxu0
      %v1022 = vpop.f32.mrf.mxu0
      %v1023 = vpop.f32.mrf.mxu0
      %v1024 = vpop.f32.mrf.mxu0
      %1025 = vmatprep.mubr.bf16.mxu0 0
      %1026 = vmatmul.mubr.bf16.gmra.mxu0 %v597
      %v1027 = vpop.f32.mrf.mxu0
      %v1028 = vpop.f32.mrf.mxu0
      %v1029 = vpop.f32.mrf.mxu0
      %v1030 = vpop.f32.mrf.mxu0
      %1031 = vdwg.mxu0
      %vm1048 = vcmask 1045504
      %v1049 = vrot.slane %v958, 2
      %v1050 = vrot.slane %v961, 2
      %v1051 = vsel %vm1048, %v1049, %v1050
      %v1052 = vrot.slane %v966, 2
      %v1053 = vsel %vm1048, %v1050, %v1052
      %v1054 = vrot.slane %v969, 2
      %v1055 = vsel %vm1048, %v1052, %v1054
      %v1056 = vrot.slane %v974, 2
      %v1057 = vsel %vm1048, %v1054, %v1056
      %v1058 = vrot.slane %v977, 2
      %v1059 = vsel %vm1048, %v1056, %v1058
      %v1060 = vrot.slane %v982, 2
      %v1061 = vsel %vm1048, %v1058, %v1060
      %v1062 = vrot.slane %v985, 2
      %v1063 = vsel %vm1048, %v1060, %v1062
      %v1064 = vrot.slane %v990, 2
      %v1065 = vsel %vm1048, %v1062, %v1064
      %v1066 = vrot.slane %v993, 2
      %v1067 = vsel %vm1048, %v1064, %v1066
      %v1068 = vrot.slane %v998, 2
      %v1069 = vsel %vm1048, %v1066, %v1068
      %v1070 = vrot.slane %v1001, 2
      %v1071 = vsel %vm1048, %v1068, %v1070
      %v1072 = vrot.slane %v1006, 2
      %v1073 = vsel %vm1048, %v1070, %v1072
      %v1074 = vrot.slane %v1009, 2
      %v1075 = vsel %vm1048, %v1072, %v1074
      %v1076 = vrot.slane %v1014, 2
      %v1077 = vsel %vm1048, %v1074, %v1076
      %v1078 = vrot.slane %v1017, 2
      %v1079 = vsel %vm1048, %v1076, %v1078
      %v1095 = vadd.f32 %v903, %v1051
      %v1096 = vadd.f32 %v904, %v1053
      %v1097 = vadd.f32 %v905, %v1055
      %v1098 = vadd.f32 %v906, %v1057
      %v1099 = vadd.f32 %v907, %v1059
      %v1100 = vadd.f32 %v908, %v1061
      %v1101 = vadd.f32 %v909, %v1063
      %v1102 = vadd.f32 %v910, %v1065
      %v1103 = vadd.f32 %v911, %v1067
      %v1104 = vadd.f32 %v912, %v1069
      %v1105 = vadd.f32 %v913, %v1071
      %v1106 = vadd.f32 %v914, %v1073
      %v1107 = vadd.f32 %v915, %v1075
      %v1108 = vadd.f32 %v916, %v1077
      %v1109 = vadd.f32 %v917, %v1079
      %s1110 = scalar_lea.vmem %s3, 6
      %v1111 = vld [vmem:[%s1110] sm:$0x3]
      %v1113 = vsel %vm599, %v1111, 0
      %1115 = vmatprep.subr.bf16.mxu0 0
      %1116 = vmatpush1.bf16.msra.mxu0 0
      %1117 = vmatprep.subr.bf16.mxu0 0
      %1118 = vmatpush1.bf16.msra.mxu0 0
      %1119 = vmatprep.subr.bf16.mxu0 0
      %1120 = vmatpush1.bf16.msra.mxu0 0
      %1121 = vmatprep.subr.bf16.mxu0 0
      %1122 = vmatpush1.bf16.msra.mxu0 0
      %1123 = vmatprep.subr.bf16.mxu0 0
      %1124 = vmatpush1.bf16.msra.mxu0 0
      %1125 = vmatprep.subr.bf16.mxu0 0
      %1126 = vmatpush1.bf16.msra.mxu0 0
      %1127 = vmatprep.subr.bf16.mxu0 0
      %1128 = vmatpush1.bf16.msra.mxu0 0
      %1129 = vmatprep.subr.bf16.mxu0 0
      %1130 = vmatpush1.bf16.msra.mxu0 %v1113
      %1131 = vmatprep.subr.bf16.mxu0 0
      %1132 = vmatpush2.bf16.msra.mxu0 0
      %1133 = vmatprep.subr.bf16.mxu0 0
      %1134 = vmatpush2.bf16.msra.mxu0 0
      %1135 = vmatprep.subr.bf16.mxu0 0
      %1136 = vmatpush2.bf16.msra.mxu0 0
      %1137 = vmatprep.subr.bf16.mxu0 0
      %1138 = vmatpush2.bf16.msra.mxu0 0
      %1139 = vmatprep.subr.bf16.mxu0 0
      %1140 = vmatpush2.bf16.msra.mxu0 0
      %1141 = vmatprep.subr.bf16.mxu0 0
      %1142 = vmatpush2.bf16.msra.mxu0 0
      %1143 = vmatprep.subr.bf16.mxu0 0
      %1144 = vmatpush2.bf16.msra.mxu0 0
      %1145 = vmatprep.subr.bf16.mxu0 0
      %1146 = vmatpush2.bf16.msra.mxu0 0
      %1147 = vmatprep.mubr.bf16.mxu0 0
      %1148 = vmatmul.mubr.bf16.gmra.mxu0 %v570
      %v1149 = vpop.f32.mrf.mxu0
      %v1150 = vpop.f32.mrf.mxu0
      %v1151 = vpop.f32.mrf.mxu0
      %v1152 = vadd.f32 0.0, %v1151
      %v1153 = vpop.f32.mrf.mxu0
      %1154 = vmatprep.mubr.bf16.mxu0 0
      %1155 = vmatmul.mubr.bf16.gmra.mxu0 %v573
      %v1156 = vpop.f32.mrf.mxu0
      %v1157 = vadd.f32 0.0, %v1156
      %v1158 = vpop.f32.mrf.mxu0
      %v1159 = vpop.f32.mrf.mxu0
      %v1160 = vadd.f32 0.0, %v1159
      %v1161 = vpop.f32.mrf.mxu0
      %1162 = vmatprep.mubr.bf16.mxu0 0
      %1163 = vmatmul.mubr.bf16.gmra.mxu0 %v576
      %v1164 = vpop.f32.mrf.mxu0
      %v1165 = vadd.f32 0.0, %v1164
      %v1166 = vpop.f32.mrf.mxu0
      %v1167 = vpop.f32.mrf.mxu0
      %v1168 = vadd.f32 0.0, %v1167
      %v1169 = vpop.f32.mrf.mxu0
      %1170 = vmatprep.mubr.bf16.mxu0 0
      %1171 = vmatmul.mubr.bf16.gmra.mxu0 %v579
      %v1172 = vpop.f32.mrf.mxu0
      %v1173 = vadd.f32 0.0, %v1172
      %v1174 = vpop.f32.mrf.mxu0
      %v1175 = vpop.f32.mrf.mxu0
      %v1176 = vadd.f32 0.0, %v1175
      %v1177 = vpop.f32.mrf.mxu0
      %1178 = vmatprep.mubr.bf16.mxu0 0
      %1179 = vmatmul.mubr.bf16.gmra.mxu0 %v582
      %v1180 = vpop.f32.mrf.mxu0
      %v1181 = vadd.f32 0.0, %v1180
      %v1182 = vpop.f32.mrf.mxu0
      %v1183 = vpop.f32.mrf.mxu0
      %v1184 = vadd.f32 0.0, %v1183
      %v1185 = vpop.f32.mrf.mxu0
      %1186 = vmatprep.mubr.bf16.mxu0 0
      %1187 = vmatmul.mubr.bf16.gmra.mxu0 %v585
      %v1188 = vpop.f32.mrf.mxu0
      %v1189 = vadd.f32 0.0, %v1188
      %v1190 = vpop.f32.mrf.mxu0
      %v1191 = vpop.f32.mrf.mxu0
      %v1192 = vadd.f32 0.0, %v1191
      %v1193 = vpop.f32.mrf.mxu0
      %1194 = vmatprep.mubr.bf16.mxu0 0
      %1195 = vmatmul.mubr.bf16.gmra.mxu0 %v588
      %v1196 = vpop.f32.mrf.mxu0
      %v1197 = vadd.f32 0.0, %v1196
      %v1198 = vpop.f32.mrf.mxu0
      %v1199 = vpop.f32.mrf.mxu0
      %v1200 = vadd.f32 0.0, %v1199
      %v1201 = vpop.f32.mrf.mxu0
      %1202 = vmatprep.mubr.bf16.mxu0 0
      %1203 = vmatmul.mubr.bf16.gmra.mxu0 %v591
      %v1204 = vpop.f32.mrf.mxu0
      %v1205 = vadd.f32 0.0, %v1204
      %v1206 = vpop.f32.mrf.mxu0
      %v1207 = vpop.f32.mrf.mxu0
      %v1208 = vadd.f32 0.0, %v1207
      %v1209 = vpop.f32.mrf.mxu0
      %1210 = vmatprep.mubr.bf16.mxu0 0
      %1211 = vmatmul.mubr.bf16.gmra.mxu0 %v594
      %v1212 = vpop.f32.mrf.mxu0
      %v1213 = vadd.f32 0.0, %v1212
      %v1214 = vpop.f32.mrf.mxu0
      %v1215 = vpop.f32.mrf.mxu0
      %v1216 = vpop.f32.mrf.mxu0
      %1217 = vmatprep.mubr.bf16.mxu0 0
      %1218 = vmatmul.mubr.bf16.gmra.mxu0 %v597
      %v1219 = vpop.f32.mrf.mxu0
      %v1220 = vpop.f32.mrf.mxu0
      %v1221 = vpop.f32.mrf.mxu0
      %v1222 = vpop.f32.mrf.mxu0
      %1223 = vdwg.mxu0
      %vm1240 = vcmask 1043456
      %v1241 = vrot.slane %v1152, 4
      %v1242 = vrot.slane %v1157, 4
      %v1243 = vsel %vm1240, %v1241, %v1242
      %v1244 = vrot.slane %v1160, 4
      %v1245 = vsel %vm1240, %v1242, %v1244
      %v1246 = vrot.slane %v1165, 4
      %v1247 = vsel %vm1240, %v1244, %v1246
      %v1248 = vrot.slane %v1168, 4
      %v1249 = vsel %vm1240, %v1246, %v1248
      %v1250 = vrot.slane %v1173, 4
      %v1251 = vsel %vm1240, %v1248, %v1250
      %v1252 = vrot.slane %v1176, 4
      %v1253 = vsel %vm1240, %v1250, %v1252
      %v1254 = vrot.slane %v1181, 4
      %v1255 = vsel %vm1240, %v1252, %v1254
      %v1256 = vrot.slane %v1184, 4
      %v1257 = vsel %vm1240, %v1254, %v1256
      %v1258 = vrot.slane %v1189, 4
      %v1259 = vsel %vm1240, %v1256, %v1258
      %v1260 = vrot.slane %v1192, 4
      %v1261 = vsel %vm1240, %v1258, %v1260
      %v1262 = vrot.slane %v1197, 4
      %v1263 = vsel %vm1240, %v1260, %v1262
      %v1264 = vrot.slane %v1200, 4
      %v1265 = vsel %vm1240, %v1262, %v1264
      %v1266 = vrot.slane %v1205, 4
      %v1267 = vsel %vm1240, %v1264, %v1266
      %v1268 = vrot.slane %v1208, 4
      %v1269 = vsel %vm1240, %v1266, %v1268
      %v1270 = vrot.slane %v1213, 4
      %v1271 = vsel %vm1240, %v1268, %v1270
      %v1287 = vadd.f32 %v1095, %v1243
      %v1288 = vadd.f32 %v1096, %v1245
      %v1289 = vadd.f32 %v1097, %v1247
      %v1290 = vadd.f32 %v1098, %v1249
      %v1291 = vadd.f32 %v1099, %v1251
      %v1292 = vadd.f32 %v1100, %v1253
      %v1293 = vadd.f32 %v1101, %v1255
      %v1294 = vadd.f32 %v1102, %v1257
      %v1295 = vadd.f32 %v1103, %v1259
      %v1296 = vadd.f32 %v1104, %v1261
      %v1297 = vadd.f32 %v1105, %v1263
      %v1298 = vadd.f32 %v1106, %v1265
      %v1299 = vadd.f32 %v1107, %v1267
      %v1300 = vadd.f32 %v1108, %v1269
      %v1301 = vadd.f32 %v1109, %v1271
      %s1302 = scalar_lea.vmem %s3, 8
      %v1303 = vld [vmem:[%s1302] sm:$0x3]
      %v1305 = vsel %vm599, %v1303, 0
      %1307 = vmatprep.subr.bf16.mxu0 0
      %1308 = vmatpush1.bf16.msra.mxu0 0
      %1309 = vmatprep.subr.bf16.mxu0 0
      %1310 = vmatpush1.bf16.msra.mxu0 0
      %1311 = vmatprep.subr.bf16.mxu0 0
      %1312 = vmatpush1.bf16.msra.mxu0 0
      %1313 = vmatprep.subr.bf16.mxu0 0
      %1314 = vmatpush1.bf16.msra.mxu0 0
      %1315 = vmatprep.subr.bf16.mxu0 0
      %1316 = vmatpush1.bf16.msra.mxu0 0
      %1317 = vmatprep.subr.bf16.mxu0 0
      %1318 = vmatpush1.bf16.msra.mxu0 0
      %1319 = vmatprep.subr.bf16.mxu0 0
      %1320 = vmatpush1.bf16.msra.mxu0 0
      %1321 = vmatprep.subr.bf16.mxu0 0
      %1322 = vmatpush1.bf16.msra.mxu0 %v1305
      %1323 = vmatprep.subr.bf16.mxu0 0
      %1324 = vmatpush2.bf16.msra.mxu0 0
      %1325 = vmatprep.subr.bf16.mxu0 0
      %1326 = vmatpush2.bf16.msra.mxu0 0
      %1327 = vmatprep.subr.bf16.mxu0 0
      %1328 = vmatpush2.bf16.msra.mxu0 0
      %1329 = vmatprep.subr.bf16.mxu0 0
      %1330 = vmatpush2.bf16.msra.mxu0 0
      %1331 = vmatprep.subr.bf16.mxu0 0
      %1332 = vmatpush2.bf16.msra.mxu0 0
      %1333 = vmatprep.subr.bf16.mxu0 0
      %1334 = vmatpush2.bf16.msra.mxu0 0
      %1335 = vmatprep.subr.bf16.mxu0 0
      %1336 = vmatpush2.bf16.msra.mxu0 0
      %1337 = vmatprep.subr.bf16.mxu0 0
      %1338 = vmatpush2.bf16.msra.mxu0 0
      %1339 = vmatprep.mubr.bf16.mxu0 0
      %1340 = vmatmul.mubr.bf16.gmra.mxu0 %v570
      %v1341 = vpop.f32.mrf.mxu0
      %v1342 = vpop.f32.mrf.mxu0
      %v1343 = vpop.f32.mrf.mxu0
      %v1344 = vadd.f32 0.0, %v1343
      %v1345 = vpop.f32.mrf.mxu0
      %1346 = vmatprep.mubr.bf16.mxu0 0
      %1347 = vmatmul.mubr.bf16.gmra.mxu0 %v573
      %v1348 = vpop.f32.mrf.mxu0
      %v1349 = vadd.f32 0.0, %v1348
      %v1350 = vpop.f32.mrf.mxu0
      %v1351 = vpop.f32.mrf.mxu0
      %v1352 = vadd.f32 0.0, %v1351
      %v1353 = vpop.f32.mrf.mxu0
      %1354 = vmatprep.mubr.bf16.mxu0 0
      %1355 = vmatmul.mubr.bf16.gmra.mxu0 %v576
      %v1356 = vpop.f32.mrf.mxu0
      %v1357 = vadd.f32 0.0, %v1356
      %v1358 = vpop.f32.mrf.mxu0
      %v1359 = vpop.f32.mrf.mxu0
      %v1360 = vadd.f32 0.0, %v1359
      %v1361 = vpop.f32.mrf.mxu0
      %1362 = vmatprep.mubr.bf16.mxu0 0
      %1363 = vmatmul.mubr.bf16.gmra.mxu0 %v579
      %v1364 = vpop.f32.mrf.mxu0
      %v1365 = vadd.f32 0.0, %v1364
      %v1366 = vpop.f32.mrf.mxu0
      %v1367 = vpop.f32.mrf.mxu0
      %v1368 = vadd.f32 0.0, %v1367
      %v1369 = vpop.f32.mrf.mxu0
      %1370 = vmatprep.mubr.bf16.mxu0 0
      %1371 = vmatmul.mubr.bf16.gmra.mxu0 %v582
      %v1372 = vpop.f32.mrf.mxu0
      %v1373 = vadd.f32 0.0, %v1372
      %v1374 = vpop.f32.mrf.mxu0
      %v1375 = vpop.f32.mrf.mxu0
      %v1376 = vadd.f32 0.0, %v1375
      %v1377 = vpop.f32.mrf.mxu0
      %1378 = vmatprep.mubr.bf16.mxu0 0
      %1379 = vmatmul.mubr.bf16.gmra.mxu0 %v585
      %v1380 = vpop.f32.mrf.mxu0
      %v1381 = vadd.f32 0.0, %v1380
      %v1382 = vpop.f32.mrf.mxu0
      %v1383 = vpop.f32.mrf.mxu0
      %v1384 = vadd.f32 0.0, %v1383
      %v1385 = vpop.f32.mrf.mxu0
      %1386 = vmatprep.mubr.bf16.mxu0 0
      %1387 = vmatmul.mubr.bf16.gmra.mxu0 %v588
      %v1388 = vpop.f32.mrf.mxu0
      %v1389 = vadd.f32 0.0, %v1388
      %v1390 = vpop.f32.mrf.mxu0
      %v1391 = vpop.f32.mrf.mxu0
      %v1392 = vadd.f32 0.0, %v1391
      %v1393 = vpop.f32.mrf.mxu0
      %1394 = vmatprep.mubr.bf16.mxu0 0
      %1395 = vmatmul.mubr.bf16.gmra.mxu0 %v591
      %v1396 = vpop.f32.mrf.mxu0
      %v1397 = vadd.f32 0.0, %v1396
      %v1398 = vpop.f32.mrf.mxu0
      %v1399 = vpop.f32.mrf.mxu0
      %v1400 = vadd.f32 0.0, %v1399
      %v1401 = vpop.f32.mrf.mxu0
      %1402 = vmatprep.mubr.bf16.mxu0 0
      %1403 = vmatmul.mubr.bf16.gmra.mxu0 %v594
      %v1404 = vpop.f32.mrf.mxu0
      %v1405 = vadd.f32 0.0, %v1404
      %v1406 = vpop.f32.mrf.mxu0
      %v1407 = vpop.f32.mrf.mxu0
      %v1408 = vpop.f32.mrf.mxu0
      %1409 = vmatprep.mubr.bf16.mxu0 0
      %1410 = vmatmul.mubr.bf16.gmra.mxu0 %v597
      %v1411 = vpop.f32.mrf.mxu0
      %v1412 = vpop.f32.mrf.mxu0
      %v1413 = vpop.f32.mrf.mxu0
      %v1414 = vpop.f32.mrf.mxu0
      %1415 = vdwg.mxu0
      %vm1432 = vcmask 1042432
      %v1433 = vrot.slane %v1344, 5
      %v1434 = vrot.slane %v1349, 5
      %v1435 = vsel %vm1432, %v1433, %v1434
      %v1436 = vrot.slane %v1352, 5
      %v1437 = vsel %vm1432, %v1434, %v1436
      %v1438 = vrot.slane %v1357, 5
      %v1439 = vsel %vm1432, %v1436, %v1438
      %v1440 = vrot.slane %v1360, 5
      %v1441 = vsel %vm1432, %v1438, %v1440
      %v1442 = vrot.slane %v1365, 5
      %v1443 = vsel %vm1432, %v1440, %v1442
      %v1444 = vrot.slane %v1368, 5
      %v1445 = vsel %vm1432, %v1442, %v1444
      %v1446 = vrot.slane %v1373, 5
      %v1447 = vsel %vm1432, %v1444, %v1446
      %v1448 = vrot.slane %v1376, 5
      %v1449 = vsel %vm1432, %v1446, %v1448
      %v1450 = vrot.slane %v1381, 5
      %v1451 = vsel %vm1432, %v1448, %v1450
      %v1452 = vrot.slane %v1384, 5
      %v1453 = vsel %vm1432, %v1450, %v1452
      %v1454 = vrot.slane %v1389, 5
      %v1455 = vsel %vm1432, %v1452, %v1454
      %v1456 = vrot.slane %v1392, 5
      %v1457 = vsel %vm1432, %v1454, %v1456
      %v1458 = vrot.slane %v1397, 5
      %v1459 = vsel %vm1432, %v1456, %v1458
      %v1460 = vrot.slane %v1400, 5
      %v1461 = vsel %vm1432, %v1458, %v1460
      %v1462 = vrot.slane %v1405, 5
      %v1463 = vsel %vm1432, %v1460, %v1462
      %v1479 = vadd.f32 %v1287, %v1435
      %v1480 = vadd.f32 %v1288, %v1437
      %v1481 = vadd.f32 %v1289, %v1439
      %v1482 = vadd.f32 %v1290, %v1441
      %v1483 = vadd.f32 %v1291, %v1443
      %v1484 = vadd.f32 %v1292, %v1445
      %v1485 = vadd.f32 %v1293, %v1447
      %v1486 = vadd.f32 %v1294, %v1449
      %v1487 = vadd.f32 %v1295, %v1451
      %v1488 = vadd.f32 %v1296, %v1453
      %v1489 = vadd.f32 %v1297, %v1455
      %v1490 = vadd.f32 %v1298, %v1457
      %v1491 = vadd.f32 %v1299, %v1459
      %v1492 = vadd.f32 %v1300, %v1461
      %v1493 = vadd.f32 %v1301, %v1463
      %s1494 = scalar_lea.vmem %s3, 10
      %v1495 = vld [vmem:[%s1494] sm:$0x3]
      %v1497 = vsel %vm599, %v1495, 0
      %1499 = vmatprep.subr.bf16.mxu0 0
      %1500 = vmatpush1.bf16.msra.mxu0 0
      %1501 = vmatprep.subr.bf16.mxu0 0
      %1502 = vmatpush1.bf16.msra.mxu0 0
      %1503 = vmatprep.subr.bf16.mxu0 0
      %1504 = vmatpush1.bf16.msra.mxu0 0
      %1505 = vmatprep.subr.bf16.mxu0 0
      %1506 = vmatpush1.bf16.msra.mxu0 0
      %1507 = vmatprep.subr.bf16.mxu0 0
      %1508 = vmatpush1.bf16.msra.mxu0 0
      %1509 = vmatprep.subr.bf16.mxu0 0
      %1510 = vmatpush1.bf16.msra.mxu0 0
      %1511 = vmatprep.subr.bf16.mxu0 0
      %1512 = vmatpush1.bf16.msra.mxu0 0
      %1513 = vmatprep.subr.bf16.mxu0 0
      %1514 = vmatpush1.bf16.msra.mxu0 %v1497
      %1515 = vmatprep.subr.bf16.mxu0 0
      %1516 = vmatpush2.bf16.msra.mxu0 0
      %1517 = vmatprep.subr.bf16.mxu0 0
      %1518 = vmatpush2.bf16.msra.mxu0 0
      %1519 = vmatprep.subr.bf16.mxu0 0
      %1520 = vmatpush2.bf16.msra.mxu0 0
      %1521 = vmatprep.subr.bf16.mxu0 0
      %1522 = vmatpush2.bf16.msra.mxu0 0
      %1523 = vmatprep.subr.bf16.mxu0 0
      %1524 = vmatpush2.bf16.msra.mxu0 0
      %1525 = vmatprep.subr.bf16.mxu0 0
      %1526 = vmatpush2.bf16.msra.mxu0 0
      %1527 = vmatprep.subr.bf16.mxu0 0
      %1528 = vmatpush2.bf16.msra.mxu0 0
      %1529 = vmatprep.subr.bf16.mxu0 0
      %1530 = vmatpush2.bf16.msra.mxu0 0
      %1531 = vmatprep.mubr.bf16.mxu0 0
      %1532 = vmatmul.mubr.bf16.gmra.mxu0 %v570
      %v1533 = vpop.f32.mrf.mxu0
      %v1534 = vpop.f32.mrf.mxu0
      %v1535 = vpop.f32.mrf.mxu0
      %v1536 = vadd.f32 0.0, %v1535
      %v1537 = vpop.f32.mrf.mxu0
      %1538 = vmatprep.mubr.bf16.mxu0 0
      %1539 = vmatmul.mubr.bf16.gmra.mxu0 %v573
      %v1540 = vpop.f32.mrf.mxu0
      %v1541 = vadd.f32 0.0, %v1540
      %v1542 = vpop.f32.mrf.mxu0
      %v1543 = vpop.f32.mrf.mxu0
      %v1544 = vadd.f32 0.0, %v1543
      %v1545 = vpop.f32.mrf.mxu0
      %1546 = vmatprep.mubr.bf16.mxu0 0
      %1547 = vmatmul.mubr.bf16.gmra.mxu0 %v576
      %v1548 = vpop.f32.mrf.mxu0
      %v1549 = vadd.f32 0.0, %v1548
      %v1550 = vpop.f32.mrf.mxu0
      %v1551 = vpop.f32.mrf.mxu0
      %v1552 = vadd.f32 0.0, %v1551
      %v1553 = vpop.f32.mrf.mxu0
      %1554 = vmatprep.mubr.bf16.mxu0 0
      %1555 = vmatmul.mubr.bf16.gmra.mxu0 %v579
      %v1556 = vpop.f32.mrf.mxu0
      %v1557 = vadd.f32 0.0, %v1556
      %v1558 = vpop.f32.mrf.mxu0
      %v1559 = vpop.f32.mrf.mxu0
      %v1560 = vadd.f32 0.0, %v1559
      %v1561 = vpop.f32.mrf.mxu0
      %1562 = vmatprep.mubr.bf16.mxu0 0
      %1563 = vmatmul.mubr.bf16.gmra.mxu0 %v582
      %v1564 = vpop.f32.mrf.mxu0
      %v1565 = vadd.f32 0.0, %v1564
      %v1566 = vpop.f32.mrf.mxu0
      %v1567 = vpop.f32.mrf.mxu0
      %v1568 = vadd.f32 0.0, %v1567
      %v1569 = vpop.f32.mrf.mxu0
      %1570 = vmatprep.mubr.bf16.mxu0 0
      %1571 = vmatmul.mubr.bf16.gmra.mxu0 %v585
      %v1572 = vpop.f32.mrf.mxu0
      %v1573 = vadd.f32 0.0, %v1572
      %v1574 = vpop.f32.mrf.mxu0
      %v1575 = vpop.f32.mrf.mxu0
      %v1576 = vadd.f32 0.0, %v1575
      %v1577 = vpop.f32.mrf.mxu0
      %1578 = vmatprep.mubr.bf16.mxu0 0
      %1579 = vmatmul.mubr.bf16.gmra.mxu0 %v588
      %v1580 = vpop.f32.mrf.mxu0
      %v1581 = vadd.f32 0.0, %v1580
      %v1582 = vpop.f32.mrf.mxu0
      %v1583 = vpop.f32.mrf.mxu0
      %v1584 = vadd.f32 0.0, %v1583
      %v1585 = vpop.f32.mrf.mxu0
      %1586 = vmatprep.mubr.bf16.mxu0 0
      %1587 = vmatmul.mubr.bf16.gmra.mxu0 %v591
      %v1588 = vpop.f32.mrf.mxu0
      %v1589 = vadd.f32 0.0, %v1588
      %v1590 = vpop.f32.mrf.mxu0
      %v1591 = vpop.f32.mrf.mxu0
      %v1592 = vadd.f32 0.0, %v1591
      %v1593 = vpop.f32.mrf.mxu0
      %1594 = vmatprep.mubr.bf16.mxu0 0
      %1595 = vmatmul.mubr.bf16.gmra.mxu0 %v594
      %v1596 = vpop.f32.mrf.mxu0
      %v1597 = vadd.f32 0.0, %v1596
      %v1598 = vpop.f32.mrf.mxu0
      %v1599 = vpop.f32.mrf.mxu0
      %v1600 = vpop.f32.mrf.mxu0
      %1601 = vmatprep.mubr.bf16.mxu0 0
      %1602 = vmatmul.mubr.bf16.gmra.mxu0 %v597
      %v1603 = vpop.f32.mrf.mxu0
      %v1604 = vpop.f32.mrf.mxu0
      %v1605 = vpop.f32.mrf.mxu0
      %v1606 = vpop.f32.mrf.mxu0
      %1607 = vdwg.mxu0
      %v1624 = vrot.slane %v1536, 6
      %v1625 = vrot.slane %v1541, 6
      %v1626 = vsel %vm599, %v1624, %v1625
      %v1627 = vrot.slane %v1544, 6
      %v1628 = vsel %vm599, %v1625, %v1627
      %v1629 = vrot.slane %v1549, 6
      %v1630 = vsel %vm599, %v1627, %v1629
      %v1631 = vrot.slane %v1552, 6
      %v1632 = vsel %vm599, %v1629, %v1631
      %v1633 = vrot.slane %v1557, 6
      %v1634 = vsel %vm599, %v1631, %v1633
      %v1635 = vrot.slane %v1560, 6
      %v1636 = vsel %vm599, %v1633, %v1635
      %v1637 = vrot.slane %v1565, 6
      %v1638 = vsel %vm599, %v1635, %v1637
      %v1639 = vrot.slane %v1568, 6
      %v1640 = vsel %vm599, %v1637, %v1639
      %v1641 = vrot.slane %v1573, 6
      %v1642 = vsel %vm599, %v1639, %v1641
      %v1643 = vrot.slane %v1576, 6
      %v1644 = vsel %vm599, %v1641, %v1643
      %v1645 = vrot.slane %v1581, 6
      %v1646 = vsel %vm599, %v1643, %v1645
      %v1647 = vrot.slane %v1584, 6
      %v1648 = vsel %vm599, %v1645, %v1647
      %v1649 = vrot.slane %v1589, 6
      %v1650 = vsel %vm599, %v1647, %v1649
      %v1651 = vrot.slane %v1592, 6
      %v1652 = vsel %vm599, %v1649, %v1651
      %v1653 = vrot.slane %v1597, 6
      %v1654 = vsel %vm599, %v1651, %v1653
      %v1670 = vadd.f32 %v1479, %v1626
      %v1671 = vadd.f32 %v1480, %v1628
      %v1672 = vadd.f32 %v1481, %v1630
      %v1673 = vadd.f32 %v1482, %v1632
      %v1674 = vadd.f32 %v1483, %v1634
      %v1675 = vadd.f32 %v1484, %v1636
      %v1676 = vadd.f32 %v1485, %v1638
      %v1677 = vadd.f32 %v1486, %v1640
      %v1678 = vadd.f32 %v1487, %v1642
      %v1679 = vadd.f32 %v1488, %v1644
      %v1680 = vadd.f32 %v1489, %v1646
      %v1681 = vadd.f32 %v1490, %v1648
      %v1682 = vadd.f32 %v1491, %v1650
      %v1683 = vadd.f32 %v1492, %v1652
      %v1684 = vadd.f32 %v1493, %v1654
      %s1685 = scalar_lea.vmem %s3, 12
      %v1686 = vld [vmem:[%s1685] sm:$0x3]
      %v1688 = vsel %vm599, %v1686, 0
      %1690 = vmatprep.subr.bf16.mxu0 0
      %1691 = vmatpush1.bf16.msra.mxu0 0
      %1692 = vmatprep.subr.bf16.mxu0 0
      %1693 = vmatpush1.bf16.msra.mxu0 0
      %1694 = vmatprep.subr.bf16.mxu0 0
      %1695 = vmatpush1.bf16.msra.mxu0 0
      %1696 = vmatprep.subr.bf16.mxu0 0
      %1697 = vmatpush1.bf16.msra.mxu0 0
      %1698 = vmatprep.subr.bf16.mxu0 0
      %1699 = vmatpush1.bf16.msra.mxu0 0
      %1700 = vmatprep.subr.bf16.mxu0 0
      %1701 = vmatpush1.bf16.msra.mxu0 0
      %1702 = vmatprep.subr.bf16.mxu0 0
      %1703 = vmatpush1.bf16.msra.mxu0 0
      %1704 = vmatprep.subr.bf16.mxu0 0
      %1705 = vmatpush1.bf16.msra.mxu0 %v1688
      %1706 = vmatprep.subr.bf16.mxu0 0
      %1707 = vmatpush2.bf16.msra.mxu0 0
      %1708 = vmatprep.subr.bf16.mxu0 0
      %1709 = vmatpush2.bf16.msra.mxu0 0
      %1710 = vmatprep.subr.bf16.mxu0 0
      %1711 = vmatpush2.bf16.msra.mxu0 0
      %1712 = vmatprep.subr.bf16.mxu0 0
      %1713 = vmatpush2.bf16.msra.mxu0 0
      %1714 = vmatprep.subr.bf16.mxu0 0
      %1715 = vmatpush2.bf16.msra.mxu0 0
      %1716 = vmatprep.subr.bf16.mxu0 0
      %1717 = vmatpush2.bf16.msra.mxu0 0
      %1718 = vmatprep.subr.bf16.mxu0 0
      %1719 = vmatpush2.bf16.msra.mxu0 0
      %1720 = vmatprep.subr.bf16.mxu0 0
      %1721 = vmatpush2.bf16.msra.mxu0 0
      %1722 = vmatprep.mubr.bf16.mxu0 0
      %1723 = vmatmul.mubr.bf16.gmra.mxu0 %v570
      %v1724 = vpop.f32.mrf.mxu0
      %v1725 = vpop.f32.mrf.mxu0
      %v1726 = vpop.f32.mrf.mxu0
      %v1727 = vpop.f32.mrf.mxu0
      %1728 = vmatprep.mubr.bf16.mxu0 0
      %1729 = vmatmul.mubr.bf16.gmra.mxu0 %v573
      %v1730 = vpop.f32.mrf.mxu0
      %v1731 = vpop.f32.mrf.mxu0
      %v1732 = vpop.f32.mrf.mxu0
      %v1733 = vadd.f32 0.0, %v1732
      %v1734 = vpop.f32.mrf.mxu0
      %1735 = vmatprep.mubr.bf16.mxu0 0
      %1736 = vmatmul.mubr.bf16.gmra.mxu0 %v576
      %v1737 = vpop.f32.mrf.mxu0
      %v1738 = vadd.f32 0.0, %v1737
      %v1739 = vpop.f32.mrf.mxu0
      %v1740 = vpop.f32.mrf.mxu0
      %v1741 = vadd.f32 0.0, %v1740
      %v1742 = vpop.f32.mrf.mxu0
      %1743 = vmatprep.mubr.bf16.mxu0 0
      %1744 = vmatmul.mubr.bf16.gmra.mxu0 %v579
      %v1745 = vpop.f32.mrf.mxu0
      %v1746 = vadd.f32 0.0, %v1745
      %v1747 = vpop.f32.mrf.mxu0
      %v1748 = vpop.f32.mrf.mxu0
      %v1749 = vadd.f32 0.0, %v1748
      %v1750 = vpop.f32.mrf.mxu0
      %1751 = vmatprep.mubr.bf16.mxu0 0
      %1752 = vmatmul.mubr.bf16.gmra.mxu0 %v582
      %v1753 = vpop.f32.mrf.mxu0
      %v1754 = vadd.f32 0.0, %v1753
      %v1755 = vpop.f32.mrf.mxu0
      %v1756 = vpop.f32.mrf.mxu0
      %v1757 = vadd.f32 0.0, %v1756
      %v1758 = vpop.f32.mrf.mxu0
      %1759 = vmatprep.mubr.bf16.mxu0 0
      %1760 = vmatmul.mubr.bf16.gmra.mxu0 %v585
      %v1761 = vpop.f32.mrf.mxu0
      %v1762 = vadd.f32 0.0, %v1761
      %v1763 = vpop.f32.mrf.mxu0
      %v1764 = vpop.f32.mrf.mxu0
      %v1765 = vadd.f32 0.0, %v1764
      %v1766 = vpop.f32.mrf.mxu0
      %1767 = vmatprep.mubr.bf16.mxu0 0
      %1768 = vmatmul.mubr.bf16.gmra.mxu0 %v588
      %v1769 = vpop.f32.mrf.mxu0
      %v1770 = vadd.f32 0.0, %v1769
      %v1771 = vpop.f32.mrf.mxu0
      %v1772 = vpop.f32.mrf.mxu0
      %v1773 = vadd.f32 0.0, %v1772
      %v1774 = vpop.f32.mrf.mxu0
      %1775 = vmatprep.mubr.bf16.mxu0 0
      %1776 = vmatmul.mubr.bf16.gmra.mxu0 %v591
      %v1777 = vpop.f32.mrf.mxu0
      %v1778 = vadd.f32 0.0, %v1777
      %v1779 = vpop.f32.mrf.mxu0
      %v1780 = vpop.f32.mrf.mxu0
      %v1781 = vadd.f32 0.0, %v1780
      %v1782 = vpop.f32.mrf.mxu0
      %1783 = vmatprep.mubr.bf16.mxu0 0
      %1784 = vmatmul.mubr.bf16.gmra.mxu0 %v594
      %v1785 = vpop.f32.mrf.mxu0
      %v1786 = vadd.f32 0.0, %v1785
      %v1787 = vpop.f32.mrf.mxu0
      %v1788 = vpop.f32.mrf.mxu0
      %v1789 = vadd.f32 0.0, %v1788
      %v1790 = vpop.f32.mrf.mxu0
      %1791 = vmatprep.mubr.bf16.mxu0 0
      %1792 = vmatmul.mubr.bf16.gmra.mxu0 %v597
      %v1793 = vpop.f32.mrf.mxu0
      %v1794 = vpop.f32.mrf.mxu0
      %v1795 = vpop.f32.mrf.mxu0
      %v1796 = vpop.f32.mrf.mxu0
      %1797 = vdwg.mxu0
      %v1798 = vadd.f32 %v1670, %v1733
      %v1799 = vadd.f32 %v1671, %v1738
      %v1800 = vadd.f32 %v1672, %v1741
      %v1801 = vadd.f32 %v1673, %v1746
      %v1802 = vadd.f32 %v1674, %v1749
      %v1803 = vadd.f32 %v1675, %v1754
      %v1804 = vadd.f32 %v1676, %v1757
      %v1805 = vadd.f32 %v1677, %v1762
      %v1806 = vadd.f32 %v1678, %v1765
      %v1807 = vadd.f32 %v1679, %v1770
      %v1808 = vadd.f32 %v1680, %v1773
      %v1809 = vadd.f32 %v1681, %v1778
      %v1810 = vadd.f32 %v1682, %v1781
      %v1811 = vadd.f32 %v1683, %v1786
      %v1812 = vadd.f32 %v1684, %v1789
      %s1813 = scalar_lea.vmem %s3, 14
      %v1814 = vld [vmem:[%s1813] sm:$0x3]
      %v1816 = vsel %vm599, %v1814, 0
      %1818 = vmatprep.subr.bf16.mxu0 0
      %1819 = vmatpush1.bf16.msra.mxu0 0
      %1820 = vmatprep.subr.bf16.mxu0 0
      %1821 = vmatpush1.bf16.msra.mxu0 0
      %1822 = vmatprep.subr.bf16.mxu0 0
      %1823 = vmatpush1.bf16.msra.mxu0 0
      %1824 = vmatprep.subr.bf16.mxu0 0
      %1825 = vmatpush1.bf16.msra.mxu0 0
      %1826 = vmatprep.subr.bf16.mxu0 0
      %1827 = vmatpush1.bf16.msra.mxu0 0
      %1828 = vmatprep.subr.bf16.mxu0 0
      %1829 = vmatpush1.bf16.msra.mxu0 0
      %1830 = vmatprep.subr.bf16.mxu0 0
      %1831 = vmatpush1.bf16.msra.mxu0 0
      %1832 = vmatprep.subr.bf16.mxu0 0
      %1833 = vmatpush1.bf16.msra.mxu0 %v1816
      %1834 = vmatprep.subr.bf16.mxu0 0
      %1835 = vmatpush2.bf16.msra.mxu0 0
      %1836 = vmatprep.subr.bf16.mxu0 0
      %1837 = vmatpush2.bf16.msra.mxu0 0
      %1838 = vmatprep.subr.bf16.mxu0 0
      %1839 = vmatpush2.bf16.msra.mxu0 0
      %1840 = vmatprep.subr.bf16.mxu0 0
      %1841 = vmatpush2.bf16.msra.mxu0 0
      %1842 = vmatprep.subr.bf16.mxu0 0
      %1843 = vmatpush2.bf16.msra.mxu0 0
      %1844 = vmatprep.subr.bf16.mxu0 0
      %1845 = vmatpush2.bf16.msra.mxu0 0
      %1846 = vmatprep.subr.bf16.mxu0 0
      %1847 = vmatpush2.bf16.msra.mxu0 0
      %1848 = vmatprep.subr.bf16.mxu0 0
      %1849 = vmatpush2.bf16.msra.mxu0 0
      %1850 = vmatprep.mubr.bf16.mxu0 0
      %1851 = vmatmul.mubr.bf16.gmra.mxu0 %v570
      %v1852 = vpop.f32.mrf.mxu0
      %v1853 = vpop.f32.mrf.mxu0
      %v1854 = vpop.f32.mrf.mxu0
      %v1855 = vpop.f32.mrf.mxu0
      %1856 = vmatprep.mubr.bf16.mxu0 0
      %1857 = vmatmul.mubr.bf16.gmra.mxu0 %v573
      %v1858 = vpop.f32.mrf.mxu0
      %v1859 = vpop.f32.mrf.mxu0
      %v1860 = vpop.f32.mrf.mxu0
      %v1861 = vadd.f32 0.0, %v1860
      %v1862 = vpop.f32.mrf.mxu0
      %1863 = vmatprep.mubr.bf16.mxu0 0
      %1864 = vmatmul.mubr.bf16.gmra.mxu0 %v576
      %v1865 = vpop.f32.mrf.mxu0
      %v1866 = vadd.f32 0.0, %v1865
      %v1867 = vpop.f32.mrf.mxu0
      %v1868 = vpop.f32.mrf.mxu0
      %v1869 = vadd.f32 0.0, %v1868
      %v1870 = vpop.f32.mrf.mxu0
      %1871 = vmatprep.mubr.bf16.mxu0 0
      %1872 = vmatmul.mubr.bf16.gmra.mxu0 %v579
      %v1873 = vpop.f32.mrf.mxu0
      %v1874 = vadd.f32 0.0, %v1873
      %v1875 = vpop.f32.mrf.mxu0
      %v1876 = vpop.f32.mrf.mxu0
      %v1877 = vadd.f32 0.0, %v1876
      %v1878 = vpop.f32.mrf.mxu0
      %1879 = vmatprep.mubr.bf16.mxu0 0
      %1880 = vmatmul.mubr.bf16.gmra.mxu0 %v582
      %v1881 = vpop.f32.mrf.mxu0
      %v1882 = vadd.f32 0.0, %v1881
      %v1883 = vpop.f32.mrf.mxu0
      %v1884 = vpop.f32.mrf.mxu0
      %v1885 = vadd.f32 0.0, %v1884
      %v1886 = vpop.f32.mrf.mxu0
      %1887 = vmatprep.mubr.bf16.mxu0 0
      %1888 = vmatmul.mubr.bf16.gmra.mxu0 %v585
      %v1889 = vpop.f32.mrf.mxu0
      %v1890 = vadd.f32 0.0, %v1889
      %v1891 = vpop.f32.mrf.mxu0
      %v1892 = vpop.f32.mrf.mxu0
      %v1893 = vadd.f32 0.0, %v1892
      %v1894 = vpop.f32.mrf.mxu0
      %1895 = vmatprep.mubr.bf16.mxu0 0
      %1896 = vmatmul.mubr.bf16.gmra.mxu0 %v588
      %v1897 = vpop.f32.mrf.mxu0
      %v1898 = vadd.f32 0.0, %v1897
      %v1899 = vpop.f32.mrf.mxu0
      %v1900 = vpop.f32.mrf.mxu0
      %v1901 = vadd.f32 0.0, %v1900
      %v1902 = vpop.f32.mrf.mxu0
      %1903 = vmatprep.mubr.bf16.mxu0 0
      %1904 = vmatmul.mubr.bf16.gmra.mxu0 %v591
      %v1905 = vpop.f32.mrf.mxu0
      %v1906 = vadd.f32 0.0, %v1905
      %v1907 = vpop.f32.mrf.mxu0
      %v1908 = vpop.f32.mrf.mxu0
      %v1909 = vadd.f32 0.0, %v1908
      %v1910 = vpop.f32.mrf.mxu0
      %1911 = vmatprep.mubr.bf16.mxu0 0
      %1912 = vmatmul.mubr.bf16.gmra.mxu0 %v594
      %v1913 = vpop.f32.mrf.mxu0
      %v1914 = vadd.f32 0.0, %v1913
      %v1915 = vpop.f32.mrf.mxu0
      %v1916 = vpop.f32.mrf.mxu0
      %v1917 = vadd.f32 0.0, %v1916
      %v1918 = vpop.f32.mrf.mxu0
      %1919 = vmatprep.mubr.bf16.mxu0 0
      %1920 = vmatmul.mubr.bf16.gmra.mxu0 %v597
      %v1921 = vpop.f32.mrf.mxu0
      %v1922 = vadd.f32 0.0, %v1921
      %v1923 = vpop.f32.mrf.mxu0
      %v1924 = vpop.f32.mrf.mxu0
      %v1925 = vpop.f32.mrf.mxu0
      %1926 = vdwg.mxu0
      %v1943 = vrot.slane %v1861, 1
      %v1944 = vrot.slane %v1866, 1
      %v1945 = vsel %vm856, %v1943, %v1944
      %v1946 = vrot.slane %v1869, 1
      %v1947 = vsel %vm856, %v1944, %v1946
      %v1948 = vrot.slane %v1874, 1
      %v1949 = vsel %vm856, %v1946, %v1948
      %v1950 = vrot.slane %v1877, 1
      %v1951 = vsel %vm856, %v1948, %v1950
      %v1952 = vrot.slane %v1882, 1
      %v1953 = vsel %vm856, %v1950, %v1952
      %v1954 = vrot.slane %v1885, 1
      %v1955 = vsel %vm856, %v1952, %v1954
      %v1956 = vrot.slane %v1890, 1
      %v1957 = vsel %vm856, %v1954, %v1956
      %v1958 = vrot.slane %v1893, 1
      %v1959 = vsel %vm856, %v1956, %v1958
      %v1960 = vrot.slane %v1898, 1
      %v1961 = vsel %vm856, %v1958, %v1960
      %v1962 = vrot.slane %v1901, 1
      %v1963 = vsel %vm856, %v1960, %v1962
      %v1964 = vrot.slane %v1906, 1
      %v1965 = vsel %vm856, %v1962, %v1964
      %v1966 = vrot.slane %v1909, 1
      %v1967 = vsel %vm856, %v1964, %v1966
      %v1968 = vrot.slane %v1914, 1
      %v1969 = vsel %vm856, %v1966, %v1968
      %v1970 = vrot.slane %v1917, 1
      %v1971 = vsel %vm856, %v1968, %v1970
      %v1972 = vrot.slane %v1922, 1
      %v1973 = vsel %vm856, %v1970, %v1972
      %v1989 = vadd.f32 %v1798, %v1945
      %v1990 = vadd.f32 %v1799, %v1947
      %v1991 = vadd.f32 %v1800, %v1949
      %v1992 = vadd.f32 %v1801, %v1951
      %v1993 = vadd.f32 %v1802, %v1953
      %v1994 = vadd.f32 %v1803, %v1955
      %v1995 = vadd.f32 %v1804, %v1957
      %v1996 = vadd.f32 %v1805, %v1959
      %v1997 = vadd.f32 %v1806, %v1961
      %v1998 = vadd.f32 %v1807, %v1963
      %v1999 = vadd.f32 %v1808, %v1965
      %v2000 = vadd.f32 %v1809, %v1967
      %v2001 = vadd.f32 %v1810, %v1969
      %v2002 = vadd.f32 %v1811, %v1971
      %v2003 = vadd.f32 %v1812, %v1973
      %s2004 = scalar_lea.vmem %s3, 16
      %v2005 = vld [vmem:[%s2004] sm:$0x3]
      %v2007 = vsel %vm599, %v2005, 0
      %2009 = vmatprep.subr.bf16.mxu0 0
      %2010 = vmatpush1.bf16.msra.mxu0 0
      %2011 = vmatprep.subr.bf16.mxu0 0
      %2012 = vmatpush1.bf16.msra.mxu0 0
      %2013 = vmatprep.subr.bf16.mxu0 0
      %2014 = vmatpush1.bf16.msra.mxu0 0
      %2015 = vmatprep.subr.bf16.mxu0 0
      %2016 = vmatpush1.bf16.msra.mxu0 0
      %2017 = vmatprep.subr.bf16.mxu0 0
      %2018 = vmatpush1.bf16.msra.mxu0 0
      %2019 = vmatprep.subr.bf16.mxu0 0
      %2020 = vmatpush1.bf16.msra.mxu0 0
      %2021 = vmatprep.subr.bf16.mxu0 0
      %2022 = vmatpush1.bf16.msra.mxu0 0
      %2023 = vmatprep.subr.bf16.mxu0 0
      %2024 = vmatpush1.bf16.msra.mxu0 %v2007
      %2025 = vmatprep.subr.bf16.mxu0 0
      %2026 = vmatpush2.bf16.msra.mxu0 0
      %2027 = vmatprep.subr.bf16.mxu0 0
      %2028 = vmatpush2.bf16.msra.mxu0 0
      %2029 = vmatprep.subr.bf16.mxu0 0
      %2030 = vmatpush2.bf16.msra.mxu0 0
      %2031 = vmatprep.subr.bf16.mxu0 0
      %2032 = vmatpush2.bf16.msra.mxu0 0
      %2033 = vmatprep.subr.bf16.mxu0 0
      %2034 = vmatpush2.bf16.msra.mxu0 0
      %2035 = vmatprep.subr.bf16.mxu0 0
      %2036 = vmatpush2.bf16.msra.mxu0 0
      %2037 = vmatprep.subr.bf16.mxu0 0
      %2038 = vmatpush2.bf16.msra.mxu0 0
      %2039 = vmatprep.subr.bf16.mxu0 0
      %2040 = vmatpush2.bf16.msra.mxu0 0
      %2041 = vmatprep.mubr.bf16.mxu0 0
      %2042 = vmatmul.mubr.bf16.gmra.mxu0 %v570
      %v2043 = vpop.f32.mrf.mxu0
      %v2044 = vpop.f32.mrf.mxu0
      %v2045 = vpop.f32.mrf.mxu0
      %v2046 = vpop.f32.mrf.mxu0
      %2047 = vmatprep.mubr.bf16.mxu0 0
      %2048 = vmatmul.mubr.bf16.gmra.mxu0 %v573
      %v2049 = vpop.f32.mrf.mxu0
      %v2050 = vpop.f32.mrf.mxu0
      %v2051 = vpop.f32.mrf.mxu0
      %v2052 = vadd.f32 0.0, %v2051
      %v2053 = vpop.f32.mrf.mxu0
      %2054 = vmatprep.mubr.bf16.mxu0 0
      %2055 = vmatmul.mubr.bf16.gmra.mxu0 %v576
      %v2056 = vpop.f32.mrf.mxu0
      %v2057 = vadd.f32 0.0, %v2056
      %v2058 = vpop.f32.mrf.mxu0
      %v2059 = vpop.f32.mrf.mxu0
      %v2060 = vadd.f32 0.0, %v2059
      %v2061 = vpop.f32.mrf.mxu0
      %2062 = vmatprep.mubr.bf16.mxu0 0
      %2063 = vmatmul.mubr.bf16.gmra.mxu0 %v579
      %v2064 = vpop.f32.mrf.mxu0
      %v2065 = vadd.f32 0.0, %v2064
      %v2066 = vpop.f32.mrf.mxu0
      %v2067 = vpop.f32.mrf.mxu0
      %v2068 = vadd.f32 0.0, %v2067
      %v2069 = vpop.f32.mrf.mxu0
      %2070 = vmatprep.mubr.bf16.mxu0 0
      %2071 = vmatmul.mubr.bf16.gmra.mxu0 %v582
      %v2072 = vpop.f32.mrf.mxu0
      %v2073 = vadd.f32 0.0, %v2072
      %v2074 = vpop.f32.mrf.mxu0
      %v2075 = vpop.f32.mrf.mxu0
      %v2076 = vadd.f32 0.0, %v2075
      %v2077 = vpop.f32.mrf.mxu0
      %2078 = vmatprep.mubr.bf16.mxu0 0
      %2079 = vmatmul.mubr.bf16.gmra.mxu0 %v585
      %v2080 = vpop.f32.mrf.mxu0
      %v2081 = vadd.f32 0.0, %v2080
      %v2082 = vpop.f32.mrf.mxu0
      %v2083 = vpop.f32.mrf.mxu0
      %v2084 = vadd.f32 0.0, %v2083
      %v2085 = vpop.f32.mrf.mxu0
      %2086 = vmatprep.mubr.bf16.mxu0 0
      %2087 = vmatmul.mubr.bf16.gmra.mxu0 %v588
      %v2088 = vpop.f32.mrf.mxu0
      %v2089 = vadd.f32 0.0, %v2088
      %v2090 = vpop.f32.mrf.mxu0
      %v2091 = vpop.f32.mrf.mxu0
      %v2092 = vadd.f32 0.0, %v2091
      %v2093 = vpop.f32.mrf.mxu0
      %2094 = vmatprep.mubr.bf16.mxu0 0
      %2095 = vmatmul.mubr.bf16.gmra.mxu0 %v591
      %v2096 = vpop.f32.mrf.mxu0
      %v2097 = vadd.f32 0.0, %v2096
      %v2098 = vpop.f32.mrf.mxu0
      %v2099 = vpop.f32.mrf.mxu0
      %v2100 = vadd.f32 0.0, %v2099
      %v2101 = vpop.f32.mrf.mxu0
      %2102 = vmatprep.mubr.bf16.mxu0 0
      %2103 = vmatmul.mubr.bf16.gmra.mxu0 %v594
      %v2104 = vpop.f32.mrf.mxu0
      %v2105 = vadd.f32 0.0, %v2104
      %v2106 = vpop.f32.mrf.mxu0
      %v2107 = vpop.f32.mrf.mxu0
      %v2108 = vadd.f32 0.0, %v2107
      %v2109 = vpop.f32.mrf.mxu0
      %2110 = vmatprep.mubr.bf16.mxu0 0
      %2111 = vmatmul.mubr.bf16.gmra.mxu0 %v597
      %v2112 = vpop.f32.mrf.mxu0
      %v2113 = vadd.f32 0.0, %v2112
      %v2114 = vpop.f32.mrf.mxu0
      %v2115 = vpop.f32.mrf.mxu0
      %v2116 = vpop.f32.mrf.mxu0
      %2117 = vdwg.mxu0
      %v2134 = vrot.slane %v2052, 2
      %v2135 = vrot.slane %v2057, 2
      %v2136 = vsel %vm1048, %v2134, %v2135
      %v2137 = vrot.slane %v2060, 2
      %v2138 = vsel %vm1048, %v2135, %v2137
      %v2139 = vrot.slane %v2065, 2
      %v2140 = vsel %vm1048, %v2137, %v2139
      %v2141 = vrot.slane %v2068, 2
      %v2142 = vsel %vm1048, %v2139, %v2141
      %v2143 = vrot.slane %v2073, 2
      %v2144 = vsel %vm1048, %v2141, %v2143
      %v2145 = vrot.slane %v2076, 2
      %v2146 = vsel %vm1048, %v2143, %v2145
      %v2147 = vrot.slane %v2081, 2
      %v2148 = vsel %vm1048, %v2145, %v2147
      %v2149 = vrot.slane %v2084, 2
      %v2150 = vsel %vm1048, %v2147, %v2149
      %v2151 = vrot.slane %v2089, 2
      %v2152 = vsel %vm1048, %v2149, %v2151
      %v2153 = vrot.slane %v2092, 2
      %v2154 = vsel %vm1048, %v2151, %v2153
      %v2155 = vrot.slane %v2097, 2
      %v2156 = vsel %vm1048, %v2153, %v2155
      %v2157 = vrot.slane %v2100, 2
      %v2158 = vsel %vm1048, %v2155, %v2157
      %v2159 = vrot.slane %v2105, 2
      %v2160 = vsel %vm1048, %v2157, %v2159
      %v2161 = vrot.slane %v2108, 2
      %v2162 = vsel %vm1048, %v2159, %v2161
      %v2163 = vrot.slane %v2113, 2
      %v2164 = vsel %vm1048, %v2161, %v2163
      %v2180 = vadd.f32 %v1989, %v2136
      %v2181 = vadd.f32 %v1990, %v2138
      %v2182 = vadd.f32 %v1991, %v2140
      %v2183 = vadd.f32 %v1992, %v2142
      %v2184 = vadd.f32 %v1993, %v2144
      %v2185 = vadd.f32 %v1994, %v2146
      %v2186 = vadd.f32 %v1995, %v2148
      %v2187 = vadd.f32 %v1996, %v2150
      %v2188 = vadd.f32 %v1997, %v2152
      %v2189 = vadd.f32 %v1998, %v2154
      %v2190 = vadd.f32 %v1999, %v2156
      %v2191 = vadd.f32 %v2000, %v2158
      %v2192 = vadd.f32 %v2001, %v2160
      %v2193 = vadd.f32 %v2002, %v2162
      %v2194 = vadd.f32 %v2003, %v2164
      %s2195 = scalar_lea.vmem %s3, 18
      %v2196 = vld [vmem:[%s2195] sm:$0x3]
      %v2216 = vunpack.c.l.b16 %v481
      %v2217 = vunpack.c.l.b16 %v482
      %v2218 = vunpack.c.l.b16 %v483
      %v2219 = vunpack.c.l.b16 %v484
      %v2220 = vunpack.c.l.b16 %v485
      %v2221 = vunpack.c.l.b16 %v486
      %v2222 = vunpack.c.l.b16 %v487
      %v2223 = vunpack.c.l.b16 %v488
      %v2224 = vunpack.c.l.b16 %v489
      %v2225 = vunpack.c.l.b16 %v490
      %v2226 = vunpack.c.l.b16 %v491
      %v2227 = vunpack.c.l.b16 %v492
      %v2228 = vunpack.c.l.b16 %v493
      %v2229 = vunpack.c.l.b16 %v494
      %v2230 = vunpack.c.l.b16 %v495
      %v2231 = vunpack.c.l.b16 %v496
      %v2232 = vunpack.c.l.b16 %v497
      %v2233 = vunpack.c.l.b16 %v498
      %v2234 = vunpack.c.l.b16 %v499
      %v2235 = vpack.c.b16 %v2217, %v2216
      %v2236 = vpack.c.b16 %v2219, %v2218
      %v2237 = vpack.c.b16 %v2221, %v2220
      %v2238 = vpack.c.b16 %v2223, %v2222
      %v2239 = vpack.c.b16 %v2225, %v2224
      %v2240 = vpack.c.b16 %v2227, %v2226
      %v2241 = vpack.c.b16 %v2229, %v2228
      %v2242 = vpack.c.b16 %v2231, %v2230
      %v2243 = vpack.c.b16 %v2233, %v2232
      %v2244 = vpack.c.b16 %v2234, %v2234
      %v2246 = vsel %vm568, %v2235, 0
      %v2249 = vsel %vm568, %v2236, 0
      %v2252 = vsel %vm568, %v2237, 0
      %v2255 = vsel %vm568, %v2238, 0
      %v2258 = vsel %vm568, %v2239, 0
      %v2261 = vsel %vm568, %v2240, 0
      %v2264 = vsel %vm568, %v2241, 0
      %v2267 = vsel %vm568, %v2242, 0
      %v2270 = vsel %vm568, %v2243, 0
      %v2273 = vsel %vm568, %v2244, 0
      %v2276 = vsel %vm599, %v2196, 0
      %2278 = vmatprep.subr.bf16.mxu0 0
      %2279 = vmatpush1.bf16.msra.mxu0 0
      %2280 = vmatprep.subr.bf16.mxu0 0
      %2281 = vmatpush1.bf16.msra.mxu0 0
      %2282 = vmatprep.subr.bf16.mxu0 0
      %2283 = vmatpush1.bf16.msra.mxu0 0
      %2284 = vmatprep.subr.bf16.mxu0 0
      %2285 = vmatpush1.bf16.msra.mxu0 0
      %2286 = vmatprep.subr.bf16.mxu0 0
      %2287 = vmatpush1.bf16.msra.mxu0 0
      %2288 = vmatprep.subr.bf16.mxu0 0
      %2289 = vmatpush1.bf16.msra.mxu0 0
      %2290 = vmatprep.subr.bf16.mxu0 0
      %2291 = vmatpush1.bf16.msra.mxu0 0
      %2292 = vmatprep.subr.bf16.mxu0 0
      %2293 = vmatpush1.bf16.msra.mxu0 %v2276
      %2294 = vmatprep.subr.bf16.mxu0 0
      %2295 = vmatpush2.bf16.msra.mxu0 0
      %2296 = vmatprep.subr.bf16.mxu0 0
      %2297 = vmatpush2.bf16.msra.mxu0 0
      %2298 = vmatprep.subr.bf16.mxu0 0
      %2299 = vmatpush2.bf16.msra.mxu0 0
      %2300 = vmatprep.subr.bf16.mxu0 0
      %2301 = vmatpush2.bf16.msra.mxu0 0
      %2302 = vmatprep.subr.bf16.mxu0 0
      %2303 = vmatpush2.bf16.msra.mxu0 0
      %2304 = vmatprep.subr.bf16.mxu0 0
      %2305 = vmatpush2.bf16.msra.mxu0 0
      %2306 = vmatprep.subr.bf16.mxu0 0
      %2307 = vmatpush2.bf16.msra.mxu0 0
      %2308 = vmatprep.subr.bf16.mxu0 0
      %2309 = vmatpush2.bf16.msra.mxu0 0
      %2310 = vmatprep.mubr.bf16.mxu0 0
      %2311 = vmatmul.mubr.bf16.gmra.mxu0 %v2246
      %v2312 = vpop.f32.mrf.mxu0
      %v2313 = vadd.f32 0.0, %v2312
      %v2314 = vpop.f32.mrf.mxu0
      %v2315 = vpop.f32.mrf.mxu0
      %v2316 = vadd.f32 0.0, %v2315
      %v2317 = vpop.f32.mrf.mxu0
      %2318 = vmatprep.mubr.bf16.mxu0 0
      %2319 = vmatmul.mubr.bf16.gmra.mxu0 %v2249
      %v2320 = vpop.f32.mrf.mxu0
      %v2321 = vadd.f32 0.0, %v2320
      %v2322 = vpop.f32.mrf.mxu0
      %v2323 = vpop.f32.mrf.mxu0
      %v2324 = vadd.f32 0.0, %v2323
      %v2325 = vpop.f32.mrf.mxu0
      %2326 = vmatprep.mubr.bf16.mxu0 0
      %2327 = vmatmul.mubr.bf16.gmra.mxu0 %v2252
      %v2328 = vpop.f32.mrf.mxu0
      %v2329 = vadd.f32 0.0, %v2328
      %v2330 = vpop.f32.mrf.mxu0
      %v2331 = vpop.f32.mrf.mxu0
      %v2332 = vadd.f32 0.0, %v2331
      %v2333 = vpop.f32.mrf.mxu0
      %2334 = vmatprep.mubr.bf16.mxu0 0
      %2335 = vmatmul.mubr.bf16.gmra.mxu0 %v2255
      %v2336 = vpop.f32.mrf.mxu0
      %v2337 = vadd.f32 0.0, %v2336
      %v2338 = vpop.f32.mrf.mxu0
      %v2339 = vpop.f32.mrf.mxu0
      %v2340 = vadd.f32 0.0, %v2339
      %v2341 = vpop.f32.mrf.mxu0
      %2342 = vmatprep.mubr.bf16.mxu0 0
      %2343 = vmatmul.mubr.bf16.gmra.mxu0 %v2258
      %v2344 = vpop.f32.mrf.mxu0
      %v2345 = vadd.f32 0.0, %v2344
      %v2346 = vpop.f32.mrf.mxu0
      %v2347 = vpop.f32.mrf.mxu0
      %v2348 = vadd.f32 0.0, %v2347
      %v2349 = vpop.f32.mrf.mxu0
      %2350 = vmatprep.mubr.bf16.mxu0 0
      %2351 = vmatmul.mubr.bf16.gmra.mxu0 %v2261
      %v2352 = vpop.f32.mrf.mxu0
      %v2353 = vadd.f32 0.0, %v2352
      %v2354 = vpop.f32.mrf.mxu0
      %v2355 = vpop.f32.mrf.mxu0
      %v2356 = vadd.f32 0.0, %v2355
      %v2357 = vpop.f32.mrf.mxu0
      %2358 = vmatprep.mubr.bf16.mxu0 0
      %2359 = vmatmul.mubr.bf16.gmra.mxu0 %v2264
      %v2360 = vpop.f32.mrf.mxu0
      %v2361 = vadd.f32 0.0, %v2360
      %v2362 = vpop.f32.mrf.mxu0
      %v2363 = vpop.f32.mrf.mxu0
      %v2364 = vadd.f32 0.0, %v2363
      %v2365 = vpop.f32.mrf.mxu0
      %2366 = vmatprep.mubr.bf16.mxu0 0
      %2367 = vmatmul.mubr.bf16.gmra.mxu0 %v2267
      %v2368 = vpop.f32.mrf.mxu0
      %v2369 = vadd.f32 0.0, %v2368
      %v2370 = vpop.f32.mrf.mxu0
      %v2371 = vpop.f32.mrf.mxu0
      %v2372 = vpop.f32.mrf.mxu0
      %2373 = vmatprep.mubr.bf16.mxu0 0
      %2374 = vmatmul.mubr.bf16.gmra.mxu0 %v2270
      %v2375 = vpop.f32.mrf.mxu0
      %v2376 = vpop.f32.mrf.mxu0
      %v2377 = vpop.f32.mrf.mxu0
      %v2378 = vpop.f32.mrf.mxu0
      %2379 = vmatprep.mubr.bf16.mxu0 0
      %2380 = vmatmul.mubr.bf16.gmra.mxu0 %v2273
      %v2381 = vpop.f32.mrf.mxu0
      %v2382 = vpop.f32.mrf.mxu0
      %v2383 = vpop.f32.mrf.mxu0
      %v2384 = vpop.f32.mrf.mxu0
      %2385 = vdwg.mxu0
      %v2386 = vadd.f32 %v2180, %v2313
      %v2387 = vadd.f32 %v2181, %v2316
      %v2388 = vadd.f32 %v2182, %v2321
      %v2389 = vadd.f32 %v2183, %v2324
      %v2390 = vadd.f32 %v2184, %v2329
      %v2391 = vadd.f32 %v2185, %v2332
      %v2392 = vadd.f32 %v2186, %v2337
      %v2393 = vadd.f32 %v2187, %v2340
      %v2394 = vadd.f32 %v2188, %v2345
      %v2395 = vadd.f32 %v2189, %v2348
      %v2396 = vadd.f32 %v2190, %v2353
      %v2397 = vadd.f32 %v2191, %v2356
      %v2398 = vadd.f32 %v2192, %v2361
      %v2399 = vadd.f32 %v2193, %v2364
      %v2400 = vadd.f32 %v2194, %v2369
      %s2401 = scalar_lea.vmem %s3, 20
      %v2402 = vld [vmem:[%s2401] sm:$0x3]
      %v2404 = vsel %vm599, %v2402, 0
      %2406 = vmatprep.subr.bf16.mxu0 0
      %2407 = vmatpush1.bf16.msra.mxu0 0
      %2408 = vmatprep.subr.bf16.mxu0 0
      %2409 = vmatpush1.bf16.msra.mxu0 0
      %2410 = vmatprep.subr.bf16.mxu0 0
      %2411 = vmatpush1.bf16.msra.mxu0 0
      %2412 = vmatprep.subr.bf16.mxu0 0
      %2413 = vmatpush1.bf16.msra.mxu0 0
      %2414 = vmatprep.subr.bf16.mxu0 0
      %2415 = vmatpush1.bf16.msra.mxu0 0
      %2416 = vmatprep.subr.bf16.mxu0 0
      %2417 = vmatpush1.bf16.msra.mxu0 0
      %2418 = vmatprep.subr.bf16.mxu0 0
      %2419 = vmatpush1.bf16.msra.mxu0 0
      %2420 = vmatprep.subr.bf16.mxu0 0
      %2421 = vmatpush1.bf16.msra.mxu0 %v2404
      %2422 = vmatprep.subr.bf16.mxu0 0
      %2423 = vmatpush2.bf16.msra.mxu0 0
      %2424 = vmatprep.subr.bf16.mxu0 0
      %2425 = vmatpush2.bf16.msra.mxu0 0
      %2426 = vmatprep.subr.bf16.mxu0 0
      %2427 = vmatpush2.bf16.msra.mxu0 0
      %2428 = vmatprep.subr.bf16.mxu0 0
      %2429 = vmatpush2.bf16.msra.mxu0 0
      %2430 = vmatprep.subr.bf16.mxu0 0
      %2431 = vmatpush2.bf16.msra.mxu0 0
      %2432 = vmatprep.subr.bf16.mxu0 0
      %2433 = vmatpush2.bf16.msra.mxu0 0
      %2434 = vmatprep.subr.bf16.mxu0 0
      %2435 = vmatpush2.bf16.msra.mxu0 0
      %2436 = vmatprep.subr.bf16.mxu0 0
      %2437 = vmatpush2.bf16.msra.mxu0 0
      %2438 = vmatprep.mubr.bf16.mxu0 0
      %2439 = vmatmul.mubr.bf16.gmra.mxu0 %v2246
      %v2440 = vpop.f32.mrf.mxu0
      %v2441 = vadd.f32 0.0, %v2440
      %v2442 = vpop.f32.mrf.mxu0
      %v2443 = vpop.f32.mrf.mxu0
      %v2444 = vadd.f32 0.0, %v2443
      %v2445 = vpop.f32.mrf.mxu0
      %2446 = vmatprep.mubr.bf16.mxu0 0
      %2447 = vmatmul.mubr.bf16.gmra.mxu0 %v2249
      %v2448 = vpop.f32.mrf.mxu0
      %v2449 = vadd.f32 0.0, %v2448
      %v2450 = vpop.f32.mrf.mxu0
      %v2451 = vpop.f32.mrf.mxu0
      %v2452 = vadd.f32 0.0, %v2451
      %v2453 = vpop.f32.mrf.mxu0
      %2454 = vmatprep.mubr.bf16.mxu0 0
      %2455 = vmatmul.mubr.bf16.gmra.mxu0 %v2252
      %v2456 = vpop.f32.mrf.mxu0
      %v2457 = vadd.f32 0.0, %v2456
      %v2458 = vpop.f32.mrf.mxu0
      %v2459 = vpop.f32.mrf.mxu0
      %v2460 = vadd.f32 0.0, %v2459
      %v2461 = vpop.f32.mrf.mxu0
      %2462 = vmatprep.mubr.bf16.mxu0 0
      %2463 = vmatmul.mubr.bf16.gmra.mxu0 %v2255
      %v2464 = vpop.f32.mrf.mxu0
      %v2465 = vadd.f32 0.0, %v2464
      %v2466 = vpop.f32.mrf.mxu0
      %v2467 = vpop.f32.mrf.mxu0
      %v2468 = vadd.f32 0.0, %v2467
      %v2469 = vpop.f32.mrf.mxu0
      %2470 = vmatprep.mubr.bf16.mxu0 0
      %2471 = vmatmul.mubr.bf16.gmra.mxu0 %v2258
      %v2472 = vpop.f32.mrf.mxu0
      %v2473 = vadd.f32 0.0, %v2472
      %v2474 = vpop.f32.mrf.mxu0
      %v2475 = vpop.f32.mrf.mxu0
      %v2476 = vadd.f32 0.0, %v2475
      %v2477 = vpop.f32.mrf.mxu0
      %2478 = vmatprep.mubr.bf16.mxu0 0
      %2479 = vmatmul.mubr.bf16.gmra.mxu0 %v2261
      %v2480 = vpop.f32.mrf.mxu0
      %v2481 = vadd.f32 0.0, %v2480
      %v2482 = vpop.f32.mrf.mxu0
      %v2483 = vpop.f32.mrf.mxu0
      %v2484 = vadd.f32 0.0, %v2483
      %v2485 = vpop.f32.mrf.mxu0
      %2486 = vmatprep.mubr.bf16.mxu0 0
      %2487 = vmatmul.mubr.bf16.gmra.mxu0 %v2264
      %v2488 = vpop.f32.mrf.mxu0
      %v2489 = vadd.f32 0.0, %v2488
      %v2490 = vpop.f32.mrf.mxu0
      %v2491 = vpop.f32.mrf.mxu0
      %v2492 = vadd.f32 0.0, %v2491
      %v2493 = vpop.f32.mrf.mxu0
      %2494 = vmatprep.mubr.bf16.mxu0 0
      %2495 = vmatmul.mubr.bf16.gmra.mxu0 %v2267
      %v2496 = vpop.f32.mrf.mxu0
      %v2497 = vadd.f32 0.0, %v2496
      %v2498 = vpop.f32.mrf.mxu0
      %v2499 = vpop.f32.mrf.mxu0
      %v2500 = vadd.f32 0.0, %v2499
      %v2501 = vpop.f32.mrf.mxu0
      %2502 = vmatprep.mubr.bf16.mxu0 0
      %2503 = vmatmul.mubr.bf16.gmra.mxu0 %v2270
      %v2504 = vpop.f32.mrf.mxu0
      %v2505 = vpop.f32.mrf.mxu0
      %v2506 = vpop.f32.mrf.mxu0
      %v2507 = vpop.f32.mrf.mxu0
      %2508 = vmatprep.mubr.bf16.mxu0 0
      %2509 = vmatmul.mubr.bf16.gmra.mxu0 %v2273
      %v2510 = vpop.f32.mrf.mxu0
      %v2511 = vpop.f32.mrf.mxu0
      %v2512 = vpop.f32.mrf.mxu0
      %v2513 = vpop.f32.mrf.mxu0
      %2514 = vdwg.mxu0
      %v2531 = vrot.slane %v2441, 1
      %v2532 = vrot.slane %v2444, 1
      %v2533 = vsel %vm856, %v2531, %v2532
      %v2534 = vrot.slane %v2449, 1
      %v2535 = vsel %vm856, %v2532, %v2534
      %v2536 = vrot.slane %v2452, 1
      %v2537 = vsel %vm856, %v2534, %v2536
      %v2538 = vrot.slane %v2457, 1
      %v2539 = vsel %vm856, %v2536, %v2538
      %v2540 = vrot.slane %v2460, 1
      %v2541 = vsel %vm856, %v2538, %v2540
      %v2542 = vrot.slane %v2465, 1
      %v2543 = vsel %vm856, %v2540, %v2542
      %v2544 = vrot.slane %v2468, 1
      %v2545 = vsel %vm856, %v2542, %v2544
      %v2546 = vrot.slane %v2473, 1
      %v2547 = vsel %vm856, %v2544, %v2546
      %v2548 = vrot.slane %v2476, 1
      %v2549 = vsel %vm856, %v2546, %v2548
      %v2550 = vrot.slane %v2481, 1
      %v2551 = vsel %vm856, %v2548, %v2550
      %v2552 = vrot.slane %v2484, 1
      %v2553 = vsel %vm856, %v2550, %v2552
      %v2554 = vrot.slane %v2489, 1
      %v2555 = vsel %vm856, %v2552, %v2554
      %v2556 = vrot.slane %v2492, 1
      %v2557 = vsel %vm856, %v2554, %v2556
      %v2558 = vrot.slane %v2497, 1
      %v2559 = vsel %vm856, %v2556, %v2558
      %v2560 = vrot.slane %v2500, 1
      %v2561 = vsel %vm856, %v2558, %v2560
      %v2577 = vadd.f32 %v2386, %v2533
      %v2578 = vadd.f32 %v2387, %v2535
      %v2579 = vadd.f32 %v2388, %v2537
      %v2580 = vadd.f32 %v2389, %v2539
      %v2581 = vadd.f32 %v2390, %v2541
      %v2582 = vadd.f32 %v2391, %v2543
      %v2583 = vadd.f32 %v2392, %v2545
      %v2584 = vadd.f32 %v2393, %v2547
      %v2585 = vadd.f32 %v2394, %v2549
      %v2586 = vadd.f32 %v2395, %v2551
      %v2587 = vadd.f32 %v2396, %v2553
      %v2588 = vadd.f32 %v2397, %v2555
      %v2589 = vadd.f32 %v2398, %v2557
      %v2590 = vadd.f32 %v2399, %v2559
      %v2591 = vadd.f32 %v2400, %v2561
      %s2592 = scalar_lea.vmem %s3, 22
      %v2593 = vld [vmem:[%s2592] sm:$0x3]
      %v2595 = vsel %vm599, %v2593, 0
      %2597 = vmatprep.subr.bf16.mxu0 0
      %2598 = vmatpush1.bf16.msra.mxu0 0
      %2599 = vmatprep.subr.bf16.mxu0 0
      %2600 = vmatpush1.bf16.msra.mxu0 0
      %2601 = vmatprep.subr.bf16.mxu0 0
      %2602 = vmatpush1.bf16.msra.mxu0 0
      %2603 = vmatprep.subr.bf16.mxu0 0
      %2604 = vmatpush1.bf16.msra.mxu0 0
      %2605 = vmatprep.subr.bf16.mxu0 0
      %2606 = vmatpush1.bf16.msra.mxu0 0
      %2607 = vmatprep.subr.bf16.mxu0 0
      %2608 = vmatpush1.bf16.msra.mxu0 0
      %2609 = vmatprep.subr.bf16.mxu0 0
      %2610 = vmatpush1.bf16.msra.mxu0 0
      %2611 = vmatprep.subr.bf16.mxu0 0
      %2612 = vmatpush1.bf16.msra.mxu0 %v2595
      %2613 = vmatprep.subr.bf16.mxu0 0
      %2614 = vmatpush2.bf16.msra.mxu0 0
      %2615 = vmatprep.subr.bf16.mxu0 0
      %2616 = vmatpush2.bf16.msra.mxu0 0
      %2617 = vmatprep.subr.bf16.mxu0 0
      %2618 = vmatpush2.bf16.msra.mxu0 0
      %2619 = vmatprep.subr.bf16.mxu0 0
      %2620 = vmatpush2.bf16.msra.mxu0 0
      %2621 = vmatprep.subr.bf16.mxu0 0
      %2622 = vmatpush2.bf16.msra.mxu0 0
      %2623 = vmatprep.subr.bf16.mxu0 0
      %2624 = vmatpush2.bf16.msra.mxu0 0
      %2625 = vmatprep.subr.bf16.mxu0 0
      %2626 = vmatpush2.bf16.msra.mxu0 0
      %2627 = vmatprep.subr.bf16.mxu0 0
      %2628 = vmatpush2.bf16.msra.mxu0 0
      %2629 = vmatprep.mubr.bf16.mxu0 0
      %2630 = vmatmul.mubr.bf16.gmra.mxu0 %v2246
      %v2631 = vpop.f32.mrf.mxu0
      %v2632 = vadd.f32 0.0, %v2631
      %v2633 = vpop.f32.mrf.mxu0
      %v2634 = vpop.f32.mrf.mxu0
      %v2635 = vadd.f32 0.0, %v2634
      %v2636 = vpop.f32.mrf.mxu0
      %2637 = vmatprep.mubr.bf16.mxu0 0
      %2638 = vmatmul.mubr.bf16.gmra.mxu0 %v2249
      %v2639 = vpop.f32.mrf.mxu0
      %v2640 = vadd.f32 0.0, %v2639
      %v2641 = vpop.f32.mrf.mxu0
      %v2642 = vpop.f32.mrf.mxu0
      %v2643 = vadd.f32 0.0, %v2642
      %v2644 = vpop.f32.mrf.mxu0
      %2645 = vmatprep.mubr.bf16.mxu0 0
      %2646 = vmatmul.mubr.bf16.gmra.mxu0 %v2252
      %v2647 = vpop.f32.mrf.mxu0
      %v2648 = vadd.f32 0.0, %v2647
      %v2649 = vpop.f32.mrf.mxu0
      %v2650 = vpop.f32.mrf.mxu0
      %v2651 = vadd.f32 0.0, %v2650
      %v2652 = vpop.f32.mrf.mxu0
      %2653 = vmatprep.mubr.bf16.mxu0 0
      %2654 = vmatmul.mubr.bf16.gmra.mxu0 %v2255
      %v2655 = vpop.f32.mrf.mxu0
      %v2656 = vadd.f32 0.0, %v2655
      %v2657 = vpop.f32.mrf.mxu0
      %v2658 = vpop.f32.mrf.mxu0
      %v2659 = vadd.f32 0.0, %v2658
      %v2660 = vpop.f32.mrf.mxu0
      %2661 = vmatprep.mubr.bf16.mxu0 0
      %2662 = vmatmul.mubr.bf16.gmra.mxu0 %v2258
      %v2663 = vpop.f32.mrf.mxu0
      %v2664 = vadd.f32 0.0, %v2663
      %v2665 = vpop.f32.mrf.mxu0
      %v2666 = vpop.f32.mrf.mxu0
      %v2667 = vadd.f32 0.0, %v2666
      %v2668 = vpop.f32.mrf.mxu0
      %2669 = vmatprep.mubr.bf16.mxu0 0
      %2670 = vmatmul.mubr.bf16.gmra.mxu0 %v2261
      %v2671 = vpop.f32.mrf.mxu0
      %v2672 = vadd.f32 0.0, %v2671
      %v2673 = vpop.f32.mrf.mxu0
      %v2674 = vpop.f32.mrf.mxu0
      %v2675 = vadd.f32 0.0, %v2674
      %v2676 = vpop.f32.mrf.mxu0
      %2677 = vmatprep.mubr.bf16.mxu0 0
      %2678 = vmatmul.mubr.bf16.gmra.mxu0 %v2264
      %v2679 = vpop.f32.mrf.mxu0
      %v2680 = vadd.f32 0.0, %v2679
      %v2681 = vpop.f32.mrf.mxu0
      %v2682 = vpop.f32.mrf.mxu0
      %v2683 = vadd.f32 0.0, %v2682
      %v2684 = vpop.f32.mrf.mxu0
      %2685 = vmatprep.mubr.bf16.mxu0 0
      %2686 = vmatmul.mubr.bf16.gmra.mxu0 %v2267
      %v2687 = vpop.f32.mrf.mxu0
      %v2688 = vadd.f32 0.0, %v2687
      %v2689 = vpop.f32.mrf.mxu0
      %v2690 = vpop.f32.mrf.mxu0
      %v2691 = vadd.f32 0.0, %v2690
      %v2692 = vpop.f32.mrf.mxu0
      %2693 = vmatprep.mubr.bf16.mxu0 0
      %2694 = vmatmul.mubr.bf16.gmra.mxu0 %v2270
      %v2695 = vpop.f32.mrf.mxu0
      %v2696 = vpop.f32.mrf.mxu0
      %v2697 = vpop.f32.mrf.mxu0
      %v2698 = vpop.f32.mrf.mxu0
      %2699 = vmatprep.mubr.bf16.mxu0 0
      %2700 = vmatmul.mubr.bf16.gmra.mxu0 %v2273
      %v2701 = vpop.f32.mrf.mxu0
      %v2702 = vpop.f32.mrf.mxu0
      %v2703 = vpop.f32.mrf.mxu0
      %v2704 = vpop.f32.mrf.mxu0
      %2705 = vdwg.mxu0
      %v2722 = vrot.slane %v2632, 2
      %v2723 = vrot.slane %v2635, 2
      %v2724 = vsel %vm1048, %v2722, %v2723
      %v2725 = vrot.slane %v2640, 2
      %v2726 = vsel %vm1048, %v2723, %v2725
      %v2727 = vrot.slane %v2643, 2
      %v2728 = vsel %vm1048, %v2725, %v2727
      %v2729 = vrot.slane %v2648, 2
      %v2730 = vsel %vm1048, %v2727, %v2729
      %v2731 = vrot.slane %v2651, 2
      %v2732 = vsel %vm1048, %v2729, %v2731
      %v2733 = vrot.slane %v2656, 2
      %v2734 = vsel %vm1048, %v2731, %v2733
      %v2735 = vrot.slane %v2659, 2
      %v2736 = vsel %vm1048, %v2733, %v2735
      %v2737 = vrot.slane %v2664, 2
      %v2738 = vsel %vm1048, %v2735, %v2737
      %v2739 = vrot.slane %v2667, 2
      %v2740 = vsel %vm1048, %v2737, %v2739
      %v2741 = vrot.slane %v2672, 2
      %v2742 = vsel %vm1048, %v2739, %v2741
      %v2743 = vrot.slane %v2675, 2
      %v2744 = vsel %vm1048, %v2741, %v2743
      %v2745 = vrot.slane %v2680, 2
      %v2746 = vsel %vm1048, %v2743, %v2745
      %v2747 = vrot.slane %v2683, 2
      %v2748 = vsel %vm1048, %v2745, %v2747
      %v2749 = vrot.slane %v2688, 2
      %v2750 = vsel %vm1048, %v2747, %v2749
      %v2751 = vrot.slane %v2691, 2
      %v2752 = vsel %vm1048, %v2749, %v2751
      %v2768 = vadd.f32 %v2577, %v2724
      %v2769 = vadd.f32 %v2578, %v2726
      %v2770 = vadd.f32 %v2579, %v2728
      %v2771 = vadd.f32 %v2580, %v2730
      %v2772 = vadd.f32 %v2581, %v2732
      %v2773 = vadd.f32 %v2582, %v2734
      %v2774 = vadd.f32 %v2583, %v2736
      %v2775 = vadd.f32 %v2584, %v2738
      %v2776 = vadd.f32 %v2585, %v2740
      %v2777 = vadd.f32 %v2586, %v2742
      %v2778 = vadd.f32 %v2587, %v2744
      %v2779 = vadd.f32 %v2588, %v2746
      %v2780 = vadd.f32 %v2589, %v2748
      %v2781 = vadd.f32 %v2590, %v2750
      %v2782 = vadd.f32 %v2591, %v2752
      %s2783 = scalar_lea.vmem %s3, 24
      %v2784 = vld [vmem:[%s2783] sm:$0x3]
      %v2786 = vsel %vm599, %v2784, 0
      %2788 = vmatprep.subr.bf16.mxu0 0
      %2789 = vmatpush1.bf16.msra.mxu0 0
      %2790 = vmatprep.subr.bf16.mxu0 0
      %2791 = vmatpush1.bf16.msra.mxu0 0
      %2792 = vmatprep.subr.bf16.mxu0 0
      %2793 = vmatpush1.bf16.msra.mxu0 0
      %2794 = vmatprep.subr.bf16.mxu0 0
      %2795 = vmatpush1.bf16.msra.mxu0 0
      %2796 = vmatprep.subr.bf16.mxu0 0
      %2797 = vmatpush1.bf16.msra.mxu0 0
      %2798 = vmatprep.subr.bf16.mxu0 0
      %2799 = vmatpush1.bf16.msra.mxu0 0
      %2800 = vmatprep.subr.bf16.mxu0 0
      %2801 = vmatpush1.bf16.msra.mxu0 0
      %2802 = vmatprep.subr.bf16.mxu0 0
      %2803 = vmatpush1.bf16.msra.mxu0 %v2786
      %2804 = vmatprep.subr.bf16.mxu0 0
      %2805 = vmatpush2.bf16.msra.mxu0 0
      %2806 = vmatprep.subr.bf16.mxu0 0
      %2807 = vmatpush2.bf16.msra.mxu0 0
      %2808 = vmatprep.subr.bf16.mxu0 0
      %2809 = vmatpush2.bf16.msra.mxu0 0
      %2810 = vmatprep.subr.bf16.mxu0 0
      %2811 = vmatpush2.bf16.msra.mxu0 0
      %2812 = vmatprep.subr.bf16.mxu0 0
      %2813 = vmatpush2.bf16.msra.mxu0 0
      %2814 = vmatprep.subr.bf16.mxu0 0
      %2815 = vmatpush2.bf16.msra.mxu0 0
      %2816 = vmatprep.subr.bf16.mxu0 0
      %2817 = vmatpush2.bf16.msra.mxu0 0
      %2818 = vmatprep.subr.bf16.mxu0 0
      %2819 = vmatpush2.bf16.msra.mxu0 0
      %2820 = vmatprep.mubr.bf16.mxu0 0
      %2821 = vmatmul.mubr.bf16.gmra.mxu0 %v2246
      %v2822 = vpop.f32.mrf.mxu0
      %v2823 = vpop.f32.mrf.mxu0
      %v2824 = vpop.f32.mrf.mxu0
      %v2825 = vadd.f32 0.0, %v2824
      %v2826 = vpop.f32.mrf.mxu0
      %2827 = vmatprep.mubr.bf16.mxu0 0
      %2828 = vmatmul.mubr.bf16.gmra.mxu0 %v2249
      %v2829 = vpop.f32.mrf.mxu0
      %v2830 = vadd.f32 0.0, %v2829
      %v2831 = vpop.f32.mrf.mxu0
      %v2832 = vpop.f32.mrf.mxu0
      %v2833 = vadd.f32 0.0, %v2832
      %v2834 = vpop.f32.mrf.mxu0
      %2835 = vmatprep.mubr.bf16.mxu0 0
      %2836 = vmatmul.mubr.bf16.gmra.mxu0 %v2252
      %v2837 = vpop.f32.mrf.mxu0
      %v2838 = vadd.f32 0.0, %v2837
      %v2839 = vpop.f32.mrf.mxu0
      %v2840 = vpop.f32.mrf.mxu0
      %v2841 = vadd.f32 0.0, %v2840
      %v2842 = vpop.f32.mrf.mxu0
      %2843 = vmatprep.mubr.bf16.mxu0 0
      %2844 = vmatmul.mubr.bf16.gmra.mxu0 %v2255
      %v2845 = vpop.f32.mrf.mxu0
      %v2846 = vadd.f32 0.0, %v2845
      %v2847 = vpop.f32.mrf.mxu0
      %v2848 = vpop.f32.mrf.mxu0
      %v2849 = vadd.f32 0.0, %v2848
      %v2850 = vpop.f32.mrf.mxu0
      %2851 = vmatprep.mubr.bf16.mxu0 0
      %2852 = vmatmul.mubr.bf16.gmra.mxu0 %v2258
      %v2853 = vpop.f32.mrf.mxu0
      %v2854 = vadd.f32 0.0, %v2853
      %v2855 = vpop.f32.mrf.mxu0
      %v2856 = vpop.f32.mrf.mxu0
      %v2857 = vadd.f32 0.0, %v2856
      %v2858 = vpop.f32.mrf.mxu0
      %2859 = vmatprep.mubr.bf16.mxu0 0
      %2860 = vmatmul.mubr.bf16.gmra.mxu0 %v2261
      %v2861 = vpop.f32.mrf.mxu0
      %v2862 = vadd.f32 0.0, %v2861
      %v2863 = vpop.f32.mrf.mxu0
      %v2864 = vpop.f32.mrf.mxu0
      %v2865 = vadd.f32 0.0, %v2864
      %v2866 = vpop.f32.mrf.mxu0
      %2867 = vmatprep.mubr.bf16.mxu0 0
      %2868 = vmatmul.mubr.bf16.gmra.mxu0 %v2264
      %v2869 = vpop.f32.mrf.mxu0
      %v2870 = vadd.f32 0.0, %v2869
      %v2871 = vpop.f32.mrf.mxu0
      %v2872 = vpop.f32.mrf.mxu0
      %v2873 = vadd.f32 0.0, %v2872
      %v2874 = vpop.f32.mrf.mxu0
      %2875 = vmatprep.mubr.bf16.mxu0 0
      %2876 = vmatmul.mubr.bf16.gmra.mxu0 %v2267
      %v2877 = vpop.f32.mrf.mxu0
      %v2878 = vadd.f32 0.0, %v2877
      %v2879 = vpop.f32.mrf.mxu0
      %v2880 = vpop.f32.mrf.mxu0
      %v2881 = vadd.f32 0.0, %v2880
      %v2882 = vpop.f32.mrf.mxu0
      %2883 = vmatprep.mubr.bf16.mxu0 0
      %2884 = vmatmul.mubr.bf16.gmra.mxu0 %v2270
      %v2885 = vpop.f32.mrf.mxu0
      %v2886 = vadd.f32 0.0, %v2885
      %v2887 = vpop.f32.mrf.mxu0
      %v2888 = vpop.f32.mrf.mxu0
      %v2889 = vpop.f32.mrf.mxu0
      %2890 = vmatprep.mubr.bf16.mxu0 0
      %2891 = vmatmul.mubr.bf16.gmra.mxu0 %v2273
      %v2892 = vpop.f32.mrf.mxu0
      %v2893 = vpop.f32.mrf.mxu0
      %v2894 = vpop.f32.mrf.mxu0
      %v2895 = vpop.f32.mrf.mxu0
      %2896 = vdwg.mxu0
      %v2913 = vrot.slane %v2825, 4
      %v2914 = vrot.slane %v2830, 4
      %v2915 = vsel %vm1240, %v2913, %v2914
      %v2916 = vrot.slane %v2833, 4
      %v2917 = vsel %vm1240, %v2914, %v2916
      %v2918 = vrot.slane %v2838, 4
      %v2919 = vsel %vm1240, %v2916, %v2918
      %v2920 = vrot.slane %v2841, 4
      %v2921 = vsel %vm1240, %v2918, %v2920
      %v2922 = vrot.slane %v2846, 4
      %v2923 = vsel %vm1240, %v2920, %v2922
      %v2924 = vrot.slane %v2849, 4
      %v2925 = vsel %vm1240, %v2922, %v2924
      %v2926 = vrot.slane %v2854, 4
      %v2927 = vsel %vm1240, %v2924, %v2926
      %v2928 = vrot.slane %v2857, 4
      %v2929 = vsel %vm1240, %v2926, %v2928
      %v2930 = vrot.slane %v2862, 4
      %v2931 = vsel %vm1240, %v2928, %v2930
      %v2932 = vrot.slane %v2865, 4
      %v2933 = vsel %vm1240, %v2930, %v2932
      %v2934 = vrot.slane %v2870, 4
      %v2935 = vsel %vm1240, %v2932, %v2934
      %v2936 = vrot.slane %v2873, 4
      %v2937 = vsel %vm1240, %v2934, %v2936
      %v2938 = vrot.slane %v2878, 4
      %v2939 = vsel %vm1240, %v2936, %v2938
      %v2940 = vrot.slane %v2881, 4
      %v2941 = vsel %vm1240, %v2938, %v2940
      %v2942 = vrot.slane %v2886, 4
      %v2943 = vsel %vm1240, %v2940, %v2942
      %v2959 = vadd.f32 %v2768, %v2915
      %v2960 = vadd.f32 %v2769, %v2917
      %v2961 = vadd.f32 %v2770, %v2919
      %v2962 = vadd.f32 %v2771, %v2921
      %v2963 = vadd.f32 %v2772, %v2923
      %v2964 = vadd.f32 %v2773, %v2925
      %v2965 = vadd.f32 %v2774, %v2927
      %v2966 = vadd.f32 %v2775, %v2929
      %v2967 = vadd.f32 %v2776, %v2931
      %v2968 = vadd.f32 %v2777, %v2933
      %v2969 = vadd.f32 %v2778, %v2935
      %v2970 = vadd.f32 %v2779, %v2937
      %v2971 = vadd.f32 %v2780, %v2939
      %v2972 = vadd.f32 %v2781, %v2941
      %v2973 = vadd.f32 %v2782, %v2943
      %s2974 = scalar_lea.vmem %s3, 26
      %v2975 = vld [vmem:[%s2974] sm:$0x3]
      %v2977 = vsel %vm599, %v2975, 0
      %2979 = vmatprep.subr.bf16.mxu0 0
      %2980 = vmatpush1.bf16.msra.mxu0 0
      %2981 = vmatprep.subr.bf16.mxu0 0
      %2982 = vmatpush1.bf16.msra.mxu0 0
      %2983 = vmatprep.subr.bf16.mxu0 0
      %2984 = vmatpush1.bf16.msra.mxu0 0
      %2985 = vmatprep.subr.bf16.mxu0 0
      %2986 = vmatpush1.bf16.msra.mxu0 0
      %2987 = vmatprep.subr.bf16.mxu0 0
      %2988 = vmatpush1.bf16.msra.mxu0 0
      %2989 = vmatprep.subr.bf16.mxu0 0
      %2990 = vmatpush1.bf16.msra.mxu0 0
      %2991 = vmatprep.subr.bf16.mxu0 0
      %2992 = vmatpush1.bf16.msra.mxu0 0
      %2993 = vmatprep.subr.bf16.mxu0 0
      %2994 = vmatpush1.bf16.msra.mxu0 %v2977
      %2995 = vmatprep.subr.bf16.mxu0 0
      %2996 = vmatpush2.bf16.msra.mxu0 0
      %2997 = vmatprep.subr.bf16.mxu0 0
      %2998 = vmatpush2.bf16.msra.mxu0 0
      %2999 = vmatprep.subr.bf16.mxu0 0
      %3000 = vmatpush2.bf16.msra.mxu0 0
      %3001 = vmatprep.subr.bf16.mxu0 0
      %3002 = vmatpush2.bf16.msra.mxu0 0
      %3003 = vmatprep.subr.bf16.mxu0 0
      %3004 = vmatpush2.bf16.msra.mxu0 0
      %3005 = vmatprep.subr.bf16.mxu0 0
      %3006 = vmatpush2.bf16.msra.mxu0 0
      %3007 = vmatprep.subr.bf16.mxu0 0
      %3008 = vmatpush2.bf16.msra.mxu0 0
      %3009 = vmatprep.subr.bf16.mxu0 0
      %3010 = vmatpush2.bf16.msra.mxu0 0
      %3011 = vmatprep.mubr.bf16.mxu0 0
      %3012 = vmatmul.mubr.bf16.gmra.mxu0 %v2246
      %v3013 = vpop.f32.mrf.mxu0
      %v3014 = vpop.f32.mrf.mxu0
      %v3015 = vpop.f32.mrf.mxu0
      %v3016 = vadd.f32 0.0, %v3015
      %v3017 = vpop.f32.mrf.mxu0
      %3018 = vmatprep.mubr.bf16.mxu0 0
      %3019 = vmatmul.mubr.bf16.gmra.mxu0 %v2249
      %v3020 = vpop.f32.mrf.mxu0
      %v3021 = vadd.f32 0.0, %v3020
      %v3022 = vpop.f32.mrf.mxu0
      %v3023 = vpop.f32.mrf.mxu0
      %v3024 = vadd.f32 0.0, %v3023
      %v3025 = vpop.f32.mrf.mxu0
      %3026 = vmatprep.mubr.bf16.mxu0 0
      %3027 = vmatmul.mubr.bf16.gmra.mxu0 %v2252
      %v3028 = vpop.f32.mrf.mxu0
      %v3029 = vadd.f32 0.0, %v3028
      %v3030 = vpop.f32.mrf.mxu0
      %v3031 = vpop.f32.mrf.mxu0
      %v3032 = vadd.f32 0.0, %v3031
      %v3033 = vpop.f32.mrf.mxu0
      %3034 = vmatprep.mubr.bf16.mxu0 0
      %3035 = vmatmul.mubr.bf16.gmra.mxu0 %v2255
      %v3036 = vpop.f32.mrf.mxu0
      %v3037 = vadd.f32 0.0, %v3036
      %v3038 = vpop.f32.mrf.mxu0
      %v3039 = vpop.f32.mrf.mxu0
      %v3040 = vadd.f32 0.0, %v3039
      %v3041 = vpop.f32.mrf.mxu0
      %3042 = vmatprep.mubr.bf16.mxu0 0
      %3043 = vmatmul.mubr.bf16.gmra.mxu0 %v2258
      %v3044 = vpop.f32.mrf.mxu0
      %v3045 = vadd.f32 0.0, %v3044
      %v3046 = vpop.f32.mrf.mxu0
      %v3047 = vpop.f32.mrf.mxu0
      %v3048 = vadd.f32 0.0, %v3047
      %v3049 = vpop.f32.mrf.mxu0
      %3050 = vmatprep.mubr.bf16.mxu0 0
      %3051 = vmatmul.mubr.bf16.gmra.mxu0 %v2261
      %v3052 = vpop.f32.mrf.mxu0
      %v3053 = vadd.f32 0.0, %v3052
      %v3054 = vpop.f32.mrf.mxu0
      %v3055 = vpop.f32.mrf.mxu0
      %v3056 = vadd.f32 0.0, %v3055
      %v3057 = vpop.f32.mrf.mxu0
      %3058 = vmatprep.mubr.bf16.mxu0 0
      %3059 = vmatmul.mubr.bf16.gmra.mxu0 %v2264
      %v3060 = vpop.f32.mrf.mxu0
      %v3061 = vadd.f32 0.0, %v3060
      %v3062 = vpop.f32.mrf.mxu0
      %v3063 = vpop.f32.mrf.mxu0
      %v3064 = vadd.f32 0.0, %v3063
      %v3065 = vpop.f32.mrf.mxu0
      %3066 = vmatprep.mubr.bf16.mxu0 0
      %3067 = vmatmul.mubr.bf16.gmra.mxu0 %v2267
      %v3068 = vpop.f32.mrf.mxu0
      %v3069 = vadd.f32 0.0, %v3068
      %v3070 = vpop.f32.mrf.mxu0
      %v3071 = vpop.f32.mrf.mxu0
      %v3072 = vadd.f32 0.0, %v3071
      %v3073 = vpop.f32.mrf.mxu0
      %3074 = vmatprep.mubr.bf16.mxu0 0
      %3075 = vmatmul.mubr.bf16.gmra.mxu0 %v2270
      %v3076 = vpop.f32.mrf.mxu0
      %v3077 = vadd.f32 0.0, %v3076
      %v3078 = vpop.f32.mrf.mxu0
      %v3079 = vpop.f32.mrf.mxu0
      %v3080 = vpop.f32.mrf.mxu0
      %3081 = vmatprep.mubr.bf16.mxu0 0
      %3082 = vmatmul.mubr.bf16.gmra.mxu0 %v2273
      %v3083 = vpop.f32.mrf.mxu0
      %v3084 = vpop.f32.mrf.mxu0
      %v3085 = vpop.f32.mrf.mxu0
      %v3086 = vpop.f32.mrf.mxu0
      %3087 = vdwg.mxu0
      %v3104 = vrot.slane %v3016, 5
      %v3105 = vrot.slane %v3021, 5
      %v3106 = vsel %vm1432, %v3104, %v3105
      %v3107 = vrot.slane %v3024, 5
      %v3108 = vsel %vm1432, %v3105, %v3107
      %v3109 = vrot.slane %v3029, 5
      %v3110 = vsel %vm1432, %v3107, %v3109
      %v3111 = vrot.slane %v3032, 5
      %v3112 = vsel %vm1432, %v3109, %v3111
      %v3113 = vrot.slane %v3037, 5
      %v3114 = vsel %vm1432, %v3111, %v3113
      %v3115 = vrot.slane %v3040, 5
      %v3116 = vsel %vm1432, %v3113, %v3115
      %v3117 = vrot.slane %v3045, 5
      %v3118 = vsel %vm1432, %v3115, %v3117
      %v3119 = vrot.slane %v3048, 5
      %v3120 = vsel %vm1432, %v3117, %v3119
      %v3121 = vrot.slane %v3053, 5
      %v3122 = vsel %vm1432, %v3119, %v3121
      %v3123 = vrot.slane %v3056, 5
      %v3124 = vsel %vm1432, %v3121, %v3123
      %v3125 = vrot.slane %v3061, 5
      %v3126 = vsel %vm1432, %v3123, %v3125
      %v3127 = vrot.slane %v3064, 5
      %v3128 = vsel %vm1432, %v3125, %v3127
      %v3129 = vrot.slane %v3069, 5
      %v3130 = vsel %vm1432, %v3127, %v3129
      %v3131 = vrot.slane %v3072, 5
      %v3132 = vsel %vm1432, %v3129, %v3131
      %v3133 = vrot.slane %v3077, 5
      %v3134 = vsel %vm1432, %v3131, %v3133
      %v3150 = vadd.f32 %v2959, %v3106
      %v3151 = vadd.f32 %v2960, %v3108
      %v3152 = vadd.f32 %v2961, %v3110
      %v3153 = vadd.f32 %v2962, %v3112
      %v3154 = vadd.f32 %v2963, %v3114
      %v3155 = vadd.f32 %v2964, %v3116
      %v3156 = vadd.f32 %v2965, %v3118
      %v3157 = vadd.f32 %v2966, %v3120
      %v3158 = vadd.f32 %v2967, %v3122
      %v3159 = vadd.f32 %v2968, %v3124
      %v3160 = vadd.f32 %v2969, %v3126
      %v3161 = vadd.f32 %v2970, %v3128
      %v3162 = vadd.f32 %v2971, %v3130
      %v3163 = vadd.f32 %v2972, %v3132
      %v3164 = vadd.f32 %v2973, %v3134
      %s3165 = scalar_lea.vmem %s3, 28
      %v3166 = vld [vmem:[%s3165] sm:$0x3]
      %v3168 = vsel %vm599, %v3166, 0
      %3170 = vmatprep.subr.bf16.mxu0 0
      %3171 = vmatpush1.bf16.msra.mxu0 0
      %3172 = vmatprep.subr.bf16.mxu0 0
      %3173 = vmatpush1.bf16.msra.mxu0 0
      %3174 = vmatprep.subr.bf16.mxu0 0
      %3175 = vmatpush1.bf16.msra.mxu0 0
      %3176 = vmatprep.subr.bf16.mxu0 0
      %3177 = vmatpush1.bf16.msra.mxu0 0
      %3178 = vmatprep.subr.bf16.mxu0 0
      %3179 = vmatpush1.bf16.msra.mxu0 0
      %3180 = vmatprep.subr.bf16.mxu0 0
      %3181 = vmatpush1.bf16.msra.mxu0 0
      %3182 = vmatprep.subr.bf16.mxu0 0
      %3183 = vmatpush1.bf16.msra.mxu0 0
      %3184 = vmatprep.subr.bf16.mxu0 0
      %3185 = vmatpush1.bf16.msra.mxu0 %v3168
      %3186 = vmatprep.subr.bf16.mxu0 0
      %3187 = vmatpush2.bf16.msra.mxu0 0
      %3188 = vmatprep.subr.bf16.mxu0 0
      %3189 = vmatpush2.bf16.msra.mxu0 0
      %3190 = vmatprep.subr.bf16.mxu0 0
      %3191 = vmatpush2.bf16.msra.mxu0 0
      %3192 = vmatprep.subr.bf16.mxu0 0
      %3193 = vmatpush2.bf16.msra.mxu0 0
      %3194 = vmatprep.subr.bf16.mxu0 0
      %3195 = vmatpush2.bf16.msra.mxu0 0
      %3196 = vmatprep.subr.bf16.mxu0 0
      %3197 = vmatpush2.bf16.msra.mxu0 0
      %3198 = vmatprep.subr.bf16.mxu0 0
      %3199 = vmatpush2.bf16.msra.mxu0 0
      %3200 = vmatprep.subr.bf16.mxu0 0
      %3201 = vmatpush2.bf16.msra.mxu0 0
      %3202 = vmatprep.mubr.bf16.mxu0 0
      %3203 = vmatmul.mubr.bf16.gmra.mxu0 %v2246
      %v3204 = vpop.f32.mrf.mxu0
      %v3205 = vpop.f32.mrf.mxu0
      %v3206 = vpop.f32.mrf.mxu0
      %v3207 = vadd.f32 0.0, %v3206
      %v3208 = vpop.f32.mrf.mxu0
      %3209 = vmatprep.mubr.bf16.mxu0 0
      %3210 = vmatmul.mubr.bf16.gmra.mxu0 %v2249
      %v3211 = vpop.f32.mrf.mxu0
      %v3212 = vadd.f32 0.0, %v3211
      %v3213 = vpop.f32.mrf.mxu0
      %v3214 = vpop.f32.mrf.mxu0
      %v3215 = vadd.f32 0.0, %v3214
      %v3216 = vpop.f32.mrf.mxu0
      %3217 = vmatprep.mubr.bf16.mxu0 0
      %3218 = vmatmul.mubr.bf16.gmra.mxu0 %v2252
      %v3219 = vpop.f32.mrf.mxu0
      %v3220 = vadd.f32 0.0, %v3219
      %v3221 = vpop.f32.mrf.mxu0
      %v3222 = vpop.f32.mrf.mxu0
      %v3223 = vadd.f32 0.0, %v3222
      %v3224 = vpop.f32.mrf.mxu0
      %3225 = vmatprep.mubr.bf16.mxu0 0
      %3226 = vmatmul.mubr.bf16.gmra.mxu0 %v2255
      %v3227 = vpop.f32.mrf.mxu0
      %v3228 = vadd.f32 0.0, %v3227
      %v3229 = vpop.f32.mrf.mxu0
      %v3230 = vpop.f32.mrf.mxu0
      %v3231 = vadd.f32 0.0, %v3230
      %v3232 = vpop.f32.mrf.mxu0
      %3233 = vmatprep.mubr.bf16.mxu0 0
      %3234 = vmatmul.mubr.bf16.gmra.mxu0 %v2258
      %v3235 = vpop.f32.mrf.mxu0
      %v3236 = vadd.f32 0.0, %v3235
      %v3237 = vpop.f32.mrf.mxu0
      %v3238 = vpop.f32.mrf.mxu0
      %v3239 = vadd.f32 0.0, %v3238
      %v3240 = vpop.f32.mrf.mxu0
      %3241 = vmatprep.mubr.bf16.mxu0 0
      %3242 = vmatmul.mubr.bf16.gmra.mxu0 %v2261
      %v3243 = vpop.f32.mrf.mxu0
      %v3244 = vadd.f32 0.0, %v3243
      %v3245 = vpop.f32.mrf.mxu0
      %v3246 = vpop.f32.mrf.mxu0
      %v3247 = vadd.f32 0.0, %v3246
      %v3248 = vpop.f32.mrf.mxu0
      %3249 = vmatprep.mubr.bf16.mxu0 0
      %3250 = vmatmul.mubr.bf16.gmra.mxu0 %v2264
      %v3251 = vpop.f32.mrf.mxu0
      %v3252 = vadd.f32 0.0, %v3251
      %v3253 = vpop.f32.mrf.mxu0
      %v3254 = vpop.f32.mrf.mxu0
      %v3255 = vadd.f32 0.0, %v3254
      %v3256 = vpop.f32.mrf.mxu0
      %3257 = vmatprep.mubr.bf16.mxu0 0
      %3258 = vmatmul.mubr.bf16.gmra.mxu0 %v2267
      %v3259 = vpop.f32.mrf.mxu0
      %v3260 = vadd.f32 0.0, %v3259
      %v3261 = vpop.f32.mrf.mxu0
      %v3262 = vpop.f32.mrf.mxu0
      %v3263 = vadd.f32 0.0, %v3262
      %v3264 = vpop.f32.mrf.mxu0
      %3265 = vmatprep.mubr.bf16.mxu0 0
      %3266 = vmatmul.mubr.bf16.gmra.mxu0 %v2270
      %v3267 = vpop.f32.mrf.mxu0
      %v3268 = vadd.f32 0.0, %v3267
      %v3269 = vpop.f32.mrf.mxu0
      %v3270 = vpop.f32.mrf.mxu0
      %v3271 = vpop.f32.mrf.mxu0
      %3272 = vmatprep.mubr.bf16.mxu0 0
      %3273 = vmatmul.mubr.bf16.gmra.mxu0 %v2273
      %v3274 = vpop.f32.mrf.mxu0
      %v3275 = vpop.f32.mrf.mxu0
      %v3276 = vpop.f32.mrf.mxu0
      %v3277 = vpop.f32.mrf.mxu0
      %3278 = vdwg.mxu0
      %v3295 = vrot.slane %v3207, 6
      %v3296 = vrot.slane %v3212, 6
      %v3297 = vsel %vm599, %v3295, %v3296
      %v3298 = vrot.slane %v3215, 6
      %v3299 = vsel %vm599, %v3296, %v3298
      %v3300 = vrot.slane %v3220, 6
      %v3301 = vsel %vm599, %v3298, %v3300
      %v3302 = vrot.slane %v3223, 6
      %v3303 = vsel %vm599, %v3300, %v3302
      %v3304 = vrot.slane %v3228, 6
      %v3305 = vsel %vm599, %v3302, %v3304
      %v3306 = vrot.slane %v3231, 6
      %v3307 = vsel %vm599, %v3304, %v3306
      %v3308 = vrot.slane %v3236, 6
      %v3309 = vsel %vm599, %v3306, %v3308
      %v3310 = vrot.slane %v3239, 6
      %v3311 = vsel %vm599, %v3308, %v3310
      %v3312 = vrot.slane %v3244, 6
      %v3313 = vsel %vm599, %v3310, %v3312
      %v3314 = vrot.slane %v3247, 6
      %v3315 = vsel %vm599, %v3312, %v3314
      %v3316 = vrot.slane %v3252, 6
      %v3317 = vsel %vm599, %v3314, %v3316
      %v3318 = vrot.slane %v3255, 6
      %v3319 = vsel %vm599, %v3316, %v3318
      %v3320 = vrot.slane %v3260, 6
      %v3321 = vsel %vm599, %v3318, %v3320
      %v3322 = vrot.slane %v3263, 6
      %v3323 = vsel %vm599, %v3320, %v3322
      %v3324 = vrot.slane %v3268, 6
      %v3325 = vsel %vm599, %v3322, %v3324
      %v3341 = vadd.f32 %v3150, %v3297
      %v3342 = vadd.f32 %v3151, %v3299
      %v3343 = vadd.f32 %v3152, %v3301
      %v3344 = vadd.f32 %v3153, %v3303
      %v3345 = vadd.f32 %v3154, %v3305
      %v3346 = vadd.f32 %v3155, %v3307
      %v3347 = vadd.f32 %v3156, %v3309
      %v3348 = vadd.f32 %v3157, %v3311
      %v3349 = vadd.f32 %v3158, %v3313
      %v3350 = vadd.f32 %v3159, %v3315
      %v3351 = vadd.f32 %v3160, %v3317
      %v3352 = vadd.f32 %v3161, %v3319
      %v3353 = vadd.f32 %v3162, %v3321
      %v3354 = vadd.f32 %v3163, %v3323
      %v3355 = vadd.f32 %v3164, %v3325
      %s3356 = scalar_lea.vmem %s3, 30
      %v3357 = vld [vmem:[%s3356] sm:$0x3]
      %v3359 = vsel %vm599, %v3357, 0
      %3361 = vmatprep.subr.bf16.mxu0 0
      %3362 = vmatpush1.bf16.msra.mxu0 0
      %3363 = vmatprep.subr.bf16.mxu0 0
      %3364 = vmatpush1.bf16.msra.mxu0 0
      %3365 = vmatprep.subr.bf16.mxu0 0
      %3366 = vmatpush1.bf16.msra.mxu0 0
      %3367 = vmatprep.subr.bf16.mxu0 0
      %3368 = vmatpush1.bf16.msra.mxu0 0
      %3369 = vmatprep.subr.bf16.mxu0 0
      %3370 = vmatpush1.bf16.msra.mxu0 0
      %3371 = vmatprep.subr.bf16.mxu0 0
      %3372 = vmatpush1.bf16.msra.mxu0 0
      %3373 = vmatprep.subr.bf16.mxu0 0
      %3374 = vmatpush1.bf16.msra.mxu0 0
      %3375 = vmatprep.subr.bf16.mxu0 0
      %3376 = vmatpush1.bf16.msra.mxu0 %v3359
      %3377 = vmatprep.subr.bf16.mxu0 0
      %3378 = vmatpush2.bf16.msra.mxu0 0
      %3379 = vmatprep.subr.bf16.mxu0 0
      %3380 = vmatpush2.bf16.msra.mxu0 0
      %3381 = vmatprep.subr.bf16.mxu0 0
      %3382 = vmatpush2.bf16.msra.mxu0 0
      %3383 = vmatprep.subr.bf16.mxu0 0
      %3384 = vmatpush2.bf16.msra.mxu0 0
      %3385 = vmatprep.subr.bf16.mxu0 0
      %3386 = vmatpush2.bf16.msra.mxu0 0
      %3387 = vmatprep.subr.bf16.mxu0 0
      %3388 = vmatpush2.bf16.msra.mxu0 0
      %3389 = vmatprep.subr.bf16.mxu0 0
      %3390 = vmatpush2.bf16.msra.mxu0 0
      %3391 = vmatprep.subr.bf16.mxu0 0
      %3392 = vmatpush2.bf16.msra.mxu0 0
      %3393 = vmatprep.mubr.bf16.mxu0 0
      %3394 = vmatmul.mubr.bf16.gmra.mxu0 %v2246
      %v3395 = vpop.f32.mrf.mxu0
      %v3396 = vpop.f32.mrf.mxu0
      %v3397 = vpop.f32.mrf.mxu0
      %v3398 = vpop.f32.mrf.mxu0
      %3399 = vmatprep.mubr.bf16.mxu0 0
      %3400 = vmatmul.mubr.bf16.gmra.mxu0 %v2249
      %v3401 = vpop.f32.mrf.mxu0
      %v3402 = vpop.f32.mrf.mxu0
      %v3403 = vpop.f32.mrf.mxu0
      %v3404 = vadd.f32 0.0, %v3403
      %v3405 = vpop.f32.mrf.mxu0
      %3406 = vmatprep.mubr.bf16.mxu0 0
      %3407 = vmatmul.mubr.bf16.gmra.mxu0 %v2252
      %v3408 = vpop.f32.mrf.mxu0
      %v3409 = vadd.f32 0.0, %v3408
      %v3410 = vpop.f32.mrf.mxu0
      %v3411 = vpop.f32.mrf.mxu0
      %v3412 = vadd.f32 0.0, %v3411
      %v3413 = vpop.f32.mrf.mxu0
      %3414 = vmatprep.mubr.bf16.mxu0 0
      %3415 = vmatmul.mubr.bf16.gmra.mxu0 %v2255
      %v3416 = vpop.f32.mrf.mxu0
      %v3417 = vadd.f32 0.0, %v3416
      %v3418 = vpop.f32.mrf.mxu0
      %v3419 = vpop.f32.mrf.mxu0
      %v3420 = vadd.f32 0.0, %v3419
      %v3421 = vpop.f32.mrf.mxu0
      %3422 = vmatprep.mubr.bf16.mxu0 0
      %3423 = vmatmul.mubr.bf16.gmra.mxu0 %v2258
      %v3424 = vpop.f32.mrf.mxu0
      %v3425 = vadd.f32 0.0, %v3424
      %v3426 = vpop.f32.mrf.mxu0
      %v3427 = vpop.f32.mrf.mxu0
      %v3428 = vadd.f32 0.0, %v3427
      %v3429 = vpop.f32.mrf.mxu0
      %3430 = vmatprep.mubr.bf16.mxu0 0
      %3431 = vmatmul.mubr.bf16.gmra.mxu0 %v2261
      %v3432 = vpop.f32.mrf.mxu0
      %v3433 = vadd.f32 0.0, %v3432
      %v3434 = vpop.f32.mrf.mxu0
      %v3435 = vpop.f32.mrf.mxu0
      %v3436 = vadd.f32 0.0, %v3435
      %v3437 = vpop.f32.mrf.mxu0
      %3438 = vmatprep.mubr.bf16.mxu0 0
      %3439 = vmatmul.mubr.bf16.gmra.mxu0 %v2264
      %v3440 = vpop.f32.mrf.mxu0
      %v3441 = vadd.f32 0.0, %v3440
      %v3442 = vpop.f32.mrf.mxu0
      %v3443 = vpop.f32.mrf.mxu0
      %v3444 = vadd.f32 0.0, %v3443
      %v3445 = vpop.f32.mrf.mxu0
      %3446 = vmatprep.mubr.bf16.mxu0 0
      %3447 = vmatmul.mubr.bf16.gmra.mxu0 %v2267
      %v3448 = vpop.f32.mrf.mxu0
      %v3449 = vadd.f32 0.0, %v3448
      %v3450 = vpop.f32.mrf.mxu0
      %v3451 = vpop.f32.mrf.mxu0
      %v3452 = vadd.f32 0.0, %v3451
      %v3453 = vpop.f32.mrf.mxu0
      %3454 = vmatprep.mubr.bf16.mxu0 0
      %3455 = vmatmul.mubr.bf16.gmra.mxu0 %v2270
      %v3456 = vpop.f32.mrf.mxu0
      %v3457 = vadd.f32 0.0, %v3456
      %v3458 = vpop.f32.mrf.mxu0
      %v3459 = vpop.f32.mrf.mxu0
      %v3460 = vadd.f32 0.0, %v3459
      %v3461 = vpop.f32.mrf.mxu0
      %3462 = vmatprep.mubr.bf16.mxu0 0
      %3463 = vmatmul.mubr.bf16.gmra.mxu0 %v2273
      %v3464 = vpop.f32.mrf.mxu0
      %v3465 = vpop.f32.mrf.mxu0
      %v3466 = vpop.f32.mrf.mxu0
      %v3467 = vpop.f32.mrf.mxu0
      %3468 = vdwg.mxu0
      %v3469 = vadd.f32 %v3341, %v3404
      %v3470 = vadd.f32 %v3342, %v3409
      %v3471 = vadd.f32 %v3343, %v3412
      %v3472 = vadd.f32 %v3344, %v3417
      %v3473 = vadd.f32 %v3345, %v3420
      %v3474 = vadd.f32 %v3346, %v3425
      %v3475 = vadd.f32 %v3347, %v3428
      %v3476 = vadd.f32 %v3348, %v3433
      %v3477 = vadd.f32 %v3349, %v3436
      %v3478 = vadd.f32 %v3350, %v3441
      %v3479 = vadd.f32 %v3351, %v3444
      %v3480 = vadd.f32 %v3352, %v3449
      %v3481 = vadd.f32 %v3353, %v3452
      %v3482 = vadd.f32 %v3354, %v3457
      %v3483 = vadd.f32 %v3355, %v3460
      %s3484 = scalar_lea.vmem %s3, 32
      %v3485 = vld [vmem:[%s3484] sm:$0x3]
      %v3487 = vsel %vm599, %v3485, 0
      %3489 = vmatprep.subr.bf16.mxu0 0
      %3490 = vmatpush1.bf16.msra.mxu0 0
      %3491 = vmatprep.subr.bf16.mxu0 0
      %3492 = vmatpush1.bf16.msra.mxu0 0
      %3493 = vmatprep.subr.bf16.mxu0 0
      %3494 = vmatpush1.bf16.msra.mxu0 0
      %3495 = vmatprep.subr.bf16.mxu0 0
      %3496 = vmatpush1.bf16.msra.mxu0 0
      %3497 = vmatprep.subr.bf16.mxu0 0
      %3498 = vmatpush1.bf16.msra.mxu0 0
      %3499 = vmatprep.subr.bf16.mxu0 0
      %3500 = vmatpush1.bf16.msra.mxu0 0
      %3501 = vmatprep.subr.bf16.mxu0 0
      %3502 = vmatpush1.bf16.msra.mxu0 0
      %3503 = vmatprep.subr.bf16.mxu0 0
      %3504 = vmatpush1.bf16.msra.mxu0 %v3487
      %3505 = vmatprep.subr.bf16.mxu0 0
      %3506 = vmatpush2.bf16.msra.mxu0 0
      %3507 = vmatprep.subr.bf16.mxu0 0
      %3508 = vmatpush2.bf16.msra.mxu0 0
      %3509 = vmatprep.subr.bf16.mxu0 0
      %3510 = vmatpush2.bf16.msra.mxu0 0
      %3511 = vmatprep.subr.bf16.mxu0 0
      %3512 = vmatpush2.bf16.msra.mxu0 0
      %3513 = vmatprep.subr.bf16.mxu0 0
      %3514 = vmatpush2.bf16.msra.mxu0 0
      %3515 = vmatprep.subr.bf16.mxu0 0
      %3516 = vmatpush2.bf16.msra.mxu0 0
      %3517 = vmatprep.subr.bf16.mxu0 0
      %3518 = vmatpush2.bf16.msra.mxu0 0
      %3519 = vmatprep.subr.bf16.mxu0 0
      %3520 = vmatpush2.bf16.msra.mxu0 0
      %3521 = vmatprep.mubr.bf16.mxu0 0
      %3522 = vmatmul.mubr.bf16.gmra.mxu0 %v2246
      %v3523 = vpop.f32.mrf.mxu0
      %v3524 = vpop.f32.mrf.mxu0
      %v3525 = vpop.f32.mrf.mxu0
      %v3526 = vpop.f32.mrf.mxu0
      %3527 = vmatprep.mubr.bf16.mxu0 0
      %3528 = vmatmul.mubr.bf16.gmra.mxu0 %v2249
      %v3529 = vpop.f32.mrf.mxu0
      %v3530 = vpop.f32.mrf.mxu0
      %v3531 = vpop.f32.mrf.mxu0
      %v3532 = vadd.f32 0.0, %v3531
      %v3533 = vpop.f32.mrf.mxu0
      %3534 = vmatprep.mubr.bf16.mxu0 0
      %3535 = vmatmul.mubr.bf16.gmra.mxu0 %v2252
      %v3536 = vpop.f32.mrf.mxu0
      %v3537 = vadd.f32 0.0, %v3536
      %v3538 = vpop.f32.mrf.mxu0
      %v3539 = vpop.f32.mrf.mxu0
      %v3540 = vadd.f32 0.0, %v3539
      %v3541 = vpop.f32.mrf.mxu0
      %3542 = vmatprep.mubr.bf16.mxu0 0
      %3543 = vmatmul.mubr.bf16.gmra.mxu0 %v2255
      %v3544 = vpop.f32.mrf.mxu0
      %v3545 = vadd.f32 0.0, %v3544
      %v3546 = vpop.f32.mrf.mxu0
      %v3547 = vpop.f32.mrf.mxu0
      %v3548 = vadd.f32 0.0, %v3547
      %v3549 = vpop.f32.mrf.mxu0
      %3550 = vmatprep.mubr.bf16.mxu0 0
      %3551 = vmatmul.mubr.bf16.gmra.mxu0 %v2258
      %v3552 = vpop.f32.mrf.mxu0
      %v3553 = vadd.f32 0.0, %v3552
      %v3554 = vpop.f32.mrf.mxu0
      %v3555 = vpop.f32.mrf.mxu0
      %v3556 = vadd.f32 0.0, %v3555
      %v3557 = vpop.f32.mrf.mxu0
      %3558 = vmatprep.mubr.bf16.mxu0 0
      %3559 = vmatmul.mubr.bf16.gmra.mxu0 %v2261
      %v3560 = vpop.f32.mrf.mxu0
      %v3561 = vadd.f32 0.0, %v3560
      %v3562 = vpop.f32.mrf.mxu0
      %v3563 = vpop.f32.mrf.mxu0
      %v3564 = vadd.f32 0.0, %v3563
      %v3565 = vpop.f32.mrf.mxu0
      %3566 = vmatprep.mubr.bf16.mxu0 0
      %3567 = vmatmul.mubr.bf16.gmra.mxu0 %v2264
      %v3568 = vpop.f32.mrf.mxu0
      %v3569 = vadd.f32 0.0, %v3568
      %v3570 = vpop.f32.mrf.mxu0
      %v3571 = vpop.f32.mrf.mxu0
      %v3572 = vadd.f32 0.0, %v3571
      %v3573 = vpop.f32.mrf.mxu0
      %3574 = vmatprep.mubr.bf16.mxu0 0
      %3575 = vmatmul.mubr.bf16.gmra.mxu0 %v2267
      %v3576 = vpop.f32.mrf.mxu0
      %v3577 = vadd.f32 0.0, %v3576
      %v3578 = vpop.f32.mrf.mxu0
      %v3579 = vpop.f32.mrf.mxu0
      %v3580 = vadd.f32 0.0, %v3579
      %v3581 = vpop.f32.mrf.mxu0
      %3582 = vmatprep.mubr.bf16.mxu0 0
      %3583 = vmatmul.mubr.bf16.gmra.mxu0 %v2270
      %v3584 = vpop.f32.mrf.mxu0
      %v3585 = vadd.f32 0.0, %v3584
      %v3586 = vpop.f32.mrf.mxu0
      %v3587 = vpop.f32.mrf.mxu0
      %v3588 = vadd.f32 0.0, %v3587
      %v3589 = vpop.f32.mrf.mxu0
      %3590 = vmatprep.mubr.bf16.mxu0 0
      %3591 = vmatmul.mubr.bf16.gmra.mxu0 %v2273
      %v3592 = vpop.f32.mrf.mxu0
      %v3593 = vadd.f32 0.0, %v3592
      %v3594 = vpop.f32.mrf.mxu0
      %v3595 = vpop.f32.mrf.mxu0
      %v3596 = vpop.f32.mrf.mxu0
      %3597 = vdwg.mxu0
      %v3614 = vrot.slane %v3532, 1
      %v3615 = vrot.slane %v3537, 1
      %v3616 = vsel %vm856, %v3614, %v3615
      %v3617 = vrot.slane %v3540, 1
      %v3618 = vsel %vm856, %v3615, %v3617
      %v3619 = vrot.slane %v3545, 1
      %v3620 = vsel %vm856, %v3617, %v3619
      %v3621 = vrot.slane %v3548, 1
      %v3622 = vsel %vm856, %v3619, %v3621
      %v3623 = vrot.slane %v3553, 1
      %v3624 = vsel %vm856, %v3621, %v3623
      %v3625 = vrot.slane %v3556, 1
      %v3626 = vsel %vm856, %v3623, %v3625
      %v3627 = vrot.slane %v3561, 1
      %v3628 = vsel %vm856, %v3625, %v3627
      %v3629 = vrot.slane %v3564, 1
      %v3630 = vsel %vm856, %v3627, %v3629
      %v3631 = vrot.slane %v3569, 1
      %v3632 = vsel %vm856, %v3629, %v3631
      %v3633 = vrot.slane %v3572, 1
      %v3634 = vsel %vm856, %v3631, %v3633
      %v3635 = vrot.slane %v3577, 1
      %v3636 = vsel %vm856, %v3633, %v3635
      %v3637 = vrot.slane %v3580, 1
      %v3638 = vsel %vm856, %v3635, %v3637
      %v3639 = vrot.slane %v3585, 1
      %v3640 = vsel %vm856, %v3637, %v3639
      %v3641 = vrot.slane %v3588, 1
      %v3642 = vsel %vm856, %v3639, %v3641
      %v3643 = vrot.slane %v3593, 1
      %v3644 = vsel %vm856, %v3641, %v3643
      %v3660 = vadd.f32 %v3469, %v3616
      %v3661 = vadd.f32 %v3470, %v3618
      %v3662 = vadd.f32 %v3471, %v3620
      %v3663 = vadd.f32 %v3472, %v3622
      %v3664 = vadd.f32 %v3473, %v3624
      %v3665 = vadd.f32 %v3474, %v3626
      %v3666 = vadd.f32 %v3475, %v3628
      %v3667 = vadd.f32 %v3476, %v3630
      %v3668 = vadd.f32 %v3477, %v3632
      %v3669 = vadd.f32 %v3478, %v3634
      %v3670 = vadd.f32 %v3479, %v3636
      %v3671 = vadd.f32 %v3480, %v3638
      %v3672 = vadd.f32 %v3481, %v3640
      %v3673 = vadd.f32 %v3482, %v3642
      %v3674 = vadd.f32 %v3483, %v3644
      %s3675 = scalar_lea.vmem %s3, 34
      %v3676 = vld [vmem:[%s3675] sm:$0x3]
      %v3678 = vsel %vm599, %v3676, 0
      %3680 = vmatprep.subr.bf16.mxu0 0
      %3681 = vmatpush1.bf16.msra.mxu0 0
      %3682 = vmatprep.subr.bf16.mxu0 0
      %3683 = vmatpush1.bf16.msra.mxu0 0
      %3684 = vmatprep.subr.bf16.mxu0 0
      %3685 = vmatpush1.bf16.msra.mxu0 0
      %3686 = vmatprep.subr.bf16.mxu0 0
      %3687 = vmatpush1.bf16.msra.mxu0 0
      %3688 = vmatprep.subr.bf16.mxu0 0
      %3689 = vmatpush1.bf16.msra.mxu0 0
      %3690 = vmatprep.subr.bf16.mxu0 0
      %3691 = vmatpush1.bf16.msra.mxu0 0
      %3692 = vmatprep.subr.bf16.mxu0 0
      %3693 = vmatpush1.bf16.msra.mxu0 0
      %3694 = vmatprep.subr.bf16.mxu0 0
      %3695 = vmatpush1.bf16.msra.mxu0 %v3678
      %3696 = vmatprep.subr.bf16.mxu0 0
      %3697 = vmatpush2.bf16.msra.mxu0 0
      %3698 = vmatprep.subr.bf16.mxu0 0
      %3699 = vmatpush2.bf16.msra.mxu0 0
      %3700 = vmatprep.subr.bf16.mxu0 0
      %3701 = vmatpush2.bf16.msra.mxu0 0
      %3702 = vmatprep.subr.bf16.mxu0 0
      %3703 = vmatpush2.bf16.msra.mxu0 0
      %3704 = vmatprep.subr.bf16.mxu0 0
      %3705 = vmatpush2.bf16.msra.mxu0 0
      %3706 = vmatprep.subr.bf16.mxu0 0
      %3707 = vmatpush2.bf16.msra.mxu0 0
      %3708 = vmatprep.subr.bf16.mxu0 0
      %3709 = vmatpush2.bf16.msra.mxu0 0
      %3710 = vmatprep.subr.bf16.mxu0 0
      %3711 = vmatpush2.bf16.msra.mxu0 0
      %3712 = vmatprep.mubr.bf16.mxu0 0
      %3713 = vmatmul.mubr.bf16.gmra.mxu0 %v2246
      %v3714 = vpop.f32.mrf.mxu0
      %v3715 = vpop.f32.mrf.mxu0
      %v3716 = vpop.f32.mrf.mxu0
      %v3717 = vpop.f32.mrf.mxu0
      %3718 = vmatprep.mubr.bf16.mxu0 0
      %3719 = vmatmul.mubr.bf16.gmra.mxu0 %v2249
      %v3720 = vpop.f32.mrf.mxu0
      %v3721 = vpop.f32.mrf.mxu0
      %v3722 = vpop.f32.mrf.mxu0
      %v3723 = vadd.f32 0.0, %v3722
      %v3724 = vpop.f32.mrf.mxu0
      %3725 = vmatprep.mubr.bf16.mxu0 0
      %3726 = vmatmul.mubr.bf16.gmra.mxu0 %v2252
      %v3727 = vpop.f32.mrf.mxu0
      %v3728 = vadd.f32 0.0, %v3727
      %v3729 = vpop.f32.mrf.mxu0
      %v3730 = vpop.f32.mrf.mxu0
      %v3731 = vadd.f32 0.0, %v3730
      %v3732 = vpop.f32.mrf.mxu0
      %3733 = vmatprep.mubr.bf16.mxu0 0
      %3734 = vmatmul.mubr.bf16.gmra.mxu0 %v2255
      %v3735 = vpop.f32.mrf.mxu0
      %v3736 = vadd.f32 0.0, %v3735
      %v3737 = vpop.f32.mrf.mxu0
      %v3738 = vpop.f32.mrf.mxu0
      %v3739 = vadd.f32 0.0, %v3738
      %v3740 = vpop.f32.mrf.mxu0
      %3741 = vmatprep.mubr.bf16.mxu0 0
      %3742 = vmatmul.mubr.bf16.gmra.mxu0 %v2258
      %v3743 = vpop.f32.mrf.mxu0
      %v3744 = vadd.f32 0.0, %v3743
      %v3745 = vpop.f32.mrf.mxu0
      %v3746 = vpop.f32.mrf.mxu0
      %v3747 = vadd.f32 0.0, %v3746
      %v3748 = vpop.f32.mrf.mxu0
      %3749 = vmatprep.mubr.bf16.mxu0 0
      %3750 = vmatmul.mubr.bf16.gmra.mxu0 %v2261
      %v3751 = vpop.f32.mrf.mxu0
      %v3752 = vadd.f32 0.0, %v3751
      %v3753 = vpop.f32.mrf.mxu0
      %v3754 = vpop.f32.mrf.mxu0
      %v3755 = vadd.f32 0.0, %v3754
      %v3756 = vpop.f32.mrf.mxu0
      %3757 = vmatprep.mubr.bf16.mxu0 0
      %3758 = vmatmul.mubr.bf16.gmra.mxu0 %v2264
      %v3759 = vpop.f32.mrf.mxu0
      %v3760 = vadd.f32 0.0, %v3759
      %v3761 = vpop.f32.mrf.mxu0
      %v3762 = vpop.f32.mrf.mxu0
      %v3763 = vadd.f32 0.0, %v3762
      %v3764 = vpop.f32.mrf.mxu0
      %3765 = vmatprep.mubr.bf16.mxu0 0
      %3766 = vmatmul.mubr.bf16.gmra.mxu0 %v2267
      %v3767 = vpop.f32.mrf.mxu0
      %v3768 = vadd.f32 0.0, %v3767
      %v3769 = vpop.f32.mrf.mxu0
      %v3770 = vpop.f32.mrf.mxu0
      %v3771 = vadd.f32 0.0, %v3770
      %v3772 = vpop.f32.mrf.mxu0
      %3773 = vmatprep.mubr.bf16.mxu0 0
      %3774 = vmatmul.mubr.bf16.gmra.mxu0 %v2270
      %v3775 = vpop.f32.mrf.mxu0
      %v3776 = vadd.f32 0.0, %v3775
      %v3777 = vpop.f32.mrf.mxu0
      %v3778 = vpop.f32.mrf.mxu0
      %v3779 = vadd.f32 0.0, %v3778
      %v3780 = vpop.f32.mrf.mxu0
      %3781 = vmatprep.mubr.bf16.mxu0 0
      %3782 = vmatmul.mubr.bf16.gmra.mxu0 %v2273
      %v3783 = vpop.f32.mrf.mxu0
      %v3784 = vadd.f32 0.0, %v3783
      %v3785 = vpop.f32.mrf.mxu0
      %v3786 = vpop.f32.mrf.mxu0
      %v3787 = vpop.f32.mrf.mxu0
      %3788 = vdwg.mxu0
      %v3805 = vrot.slane %v3723, 2
      %v3806 = vrot.slane %v3728, 2
      %v3807 = vsel %vm1048, %v3805, %v3806
      %v3808 = vrot.slane %v3731, 2
      %v3809 = vsel %vm1048, %v3806, %v3808
      %v3810 = vrot.slane %v3736, 2
      %v3811 = vsel %vm1048, %v3808, %v3810
      %v3812 = vrot.slane %v3739, 2
      %v3813 = vsel %vm1048, %v3810, %v3812
      %v3814 = vrot.slane %v3744, 2
      %v3815 = vsel %vm1048, %v3812, %v3814
      %v3816 = vrot.slane %v3747, 2
      %v3817 = vsel %vm1048, %v3814, %v3816
      %v3818 = vrot.slane %v3752, 2
      %v3819 = vsel %vm1048, %v3816, %v3818
      %v3820 = vrot.slane %v3755, 2
      %v3821 = vsel %vm1048, %v3818, %v3820
      %v3822 = vrot.slane %v3760, 2
      %v3823 = vsel %vm1048, %v3820, %v3822
      %v3824 = vrot.slane %v3763, 2
      %v3825 = vsel %vm1048, %v3822, %v3824
      %v3826 = vrot.slane %v3768, 2
      %v3827 = vsel %vm1048, %v3824, %v3826
      %v3828 = vrot.slane %v3771, 2
      %v3829 = vsel %vm1048, %v3826, %v3828
      %v3830 = vrot.slane %v3776, 2
      %v3831 = vsel %vm1048, %v3828, %v3830
      %v3832 = vrot.slane %v3779, 2
      %v3833 = vsel %vm1048, %v3830, %v3832
      %v3834 = vrot.slane %v3784, 2
      %v3835 = vsel %vm1048, %v3832, %v3834
      %v3851 = vadd.f32 %v3660, %v3807
      %v3852 = vadd.f32 %v3661, %v3809
      %v3853 = vadd.f32 %v3662, %v3811
      %v3854 = vadd.f32 %v3663, %v3813
      %v3855 = vadd.f32 %v3664, %v3815
      %v3856 = vadd.f32 %v3665, %v3817
      %v3857 = vadd.f32 %v3666, %v3819
      %v3858 = vadd.f32 %v3667, %v3821
      %v3859 = vadd.f32 %v3668, %v3823
      %v3860 = vadd.f32 %v3669, %v3825
      %v3861 = vadd.f32 %v3670, %v3827
      %v3862 = vadd.f32 %v3671, %v3829
      %v3863 = vadd.f32 %v3672, %v3831
      %v3864 = vadd.f32 %v3673, %v3833
      %v3865 = vadd.f32 %v3674, %v3835
      %s3866 = scalar_lea.vmem %s3, 36
      %v3867 = vld [vmem:[%s3866] sm:$0x3]
      %v3887 = vunpack.c.l.b16 %v500
      %v3888 = vunpack.c.l.b16 %v501
      %v3889 = vunpack.c.l.b16 %v502
      %v3890 = vunpack.c.l.b16 %v503
      %v3891 = vunpack.c.l.b16 %v504
      %v3892 = vunpack.c.l.b16 %v505
      %v3893 = vunpack.c.l.b16 %v506
      %v3894 = vunpack.c.l.b16 %v507
      %v3895 = vunpack.c.l.b16 %v508
      %v3896 = vunpack.c.l.b16 %v509
      %v3897 = vunpack.c.l.b16 %v510
      %v3898 = vunpack.c.l.b16 %v511
      %v3899 = vunpack.c.l.b16 %v512
      %v3900 = vunpack.c.l.b16 %v513
      %v3901 = vunpack.c.l.b16 %v514
      %v3902 = vunpack.c.l.b16 %v515
      %v3903 = vunpack.c.l.b16 %v516
      %v3904 = vunpack.c.l.b16 %v517
      %v3905 = vunpack.c.l.b16 %v518
      %v3906 = vpack.c.b16 %v3888, %v3887
      %v3907 = vpack.c.b16 %v3890, %v3889
      %v3908 = vpack.c.b16 %v3892, %v3891
      %v3909 = vpack.c.b16 %v3894, %v3893
      %v3910 = vpack.c.b16 %v3896, %v3895
      %v3911 = vpack.c.b16 %v3898, %v3897
      %v3912 = vpack.c.b16 %v3900, %v3899
      %v3913 = vpack.c.b16 %v3902, %v3901
      %v3914 = vpack.c.b16 %v3904, %v3903
      %v3915 = vpack.c.b16 %v3905, %v3905
      %v3917 = vsel %vm568, %v3906, 0
      %v3920 = vsel %vm568, %v3907, 0
      %v3923 = vsel %vm568, %v3908, 0
      %v3926 = vsel %vm568, %v3909, 0
      %v3929 = vsel %vm568, %v3910, 0
      %v3932 = vsel %vm568, %v3911, 0
      %v3935 = vsel %vm568, %v3912, 0
      %v3938 = vsel %vm568, %v3913, 0
      %v3941 = vsel %vm568, %v3914, 0
      %v3944 = vsel %vm568, %v3915, 0
      %v3947 = vsel %vm599, %v3867, 0
      %3949 = vmatprep.subr.bf16.mxu0 0
      %3950 = vmatpush1.bf16.msra.mxu0 0
      %3951 = vmatprep.subr.bf16.mxu0 0
      %3952 = vmatpush1.bf16.msra.mxu0 0
      %3953 = vmatprep.subr.bf16.mxu0 0
      %3954 = vmatpush1.bf16.msra.mxu0 0
      %3955 = vmatprep.subr.bf16.mxu0 0
      %3956 = vmatpush1.bf16.msra.mxu0 0
      %3957 = vmatprep.subr.bf16.mxu0 0
      %3958 = vmatpush1.bf16.msra.mxu0 0
      %3959 = vmatprep.subr.bf16.mxu0 0
      %3960 = vmatpush1.bf16.msra.mxu0 0
      %3961 = vmatprep.subr.bf16.mxu0 0
      %3962 = vmatpush1.bf16.msra.mxu0 0
      %3963 = vmatprep.subr.bf16.mxu0 0
      %3964 = vmatpush1.bf16.msra.mxu0 %v3947
      %3965 = vmatprep.subr.bf16.mxu0 0
      %3966 = vmatpush2.bf16.msra.mxu0 0
      %3967 = vmatprep.subr.bf16.mxu0 0
      %3968 = vmatpush2.bf16.msra.mxu0 0
      %3969 = vmatprep.subr.bf16.mxu0 0
      %3970 = vmatpush2.bf16.msra.mxu0 0
      %3971 = vmatprep.subr.bf16.mxu0 0
      %3972 = vmatpush2.bf16.msra.mxu0 0
      %3973 = vmatprep.subr.bf16.mxu0 0
      %3974 = vmatpush2.bf16.msra.mxu0 0
      %3975 = vmatprep.subr.bf16.mxu0 0
      %3976 = vmatpush2.bf16.msra.mxu0 0
      %3977 = vmatprep.subr.bf16.mxu0 0
      %3978 = vmatpush2.bf16.msra.mxu0 0
      %3979 = vmatprep.subr.bf16.mxu0 0
      %3980 = vmatpush2.bf16.msra.mxu0 0
      %3981 = vmatprep.mubr.bf16.mxu0 0
      %3982 = vmatmul.mubr.bf16.gmra.mxu0 %v3917
      %v3983 = vpop.f32.mrf.mxu0
      %v3984 = vadd.f32 0.0, %v3983
      %v3985 = vpop.f32.mrf.mxu0
      %v3986 = vpop.f32.mrf.mxu0
      %v3987 = vadd.f32 0.0, %v3986
      %v3988 = vpop.f32.mrf.mxu0
      %3989 = vmatprep.mubr.bf16.mxu0 0
      %3990 = vmatmul.mubr.bf16.gmra.mxu0 %v3920
      %v3991 = vpop.f32.mrf.mxu0
      %v3992 = vadd.f32 0.0, %v3991
      %v3993 = vpop.f32.mrf.mxu0
      %v3994 = vpop.f32.mrf.mxu0
      %v3995 = vadd.f32 0.0, %v3994
      %v3996 = vpop.f32.mrf.mxu0
      %3997 = vmatprep.mubr.bf16.mxu0 0
      %3998 = vmatmul.mubr.bf16.gmra.mxu0 %v3923
      %v3999 = vpop.f32.mrf.mxu0
      %v4000 = vadd.f32 0.0, %v3999
      %v4001 = vpop.f32.mrf.mxu0
      %v4002 = vpop.f32.mrf.mxu0
      %v4003 = vadd.f32 0.0, %v4002
      %v4004 = vpop.f32.mrf.mxu0
      %4005 = vmatprep.mubr.bf16.mxu0 0
      %4006 = vmatmul.mubr.bf16.gmra.mxu0 %v3926
      %v4007 = vpop.f32.mrf.mxu0
      %v4008 = vadd.f32 0.0, %v4007
      %v4009 = vpop.f32.mrf.mxu0
      %v4010 = vpop.f32.mrf.mxu0
      %v4011 = vadd.f32 0.0, %v4010
      %v4012 = vpop.f32.mrf.mxu0
      %4013 = vmatprep.mubr.bf16.mxu0 0
      %4014 = vmatmul.mubr.bf16.gmra.mxu0 %v3929
      %v4015 = vpop.f32.mrf.mxu0
      %v4016 = vadd.f32 0.0, %v4015
      %v4017 = vpop.f32.mrf.mxu0
      %v4018 = vpop.f32.mrf.mxu0
      %v4019 = vadd.f32 0.0, %v4018
      %v4020 = vpop.f32.mrf.mxu0
      %4021 = vmatprep.mubr.bf16.mxu0 0
      %4022 = vmatmul.mubr.bf16.gmra.mxu0 %v3932
      %v4023 = vpop.f32.mrf.mxu0
      %v4024 = vadd.f32 0.0, %v4023
      %v4025 = vpop.f32.mrf.mxu0
      %v4026 = vpop.f32.mrf.mxu0
      %v4027 = vadd.f32 0.0, %v4026
      %v4028 = vpop.f32.mrf.mxu0
      %4029 = vmatprep.mubr.bf16.mxu0 0
      %4030 = vmatmul.mubr.bf16.gmra.mxu0 %v3935
      %v4031 = vpop.f32.mrf.mxu0
      %v4032 = vadd.f32 0.0, %v4031
      %v4033 = vpop.f32.mrf.mxu0
      %v4034 = vpop.f32.mrf.mxu0
      %v4035 = vadd.f32 0.0, %v4034
      %v4036 = vpop.f32.mrf.mxu0
      %4037 = vmatprep.mubr.bf16.mxu0 0
      %4038 = vmatmul.mubr.bf16.gmra.mxu0 %v3938
      %v4039 = vpop.f32.mrf.mxu0
      %v4040 = vadd.f32 0.0, %v4039
      %v4041 = vpop.f32.mrf.mxu0
      %v4042 = vpop.f32.mrf.mxu0
      %v4043 = vpop.f32.mrf.mxu0
      %4044 = vmatprep.mubr.bf16.mxu0 0
      %4045 = vmatmul.mubr.bf16.gmra.mxu0 %v3941
      %v4046 = vpop.f32.mrf.mxu0
      %v4047 = vpop.f32.mrf.mxu0
      %v4048 = vpop.f32.mrf.mxu0
      %v4049 = vpop.f32.mrf.mxu0
      %4050 = vmatprep.mubr.bf16.mxu0 0
      %4051 = vmatmul.mubr.bf16.gmra.mxu0 %v3944
      %v4052 = vpop.f32.mrf.mxu0
      %v4053 = vpop.f32.mrf.mxu0
      %v4054 = vpop.f32.mrf.mxu0
      %v4055 = vpop.f32.mrf.mxu0
      %4056 = vdwg.mxu0
      %v4057 = vadd.f32 %v3851, %v3984
      %v4058 = vadd.f32 %v3852, %v3987
      %v4059 = vadd.f32 %v3853, %v3992
      %v4060 = vadd.f32 %v3854, %v3995
      %v4061 = vadd.f32 %v3855, %v4000
      %v4062 = vadd.f32 %v3856, %v4003
      %v4063 = vadd.f32 %v3857, %v4008
      %v4064 = vadd.f32 %v3858, %v4011
      %v4065 = vadd.f32 %v3859, %v4016
      %v4066 = vadd.f32 %v3860, %v4019
      %v4067 = vadd.f32 %v3861, %v4024
      %v4068 = vadd.f32 %v3862, %v4027
      %v4069 = vadd.f32 %v3863, %v4032
      %v4070 = vadd.f32 %v3864, %v4035
      %v4071 = vadd.f32 %v3865, %v4040
      %s4072 = scalar_lea.vmem %s3, 38
      %v4073 = vld [vmem:[%s4072] sm:$0x3]
      %v4075 = vsel %vm599, %v4073, 0
      %4077 = vmatprep.subr.bf16.mxu0 0
      %4078 = vmatpush1.bf16.msra.mxu0 0
      %4079 = vmatprep.subr.bf16.mxu0 0
      %4080 = vmatpush1.bf16.msra.mxu0 0
      %4081 = vmatprep.subr.bf16.mxu0 0
      %4082 = vmatpush1.bf16.msra.mxu0 0
      %4083 = vmatprep.subr.bf16.mxu0 0
      %4084 = vmatpush1.bf16.msra.mxu0 0
      %4085 = vmatprep.subr.bf16.mxu0 0
      %4086 = vmatpush1.bf16.msra.mxu0 0
      %4087 = vmatprep.subr.bf16.mxu0 0
      %4088 = vmatpush1.bf16.msra.mxu0 0
      %4089 = vmatprep.subr.bf16.mxu0 0
      %4090 = vmatpush1.bf16.msra.mxu0 0
      %4091 = vmatprep.subr.bf16.mxu0 0
      %4092 = vmatpush1.bf16.msra.mxu0 %v4075
      %4093 = vmatprep.subr.bf16.mxu0 0
      %4094 = vmatpush2.bf16.msra.mxu0 0
      %4095 = vmatprep.subr.bf16.mxu0 0
      %4096 = vmatpush2.bf16.msra.mxu0 0
      %4097 = vmatprep.subr.bf16.mxu0 0
      %4098 = vmatpush2.bf16.msra.mxu0 0
      %4099 = vmatprep.subr.bf16.mxu0 0
      %4100 = vmatpush2.bf16.msra.mxu0 0
      %4101 = vmatprep.subr.bf16.mxu0 0
      %4102 = vmatpush2.bf16.msra.mxu0 0
      %4103 = vmatprep.subr.bf16.mxu0 0
      %4104 = vmatpush2.bf16.msra.mxu0 0
      %4105 = vmatprep.subr.bf16.mxu0 0
      %4106 = vmatpush2.bf16.msra.mxu0 0
      %4107 = vmatprep.subr.bf16.mxu0 0
      %4108 = vmatpush2.bf16.msra.mxu0 0
      %4109 = vmatprep.mubr.bf16.mxu0 0
      %4110 = vmatmul.mubr.bf16.gmra.mxu0 %v3917
      %v4111 = vpop.f32.mrf.mxu0
      %v4112 = vadd.f32 0.0, %v4111
      %v4113 = vpop.f32.mrf.mxu0
      %v4114 = vpop.f32.mrf.mxu0
      %v4115 = vadd.f32 0.0, %v4114
      %v4116 = vpop.f32.mrf.mxu0
      %4117 = vmatprep.mubr.bf16.mxu0 0
      %4118 = vmatmul.mubr.bf16.gmra.mxu0 %v3920
      %v4119 = vpop.f32.mrf.mxu0
      %v4120 = vadd.f32 0.0, %v4119
      %v4121 = vpop.f32.mrf.mxu0
      %v4122 = vpop.f32.mrf.mxu0
      %v4123 = vadd.f32 0.0, %v4122
      %v4124 = vpop.f32.mrf.mxu0
      %4125 = vmatprep.mubr.bf16.mxu0 0
      %4126 = vmatmul.mubr.bf16.gmra.mxu0 %v3923
      %v4127 = vpop.f32.mrf.mxu0
      %v4128 = vadd.f32 0.0, %v4127
      %v4129 = vpop.f32.mrf.mxu0
      %v4130 = vpop.f32.mrf.mxu0
      %v4131 = vadd.f32 0.0, %v4130
      %v4132 = vpop.f32.mrf.mxu0
      %4133 = vmatprep.mubr.bf16.mxu0 0
      %4134 = vmatmul.mubr.bf16.gmra.mxu0 %v3926
      %v4135 = vpop.f32.mrf.mxu0
      %v4136 = vadd.f32 0.0, %v4135
      %v4137 = vpop.f32.mrf.mxu0
      %v4138 = vpop.f32.mrf.mxu0
      %v4139 = vadd.f32 0.0, %v4138
      %v4140 = vpop.f32.mrf.mxu0
      %4141 = vmatprep.mubr.bf16.mxu0 0
      %4142 = vmatmul.mubr.bf16.gmra.mxu0 %v3929
      %v4143 = vpop.f32.mrf.mxu0
      %v4144 = vadd.f32 0.0, %v4143
      %v4145 = vpop.f32.mrf.mxu0
      %v4146 = vpop.f32.mrf.mxu0
      %v4147 = vadd.f32 0.0, %v4146
      %v4148 = vpop.f32.mrf.mxu0
      %4149 = vmatprep.mubr.bf16.mxu0 0
      %4150 = vmatmul.mubr.bf16.gmra.mxu0 %v3932
      %v4151 = vpop.f32.mrf.mxu0
      %v4152 = vadd.f32 0.0, %v4151
      %v4153 = vpop.f32.mrf.mxu0
      %v4154 = vpop.f32.mrf.mxu0
      %v4155 = vadd.f32 0.0, %v4154
      %v4156 = vpop.f32.mrf.mxu0
      %4157 = vmatprep.mubr.bf16.mxu0 0
      %4158 = vmatmul.mubr.bf16.gmra.mxu0 %v3935
      %v4159 = vpop.f32.mrf.mxu0
      %v4160 = vadd.f32 0.0, %v4159
      %v4161 = vpop.f32.mrf.mxu0
      %v4162 = vpop.f32.mrf.mxu0
      %v4163 = vadd.f32 0.0, %v4162
      %v4164 = vpop.f32.mrf.mxu0
      %4165 = vmatprep.mubr.bf16.mxu0 0
      %4166 = vmatmul.mubr.bf16.gmra.mxu0 %v3938
      %v4167 = vpop.f32.mrf.mxu0
      %v4168 = vadd.f32 0.0, %v4167
      %v4169 = vpop.f32.mrf.mxu0
      %v4170 = vpop.f32.mrf.mxu0
      %v4171 = vadd.f32 0.0, %v4170
      %v4172 = vpop.f32.mrf.mxu0
      %4173 = vmatprep.mubr.bf16.mxu0 0
      %4174 = vmatmul.mubr.bf16.gmra.mxu0 %v3941
      %v4175 = vpop.f32.mrf.mxu0
      %v4176 = vpop.f32.mrf.mxu0
      %v4177 = vpop.f32.mrf.mxu0
      %v4178 = vpop.f32.mrf.mxu0
      %4179 = vmatprep.mubr.bf16.mxu0 0
      %4180 = vmatmul.mubr.bf16.gmra.mxu0 %v3944
      %v4181 = vpop.f32.mrf.mxu0
      %v4182 = vpop.f32.mrf.mxu0
      %v4183 = vpop.f32.mrf.mxu0
      %v4184 = vpop.f32.mrf.mxu0
      %4185 = vdwg.mxu0
      %v4202 = vrot.slane %v4112, 1
      %v4203 = vrot.slane %v4115, 1
      %v4204 = vsel %vm856, %v4202, %v4203
      %v4205 = vrot.slane %v4120, 1
      %v4206 = vsel %vm856, %v4203, %v4205
      %v4207 = vrot.slane %v4123, 1
      %v4208 = vsel %vm856, %v4205, %v4207
      %v4209 = vrot.slane %v4128, 1
      %v4210 = vsel %vm856, %v4207, %v4209
      %v4211 = vrot.slane %v4131, 1
      %v4212 = vsel %vm856, %v4209, %v4211
      %v4213 = vrot.slane %v4136, 1
      %v4214 = vsel %vm856, %v4211, %v4213
      %v4215 = vrot.slane %v4139, 1
      %v4216 = vsel %vm856, %v4213, %v4215
      %v4217 = vrot.slane %v4144, 1
      %v4218 = vsel %vm856, %v4215, %v4217
      %v4219 = vrot.slane %v4147, 1
      %v4220 = vsel %vm856, %v4217, %v4219
      %v4221 = vrot.slane %v4152, 1
      %v4222 = vsel %vm856, %v4219, %v4221
      %v4223 = vrot.slane %v4155, 1
      %v4224 = vsel %vm856, %v4221, %v4223
      %v4225 = vrot.slane %v4160, 1
      %v4226 = vsel %vm856, %v4223, %v4225
      %v4227 = vrot.slane %v4163, 1
      %v4228 = vsel %vm856, %v4225, %v4227
      %v4229 = vrot.slane %v4168, 1
      %v4230 = vsel %vm856, %v4227, %v4229
      %v4231 = vrot.slane %v4171, 1
      %v4232 = vsel %vm856, %v4229, %v4231
      %v4248 = vadd.f32 %v4057, %v4204
      %v4249 = vadd.f32 %v4058, %v4206
      %v4250 = vadd.f32 %v4059, %v4208
      %v4251 = vadd.f32 %v4060, %v4210
      %v4252 = vadd.f32 %v4061, %v4212
      %v4253 = vadd.f32 %v4062, %v4214
      %v4254 = vadd.f32 %v4063, %v4216
      %v4255 = vadd.f32 %v4064, %v4218
      %v4256 = vadd.f32 %v4065, %v4220
      %v4257 = vadd.f32 %v4066, %v4222
      %v4258 = vadd.f32 %v4067, %v4224
      %v4259 = vadd.f32 %v4068, %v4226
      %v4260 = vadd.f32 %v4069, %v4228
      %v4261 = vadd.f32 %v4070, %v4230
      %v4262 = vadd.f32 %v4071, %v4232
      %s4263 = scalar_lea.vmem %s3, 40
      %v4264 = vld [vmem:[%s4263] sm:$0x3]
      %v4266 = vsel %vm599, %v4264, 0
      %4268 = vmatprep.subr.bf16.mxu0 0
      %4269 = vmatpush1.bf16.msra.mxu0 0
      %4270 = vmatprep.subr.bf16.mxu0 0
      %4271 = vmatpush1.bf16.msra.mxu0 0
      %4272 = vmatprep.subr.bf16.mxu0 0
      %4273 = vmatpush1.bf16.msra.mxu0 0
      %4274 = vmatprep.subr.bf16.mxu0 0
      %4275 = vmatpush1.bf16.msra.mxu0 0
      %4276 = vmatprep.subr.bf16.mxu0 0
      %4277 = vmatpush1.bf16.msra.mxu0 0
      %4278 = vmatprep.subr.bf16.mxu0 0
      %4279 = vmatpush1.bf16.msra.mxu0 0
      %4280 = vmatprep.subr.bf16.mxu0 0
      %4281 = vmatpush1.bf16.msra.mxu0 0
      %4282 = vmatprep.subr.bf16.mxu0 0
      %4283 = vmatpush1.bf16.msra.mxu0 %v4266
      %4284 = vmatprep.subr.bf16.mxu0 0
      %4285 = vmatpush2.bf16.msra.mxu0 0
      %4286 = vmatprep.subr.bf16.mxu0 0
      %4287 = vmatpush2.bf16.msra.mxu0 0
      %4288 = vmatprep.subr.bf16.mxu0 0
      %4289 = vmatpush2.bf16.msra.mxu0 0
      %4290 = vmatprep.subr.bf16.mxu0 0
      %4291 = vmatpush2.bf16.msra.mxu0 0
      %4292 = vmatprep.subr.bf16.mxu0 0
      %4293 = vmatpush2.bf16.msra.mxu0 0
      %4294 = vmatprep.subr.bf16.mxu0 0
      %4295 = vmatpush2.bf16.msra.mxu0 0
      %4296 = vmatprep.subr.bf16.mxu0 0
      %4297 = vmatpush2.bf16.msra.mxu0 0
      %4298 = vmatprep.subr.bf16.mxu0 0
      %4299 = vmatpush2.bf16.msra.mxu0 0
      %4300 = vmatprep.mubr.bf16.mxu0 0
      %4301 = vmatmul.mubr.bf16.gmra.mxu0 %v3917
      %v4302 = vpop.f32.mrf.mxu0
      %v4303 = vadd.f32 0.0, %v4302
      %v4304 = vpop.f32.mrf.mxu0
      %v4305 = vpop.f32.mrf.mxu0
      %v4306 = vadd.f32 0.0, %v4305
      %v4307 = vpop.f32.mrf.mxu0
      %4308 = vmatprep.mubr.bf16.mxu0 0
      %4309 = vmatmul.mubr.bf16.gmra.mxu0 %v3920
      %v4310 = vpop.f32.mrf.mxu0
      %v4311 = vadd.f32 0.0, %v4310
      %v4312 = vpop.f32.mrf.mxu0
      %v4313 = vpop.f32.mrf.mxu0
      %v4314 = vadd.f32 0.0, %v4313
      %v4315 = vpop.f32.mrf.mxu0
      %4316 = vmatprep.mubr.bf16.mxu0 0
      %4317 = vmatmul.mubr.bf16.gmra.mxu0 %v3923
      %v4318 = vpop.f32.mrf.mxu0
      %v4319 = vadd.f32 0.0, %v4318
      %v4320 = vpop.f32.mrf.mxu0
      %v4321 = vpop.f32.mrf.mxu0
      %v4322 = vadd.f32 0.0, %v4321
      %v4323 = vpop.f32.mrf.mxu0
      %4324 = vmatprep.mubr.bf16.mxu0 0
      %4325 = vmatmul.mubr.bf16.gmra.mxu0 %v3926
      %v4326 = vpop.f32.mrf.mxu0
      %v4327 = vadd.f32 0.0, %v4326
      %v4328 = vpop.f32.mrf.mxu0
      %v4329 = vpop.f32.mrf.mxu0
      %v4330 = vadd.f32 0.0, %v4329
      %v4331 = vpop.f32.mrf.mxu0
      %4332 = vmatprep.mubr.bf16.mxu0 0
      %4333 = vmatmul.mubr.bf16.gmra.mxu0 %v3929
      %v4334 = vpop.f32.mrf.mxu0
      %v4335 = vadd.f32 0.0, %v4334
      %v4336 = vpop.f32.mrf.mxu0
      %v4337 = vpop.f32.mrf.mxu0
      %v4338 = vadd.f32 0.0, %v4337
      %v4339 = vpop.f32.mrf.mxu0
      %4340 = vmatprep.mubr.bf16.mxu0 0
      %4341 = vmatmul.mubr.bf16.gmra.mxu0 %v3932
      %v4342 = vpop.f32.mrf.mxu0
      %v4343 = vadd.f32 0.0, %v4342
      %v4344 = vpop.f32.mrf.mxu0
      %v4345 = vpop.f32.mrf.mxu0
      %v4346 = vadd.f32 0.0, %v4345
      %v4347 = vpop.f32.mrf.mxu0
      %4348 = vmatprep.mubr.bf16.mxu0 0
      %4349 = vmatmul.mubr.bf16.gmra.mxu0 %v3935
      %v4350 = vpop.f32.mrf.mxu0
      %v4351 = vadd.f32 0.0, %v4350
      %v4352 = vpop.f32.mrf.mxu0
      %v4353 = vpop.f32.mrf.mxu0
      %v4354 = vadd.f32 0.0, %v4353
      %v4355 = vpop.f32.mrf.mxu0
      %4356 = vmatprep.mubr.bf16.mxu0 0
      %4357 = vmatmul.mubr.bf16.gmra.mxu0 %v3938
      %v4358 = vpop.f32.mrf.mxu0
      %v4359 = vadd.f32 0.0, %v4358
      %v4360 = vpop.f32.mrf.mxu0
      %v4361 = vpop.f32.mrf.mxu0
      %v4362 = vadd.f32 0.0, %v4361
      %v4363 = vpop.f32.mrf.mxu0
      %4364 = vmatprep.mubr.bf16.mxu0 0
      %4365 = vmatmul.mubr.bf16.gmra.mxu0 %v3941
      %v4366 = vpop.f32.mrf.mxu0
      %v4367 = vpop.f32.mrf.mxu0
      %v4368 = vpop.f32.mrf.mxu0
      %v4369 = vpop.f32.mrf.mxu0
      %4370 = vmatprep.mubr.bf16.mxu0 0
      %4371 = vmatmul.mubr.bf16.gmra.mxu0 %v3944
      %v4372 = vpop.f32.mrf.mxu0
      %v4373 = vpop.f32.mrf.mxu0
      %v4374 = vpop.f32.mrf.mxu0
      %v4375 = vpop.f32.mrf.mxu0
      %4376 = vdwg.mxu0
      %v4393 = vrot.slane %v4303, 2
      %v4394 = vrot.slane %v4306, 2
      %v4395 = vsel %vm1048, %v4393, %v4394
      %v4396 = vrot.slane %v4311, 2
      %v4397 = vsel %vm1048, %v4394, %v4396
      %v4398 = vrot.slane %v4314, 2
      %v4399 = vsel %vm1048, %v4396, %v4398
      %v4400 = vrot.slane %v4319, 2
      %v4401 = vsel %vm1048, %v4398, %v4400
      %v4402 = vrot.slane %v4322, 2
      %v4403 = vsel %vm1048, %v4400, %v4402
      %v4404 = vrot.slane %v4327, 2
      %v4405 = vsel %vm1048, %v4402, %v4404
      %v4406 = vrot.slane %v4330, 2
      %v4407 = vsel %vm1048, %v4404, %v4406
      %v4408 = vrot.slane %v4335, 2
      %v4409 = vsel %vm1048, %v4406, %v4408
      %v4410 = vrot.slane %v4338, 2
      %v4411 = vsel %vm1048, %v4408, %v4410
      %v4412 = vrot.slane %v4343, 2
      %v4413 = vsel %vm1048, %v4410, %v4412
      %v4414 = vrot.slane %v4346, 2
      %v4415 = vsel %vm1048, %v4412, %v4414
      %v4416 = vrot.slane %v4351, 2
      %v4417 = vsel %vm1048, %v4414, %v4416
      %v4418 = vrot.slane %v4354, 2
      %v4419 = vsel %vm1048, %v4416, %v4418
      %v4420 = vrot.slane %v4359, 2
      %v4421 = vsel %vm1048, %v4418, %v4420
      %v4422 = vrot.slane %v4362, 2
      %v4423 = vsel %vm1048, %v4420, %v4422
      %v4439 = vadd.f32 %v4248, %v4395
      %v4440 = vadd.f32 %v4249, %v4397
      %v4441 = vadd.f32 %v4250, %v4399
      %v4442 = vadd.f32 %v4251, %v4401
      %v4443 = vadd.f32 %v4252, %v4403
      %v4444 = vadd.f32 %v4253, %v4405
      %v4445 = vadd.f32 %v4254, %v4407
      %v4446 = vadd.f32 %v4255, %v4409
      %v4447 = vadd.f32 %v4256, %v4411
      %v4448 = vadd.f32 %v4257, %v4413
      %v4449 = vadd.f32 %v4258, %v4415
      %v4450 = vadd.f32 %v4259, %v4417
      %v4451 = vadd.f32 %v4260, %v4419
      %v4452 = vadd.f32 %v4261, %v4421
      %v4453 = vadd.f32 %v4262, %v4423
      %s4454 = scalar_lea.vmem %s3, 42
      %v4455 = vld [vmem:[%s4454] sm:$0x3]
      %v4457 = vsel %vm599, %v4455, 0
      %4459 = vmatprep.subr.bf16.mxu0 0
      %4460 = vmatpush1.bf16.msra.mxu0 0
      %4461 = vmatprep.subr.bf16.mxu0 0
      %4462 = vmatpush1.bf16.msra.mxu0 0
      %4463 = vmatprep.subr.bf16.mxu0 0
      %4464 = vmatpush1.bf16.msra.mxu0 0
      %4465 = vmatprep.subr.bf16.mxu0 0
      %4466 = vmatpush1.bf16.msra.mxu0 0
      %4467 = vmatprep.subr.bf16.mxu0 0
      %4468 = vmatpush1.bf16.msra.mxu0 0
      %4469 = vmatprep.subr.bf16.mxu0 0
      %4470 = vmatpush1.bf16.msra.mxu0 0
      %4471 = vmatprep.subr.bf16.mxu0 0
      %4472 = vmatpush1.bf16.msra.mxu0 0
      %4473 = vmatprep.subr.bf16.mxu0 0
      %4474 = vmatpush1.bf16.msra.mxu0 %v4457
      %4475 = vmatprep.subr.bf16.mxu0 0
      %4476 = vmatpush2.bf16.msra.mxu0 0
      %4477 = vmatprep.subr.bf16.mxu0 0
      %4478 = vmatpush2.bf16.msra.mxu0 0
      %4479 = vmatprep.subr.bf16.mxu0 0
      %4480 = vmatpush2.bf16.msra.mxu0 0
      %4481 = vmatprep.subr.bf16.mxu0 0
      %4482 = vmatpush2.bf16.msra.mxu0 0
      %4483 = vmatprep.subr.bf16.mxu0 0
      %4484 = vmatpush2.bf16.msra.mxu0 0
      %4485 = vmatprep.subr.bf16.mxu0 0
      %4486 = vmatpush2.bf16.msra.mxu0 0
      %4487 = vmatprep.subr.bf16.mxu0 0
      %4488 = vmatpush2.bf16.msra.mxu0 0
      %4489 = vmatprep.subr.bf16.mxu0 0
      %4490 = vmatpush2.bf16.msra.mxu0 0
      %4491 = vmatprep.mubr.bf16.mxu0 0
      %4492 = vmatmul.mubr.bf16.gmra.mxu0 %v3917
      %v4493 = vpop.f32.mrf.mxu0
      %v4494 = vpop.f32.mrf.mxu0
      %v4495 = vpop.f32.mrf.mxu0
      %v4496 = vadd.f32 0.0, %v4495
      %v4497 = vpop.f32.mrf.mxu0
      %4498 = vmatprep.mubr.bf16.mxu0 0
      %4499 = vmatmul.mubr.bf16.gmra.mxu0 %v3920
      %v4500 = vpop.f32.mrf.mxu0
      %v4501 = vadd.f32 0.0, %v4500
      %v4502 = vpop.f32.mrf.mxu0
      %v4503 = vpop.f32.mrf.mxu0
      %v4504 = vadd.f32 0.0, %v4503
      %v4505 = vpop.f32.mrf.mxu0
      %4506 = vmatprep.mubr.bf16.mxu0 0
      %4507 = vmatmul.mubr.bf16.gmra.mxu0 %v3923
      %v4508 = vpop.f32.mrf.mxu0
      %v4509 = vadd.f32 0.0, %v4508
      %v4510 = vpop.f32.mrf.mxu0
      %v4511 = vpop.f32.mrf.mxu0
      %v4512 = vadd.f32 0.0, %v4511
      %v4513 = vpop.f32.mrf.mxu0
      %4514 = vmatprep.mubr.bf16.mxu0 0
      %4515 = vmatmul.mubr.bf16.gmra.mxu0 %v3926
      %v4516 = vpop.f32.mrf.mxu0
      %v4517 = vadd.f32 0.0, %v4516
      %v4518 = vpop.f32.mrf.mxu0
      %v4519 = vpop.f32.mrf.mxu0
      %v4520 = vadd.f32 0.0, %v4519
      %v4521 = vpop.f32.mrf.mxu0
      %4522 = vmatprep.mubr.bf16.mxu0 0
      %4523 = vmatmul.mubr.bf16.gmra.mxu0 %v3929
      %v4524 = vpop.f32.mrf.mxu0
      %v4525 = vadd.f32 0.0, %v4524
      %v4526 = vpop.f32.mrf.mxu0
      %v4527 = vpop.f32.mrf.mxu0
      %v4528 = vadd.f32 0.0, %v4527
      %v4529 = vpop.f32.mrf.mxu0
      %4530 = vmatprep.mubr.bf16.mxu0 0
      %4531 = vmatmul.mubr.bf16.gmra.mxu0 %v3932
      %v4532 = vpop.f32.mrf.mxu0
      %v4533 = vadd.f32 0.0, %v4532
      %v4534 = vpop.f32.mrf.mxu0
      %v4535 = vpop.f32.mrf.mxu0
      %v4536 = vadd.f32 0.0, %v4535
      %v4537 = vpop.f32.mrf.mxu0
      %4538 = vmatprep.mubr.bf16.mxu0 0
      %4539 = vmatmul.mubr.bf16.gmra.mxu0 %v3935
      %v4540 = vpop.f32.mrf.mxu0
      %v4541 = vadd.f32 0.0, %v4540
      %v4542 = vpop.f32.mrf.mxu0
      %v4543 = vpop.f32.mrf.mxu0
      %v4544 = vadd.f32 0.0, %v4543
      %v4545 = vpop.f32.mrf.mxu0
      %4546 = vmatprep.mubr.bf16.mxu0 0
      %4547 = vmatmul.mubr.bf16.gmra.mxu0 %v3938
      %v4548 = vpop.f32.mrf.mxu0
      %v4549 = vadd.f32 0.0, %v4548
      %v4550 = vpop.f32.mrf.mxu0
      %v4551 = vpop.f32.mrf.mxu0
      %v4552 = vadd.f32 0.0, %v4551
      %v4553 = vpop.f32.mrf.mxu0
      %4554 = vmatprep.mubr.bf16.mxu0 0
      %4555 = vmatmul.mubr.bf16.gmra.mxu0 %v3941
      %v4556 = vpop.f32.mrf.mxu0
      %v4557 = vadd.f32 0.0, %v4556
      %v4558 = vpop.f32.mrf.mxu0
      %v4559 = vpop.f32.mrf.mxu0
      %v4560 = vpop.f32.mrf.mxu0
      %4561 = vmatprep.mubr.bf16.mxu0 0
      %4562 = vmatmul.mubr.bf16.gmra.mxu0 %v3944
      %v4563 = vpop.f32.mrf.mxu0
      %v4564 = vpop.f32.mrf.mxu0
      %v4565 = vpop.f32.mrf.mxu0
      %v4566 = vpop.f32.mrf.mxu0
      %4567 = vdwg.mxu0
      %v4584 = vrot.slane %v4496, 4
      %v4585 = vrot.slane %v4501, 4
      %v4586 = vsel %vm1240, %v4584, %v4585
      %v4587 = vrot.slane %v4504, 4
      %v4588 = vsel %vm1240, %v4585, %v4587
      %v4589 = vrot.slane %v4509, 4
      %v4590 = vsel %vm1240, %v4587, %v4589
      %v4591 = vrot.slane %v4512, 4
      %v4592 = vsel %vm1240, %v4589, %v4591
      %v4593 = vrot.slane %v4517, 4
      %v4594 = vsel %vm1240, %v4591, %v4593
      %v4595 = vrot.slane %v4520, 4
      %v4596 = vsel %vm1240, %v4593, %v4595
      %v4597 = vrot.slane %v4525, 4
      %v4598 = vsel %vm1240, %v4595, %v4597
      %v4599 = vrot.slane %v4528, 4
      %v4600 = vsel %vm1240, %v4597, %v4599
      %v4601 = vrot.slane %v4533, 4
      %v4602 = vsel %vm1240, %v4599, %v4601
      %v4603 = vrot.slane %v4536, 4
      %v4604 = vsel %vm1240, %v4601, %v4603
      %v4605 = vrot.slane %v4541, 4
      %v4606 = vsel %vm1240, %v4603, %v4605
      %v4607 = vrot.slane %v4544, 4
      %v4608 = vsel %vm1240, %v4605, %v4607
      %v4609 = vrot.slane %v4549, 4
      %v4610 = vsel %vm1240, %v4607, %v4609
      %v4611 = vrot.slane %v4552, 4
      %v4612 = vsel %vm1240, %v4609, %v4611
      %v4613 = vrot.slane %v4557, 4
      %v4614 = vsel %vm1240, %v4611, %v4613
      %v4630 = vadd.f32 %v4439, %v4586
      %v4631 = vadd.f32 %v4440, %v4588
      %v4632 = vadd.f32 %v4441, %v4590
      %v4633 = vadd.f32 %v4442, %v4592
      %v4634 = vadd.f32 %v4443, %v4594
      %v4635 = vadd.f32 %v4444, %v4596
      %v4636 = vadd.f32 %v4445, %v4598
      %v4637 = vadd.f32 %v4446, %v4600
      %v4638 = vadd.f32 %v4447, %v4602
      %v4639 = vadd.f32 %v4448, %v4604
      %v4640 = vadd.f32 %v4449, %v4606
      %v4641 = vadd.f32 %v4450, %v4608
      %v4642 = vadd.f32 %v4451, %v4610
      %v4643 = vadd.f32 %v4452, %v4612
      %v4644 = vadd.f32 %v4453, %v4614
      %s4645 = scalar_lea.vmem %s3, 44
      %v4646 = vld [vmem:[%s4645] sm:$0x3]
      %v4648 = vsel %vm599, %v4646, 0
      %4650 = vmatprep.subr.bf16.mxu0 0
      %4651 = vmatpush1.bf16.msra.mxu0 0
      %4652 = vmatprep.subr.bf16.mxu0 0
      %4653 = vmatpush1.bf16.msra.mxu0 0
      %4654 = vmatprep.subr.bf16.mxu0 0
      %4655 = vmatpush1.bf16.msra.mxu0 0
      %4656 = vmatprep.subr.bf16.mxu0 0
      %4657 = vmatpush1.bf16.msra.mxu0 0
      %4658 = vmatprep.subr.bf16.mxu0 0
      %4659 = vmatpush1.bf16.msra.mxu0 0
      %4660 = vmatprep.subr.bf16.mxu0 0
      %4661 = vmatpush1.bf16.msra.mxu0 0
      %4662 = vmatprep.subr.bf16.mxu0 0
      %4663 = vmatpush1.bf16.msra.mxu0 0
      %4664 = vmatprep.subr.bf16.mxu0 0
      %4665 = vmatpush1.bf16.msra.mxu0 %v4648
      %4666 = vmatprep.subr.bf16.mxu0 0
      %4667 = vmatpush2.bf16.msra.mxu0 0
      %4668 = vmatprep.subr.bf16.mxu0 0
      %4669 = vmatpush2.bf16.msra.mxu0 0
      %4670 = vmatprep.subr.bf16.mxu0 0
      %4671 = vmatpush2.bf16.msra.mxu0 0
      %4672 = vmatprep.subr.bf16.mxu0 0
      %4673 = vmatpush2.bf16.msra.mxu0 0
      %4674 = vmatprep.subr.bf16.mxu0 0
      %4675 = vmatpush2.bf16.msra.mxu0 0
      %4676 = vmatprep.subr.bf16.mxu0 0
      %4677 = vmatpush2.bf16.msra.mxu0 0
      %4678 = vmatprep.subr.bf16.mxu0 0
      %4679 = vmatpush2.bf16.msra.mxu0 0
      %4680 = vmatprep.subr.bf16.mxu0 0
      %4681 = vmatpush2.bf16.msra.mxu0 0
      %4682 = vmatprep.mubr.bf16.mxu0 0
      %4683 = vmatmul.mubr.bf16.gmra.mxu0 %v3917
      %v4684 = vpop.f32.mrf.mxu0
      %v4685 = vpop.f32.mrf.mxu0
      %v4686 = vpop.f32.mrf.mxu0
      %v4687 = vadd.f32 0.0, %v4686
      %v4688 = vpop.f32.mrf.mxu0
      %4689 = vmatprep.mubr.bf16.mxu0 0
      %4690 = vmatmul.mubr.bf16.gmra.mxu0 %v3920
      %v4691 = vpop.f32.mrf.mxu0
      %v4692 = vadd.f32 0.0, %v4691
      %v4693 = vpop.f32.mrf.mxu0
      %v4694 = vpop.f32.mrf.mxu0
      %v4695 = vadd.f32 0.0, %v4694
      %v4696 = vpop.f32.mrf.mxu0
      %4697 = vmatprep.mubr.bf16.mxu0 0
      %4698 = vmatmul.mubr.bf16.gmra.mxu0 %v3923
      %v4699 = vpop.f32.mrf.mxu0
      %v4700 = vadd.f32 0.0, %v4699
      %v4701 = vpop.f32.mrf.mxu0
      %v4702 = vpop.f32.mrf.mxu0
      %v4703 = vadd.f32 0.0, %v4702
      %v4704 = vpop.f32.mrf.mxu0
      %4705 = vmatprep.mubr.bf16.mxu0 0
      %4706 = vmatmul.mubr.bf16.gmra.mxu0 %v3926
      %v4707 = vpop.f32.mrf.mxu0
      %v4708 = vadd.f32 0.0, %v4707
      %v4709 = vpop.f32.mrf.mxu0
      %v4710 = vpop.f32.mrf.mxu0
      %v4711 = vadd.f32 0.0, %v4710
      %v4712 = vpop.f32.mrf.mxu0
      %4713 = vmatprep.mubr.bf16.mxu0 0
      %4714 = vmatmul.mubr.bf16.gmra.mxu0 %v3929
      %v4715 = vpop.f32.mrf.mxu0
      %v4716 = vadd.f32 0.0, %v4715
      %v4717 = vpop.f32.mrf.mxu0
      %v4718 = vpop.f32.mrf.mxu0
      %v4719 = vadd.f32 0.0, %v4718
      %v4720 = vpop.f32.mrf.mxu0
      %4721 = vmatprep.mubr.bf16.mxu0 0
      %4722 = vmatmul.mubr.bf16.gmra.mxu0 %v3932
      %v4723 = vpop.f32.mrf.mxu0
      %v4724 = vadd.f32 0.0, %v4723
      %v4725 = vpop.f32.mrf.mxu0
      %v4726 = vpop.f32.mrf.mxu0
      %v4727 = vadd.f32 0.0, %v4726
      %v4728 = vpop.f32.mrf.mxu0
      %4729 = vmatprep.mubr.bf16.mxu0 0
      %4730 = vmatmul.mubr.bf16.gmra.mxu0 %v3935
      %v4731 = vpop.f32.mrf.mxu0
      %v4732 = vadd.f32 0.0, %v4731
      %v4733 = vpop.f32.mrf.mxu0
      %v4734 = vpop.f32.mrf.mxu0
      %v4735 = vadd.f32 0.0, %v4734
      %v4736 = vpop.f32.mrf.mxu0
      %4737 = vmatprep.mubr.bf16.mxu0 0
      %4738 = vmatmul.mubr.bf16.gmra.mxu0 %v3938
      %v4739 = vpop.f32.mrf.mxu0
      %v4740 = vadd.f32 0.0, %v4739
      %v4741 = vpop.f32.mrf.mxu0
      %v4742 = vpop.f32.mrf.mxu0
      %v4743 = vadd.f32 0.0, %v4742
      %v4744 = vpop.f32.mrf.mxu0
      %4745 = vmatprep.mubr.bf16.mxu0 0
      %4746 = vmatmul.mubr.bf16.gmra.mxu0 %v3941
      %v4747 = vpop.f32.mrf.mxu0
      %v4748 = vadd.f32 0.0, %v4747
      %v4749 = vpop.f32.mrf.mxu0
      %v4750 = vpop.f32.mrf.mxu0
      %v4751 = vpop.f32.mrf.mxu0
      %4752 = vmatprep.mubr.bf16.mxu0 0
      %4753 = vmatmul.mubr.bf16.gmra.mxu0 %v3944
      %v4754 = vpop.f32.mrf.mxu0
      %v4755 = vpop.f32.mrf.mxu0
      %v4756 = vpop.f32.mrf.mxu0
      %v4757 = vpop.f32.mrf.mxu0
      %4758 = vdwg.mxu0
      %v4775 = vrot.slane %v4687, 5
      %v4776 = vrot.slane %v4692, 5
      %v4777 = vsel %vm1432, %v4775, %v4776
      %v4778 = vrot.slane %v4695, 5
      %v4779 = vsel %vm1432, %v4776, %v4778
      %v4780 = vrot.slane %v4700, 5
      %v4781 = vsel %vm1432, %v4778, %v4780
      %v4782 = vrot.slane %v4703, 5
      %v4783 = vsel %vm1432, %v4780, %v4782
      %v4784 = vrot.slane %v4708, 5
      %v4785 = vsel %vm1432, %v4782, %v4784
      %v4786 = vrot.slane %v4711, 5
      %v4787 = vsel %vm1432, %v4784, %v4786
      %v4788 = vrot.slane %v4716, 5
      %v4789 = vsel %vm1432, %v4786, %v4788
      %v4790 = vrot.slane %v4719, 5
      %v4791 = vsel %vm1432, %v4788, %v4790
      %v4792 = vrot.slane %v4724, 5
      %v4793 = vsel %vm1432, %v4790, %v4792
      %v4794 = vrot.slane %v4727, 5
      %v4795 = vsel %vm1432, %v4792, %v4794
      %v4796 = vrot.slane %v4732, 5
      %v4797 = vsel %vm1432, %v4794, %v4796
      %v4798 = vrot.slane %v4735, 5
      %v4799 = vsel %vm1432, %v4796, %v4798
      %v4800 = vrot.slane %v4740, 5
      %v4801 = vsel %vm1432, %v4798, %v4800
      %v4802 = vrot.slane %v4743, 5
      %v4803 = vsel %vm1432, %v4800, %v4802
      %v4804 = vrot.slane %v4748, 5
      %v4805 = vsel %vm1432, %v4802, %v4804
      %v4821 = vadd.f32 %v4630, %v4777
      %v4822 = vadd.f32 %v4631, %v4779
      %v4823 = vadd.f32 %v4632, %v4781
      %v4824 = vadd.f32 %v4633, %v4783
      %v4825 = vadd.f32 %v4634, %v4785
      %v4826 = vadd.f32 %v4635, %v4787
      %v4827 = vadd.f32 %v4636, %v4789
      %v4828 = vadd.f32 %v4637, %v4791
      %v4829 = vadd.f32 %v4638, %v4793
      %v4830 = vadd.f32 %v4639, %v4795
      %v4831 = vadd.f32 %v4640, %v4797
      %v4832 = vadd.f32 %v4641, %v4799
      %v4833 = vadd.f32 %v4642, %v4801
      %v4834 = vadd.f32 %v4643, %v4803
      %v4835 = vadd.f32 %v4644, %v4805
      %s4836 = scalar_lea.vmem %s3, 46
      %v4837 = vld [vmem:[%s4836] sm:$0x3]
      %v4839 = vsel %vm599, %v4837, 0
      %4841 = vmatprep.subr.bf16.mxu0 0
      %4842 = vmatpush1.bf16.msra.mxu0 0
      %4843 = vmatprep.subr.bf16.mxu0 0
      %4844 = vmatpush1.bf16.msra.mxu0 0
      %4845 = vmatprep.subr.bf16.mxu0 0
      %4846 = vmatpush1.bf16.msra.mxu0 0
      %4847 = vmatprep.subr.bf16.mxu0 0
      %4848 = vmatpush1.bf16.msra.mxu0 0
      %4849 = vmatprep.subr.bf16.mxu0 0
      %4850 = vmatpush1.bf16.msra.mxu0 0
      %4851 = vmatprep.subr.bf16.mxu0 0
      %4852 = vmatpush1.bf16.msra.mxu0 0
      %4853 = vmatprep.subr.bf16.mxu0 0
      %4854 = vmatpush1.bf16.msra.mxu0 0
      %4855 = vmatprep.subr.bf16.mxu0 0
      %4856 = vmatpush1.bf16.msra.mxu0 %v4839
      %4857 = vmatprep.subr.bf16.mxu0 0
      %4858 = vmatpush2.bf16.msra.mxu0 0
      %4859 = vmatprep.subr.bf16.mxu0 0
      %4860 = vmatpush2.bf16.msra.mxu0 0
      %4861 = vmatprep.subr.bf16.mxu0 0
      %4862 = vmatpush2.bf16.msra.mxu0 0
      %4863 = vmatprep.subr.bf16.mxu0 0
      %4864 = vmatpush2.bf16.msra.mxu0 0
      %4865 = vmatprep.subr.bf16.mxu0 0
      %4866 = vmatpush2.bf16.msra.mxu0 0
      %4867 = vmatprep.subr.bf16.mxu0 0
      %4868 = vmatpush2.bf16.msra.mxu0 0
      %4869 = vmatprep.subr.bf16.mxu0 0
      %4870 = vmatpush2.bf16.msra.mxu0 0
      %4871 = vmatprep.subr.bf16.mxu0 0
      %4872 = vmatpush2.bf16.msra.mxu0 0
      %4873 = vmatprep.mubr.bf16.mxu0 0
      %4874 = vmatmul.mubr.bf16.gmra.mxu0 %v3917
      %v4875 = vpop.f32.mrf.mxu0
      %v4876 = vpop.f32.mrf.mxu0
      %v4877 = vpop.f32.mrf.mxu0
      %v4878 = vadd.f32 0.0, %v4877
      %v4879 = vpop.f32.mrf.mxu0
      %4880 = vmatprep.mubr.bf16.mxu0 0
      %4881 = vmatmul.mubr.bf16.gmra.mxu0 %v3920
      %v4882 = vpop.f32.mrf.mxu0
      %v4883 = vadd.f32 0.0, %v4882
      %v4884 = vpop.f32.mrf.mxu0
      %v4885 = vpop.f32.mrf.mxu0
      %v4886 = vadd.f32 0.0, %v4885
      %v4887 = vpop.f32.mrf.mxu0
      %4888 = vmatprep.mubr.bf16.mxu0 0
      %4889 = vmatmul.mubr.bf16.gmra.mxu0 %v3923
      %v4890 = vpop.f32.mrf.mxu0
      %v4891 = vadd.f32 0.0, %v4890
      %v4892 = vpop.f32.mrf.mxu0
      %v4893 = vpop.f32.mrf.mxu0
      %v4894 = vadd.f32 0.0, %v4893
      %v4895 = vpop.f32.mrf.mxu0
      %4896 = vmatprep.mubr.bf16.mxu0 0
      %4897 = vmatmul.mubr.bf16.gmra.mxu0 %v3926
      %v4898 = vpop.f32.mrf.mxu0
      %v4899 = vadd.f32 0.0, %v4898
      %v4900 = vpop.f32.mrf.mxu0
      %v4901 = vpop.f32.mrf.mxu0
      %v4902 = vadd.f32 0.0, %v4901
      %v4903 = vpop.f32.mrf.mxu0
      %4904 = vmatprep.mubr.bf16.mxu0 0
      %4905 = vmatmul.mubr.bf16.gmra.mxu0 %v3929
      %v4906 = vpop.f32.mrf.mxu0
      %v4907 = vadd.f32 0.0, %v4906
      %v4908 = vpop.f32.mrf.mxu0
      %v4909 = vpop.f32.mrf.mxu0
      %v4910 = vadd.f32 0.0, %v4909
      %v4911 = vpop.f32.mrf.mxu0
      %4912 = vmatprep.mubr.bf16.mxu0 0
      %4913 = vmatmul.mubr.bf16.gmra.mxu0 %v3932
      %v4914 = vpop.f32.mrf.mxu0
      %v4915 = vadd.f32 0.0, %v4914
      %v4916 = vpop.f32.mrf.mxu0
      %v4917 = vpop.f32.mrf.mxu0
      %v4918 = vadd.f32 0.0, %v4917
      %v4919 = vpop.f32.mrf.mxu0
      %4920 = vmatprep.mubr.bf16.mxu0 0
      %4921 = vmatmul.mubr.bf16.gmra.mxu0 %v3935
      %v4922 = vpop.f32.mrf.mxu0
      %v4923 = vadd.f32 0.0, %v4922
      %v4924 = vpop.f32.mrf.mxu0
      %v4925 = vpop.f32.mrf.mxu0
      %v4926 = vadd.f32 0.0, %v4925
      %v4927 = vpop.f32.mrf.mxu0
      %4928 = vmatprep.mubr.bf16.mxu0 0
      %4929 = vmatmul.mubr.bf16.gmra.mxu0 %v3938
      %v4930 = vpop.f32.mrf.mxu0
      %v4931 = vadd.f32 0.0, %v4930
      %v4932 = vpop.f32.mrf.mxu0
      %v4933 = vpop.f32.mrf.mxu0
      %v4934 = vadd.f32 0.0, %v4933
      %v4935 = vpop.f32.mrf.mxu0
      %4936 = vmatprep.mubr.bf16.mxu0 0
      %4937 = vmatmul.mubr.bf16.gmra.mxu0 %v3941
      %v4938 = vpop.f32.mrf.mxu0
      %v4939 = vadd.f32 0.0, %v4938
      %v4940 = vpop.f32.mrf.mxu0
      %v4941 = vpop.f32.mrf.mxu0
      %v4942 = vpop.f32.mrf.mxu0
      %4943 = vmatprep.mubr.bf16.mxu0 0
      %4944 = vmatmul.mubr.bf16.gmra.mxu0 %v3944
      %v4945 = vpop.f32.mrf.mxu0
      %v4946 = vpop.f32.mrf.mxu0
      %v4947 = vpop.f32.mrf.mxu0
      %v4948 = vpop.f32.mrf.mxu0
      %4949 = vdwg.mxu0
      %v4966 = vrot.slane %v4878, 6
      %v4967 = vrot.slane %v4883, 6
      %v4968 = vsel %vm599, %v4966, %v4967
      %v4969 = vrot.slane %v4886, 6
      %v4970 = vsel %vm599, %v4967, %v4969
      %v4971 = vrot.slane %v4891, 6
      %v4972 = vsel %vm599, %v4969, %v4971
      %v4973 = vrot.slane %v4894, 6
      %v4974 = vsel %vm599, %v4971, %v4973
      %v4975 = vrot.slane %v4899, 6
      %v4976 = vsel %vm599, %v4973, %v4975
      %v4977 = vrot.slane %v4902, 6
      %v4978 = vsel %vm599, %v4975, %v4977
      %v4979 = vrot.slane %v4907, 6
      %v4980 = vsel %vm599, %v4977, %v4979
      %v4981 = vrot.slane %v4910, 6
      %v4982 = vsel %vm599, %v4979, %v4981
      %v4983 = vrot.slane %v4915, 6
      %v4984 = vsel %vm599, %v4981, %v4983
      %v4985 = vrot.slane %v4918, 6
      %v4986 = vsel %vm599, %v4983, %v4985
      %v4987 = vrot.slane %v4923, 6
      %v4988 = vsel %vm599, %v4985, %v4987
      %v4989 = vrot.slane %v4926, 6
      %v4990 = vsel %vm599, %v4987, %v4989
      %v4991 = vrot.slane %v4931, 6
      %v4992 = vsel %vm599, %v4989, %v4991
      %v4993 = vrot.slane %v4934, 6
      %v4994 = vsel %vm599, %v4991, %v4993
      %v4995 = vrot.slane %v4939, 6
      %v4996 = vsel %vm599, %v4993, %v4995
      %v5012 = vadd.f32 %v4821, %v4968
      %v5013 = vadd.f32 %v4822, %v4970
      %v5014 = vadd.f32 %v4823, %v4972
      %v5015 = vadd.f32 %v4824, %v4974
      %v5016 = vadd.f32 %v4825, %v4976
      %v5017 = vadd.f32 %v4826, %v4978
      %v5018 = vadd.f32 %v4827, %v4980
      %v5019 = vadd.f32 %v4828, %v4982
      %v5020 = vadd.f32 %v4829, %v4984
      %v5021 = vadd.f32 %v4830, %v4986
      %v5022 = vadd.f32 %v4831, %v4988
      %v5023 = vadd.f32 %v4832, %v4990
      %v5024 = vadd.f32 %v4833, %v4992
      %v5025 = vadd.f32 %v4834, %v4994
      %v5026 = vadd.f32 %v4835, %v4996
      %s5027 = scalar_lea.vmem %s3, 48
      %v5028 = vld [vmem:[%s5027] sm:$0x3]
      %v5030 = vsel %vm599, %v5028, 0
      %5032 = vmatprep.subr.bf16.mxu0 0
      %5033 = vmatpush1.bf16.msra.mxu0 0
      %5034 = vmatprep.subr.bf16.mxu0 0
      %5035 = vmatpush1.bf16.msra.mxu0 0
      %5036 = vmatprep.subr.bf16.mxu0 0
      %5037 = vmatpush1.bf16.msra.mxu0 0
      %5038 = vmatprep.subr.bf16.mxu0 0
      %5039 = vmatpush1.bf16.msra.mxu0 0
      %5040 = vmatprep.subr.bf16.mxu0 0
      %5041 = vmatpush1.bf16.msra.mxu0 0
      %5042 = vmatprep.subr.bf16.mxu0 0
      %5043 = vmatpush1.bf16.msra.mxu0 0
      %5044 = vmatprep.subr.bf16.mxu0 0
      %5045 = vmatpush1.bf16.msra.mxu0 0
      %5046 = vmatprep.subr.bf16.mxu0 0
      %5047 = vmatpush1.bf16.msra.mxu0 %v5030
      %5048 = vmatprep.subr.bf16.mxu0 0
      %5049 = vmatpush2.bf16.msra.mxu0 0
      %5050 = vmatprep.subr.bf16.mxu0 0
      %5051 = vmatpush2.bf16.msra.mxu0 0
      %5052 = vmatprep.subr.bf16.mxu0 0
      %5053 = vmatpush2.bf16.msra.mxu0 0
      %5054 = vmatprep.subr.bf16.mxu0 0
      %5055 = vmatpush2.bf16.msra.mxu0 0
      %5056 = vmatprep.subr.bf16.mxu0 0
      %5057 = vmatpush2.bf16.msra.mxu0 0
      %5058 = vmatprep.subr.bf16.mxu0 0
      %5059 = vmatpush2.bf16.msra.mxu0 0
      %5060 = vmatprep.subr.bf16.mxu0 0
      %5061 = vmatpush2.bf16.msra.mxu0 0
      %5062 = vmatprep.subr.bf16.mxu0 0
      %5063 = vmatpush2.bf16.msra.mxu0 0
      %5064 = vmatprep.mubr.bf16.mxu0 0
      %5065 = vmatmul.mubr.bf16.gmra.mxu0 %v3917
      %v5066 = vpop.f32.mrf.mxu0
      %v5067 = vpop.f32.mrf.mxu0
      %v5068 = vpop.f32.mrf.mxu0
      %v5069 = vpop.f32.mrf.mxu0
      %5070 = vmatprep.mubr.bf16.mxu0 0
      %5071 = vmatmul.mubr.bf16.gmra.mxu0 %v3920
      %v5072 = vpop.f32.mrf.mxu0
      %v5073 = vpop.f32.mrf.mxu0
      %v5074 = vpop.f32.mrf.mxu0
      %v5075 = vadd.f32 0.0, %v5074
      %v5076 = vpop.f32.mrf.mxu0
      %5077 = vmatprep.mubr.bf16.mxu0 0
      %5078 = vmatmul.mubr.bf16.gmra.mxu0 %v3923
      %v5079 = vpop.f32.mrf.mxu0
      %v5080 = vadd.f32 0.0, %v5079
      %v5081 = vpop.f32.mrf.mxu0
      %v5082 = vpop.f32.mrf.mxu0
      %v5083 = vadd.f32 0.0, %v5082
      %v5084 = vpop.f32.mrf.mxu0
      %5085 = vmatprep.mubr.bf16.mxu0 0
      %5086 = vmatmul.mubr.bf16.gmra.mxu0 %v3926
      %v5087 = vpop.f32.mrf.mxu0
      %v5088 = vadd.f32 0.0, %v5087
      %v5089 = vpop.f32.mrf.mxu0
      %v5090 = vpop.f32.mrf.mxu0
      %v5091 = vadd.f32 0.0, %v5090
      %v5092 = vpop.f32.mrf.mxu0
      %5093 = vmatprep.mubr.bf16.mxu0 0
      %5094 = vmatmul.mubr.bf16.gmra.mxu0 %v3929
      %v5095 = vpop.f32.mrf.mxu0
      %v5096 = vadd.f32 0.0, %v5095
      %v5097 = vpop.f32.mrf.mxu0
      %v5098 = vpop.f32.mrf.mxu0
      %v5099 = vadd.f32 0.0, %v5098
      %v5100 = vpop.f32.mrf.mxu0
      %5101 = vmatprep.mubr.bf16.mxu0 0
      %5102 = vmatmul.mubr.bf16.gmra.mxu0 %v3932
      %v5103 = vpop.f32.mrf.mxu0
      %v5104 = vadd.f32 0.0, %v5103
      %v5105 = vpop.f32.mrf.mxu0
      %v5106 = vpop.f32.mrf.mxu0
      %v5107 = vadd.f32 0.0, %v5106
      %v5108 = vpop.f32.mrf.mxu0
      %5109 = vmatprep.mubr.bf16.mxu0 0
      %5110 = vmatmul.mubr.bf16.gmra.mxu0 %v3935
      %v5111 = vpop.f32.mrf.mxu0
      %v5112 = vadd.f32 0.0, %v5111
      %v5113 = vpop.f32.mrf.mxu0
      %v5114 = vpop.f32.mrf.mxu0
      %v5115 = vadd.f32 0.0, %v5114
      %v5116 = vpop.f32.mrf.mxu0
      %5117 = vmatprep.mubr.bf16.mxu0 0
      %5118 = vmatmul.mubr.bf16.gmra.mxu0 %v3938
      %v5119 = vpop.f32.mrf.mxu0
      %v5120 = vadd.f32 0.0, %v5119
      %v5121 = vpop.f32.mrf.mxu0
      %v5122 = vpop.f32.mrf.mxu0
      %v5123 = vadd.f32 0.0, %v5122
      %v5124 = vpop.f32.mrf.mxu0
      %5125 = vmatprep.mubr.bf16.mxu0 0
      %5126 = vmatmul.mubr.bf16.gmra.mxu0 %v3941
      %v5127 = vpop.f32.mrf.mxu0
      %v5128 = vadd.f32 0.0, %v5127
      %v5129 = vpop.f32.mrf.mxu0
      %v5130 = vpop.f32.mrf.mxu0
      %v5131 = vadd.f32 0.0, %v5130
      %v5132 = vpop.f32.mrf.mxu0
      %5133 = vmatprep.mubr.bf16.mxu0 0
      %5134 = vmatmul.mubr.bf16.gmra.mxu0 %v3944
      %v5135 = vpop.f32.mrf.mxu0
      %v5136 = vpop.f32.mrf.mxu0
      %v5137 = vpop.f32.mrf.mxu0
      %v5138 = vpop.f32.mrf.mxu0
      %5139 = vdwg.mxu0
      %v5140 = vadd.f32 %v5012, %v5075
      %v5141 = vadd.f32 %v5013, %v5080
      %v5142 = vadd.f32 %v5014, %v5083
      %v5143 = vadd.f32 %v5015, %v5088
      %v5144 = vadd.f32 %v5016, %v5091
      %v5145 = vadd.f32 %v5017, %v5096
      %v5146 = vadd.f32 %v5018, %v5099
      %v5147 = vadd.f32 %v5019, %v5104
      %v5148 = vadd.f32 %v5020, %v5107
      %v5149 = vadd.f32 %v5021, %v5112
      %v5150 = vadd.f32 %v5022, %v5115
      %v5151 = vadd.f32 %v5023, %v5120
      %v5152 = vadd.f32 %v5024, %v5123
      %v5153 = vadd.f32 %v5025, %v5128
      %v5154 = vadd.f32 %v5026, %v5131
      %s5155 = scalar_lea.vmem %s3, 50
      %v5156 = vld [vmem:[%s5155] sm:$0x3]
      %v5158 = vsel %vm599, %v5156, 0
      %5160 = vmatprep.subr.bf16.mxu0 0
      %5161 = vmatpush1.bf16.msra.mxu0 0
      %5162 = vmatprep.subr.bf16.mxu0 0
      %5163 = vmatpush1.bf16.msra.mxu0 0
      %5164 = vmatprep.subr.bf16.mxu0 0
      %5165 = vmatpush1.bf16.msra.mxu0 0
      %5166 = vmatprep.subr.bf16.mxu0 0
      %5167 = vmatpush1.bf16.msra.mxu0 0
      %5168 = vmatprep.subr.bf16.mxu0 0
      %5169 = vmatpush1.bf16.msra.mxu0 0
      %5170 = vmatprep.subr.bf16.mxu0 0
      %5171 = vmatpush1.bf16.msra.mxu0 0
      %5172 = vmatprep.subr.bf16.mxu0 0
      %5173 = vmatpush1.bf16.msra.mxu0 0
      %5174 = vmatprep.subr.bf16.mxu0 0
      %5175 = vmatpush1.bf16.msra.mxu0 %v5158
      %5176 = vmatprep.subr.bf16.mxu0 0
      %5177 = vmatpush2.bf16.msra.mxu0 0
      %5178 = vmatprep.subr.bf16.mxu0 0
      %5179 = vmatpush2.bf16.msra.mxu0 0
      %5180 = vmatprep.subr.bf16.mxu0 0
      %5181 = vmatpush2.bf16.msra.mxu0 0
      %5182 = vmatprep.subr.bf16.mxu0 0
      %5183 = vmatpush2.bf16.msra.mxu0 0
      %5184 = vmatprep.subr.bf16.mxu0 0
      %5185 = vmatpush2.bf16.msra.mxu0 0
      %5186 = vmatprep.subr.bf16.mxu0 0
      %5187 = vmatpush2.bf16.msra.mxu0 0
      %5188 = vmatprep.subr.bf16.mxu0 0
      %5189 = vmatpush2.bf16.msra.mxu0 0
      %5190 = vmatprep.subr.bf16.mxu0 0
      %5191 = vmatpush2.bf16.msra.mxu0 0
      %5192 = vmatprep.mubr.bf16.mxu0 0
      %5193 = vmatmul.mubr.bf16.gmra.mxu0 %v3917
      %v5194 = vpop.f32.mrf.mxu0
      %v5195 = vpop.f32.mrf.mxu0
      %v5196 = vpop.f32.mrf.mxu0
      %v5197 = vpop.f32.mrf.mxu0
      %5198 = vmatprep.mubr.bf16.mxu0 0
      %5199 = vmatmul.mubr.bf16.gmra.mxu0 %v3920
      %v5200 = vpop.f32.mrf.mxu0
      %v5201 = vpop.f32.mrf.mxu0
      %v5202 = vpop.f32.mrf.mxu0
      %v5203 = vadd.f32 0.0, %v5202
      %v5204 = vpop.f32.mrf.mxu0
      %5205 = vmatprep.mubr.bf16.mxu0 0
      %5206 = vmatmul.mubr.bf16.gmra.mxu0 %v3923
      %v5207 = vpop.f32.mrf.mxu0
      %v5208 = vadd.f32 0.0, %v5207
      %v5209 = vpop.f32.mrf.mxu0
      %v5210 = vpop.f32.mrf.mxu0
      %v5211 = vadd.f32 0.0, %v5210
      %v5212 = vpop.f32.mrf.mxu0
      %5213 = vmatprep.mubr.bf16.mxu0 0
      %5214 = vmatmul.mubr.bf16.gmra.mxu0 %v3926
      %v5215 = vpop.f32.mrf.mxu0
      %v5216 = vadd.f32 0.0, %v5215
      %v5217 = vpop.f32.mrf.mxu0
      %v5218 = vpop.f32.mrf.mxu0
      %v5219 = vadd.f32 0.0, %v5218
      %v5220 = vpop.f32.mrf.mxu0
      %5221 = vmatprep.mubr.bf16.mxu0 0
      %5222 = vmatmul.mubr.bf16.gmra.mxu0 %v3929
      %v5223 = vpop.f32.mrf.mxu0
      %v5224 = vadd.f32 0.0, %v5223
      %v5225 = vpop.f32.mrf.mxu0
      %v5226 = vpop.f32.mrf.mxu0
      %v5227 = vadd.f32 0.0, %v5226
      %v5228 = vpop.f32.mrf.mxu0
      %5229 = vmatprep.mubr.bf16.mxu0 0
      %5230 = vmatmul.mubr.bf16.gmra.mxu0 %v3932
      %v5231 = vpop.f32.mrf.mxu0
      %v5232 = vadd.f32 0.0, %v5231
      %v5233 = vpop.f32.mrf.mxu0
      %v5234 = vpop.f32.mrf.mxu0
      %v5235 = vadd.f32 0.0, %v5234
      %v5236 = vpop.f32.mrf.mxu0
      %5237 = vmatprep.mubr.bf16.mxu0 0
      %5238 = vmatmul.mubr.bf16.gmra.mxu0 %v3935
      %v5239 = vpop.f32.mrf.mxu0
      %v5240 = vadd.f32 0.0, %v5239
      %v5241 = vpop.f32.mrf.mxu0
      %v5242 = vpop.f32.mrf.mxu0
      %v5243 = vadd.f32 0.0, %v5242
      %v5244 = vpop.f32.mrf.mxu0
      %5245 = vmatprep.mubr.bf16.mxu0 0
      %5246 = vmatmul.mubr.bf16.gmra.mxu0 %v3938
      %v5247 = vpop.f32.mrf.mxu0
      %v5248 = vadd.f32 0.0, %v5247
      %v5249 = vpop.f32.mrf.mxu0
      %v5250 = vpop.f32.mrf.mxu0
      %v5251 = vadd.f32 0.0, %v5250
      %v5252 = vpop.f32.mrf.mxu0
      %5253 = vmatprep.mubr.bf16.mxu0 0
      %5254 = vmatmul.mubr.bf16.gmra.mxu0 %v3941
      %v5255 = vpop.f32.mrf.mxu0
      %v5256 = vadd.f32 0.0, %v5255
      %v5257 = vpop.f32.mrf.mxu0
      %v5258 = vpop.f32.mrf.mxu0
      %v5259 = vadd.f32 0.0, %v5258
      %v5260 = vpop.f32.mrf.mxu0
      %5261 = vmatprep.mubr.bf16.mxu0 0
      %5262 = vmatmul.mubr.bf16.gmra.mxu0 %v3944
      %v5263 = vpop.f32.mrf.mxu0
      %v5264 = vadd.f32 0.0, %v5263
      %v5265 = vpop.f32.mrf.mxu0
      %v5266 = vpop.f32.mrf.mxu0
      %v5267 = vpop.f32.mrf.mxu0
      %5268 = vdwg.mxu0
      %v5285 = vrot.slane %v5203, 1
      %v5286 = vrot.slane %v5208, 1
      %v5287 = vsel %vm856, %v5285, %v5286
      %v5288 = vrot.slane %v5211, 1
      %v5289 = vsel %vm856, %v5286, %v5288
      %v5290 = vrot.slane %v5216, 1
      %v5291 = vsel %vm856, %v5288, %v5290
      %v5292 = vrot.slane %v5219, 1
      %v5293 = vsel %vm856, %v5290, %v5292
      %v5294 = vrot.slane %v5224, 1
      %v5295 = vsel %vm856, %v5292, %v5294
      %v5296 = vrot.slane %v5227, 1
      %v5297 = vsel %vm856, %v5294, %v5296
      %v5298 = vrot.slane %v5232, 1
      %v5299 = vsel %vm856, %v5296, %v5298
      %v5300 = vrot.slane %v5235, 1
      %v5301 = vsel %vm856, %v5298, %v5300
      %v5302 = vrot.slane %v5240, 1
      %v5303 = vsel %vm856, %v5300, %v5302
      %v5304 = vrot.slane %v5243, 1
      %v5305 = vsel %vm856, %v5302, %v5304
      %v5306 = vrot.slane %v5248, 1
      %v5307 = vsel %vm856, %v5304, %v5306
      %v5308 = vrot.slane %v5251, 1
      %v5309 = vsel %vm856, %v5306, %v5308
      %v5310 = vrot.slane %v5256, 1
      %v5311 = vsel %vm856, %v5308, %v5310
      %v5312 = vrot.slane %v5259, 1
      %v5313 = vsel %vm856, %v5310, %v5312
      %v5314 = vrot.slane %v5264, 1
      %v5315 = vsel %vm856, %v5312, %v5314
      %v5331 = vadd.f32 %v5140, %v5287
      %v5332 = vadd.f32 %v5141, %v5289
      %v5333 = vadd.f32 %v5142, %v5291
      %v5334 = vadd.f32 %v5143, %v5293
      %v5335 = vadd.f32 %v5144, %v5295
      %v5336 = vadd.f32 %v5145, %v5297
      %v5337 = vadd.f32 %v5146, %v5299
      %v5338 = vadd.f32 %v5147, %v5301
      %v5339 = vadd.f32 %v5148, %v5303
      %v5340 = vadd.f32 %v5149, %v5305
      %v5341 = vadd.f32 %v5150, %v5307
      %v5342 = vadd.f32 %v5151, %v5309
      %v5343 = vadd.f32 %v5152, %v5311
      %v5344 = vadd.f32 %v5153, %v5313
      %v5345 = vadd.f32 %v5154, %v5315
      %s5346 = scalar_lea.vmem %s3, 52
      %v5347 = vld [vmem:[%s5346] sm:$0x3]
      %v5349 = vsel %vm599, %v5347, 0
      %5351 = vmatprep.subr.bf16.mxu0 0
      %5352 = vmatpush1.bf16.msra.mxu0 0
      %5353 = vmatprep.subr.bf16.mxu0 0
      %5354 = vmatpush1.bf16.msra.mxu0 0
      %5355 = vmatprep.subr.bf16.mxu0 0
      %5356 = vmatpush1.bf16.msra.mxu0 0
      %5357 = vmatprep.subr.bf16.mxu0 0
      %5358 = vmatpush1.bf16.msra.mxu0 0
      %5359 = vmatprep.subr.bf16.mxu0 0
      %5360 = vmatpush1.bf16.msra.mxu0 0
      %5361 = vmatprep.subr.bf16.mxu0 0
      %5362 = vmatpush1.bf16.msra.mxu0 0
      %5363 = vmatprep.subr.bf16.mxu0 0
      %5364 = vmatpush1.bf16.msra.mxu0 0
      %5365 = vmatprep.subr.bf16.mxu0 0
      %5366 = vmatpush1.bf16.msra.mxu0 %v5349
      %5367 = vmatprep.subr.bf16.mxu0 0
      %5368 = vmatpush2.bf16.msra.mxu0 0
      %5369 = vmatprep.subr.bf16.mxu0 0
      %5370 = vmatpush2.bf16.msra.mxu0 0
      %5371 = vmatprep.subr.bf16.mxu0 0
      %5372 = vmatpush2.bf16.msra.mxu0 0
      %5373 = vmatprep.subr.bf16.mxu0 0
      %5374 = vmatpush2.bf16.msra.mxu0 0
      %5375 = vmatprep.subr.bf16.mxu0 0
      %5376 = vmatpush2.bf16.msra.mxu0 0
      %5377 = vmatprep.subr.bf16.mxu0 0
      %5378 = vmatpush2.bf16.msra.mxu0 0
      %5379 = vmatprep.subr.bf16.mxu0 0
      %5380 = vmatpush2.bf16.msra.mxu0 0
      %5381 = vmatprep.subr.bf16.mxu0 0
      %5382 = vmatpush2.bf16.msra.mxu0 0
      %5383 = vmatprep.mubr.bf16.mxu0 0
      %5384 = vmatmul.mubr.bf16.gmra.mxu0 %v3917
      %v5385 = vpop.f32.mrf.mxu0
      %v5386 = vpop.f32.mrf.mxu0
      %v5387 = vpop.f32.mrf.mxu0
      %v5388 = vpop.f32.mrf.mxu0
      %5389 = vmatprep.mubr.bf16.mxu0 0
      %5390 = vmatmul.mubr.bf16.gmra.mxu0 %v3920
      %v5391 = vpop.f32.mrf.mxu0
      %v5392 = vpop.f32.mrf.mxu0
      %v5393 = vpop.f32.mrf.mxu0
      %v5394 = vadd.f32 0.0, %v5393
      %v5395 = vpop.f32.mrf.mxu0
      %5396 = vmatprep.mubr.bf16.mxu0 0
      %5397 = vmatmul.mubr.bf16.gmra.mxu0 %v3923
      %v5398 = vpop.f32.mrf.mxu0
      %v5399 = vadd.f32 0.0, %v5398
      %v5400 = vpop.f32.mrf.mxu0
      %v5401 = vpop.f32.mrf.mxu0
      %v5402 = vadd.f32 0.0, %v5401
      %v5403 = vpop.f32.mrf.mxu0
      %5404 = vmatprep.mubr.bf16.mxu0 0
      %5405 = vmatmul.mubr.bf16.gmra.mxu0 %v3926
      %v5406 = vpop.f32.mrf.mxu0
      %v5407 = vadd.f32 0.0, %v5406
      %v5408 = vpop.f32.mrf.mxu0
      %v5409 = vpop.f32.mrf.mxu0
      %v5410 = vadd.f32 0.0, %v5409
      %v5411 = vpop.f32.mrf.mxu0
      %5412 = vmatprep.mubr.bf16.mxu0 0
      %5413 = vmatmul.mubr.bf16.gmra.mxu0 %v3929
      %v5414 = vpop.f32.mrf.mxu0
      %v5415 = vadd.f32 0.0, %v5414
      %v5416 = vpop.f32.mrf.mxu0
      %v5417 = vpop.f32.mrf.mxu0
      %v5418 = vadd.f32 0.0, %v5417
      %v5419 = vpop.f32.mrf.mxu0
      %5420 = vmatprep.mubr.bf16.mxu0 0
      %5421 = vmatmul.mubr.bf16.gmra.mxu0 %v3932
      %v5422 = vpop.f32.mrf.mxu0
      %v5423 = vadd.f32 0.0, %v5422
      %v5424 = vpop.f32.mrf.mxu0
      %v5425 = vpop.f32.mrf.mxu0
      %v5426 = vadd.f32 0.0, %v5425
      %v5427 = vpop.f32.mrf.mxu0
      %5428 = vmatprep.mubr.bf16.mxu0 0
      %5429 = vmatmul.mubr.bf16.gmra.mxu0 %v3935
      %v5430 = vpop.f32.mrf.mxu0
      %v5431 = vadd.f32 0.0, %v5430
      %v5432 = vpop.f32.mrf.mxu0
      %v5433 = vpop.f32.mrf.mxu0
      %v5434 = vadd.f32 0.0, %v5433
      %v5435 = vpop.f32.mrf.mxu0
      %5436 = vmatprep.mubr.bf16.mxu0 0
      %5437 = vmatmul.mubr.bf16.gmra.mxu0 %v3938
      %v5438 = vpop.f32.mrf.mxu0
      %v5439 = vadd.f32 0.0, %v5438
      %v5440 = vpop.f32.mrf.mxu0
      %v5441 = vpop.f32.mrf.mxu0
      %v5442 = vadd.f32 0.0, %v5441
      %v5443 = vpop.f32.mrf.mxu0
      %5444 = vmatprep.mubr.bf16.mxu0 0
      %5445 = vmatmul.mubr.bf16.gmra.mxu0 %v3941
      %v5446 = vpop.f32.mrf.mxu0
      %v5447 = vadd.f32 0.0, %v5446
      %v5448 = vpop.f32.mrf.mxu0
      %v5449 = vpop.f32.mrf.mxu0
      %v5450 = vadd.f32 0.0, %v5449
      %v5451 = vpop.f32.mrf.mxu0
      %5452 = vmatprep.mubr.bf16.mxu0 0
      %5453 = vmatmul.mubr.bf16.gmra.mxu0 %v3944
      %v5454 = vpop.f32.mrf.mxu0
      %v5455 = vadd.f32 0.0, %v5454
      %v5456 = vpop.f32.mrf.mxu0
      %v5457 = vpop.f32.mrf.mxu0
      %v5458 = vpop.f32.mrf.mxu0
      %5459 = vdwg.mxu0
      %v5476 = vrot.slane %v5394, 2
      %v5477 = vrot.slane %v5399, 2
      %v5478 = vsel %vm1048, %v5476, %v5477
      %v5479 = vrot.slane %v5402, 2
      %v5480 = vsel %vm1048, %v5477, %v5479
      %v5481 = vrot.slane %v5407, 2
      %v5482 = vsel %vm1048, %v5479, %v5481
      %v5483 = vrot.slane %v5410, 2
      %v5484 = vsel %vm1048, %v5481, %v5483
      %v5485 = vrot.slane %v5415, 2
      %v5486 = vsel %vm1048, %v5483, %v5485
      %v5487 = vrot.slane %v5418, 2
      %v5488 = vsel %vm1048, %v5485, %v5487
      %v5489 = vrot.slane %v5423, 2
      %v5490 = vsel %vm1048, %v5487, %v5489
      %v5491 = vrot.slane %v5426, 2
      %v5492 = vsel %vm1048, %v5489, %v5491
      %v5493 = vrot.slane %v5431, 2
      %v5494 = vsel %vm1048, %v5491, %v5493
      %v5495 = vrot.slane %v5434, 2
      %v5496 = vsel %vm1048, %v5493, %v5495
      %v5497 = vrot.slane %v5439, 2
      %v5498 = vsel %vm1048, %v5495, %v5497
      %v5499 = vrot.slane %v5442, 2
      %v5500 = vsel %vm1048, %v5497, %v5499
      %v5501 = vrot.slane %v5447, 2
      %v5502 = vsel %vm1048, %v5499, %v5501
      %v5503 = vrot.slane %v5450, 2
      %v5504 = vsel %vm1048, %v5501, %v5503
      %v5505 = vrot.slane %v5455, 2
      %v5506 = vsel %vm1048, %v5503, %v5505
      %v5522 = vadd.f32 %v5331, %v5478
      %v5523 = vadd.f32 %v5332, %v5480
      %v5524 = vadd.f32 %v5333, %v5482
      %v5525 = vadd.f32 %v5334, %v5484
      %v5526 = vadd.f32 %v5335, %v5486
      %v5527 = vadd.f32 %v5336, %v5488
      %v5528 = vadd.f32 %v5337, %v5490
      %v5529 = vadd.f32 %v5338, %v5492
      %v5530 = vadd.f32 %v5339, %v5494
      %v5531 = vadd.f32 %v5340, %v5496
      %v5532 = vadd.f32 %v5341, %v5498
      %v5533 = vadd.f32 %v5342, %v5500
      %v5534 = vadd.f32 %v5343, %v5502
      %v5535 = vadd.f32 %v5344, %v5504
      %v5536 = vadd.f32 %v5345, %v5506
      %v5537 = vld [vmem:[%s4] sm:$0x1]
      %v5539 = vlaneseq
      %v5540 = vshrl.u32 %v5539, 7
      %v5541 = vsub.s32 0, %v5540
      %v5542 = vrot.slane %v5537, %v5541
      %v5544 = vadd.f32 %v5522, %v5542
      %v5545 = vadd.f32 %v5523, %v5542
      %v5546 = vadd.f32 %v5524, %v5542
      %v5547 = vadd.f32 %v5525, %v5542
      %v5548 = vadd.f32 %v5526, %v5542
      %v5549 = vadd.f32 %v5527, %v5542
      %v5550 = vadd.f32 %v5528, %v5542
      %v5551 = vadd.f32 %v5529, %v5542
      %v5552 = vadd.f32 %v5530, %v5542
      %v5553 = vadd.f32 %v5531, %v5542
      %v5554 = vadd.f32 %v5532, %v5542
      %v5555 = vadd.f32 %v5533, %v5542
      %v5556 = vadd.f32 %v5534, %v5542
      %v5557 = vadd.f32 %v5535, %v5542
      %v5558 = vadd.f32 %v5536, %v5542
      %v5559 = vmax.f32 %v5544, 0.0
      %v5560 = vmax.f32 %v5545, 0.0
      %v5561 = vmax.f32 %v5546, 0.0
      %v5562 = vmax.f32 %v5547, 0.0
      %v5563 = vmax.f32 %v5548, 0.0
      %v5564 = vmax.f32 %v5549, 0.0
      %v5565 = vmax.f32 %v5550, 0.0
      %v5566 = vmax.f32 %v5551, 0.0
      %v5567 = vmax.f32 %v5552, 0.0
      %v5568 = vmax.f32 %v5553, 0.0
      %v5569 = vmax.f32 %v5554, 0.0
      %v5570 = vmax.f32 %v5555, 0.0
      %v5571 = vmax.f32 %v5556, 0.0
      %v5572 = vmax.f32 %v5557, 0.0
      %v5573 = vmax.f32 %v5558, 0.0
      %v5574 = vpack.c.bf16 %v5560, %v5559
      %v5575 = vpack.c.bf16 %v5562, %v5561
      %v5576 = vpack.c.bf16 %v5564, %v5563
      %v5577 = vpack.c.bf16 %v5566, %v5565
      %v5578 = vpack.c.bf16 %v5568, %v5567
      %v5579 = vpack.c.bf16 %v5570, %v5569
      %v5580 = vpack.c.bf16 %v5572, %v5571
      %v5581 = vpack.c.bf16 %v5573, %v5573
      %v5590 = vunpack.c.l.b16 %v5574
      %v5591 = vunpack.c.h.b16 %v5574
      %v5592 = vunpack.c.l.b16 %v5575
      %v5593 = vunpack.c.h.b16 %v5575
      %v5594 = vunpack.c.l.b16 %v5576
      %v5595 = vunpack.c.h.b16 %v5576
      %v5596 = vunpack.c.l.b16 %v5577
      %v5597 = vunpack.c.h.b16 %v5577
      %v5598 = vunpack.c.l.b16 %v5578
      %v5599 = vunpack.c.h.b16 %v5578
      %v5600 = vunpack.c.l.b16 %v5579
      %v5601 = vunpack.c.h.b16 %v5579
      %v5602 = vunpack.c.l.b16 %v5580
      %v5603 = vunpack.c.h.b16 %v5580
      %v5604 = vunpack.c.l.b16 %v5581
      %v5605 = vpack.c.b16 %v5590, %v5590
      %v5606 = vpack.c.b16 %v5591, %v5591
      %v5607 = vpack.c.b16 %v5592, %v5592
      %v5608 = vpack.c.b16 %v5593, %v5593
      %v5609 = vpack.c.b16 %v5594, %v5594
      %v5610 = vpack.c.b16 %v5595, %v5595
      %v5611 = vpack.c.b16 %v5596, %v5596
      %v5612 = vpack.c.b16 %v5597, %v5597
      %v5613 = vpack.c.b16 %v5598, %v5598
      %v5614 = vpack.c.b16 %v5599, %v5599
      %v5615 = vpack.c.b16 %v5600, %v5600
      %v5616 = vpack.c.b16 %v5601, %v5601
      %v5617 = vpack.c.b16 %v5602, %v5602
      %v5618 = vpack.c.b16 %v5603, %v5603
      %v5619 = vpack.c.b16 %v5604, %v5604
      %5635 = vst [vmem:[%s446] sm:$0xf] %v5605
      %5636 = vst [vmem:[%s446 + $0x4] sm:$0xf] %v5606
      %5637 = vst [vmem:[%s446 + $0x8] sm:$0xf] %v5607
      %5638 = vst [vmem:[%s446 + $0xc] sm:$0xf] %v5608
      %5639 = vst [vmem:[%s446 + $0x10] sm:$0xf] %v5609
      %5640 = vst [vmem:[%s446 + $0x14] sm:$0xf] %v5610
      %5641 = vst [vmem:[%s446 + $0x18] sm:$0xf] %v5611
      %5642 = vst [vmem:[%s446 + $0x1c] sm:$0xf] %v5612
      %5643 = vst [vmem:[%s446 + $0x20] sm:$0xf] %v5613
      %5644 = vst [vmem:[%s446 + $0x24] sm:$0xf] %v5614
      %5645 = vst [vmem:[%s446 + $0x28] sm:$0xf] %v5615
      %5646 = vst [vmem:[%s446 + $0x2c] sm:$0xf] %v5616
      %5647 = vst [vmem:[%s446 + $0x30] sm:$0xf] %v5617
      %5648 = vst [vmem:[%s446 + $0x34] sm:$0xf] %v5618
      %5649 = vst [vmem:[%s446 + $0x38] sm:$0xf] %v5619
      %v5650 = vld [vmem:[%s5] sm:$0xff]
      %v5651 = vld [vmem:[%s5 + $0x8] sm:$0xff]
      %v5652 = vld [vmem:[%s5 + $0x10] sm:$0xff]
      %v5653 = vld [vmem:[%s5 + $0x18] sm:$0xff]
      %v5654 = vld [vmem:[%s5 + $0x20] sm:$0xff]
      %v5655 = vld [vmem:[%s5 + $0x28] sm:$0xff]
      %v5656 = vld [vmem:[%s5 + $0x30] sm:$0xff]
      %v5657 = vld [vmem:[%s5 + $0x38] sm:$0xff]
      %v5658 = vld [vmem:[%s5 + $0x40] sm:$0xff]
      %v5659 = vld [vmem:[%s5 + $0x48] sm:$0xff]
      %v5660 = vld [vmem:[%s5 + $0x50] sm:$0xff]
      %v5661 = vld [vmem:[%s5 + $0x58] sm:$0xff]
      %v5662 = vld [vmem:[%s5 + $0x60] sm:$0xff]
      %v5663 = vld [vmem:[%s5 + $0x68] sm:$0xff]
      %v5664 = vld [vmem:[%s5 + $0x70] sm:$0xff]
      %5666 = vset.pattern.permute.xlu0 0
      %5667 = vperm.xlu0 %5666, %v5650
      %v5668 = vpop.permute.xlu0 %5667
      %5671 = vset.pattern.permute.xlu0 0
      %5672 = vperm.xlu0 %5671, %v5651
      %v5673 = vpop.permute.xlu0 %5672
      %5676 = vset.pattern.permute.xlu0 0
      %5677 = vperm.xlu0 %5676, %v5652
      %v5678 = vpop.permute.xlu0 %5677
      %5681 = vset.pattern.permute.xlu0 0
      %5682 = vperm.xlu0 %5681, %v5653
      %v5683 = vpop.permute.xlu0 %5682
      %5686 = vset.pattern.permute.xlu0 0
      %5687 = vperm.xlu0 %5686, %v5654
      %v5688 = vpop.permute.xlu0 %5687
      %5691 = vset.pattern.permute.xlu0 0
      %5692 = vperm.xlu0 %5691, %v5655
      %v5693 = vpop.permute.xlu0 %5692
      %5696 = vset.pattern.permute.xlu0 0
      %5697 = vperm.xlu0 %5696, %v5656
      %v5698 = vpop.permute.xlu0 %5697
      %5701 = vset.pattern.permute.xlu0 0
      %5702 = vperm.xlu0 %5701, %v5657
      %v5703 = vpop.permute.xlu0 %5702
      %5706 = vset.pattern.permute.xlu0 0
      %5707 = vperm.xlu0 %5706, %v5658
      %v5708 = vpop.permute.xlu0 %5707
      %5711 = vset.pattern.permute.xlu0 0
      %5712 = vperm.xlu0 %5711, %v5659
      %v5713 = vpop.permute.xlu0 %5712
      %5716 = vset.pattern.permute.xlu0 0
      %5717 = vperm.xlu0 %5716, %v5660
      %v5718 = vpop.permute.xlu0 %5717
      %5721 = vset.pattern.permute.xlu0 0
      %5722 = vperm.xlu0 %5721, %v5661
      %v5723 = vpop.permute.xlu0 %5722
      %5726 = vset.pattern.permute.xlu0 0
      %5727 = vperm.xlu0 %5726, %v5662
      %v5728 = vpop.permute.xlu0 %5727
      %5731 = vset.pattern.permute.xlu0 0
      %5732 = vperm.xlu0 %5731, %v5663
      %v5733 = vpop.permute.xlu0 %5732
      %5736 = vset.pattern.permute.xlu0 0
      %5737 = vperm.xlu0 %5736, %v5664
      %v5738 = vpop.permute.xlu0 %5737
      %v5740 = vmul.f32 %v5559, %v5668
      %v5741 = vmul.f32 %v5560, %v5673
      %v5742 = vmul.f32 %v5561, %v5678
      %v5743 = vmul.f32 %v5562, %v5683
      %v5744 = vmul.f32 %v5563, %v5688
      %v5745 = vmul.f32 %v5564, %v5693
      %v5746 = vmul.f32 %v5565, %v5698
      %v5747 = vmul.f32 %v5566, %v5703
      %v5748 = vmul.f32 %v5567, %v5708
      %v5749 = vmul.f32 %v5568, %v5713
      %v5750 = vmul.f32 %v5569, %v5718
      %v5751 = vmul.f32 %v5570, %v5723
      %v5752 = vmul.f32 %v5571, %v5728
      %v5753 = vmul.f32 %v5572, %v5733
      %v5754 = vmul.f32 %v5573, %v5738
      %v5755 = vadd.f32 %v5740, %v5741
      %v5756 = vadd.f32 %v5755, %v5742
      %v5757 = vadd.f32 %v5756, %v5743
      %v5758 = vadd.f32 %v5757, %v5744
      %v5759 = vadd.f32 %v5758, %v5745
      %v5760 = vadd.f32 %v5759, %v5746
      %v5761 = vadd.f32 %v5760, %v5747
      %v5762 = vadd.f32 %v5761, %v5748
      %v5763 = vadd.f32 %v5762, %v5749
      %v5764 = vadd.f32 %v5763, %v5750
      %v5765 = vadd.f32 %v5764, %v5751
      %v5766 = vadd.f32 %v5765, %v5752
      %v5767 = vadd.f32 %v5766, %v5753
      %v5768 = vadd.f32 %v5767, %v5754
      %v5769 = vrot.slane %v5768, 4
      %v5770 = vadd.f32 %v5768, %v5769
      %v5771 = vrot.slane %v5770, 2
      %v5772 = vadd.f32 %v5770, %v5771
      %v5773 = vrot.slane %v5772, 1
      %v5774 = vadd.f32 %v5772, %v5773
      %5775 = vst [vmem:[%s453] sm:$0x1] %v5774
      %v5776 = vmul.f32 %v5740, %v5740
      %v5777 = vmul.f32 %v5741, %v5741
      %v5778 = vmul.f32 %v5742, %v5742
      %v5779 = vmul.f32 %v5743, %v5743
      %v5780 = vmul.f32 %v5744, %v5744
      %v5781 = vmul.f32 %v5745, %v5745
      %v5782 = vmul.f32 %v5746, %v5746
      %v5783 = vmul.f32 %v5747, %v5747
      %v5784 = vmul.f32 %v5748, %v5748
      %v5785 = vmul.f32 %v5749, %v5749
      %v5786 = vmul.f32 %v5750, %v5750
      %v5787 = vmul.f32 %v5751, %v5751
      %v5788 = vmul.f32 %v5752, %v5752
      %v5789 = vmul.f32 %v5753, %v5753
      %v5790 = vmul.f32 %v5754, %v5754
      %v5791 = vadd.f32 %v5776, %v5777
      %v5792 = vadd.f32 %v5791, %v5778
      %v5793 = vadd.f32 %v5792, %v5779
      %v5794 = vadd.f32 %v5793, %v5780
      %v5795 = vadd.f32 %v5794, %v5781
      %v5796 = vadd.f32 %v5795, %v5782
      %v5797 = vadd.f32 %v5796, %v5783
      %v5798 = vadd.f32 %v5797, %v5784
      %v5799 = vadd.f32 %v5798, %v5785
      %v5800 = vadd.f32 %v5799, %v5786
      %v5801 = vadd.f32 %v5800, %v5787
      %v5802 = vadd.f32 %v5801, %v5788
      %v5803 = vadd.f32 %v5802, %v5789
      %v5804 = vadd.f32 %v5803, %v5790
      %v5805 = vrot.slane %v5804, 4
      %v5806 = vadd.f32 %v5804, %v5805
      %v5807 = vrot.slane %v5806, 2
      %v5808 = vadd.f32 %v5806, %v5807
      %v5809 = vrot.slane %v5808, 1
      %v5810 = vadd.f32 %v5808, %v5809
      %5811 = vst [vmem:[%s460] sm:$0x1] %v5810
      %p5812 = scmp.lt.s32.totalorder %s24, 1
      %s5813 = scalar_select %p5812, %s24, 1
      %p5814 = scmp.lt.s32.totalorder %s25, 9
      %s5815 = scalar_select %p5814, %s25, 9
      %s5816 = smul.addr %s5815, 15
      %s5817 = smul.addr %s5813, 150
      %s5818 = sadd.s32 %s5816, %s5817
      %s5819 = smul.addr %s5818, 4
      %s5820 = scalar_lea.vmem %s6, %s5819
      %p5821 = scmp.lt.s32.totalorder %s24, 1
      %s5822 = scalar_select %p5821, %s24, 1
      %p5823 = scmp.lt.s32.totalorder %s25, 9
      %s5824 = scalar_select %p5823, %s25, 9
      %s5825 = smul.addr %s5822, 10
      %s5826 = sadd.s32 %s5824, %s5825
      %s5827 = scalar_lea.vmem %s7, %s5826
      %p5828 = scmp.lt.s32.totalorder %s24, 1
      %s5829 = scalar_select %p5828, %s24, 1
      %p5830 = scmp.lt.s32.totalorder %s25, 9
      %s5831 = scalar_select %p5830, %s25, 9
      %s5832 = smul.addr %s5829, 10
      %s5833 = sadd.s32 %s5831, %s5832
      %s5834 = scalar_lea.vmem %s8, %s5833
      // Predicated region
      $region45: #{stack_conv_norm_nonlin.2} parent=43 // pred_check
        %p5835 = pneg %p203
      $region46: #{stack_conv_norm_nonlin.2} parent=43 // pred_check_branch
        %5837 = sbr.rel (%p5835) target = $region48
      $region47: #{stack_conv_norm_nonlin.2} parent=43 // pred_region
        _
      $region48: #{stack_conv_norm_nonlin.2} parent=43 // pred_fallthru
        _
      // Predicated region
      $region49: #{stack_conv_norm_nonlin.2} parent=43 // pred_check
        %p5838 = pneg %p231
      $region50: #{stack_conv_norm_nonlin.2} parent=43 // pred_check_branch
        %5840 = sbr.rel (%p5838) target = $region52
      $region51: #{stack_conv_norm_nonlin.2} parent=43 // pred_region
        _
      $region52: #{stack_conv_norm_nonlin.2} parent=43 // pred_fallthru
        _
      // Predicated region
      $region53: #{stack_conv_norm_nonlin.2} parent=43 // pred_check
        %p5841 = pneg %p259
      $region54: #{stack_conv_norm_nonlin.2} parent=43 // pred_check_branch
        %5843 = sbr.rel (%p5841) target = $region56
      $region55: #{stack_conv_norm_nonlin.2} parent=43 // pred_region
        _
      $region56: #{stack_conv_norm_nonlin.2} parent=43 // pred_fallthru
        _
    $region44: #{stack_conv_norm_nonlin.2} parent=5 // pred_fallthru
      _
    %p5844 = scmp.le.s32.totalorder 2, %s15
    // Predicated region
    $region57: #{stack_conv_norm_nonlin.2} parent=5 // pred_check
      %p5845 = pneg %p5844
    $region58: #{stack_conv_norm_nonlin.2} parent=5 // pred_check_branch
      %5847 = sbr.rel (%p5845) target = $region60
    $region59: #{stack_conv_norm_nonlin.2} parent=5 // pred_region
      %s5848 = ssub.s32 %s15, 2
      // Predicated region
      $region61: #{stack_conv_norm_nonlin.2} parent=59 // pred_check
        %p5849 = pneg %p209
      $region62: #{stack_conv_norm_nonlin.2} parent=59 // pred_check_branch
        %5851 = sbr.rel (%p5849) target = $region64
      $region63: #{stack_conv_norm_nonlin.2} parent=59 // pred_region
        %p5852 = scmp.lt.s32.totalorder %s26, 1
        %s5853 = scalar_select %p5852, %s26, 1
        %p5854 = scmp.lt.s32.totalorder %s27, 9
        %s5855 = scalar_select %p5854, %s27, 9
        %s5856 = smul.addr %s5855, 15
        %s5857 = smul.addr %s5853, 150
        %s5858 = sadd.s32 %s5856, %s5857
        %s5859 = smul.addr %s5858, 4
        %s5860 = scalar_lea.vmem %s6, %s5859
      $region64: #{stack_conv_norm_nonlin.2} parent=59 // pred_fallthru
        _
      // Predicated region
      $region65: #{stack_conv_norm_nonlin.2} parent=59 // pred_check
        %p5861 = pneg %p237
      $region66: #{stack_conv_norm_nonlin.2} parent=59 // pred_check_branch
        %5863 = sbr.rel (%p5861) target = $region68
      $region67: #{stack_conv_norm_nonlin.2} parent=59 // pred_region
        %p5864 = scmp.lt.s32.totalorder %s26, 1
        %s5865 = scalar_select %p5864, %s26, 1
        %p5866 = scmp.lt.s32.totalorder %s27, 9
        %s5867 = scalar_select %p5866, %s27, 9
        %s5868 = smul.addr %s5865, 10
        %s5869 = sadd.s32 %s5867, %s5868
        %s5870 = scalar_lea.vmem %s7, %s5869
      $region68: #{stack_conv_norm_nonlin.2} parent=59 // pred_fallthru
        _
      // Predicated region
      $region69: #{stack_conv_norm_nonlin.2} parent=59 // pred_check
        %p5871 = pneg %p265
      $region70: #{stack_conv_norm_nonlin.2} parent=59 // pred_check_branch
        %5873 = sbr.rel (%p5871) target = $region72
      $region71: #{stack_conv_norm_nonlin.2} parent=59 // pred_region
        %p5874 = scmp.lt.s32.totalorder %s26, 1
        %s5875 = scalar_select %p5874, %s26, 1
        %p5876 = scmp.lt.s32.totalorder %s27, 9
        %s5877 = scalar_select %p5876, %s27, 9
        %s5878 = smul.addr %s5875, 10
        %s5879 = sadd.s32 %s5877, %s5878
        %s5880 = scalar_lea.vmem %s8, %s5879
      $region72: #{stack_conv_norm_nonlin.2} parent=59 // pred_fallthru
        _
    $region60: #{stack_conv_norm_nonlin.2} parent=5 // pred_fallthru
      _
  $region6: #{stack_conv_norm_nonlin.2} parent=0 // loop_footer
    %s19 = sadd.s32 1, %s15
  $region7: #{stack_conv_norm_nonlin.2} parent=0 // loop_footer_branch
    %14 = sbr.rel target = $region3
  $region8: #{stack_conv_norm_nonlin.2} parent=0 // loop_exit
    _

// kernel: stack_conv_norm_nonlin.3
$region0: #{stack_conv_norm_nonlin.3}
  #allocation0 [shape = 'u32[]', space=smem, size = 0x4, offset = 0x4, fixed_abs, tag = 'smem constant byte address 0x4 - core index']
  #allocation1 [shape = 'u32[144,128]{1,0:T(1,128)}', space=vmem, size = 0x12000, scoped, tag = 'internal scratch']
  %s0 = inlined_call_operand.vmem [shape: bf16[2,12,152,8], index: 0, kind: input, shape index: {}, may-alias: {0,1,2}]
  %s1 = inlined_call_operand.vmem [shape: bf16[2,12,152,8], index: 1, kind: input, shape index: {}, may-alias: {0,1,2}]
  %s2 = inlined_call_operand.vmem [shape: bf16[2,12,152,8], index: 2, kind: input, shape index: {}, may-alias: {0,1,2}]
  %s3 = inlined_call_operand.vmem [shape: bf16[27,8,128], index: 3, kind: input, shape index: {}]
  %s4 = inlined_call_operand.vmem [shape: f32[1,128], index: 4, kind: input, shape index: {}]
  %s5 = inlined_call_operand.vmem [shape: f32[120,1], index: 5, kind: input, shape index: {}]
  %s6 = inlined_call_operand.vmem [shape: bf16[2,10,120,128], index: 6, kind: output, shape index: {0}]
  %s7 = inlined_call_operand.vmem [shape: f32[2,10,1,128], index: 7, kind: output, shape index: {1}]
  %s8 = inlined_call_operand.vmem [shape: f32[2,10,1,128], index: 8, kind: output, shape index: {2}]
  %9 = xla_tuple %s6, %s7, %s8
  %s10 = sld [smem:[#allocation0]]
  $region73: #{stack_conv_norm_nonlin.3} parent=0
    _
  %s12 = ssub.s32 1, %s10
  %s13 = scalar_select 0, %s12, %s10
  loop: start=0, step=1, limit=22
  $region2: #{stack_conv_norm_nonlin.3} parent=0 // loop_pre_header
    _
  $region3: #{stack_conv_norm_nonlin.3} parent=0 // loop_header
    %s15 = sphi 0, %s19
    %p16 = scmp.ge.s32.totalorder %s15, 22
    %s22 = sphi 0, %s34
    %s23 = sphi 0, %s30
    %s24 = sphi 0, %s22
    %s25 = sphi 0, %s23
    %s26 = sphi 0, %s24
    %s27 = sphi 0, %s25
    %s39 = sphi 0, %s41
    %s42 = sphi 0, %s39
    %s43 = sphi 0, %s42
    %s59 = sphi 0, %s43
    %s69 = sphi 0, %s71
    %s72 = sphi 0, %s69
    %s73 = sphi 0, %s72
    %s89 = sphi 0, %s73
    %s99 = sphi 0, %s101
    %s102 = sphi 0, %s99
    %s103 = sphi 0, %s102
    %s119 = sphi 0, %s103
    %s123 = sphi 0, %s123
    %s125 = sphi 0, %s123
    %s126 = sphi 0, %s125
    %s140 = sphi 0, %s126
    %s144 = sphi 0, %s144
    %s146 = sphi 0, %s144
    %s147 = sphi 0, %s146
    %s161 = sphi 0, %s147
    %s165 = sphi 0, %s165
    %s167 = sphi 0, %s165
    %s168 = sphi 0, %s167
    %s182 = sphi 0, %s168
    %s190 = sphi 0, %s192
    %s193 = sphi 0, %s190
    %s194 = sphi 0, %s193
    %s210 = sphi 0, %s194
    %s218 = sphi 0, %s220
    %s221 = sphi 0, %s218
    %s222 = sphi 0, %s221
    %s238 = sphi 0, %s222
    %s246 = sphi 0, %s248
    %s249 = sphi 0, %s246
    %s250 = sphi 0, %s249
    %s266 = sphi 0, %s250
  $region4: #{stack_conv_norm_nonlin.3} parent=0 // loop_header_branch
    %18 = sbr.rel (%p16) target = $region8
  $region5: #{stack_conv_norm_nonlin.3} parent=0 // loop_body
    %s20 = ssub.s32 %s15, 1
    %s21 = ssub.s32 %s15, 2
    %s28 = sadd.s32 1, %s23
    %p29 = scmp.ge.s32.totalorder %s28, 10
    %s30 = scalar_select %p29, 0, %s28
    %s31 = sadd.s32 1, %s22
    %s32 = scalar_select %p29, %s31, %s22
    %p33 = scmp.ge.s32.totalorder %s32, 2
    %s34 = scalar_select %p33, 0, %s32
    %s35 = ssub.s32 %s22, %s34
    %s36 = ssub.s32 %s23, %s30
    %s37 = sor.u32 %s35, %s36
    %p38 = scmp.eq.s32.totalorder %s37, 0
    %s40 = sadd.s32 %s39, 1
    %s41 = scalar_select %p38, %s39, %s40
    %p44 = pneg %p38
    %p45 = scmp.eq.s32.totalorder %s15, 19
    %p46 = por %p44, %p45
    %p47 = scmp.ne.s32.totalorder %s39, %s42
    %p48 = scmp.eq.s32.totalorder %s15, 0
    %p49 = por %p47, %p48
    %p50 = scmp.ne.s32.totalorder %s39, %s42
    %p51 = scmp.eq.s32.totalorder %s20, 19
    %p52 = por %p50, %p51
    %p53 = scmp.ne.s32.totalorder %s42, %s43
    %p54 = scmp.eq.s32.totalorder %s20, 0
    %p55 = por %p53, %p54
    %p56 = scmp.ne.s32.totalorder %s42, %s43
    %p57 = scmp.eq.s32.totalorder %s21, 19
    %p58 = por %p56, %p57
    %p60 = scmp.ne.s32.totalorder %s43, %s59
    %p61 = scmp.eq.s32.totalorder %s21, 0
    %p62 = por %p60, %p61
    %s63 = sadd.s32 %s23, 1
    %s64 = sadd.s32 %s30, 1
    %s65 = ssub.s32 %s22, %s34
    %s66 = ssub.s32 %s63, %s64
    %s67 = sor.u32 %s65, %s66
    %p68 = scmp.eq.s32.totalorder %s67, 0
    %s70 = sadd.s32 %s69, 1
    %s71 = scalar_select %p68, %s69, %s70
    %p74 = pneg %p68
    %p75 = scmp.eq.s32.totalorder %s15, 19
    %p76 = por %p74, %p75
    %p77 = scmp.ne.s32.totalorder %s69, %s72
    %p78 = scmp.eq.s32.totalorder %s15, 0
    %p79 = por %p77, %p78
    %p80 = scmp.ne.s32.totalorder %s69, %s72
    %p81 = scmp.eq.s32.totalorder %s20, 19
    %p82 = por %p80, %p81
    %p83 = scmp.ne.s32.totalorder %s72, %s73
    %p84 = scmp.eq.s32.totalorder %s20, 0
    %p85 = por %p83, %p84
    %p86 = scmp.ne.s32.totalorder %s72, %s73
    %p87 = scmp.eq.s32.totalorder %s21, 19
    %p88 = por %p86, %p87
    %p90 = scmp.ne.s32.totalorder %s73, %s89
    %p91 = scmp.eq.s32.totalorder %s21, 0
    %p92 = por %p90, %p91
    %s93 = sadd.s32 %s23, 2
    %s94 = sadd.s32 %s30, 2
    %s95 = ssub.s32 %s22, %s34
    %s96 = ssub.s32 %s93, %s94
    %s97 = sor.u32 %s95, %s96
    %p98 = scmp.eq.s32.totalorder %s97, 0
    %s100 = sadd.s32 %s99, 1
    %s101 = scalar_select %p98, %s99, %s100
    %p104 = pneg %p98
    %p105 = scmp.eq.s32.totalorder %s15, 19
    %p106 = por %p104, %p105
    %p107 = scmp.ne.s32.totalorder %s99, %s102
    %p108 = scmp.eq.s32.totalorder %s15, 0
    %p109 = por %p107, %p108
    %p110 = scmp.ne.s32.totalorder %s99, %s102
    %p111 = scmp.eq.s32.totalorder %s20, 19
    %p112 = por %p110, %p111
    %p113 = scmp.ne.s32.totalorder %s102, %s103
    %p114 = scmp.eq.s32.totalorder %s20, 0
    %p115 = por %p113, %p114
    %p116 = scmp.ne.s32.totalorder %s102, %s103
    %p117 = scmp.eq.s32.totalorder %s21, 19
    %p118 = por %p116, %p117
    %p120 = scmp.ne.s32.totalorder %s103, %s119
    %p121 = scmp.eq.s32.totalorder %s21, 0
    %p122 = por %p120, %p121
    %s124 = sadd.s32 %s123, 1
    %p127 = scmp.eq.s32.totalorder %s15, 19
    %p128 = scmp.ne.s32.totalorder %s123, %s125
    %p129 = scmp.eq.s32.totalorder %s15, 0
    %p130 = por %p128, %p129
    %p131 = scmp.ne.s32.totalorder %s123, %s125
    %p132 = scmp.eq.s32.totalorder %s20, 19
    %p133 = por %p131, %p132
    %p134 = scmp.ne.s32.totalorder %s125, %s126
    %p135 = scmp.eq.s32.totalorder %s20, 0
    %p136 = por %p134, %p135
    %p137 = scmp.ne.s32.totalorder %s125, %s126
    %p138 = scmp.eq.s32.totalorder %s21, 19
    %p139 = por %p137, %p138
    %p141 = scmp.ne.s32.totalorder %s126, %s140
    %p142 = scmp.eq.s32.totalorder %s21, 0
    %p143 = por %p141, %p142
    %s145 = sadd.s32 %s144, 1
    %p148 = scmp.eq.s32.totalorder %s15, 19
    %p149 = scmp.ne.s32.totalorder %s144, %s146
    %p150 = scmp.eq.s32.totalorder %s15, 0
    %p151 = por %p149, %p150
    %p152 = scmp.ne.s32.totalorder %s144, %s146
    %p153 = scmp.eq.s32.totalorder %s20, 19
    %p154 = por %p152, %p153
    %p155 = scmp.ne.s32.totalorder %s146, %s147
    %p156 = scmp.eq.s32.totalorder %s20, 0
    %p157 = por %p155, %p156
    %p158 = scmp.ne.s32.totalorder %s146, %s147
    %p159 = scmp.eq.s32.totalorder %s21, 19
    %p160 = por %p158, %p159
    %p162 = scmp.ne.s32.totalorder %s147, %s161
    %p163 = scmp.eq.s32.totalorder %s21, 0
    %p164 = por %p162, %p163
    %s166 = sadd.s32 %s165, 1
    %p169 = scmp.eq.s32.totalorder %s15, 19
    %p170 = scmp.ne.s32.totalorder %s165, %s167
    %p171 = scmp.eq.s32.totalorder %s15, 0
    %p172 = por %p170, %p171
    %p173 = scmp.ne.s32.totalorder %s165, %s167
    %p174 = scmp.eq.s32.totalorder %s20, 19
    %p175 = por %p173, %p174
    %p176 = scmp.ne.s32.totalorder %s167, %s168
    %p177 = scmp.eq.s32.totalorder %s20, 0
    %p178 = por %p176, %p177
    %p179 = scmp.ne.s32.totalorder %s167, %s168
    %p180 = scmp.eq.s32.totalorder %s21, 19
    %p181 = por %p179, %p180
    %p183 = scmp.ne.s32.totalorder %s168, %s182
    %p184 = scmp.eq.s32.totalorder %s21, 0
    %p185 = por %p183, %p184
    %s186 = ssub.s32 %s22, %s34
    %s187 = ssub.s32 %s23, %s30
    %s188 = sor.u32 %s186, %s187
    %p189 = scmp.eq.s32.totalorder %s188, 0
    %s191 = sadd.s32 %s190, 1
    %s192 = scalar_select %p189, %s190, %s191
    %p195 = pneg %p189
    %p196 = scmp.eq.s32.totalorder %s15, 19
    %p197 = por %p195, %p196
    %p198 = scmp.ne.s32.totalorder %s190, %s193
    %p199 = scmp.eq.s32.totalorder %s15, 0
    %p200 = por %p198, %p199
    %p201 = scmp.ne.s32.totalorder %s190, %s193
    %p202 = scmp.eq.s32.totalorder %s20, 19
    %p203 = por %p201, %p202
    %p204 = scmp.ne.s32.totalorder %s193, %s194
    %p205 = scmp.eq.s32.totalorder %s20, 0
    %p206 = por %p204, %p205
    %p207 = scmp.ne.s32.totalorder %s193, %s194
    %p208 = scmp.eq.s32.totalorder %s21, 19
    %p209 = por %p207, %p208
    %p211 = scmp.ne.s32.totalorder %s194, %s210
    %p212 = scmp.eq.s32.totalorder %s21, 0
    %p213 = por %p211, %p212
    %s214 = ssub.s32 %s22, %s34
    %s215 = ssub.s32 %s23, %s30
    %s216 = sor.u32 %s214, %s215
    %p217 = scmp.eq.s32.totalorder %s216, 0
    %s219 = sadd.s32 %s218, 1
    %s220 = scalar_select %p217, %s218, %s219
    %p223 = pneg %p217
    %p224 = scmp.eq.s32.totalorder %s15, 19
    %p225 = por %p223, %p224
    %p226 = scmp.ne.s32.totalorder %s218, %s221
    %p227 = scmp.eq.s32.totalorder %s15, 0
    %p228 = por %p226, %p227
    %p229 = scmp.ne.s32.totalorder %s218, %s221
    %p230 = scmp.eq.s32.totalorder %s20, 19
    %p231 = por %p229, %p230
    %p232 = scmp.ne.s32.totalorder %s221, %s222
    %p233 = scmp.eq.s32.totalorder %s20, 0
    %p234 = por %p232, %p233
    %p235 = scmp.ne.s32.totalorder %s221, %s222
    %p236 = scmp.eq.s32.totalorder %s21, 19
    %p237 = por %p235, %p236
    %p239 = scmp.ne.s32.totalorder %s222, %s238
    %p240 = scmp.eq.s32.totalorder %s21, 0
    %p241 = por %p239, %p240
    %s242 = ssub.s32 %s22, %s34
    %s243 = ssub.s32 %s23, %s30
    %s244 = sor.u32 %s242, %s243
    %p245 = scmp.eq.s32.totalorder %s244, 0
    %s247 = sadd.s32 %s246, 1
    %s248 = scalar_select %p245, %s246, %s247
    %p251 = pneg %p245
    %p252 = scmp.eq.s32.totalorder %s15, 19
    %p253 = por %p251, %p252
    %p254 = scmp.ne.s32.totalorder %s246, %s249
    %p255 = scmp.eq.s32.totalorder %s15, 0
    %p256 = por %p254, %p255
    %p257 = scmp.ne.s32.totalorder %s246, %s249
    %p258 = scmp.eq.s32.totalorder %s20, 19
    %p259 = por %p257, %p258
    %p260 = scmp.ne.s32.totalorder %s249, %s250
    %p261 = scmp.eq.s32.totalorder %s20, 0
    %p262 = por %p260, %p261
    %p263 = scmp.ne.s32.totalorder %s249, %s250
    %p264 = scmp.eq.s32.totalorder %s21, 19
    %p265 = por %p263, %p264
    %p267 = scmp.ne.s32.totalorder %s250, %s266
    %p268 = scmp.eq.s32.totalorder %s21, 0
    %p269 = por %p267, %p268
    %p270 = scmp.le.s32.totalorder 1, %s15
    %p271 = scmp.lt.s32.totalorder %s15, 21
    %p272 = pnand %p270, %p271
    %p273 = pneg %p272
    // Predicated region
    $region9: #{stack_conv_norm_nonlin.3} parent=5 // pred_check
      _
    $region10: #{stack_conv_norm_nonlin.3} parent=5 // pred_check_branch
      %275 = sbr.rel (%p272) target = $region12
    $region11: #{stack_conv_norm_nonlin.3} parent=5 // pred_region
      %s276 = ssub.s32 %s15, 1
      // Predicated region
      $region13: #{stack_conv_norm_nonlin.3} parent=11 // pred_check
        %p277 = pneg %p136
      $region14: #{stack_conv_norm_nonlin.3} parent=11 // pred_check_branch
        %279 = sbr.rel (%p277) target = $region16
      $region15: #{stack_conv_norm_nonlin.3} parent=11 // pred_region
        _
      $region16: #{stack_conv_norm_nonlin.3} parent=11 // pred_fallthru
        _
      // Predicated region
      $region17: #{stack_conv_norm_nonlin.3} parent=11 // pred_check
        %p280 = pneg %p157
      $region18: #{stack_conv_norm_nonlin.3} parent=11 // pred_check_branch
        %282 = sbr.rel (%p280) target = $region20
      $region19: #{stack_conv_norm_nonlin.3} parent=11 // pred_region
        _
      $region20: #{stack_conv_norm_nonlin.3} parent=11 // pred_fallthru
        _
      // Predicated region
      $region21: #{stack_conv_norm_nonlin.3} parent=11 // pred_check
        %p283 = pneg %p178
      $region22: #{stack_conv_norm_nonlin.3} parent=11 // pred_check_branch
        %285 = sbr.rel (%p283) target = $region24
      $region23: #{stack_conv_norm_nonlin.3} parent=11 // pred_region
        _
      $region24: #{stack_conv_norm_nonlin.3} parent=11 // pred_fallthru
        _
    $region12: #{stack_conv_norm_nonlin.3} parent=5 // pred_fallthru
      _
    %p286 = scmp.lt.s32.totalorder %s15, 20
    // Predicated region
    $region25: #{stack_conv_norm_nonlin.3} parent=5 // pred_check
      %p287 = pneg %p286
    $region26: #{stack_conv_norm_nonlin.3} parent=5 // pred_check_branch
      %289 = sbr.rel (%p287) target = $region28
    $region27: #{stack_conv_norm_nonlin.3} parent=5 // pred_region
      // Predicated region
      $region29: #{stack_conv_norm_nonlin.3} parent=27 // pred_check
        %p290 = pneg %p49
      $region30: #{stack_conv_norm_nonlin.3} parent=27 // pred_check_branch
        %292 = sbr.rel (%p290) target = $region32
      $region31: #{stack_conv_norm_nonlin.3} parent=27 // pred_region
        %p293 = scmp.lt.s32.totalorder %s22, 1
        %s294 = scalar_select %p293, %s22, 1
        %p295 = scmp.lt.s32.totalorder %s23, 11
        %s296 = scalar_select %p295, %s23, 11
        %s297 = smul.addr %s296, 19
        %s298 = smul.addr %s294, 228
        %s299 = sadd.s32 %s297, %s298
        %s300 = smul.addr %s299, 4
        %s301 = scalar_lea.vmem %s0, %s300
      $region32: #{stack_conv_norm_nonlin.3} parent=27 // pred_fallthru
        _
      // Predicated region
      $region33: #{stack_conv_norm_nonlin.3} parent=27 // pred_check
        %p302 = pneg %p79
      $region34: #{stack_conv_norm_nonlin.3} parent=27 // pred_check_branch
        %304 = sbr.rel (%p302) target = $region36
      $region35: #{stack_conv_norm_nonlin.3} parent=27 // pred_region
        %s305 = sadd.s32 %s23, 1
        %p306 = scmp.lt.s32.totalorder %s22, 1
        %s307 = scalar_select %p306, %s22, 1
        %p308 = scmp.lt.s32.totalorder %s305, 11
        %s309 = scalar_select %p308, %s305, 11
        %s310 = smul.addr %s309, 19
        %s311 = smul.addr %s307, 228
        %s312 = sadd.s32 %s310, %s311
        %s313 = smul.addr %s312, 4
        %s314 = scalar_lea.vmem %s1, %s313
        %s315 = sadd.s32 %s23, 1
      $region36: #{stack_conv_norm_nonlin.3} parent=27 // pred_fallthru
        _
      // Predicated region
      $region37: #{stack_conv_norm_nonlin.3} parent=27 // pred_check
        %p316 = pneg %p109
      $region38: #{stack_conv_norm_nonlin.3} parent=27 // pred_check_branch
        %318 = sbr.rel (%p316) target = $region40
      $region39: #{stack_conv_norm_nonlin.3} parent=27 // pred_region
        %s319 = sadd.s32 %s23, 2
        %p320 = scmp.lt.s32.totalorder %s22, 1
        %s321 = scalar_select %p320, %s22, 1
        %p322 = scmp.lt.s32.totalorder %s319, 11
        %s323 = scalar_select %p322, %s319, 11
        %s324 = smul.addr %s323, 19
        %s325 = smul.addr %s321, 228
        %s326 = sadd.s32 %s324, %s325
        %s327 = smul.addr %s326, 4
        %s328 = scalar_lea.vmem %s2, %s327
        %s329 = sadd.s32 %s23, 2
      $region40: #{stack_conv_norm_nonlin.3} parent=27 // pred_fallthru
        _
    $region28: #{stack_conv_norm_nonlin.3} parent=5 // pred_fallthru
      _
    %p330 = scmp.le.s32.totalorder 1, %s15
    %p331 = scmp.lt.s32.totalorder %s15, 21
    %p332 = pnand %p330, %p331
    %p333 = pneg %p332
    // Predicated region
    $region41: #{stack_conv_norm_nonlin.3} parent=5 // pred_check
      _
    $region42: #{stack_conv_norm_nonlin.3} parent=5 // pred_check_branch
      %335 = sbr.rel (%p332) target = $region44
    $region43: #{stack_conv_norm_nonlin.3} parent=5 // pred_region
      %s336 = ssub.s32 %s15, 1
      %p337 = scmp.lt.s32.totalorder %s24, 1
      %s338 = scalar_select %p337, %s24, 1
      %p339 = scmp.lt.s32.totalorder %s25, 11
      %s340 = scalar_select %p339, %s25, 11
      %s341 = smul.addr %s340, 19
      %s342 = smul.addr %s338, 228
      %s343 = sadd.s32 %s341, %s342
      %s344 = smul.addr %s343, 4
      %s345 = scalar_lea.vmem %s0, %s344
      %p346 = pneg %p55
      %p347 = pneg %p52
      %s348 = sadd.s32 %s25, 1
      %p349 = scmp.lt.s32.totalorder %s24, 1
      %s350 = scalar_select %p349, %s24, 1
      %p351 = scmp.lt.s32.totalorder %s348, 11
      %s352 = scalar_select %p351, %s348, 11
      %s353 = smul.addr %s352, 19
      %s354 = smul.addr %s350, 228
      %s355 = sadd.s32 %s353, %s354
      %s356 = smul.addr %s355, 4
      %s357 = scalar_lea.vmem %s1, %s356
      %p358 = pneg %p85
      %p359 = pneg %p82
      %s360 = sadd.s32 %s25, 2
      %p361 = scmp.lt.s32.totalorder %s24, 1
      %s362 = scalar_select %p361, %s24, 1
      %p363 = scmp.lt.s32.totalorder %s360, 11
      %s364 = scalar_select %p363, %s360, 11
      %s365 = smul.addr %s364, 19
      %s366 = smul.addr %s362, 228
      %s367 = sadd.s32 %s365, %s366
      %s368 = smul.addr %s367, 4
      %s369 = scalar_lea.vmem %s2, %s368
      %p370 = pneg %p115
      %p371 = pneg %p112
      %p372 = pneg %p136
      %p373 = pneg %p133
      %p374 = pneg %p157
      %p375 = pneg %p154
      %p376 = pneg %p178
      %p377 = pneg %p175
      %p378 = pneg %p206
      %p379 = pneg %p203
      %p380 = scmp.lt.s32.totalorder %s24, 1
      %s381 = scalar_select %p380, %s24, 1
      %p382 = scmp.lt.s32.totalorder %s25, 9
      %s383 = scalar_select %p382, %s25, 9
      %s384 = smul.addr %s383, 15
      %s385 = smul.addr %s381, 150
      %s386 = sadd.s32 %s384, %s385
      %s387 = smul.addr %s386, 4
      %s388 = scalar_lea.vmem %s6, %s387
      %p389 = pneg %p234
      %p390 = pneg %p231
      %p391 = scmp.lt.s32.totalorder %s24, 1
      %s392 = scalar_select %p391, %s24, 1
      %p393 = scmp.lt.s32.totalorder %s25, 9
      %s394 = scalar_select %p393, %s25, 9
      %s395 = smul.addr %s392, 10
      %s396 = sadd.s32 %s394, %s395
      %s397 = scalar_lea.vmem %s7, %s396
      %p398 = pneg %p262
      %p399 = pneg %p259
      %p400 = scmp.lt.s32.totalorder %s24, 1
      %s401 = scalar_select %p400, %s24, 1
      %p402 = scmp.lt.s32.totalorder %s25, 9
      %s403 = scalar_select %p402, %s25, 9
      %s404 = smul.addr %s401, 10
      %s405 = sadd.s32 %s403, %s404
      %s406 = scalar_lea.vmem %s8, %s405
      %p407 = scmp.lt.s32.totalorder %s24, 1
      %s408 = scalar_select %p407, %s24, 1
      %p409 = scmp.lt.s32.totalorder %s25, 11
      %s410 = scalar_select %p409, %s25, 11
      %s411 = smul.addr %s410, 19
      %s412 = smul.addr %s408, 228
      %s413 = sadd.s32 %s411, %s412
      %s414 = smul.addr %s413, 4
      %s415 = scalar_lea.vmem %s0, %s414
      %s416 = sadd.s32 %s25, 1
      %p417 = scmp.lt.s32.totalorder %s24, 1
      %s418 = scalar_select %p417, %s24, 1
      %p419 = scmp.lt.s32.totalorder %s416, 11
      %s420 = scalar_select %p419, %s416, 11
      %s421 = smul.addr %s420, 19
      %s422 = smul.addr %s418, 228
      %s423 = sadd.s32 %s421, %s422
      %s424 = smul.addr %s423, 4
      %s425 = scalar_lea.vmem %s1, %s424
      %s426 = sadd.s32 %s25, 1
      %s427 = sadd.s32 %s25, 2
      %p428 = scmp.lt.s32.totalorder %s24, 1
      %s429 = scalar_select %p428, %s24, 1
      %p430 = scmp.lt.s32.totalorder %s427, 11
      %s431 = scalar_select %p430, %s427, 11
      %s432 = smul.addr %s431, 19
      %s433 = smul.addr %s429, 228
      %s434 = sadd.s32 %s432, %s433
      %s435 = smul.addr %s434, 4
      %s436 = scalar_lea.vmem %s2, %s435
      %s437 = sadd.s32 %s25, 2
      %p438 = scmp.lt.s32.totalorder %s24, 1
      %s439 = scalar_select %p438, %s24, 1
      %p440 = scmp.lt.s32.totalorder %s25, 9
      %s441 = scalar_select %p440, %s25, 9
      %s442 = smul.addr %s441, 15
      %s443 = smul.addr %s439, 150
      %s444 = sadd.s32 %s442, %s443
      %s445 = smul.addr %s444, 4
      %s446 = scalar_lea.vmem %s6, %s445
      %p447 = scmp.lt.s32.totalorder %s24, 1
      %s448 = scalar_select %p447, %s24, 1
      %p449 = scmp.lt.s32.totalorder %s25, 9
      %s450 = scalar_select %p449, %s25, 9
      %s451 = smul.addr %s448, 10
      %s452 = sadd.s32 %s450, %s451
      %s453 = scalar_lea.vmem %s7, %s452
      %p454 = scmp.lt.s32.totalorder %s24, 1
      %s455 = scalar_select %p454, %s24, 1
      %p456 = scmp.lt.s32.totalorder %s25, 9
      %s457 = scalar_select %p456, %s25, 9
      %s458 = smul.addr %s455, 10
      %s459 = sadd.s32 %s457, %s458
      %s460 = scalar_lea.vmem %s8, %s459
      %v462 = vld [vmem:[%s415] sm:$0xf]
      %v463 = vld [vmem:[%s415 + $0x4] sm:$0xf]
      %v464 = vld [vmem:[%s415 + $0x8] sm:$0xf]
      %v465 = vld [vmem:[%s415 + $0xc] sm:$0xf]
      %v466 = vld [vmem:[%s415 + $0x10] sm:$0xf]
      %v467 = vld [vmem:[%s415 + $0x14] sm:$0xf]
      %v468 = vld [vmem:[%s415 + $0x18] sm:$0xf]
      %v469 = vld [vmem:[%s415 + $0x1c] sm:$0xf]
      %v470 = vld [vmem:[%s415 + $0x20] sm:$0xf]
      %v471 = vld [vmem:[%s415 + $0x24] sm:$0xf]
      %v472 = vld [vmem:[%s415 + $0x28] sm:$0xf]
      %v473 = vld [vmem:[%s415 + $0x2c] sm:$0xf]
      %v474 = vld [vmem:[%s415 + $0x30] sm:$0xf]
      %v475 = vld [vmem:[%s415 + $0x34] sm:$0xf]
      %v476 = vld [vmem:[%s415 + $0x38] sm:$0xf]
      %v477 = vld [vmem:[%s415 + $0x3c] sm:$0xf]
      %v478 = vld [vmem:[%s415 + $0x40] sm:$0xf]
      %v479 = vld [vmem:[%s415 + $0x44] sm:$0xf]
      %v480 = vld [vmem:[%s415 + $0x48] sm:$0xf]
      %v481 = vld [vmem:[%s425] sm:$0xf]
      %v482 = vld [vmem:[%s425 + $0x4] sm:$0xf]
      %v483 = vld [vmem:[%s425 + $0x8] sm:$0xf]
      %v484 = vld [vmem:[%s425 + $0xc] sm:$0xf]
      %v485 = vld [vmem:[%s425 + $0x10] sm:$0xf]
      %v486 = vld [vmem:[%s425 + $0x14] sm:$0xf]
      %v487 = vld [vmem:[%s425 + $0x18] sm:$0xf]
      %v488 = vld [vmem:[%s425 + $0x1c] sm:$0xf]
      %v489 = vld [vmem:[%s425 + $0x20] sm:$0xf]
      %v490 = vld [vmem:[%s425 + $0x24] sm:$0xf]
      %v491 = vld [vmem:[%s425 + $0x28] sm:$0xf]
      %v492 = vld [vmem:[%s425 + $0x2c] sm:$0xf]
      %v493 = vld [vmem:[%s425 + $0x30] sm:$0xf]
      %v494 = vld [vmem:[%s425 + $0x34] sm:$0xf]
      %v495 = vld [vmem:[%s425 + $0x38] sm:$0xf]
      %v496 = vld [vmem:[%s425 + $0x3c] sm:$0xf]
      %v497 = vld [vmem:[%s425 + $0x40] sm:$0xf]
      %v498 = vld [vmem:[%s425 + $0x44] sm:$0xf]
      %v499 = vld [vmem:[%s425 + $0x48] sm:$0xf]
      %v500 = vld [vmem:[%s436] sm:$0xf]
      %v501 = vld [vmem:[%s436 + $0x4] sm:$0xf]
      %v502 = vld [vmem:[%s436 + $0x8] sm:$0xf]
      %v503 = vld [vmem:[%s436 + $0xc] sm:$0xf]
      %v504 = vld [vmem:[%s436 + $0x10] sm:$0xf]
      %v505 = vld [vmem:[%s436 + $0x14] sm:$0xf]
      %v506 = vld [vmem:[%s436 + $0x18] sm:$0xf]
      %v507 = vld [vmem:[%s436 + $0x1c] sm:$0xf]
      %v508 = vld [vmem:[%s436 + $0x20] sm:$0xf]
      %v509 = vld [vmem:[%s436 + $0x24] sm:$0xf]
      %v510 = vld [vmem:[%s436 + $0x28] sm:$0xf]
      %v511 = vld [vmem:[%s436 + $0x2c] sm:$0xf]
      %v512 = vld [vmem:[%s436 + $0x30] sm:$0xf]
      %v513 = vld [vmem:[%s436 + $0x34] sm:$0xf]
      %v514 = vld [vmem:[%s436 + $0x38] sm:$0xf]
      %v515 = vld [vmem:[%s436 + $0x3c] sm:$0xf]
      %v516 = vld [vmem:[%s436 + $0x40] sm:$0xf]
      %v517 = vld [vmem:[%s436 + $0x44] sm:$0xf]
      %v518 = vld [vmem:[%s436 + $0x48] sm:$0xf]
      %v519 = vld [vmem:[%s3] sm:$0xf]
      %v539 = vunpack.c.l.b16 %v462
      %v540 = vunpack.c.l.b16 %v463
      %v541 = vunpack.c.l.b16 %v464
      %v542 = vunpack.c.l.b16 %v465
      %v543 = vunpack.c.l.b16 %v466
      %v544 = vunpack.c.l.b16 %v467
      %v545 = vunpack.c.l.b16 %v468
      %v546 = vunpack.c.l.b16 %v469
      %v547 = vunpack.c.l.b16 %v470
      %v548 = vunpack.c.l.b16 %v471
      %v549 = vunpack.c.l.b16 %v472
      %v550 = vunpack.c.l.b16 %v473
      %v551 = vunpack.c.l.b16 %v474
      %v552 = vunpack.c.l.b16 %v475
      %v553 = vunpack.c.l.b16 %v476
      %v554 = vunpack.c.l.b16 %v477
      %v555 = vunpack.c.l.b16 %v478
      %v556 = vunpack.c.l.b16 %v479
      %v557 = vunpack.c.l.b16 %v480
      %v558 = vpack.c.b16 %v540, %v539
      %v559 = vpack.c.b16 %v542, %v541
      %v560 = vpack.c.b16 %v544, %v543
      %v561 = vpack.c.b16 %v546, %v545
      %v562 = vpack.c.b16 %v548, %v547
      %v563 = vpack.c.b16 %v550, %v549
      %v564 = vpack.c.b16 %v552, %v551
      %v565 = vpack.c.b16 %v554, %v553
      %v566 = vpack.c.b16 %v556, %v555
      %v567 = vpack.c.b16 %v557, %v557
      %vm568 = vcmask 64512
      %v570 = vsel %vm568, %v558, 0
      %v573 = vsel %vm568, %v559, 0
      %v576 = vsel %vm568, %v560, 0
      %v579 = vsel %vm568, %v561, 0
      %v582 = vsel %vm568, %v562, 0
      %v585 = vsel %vm568, %v563, 0
      %v588 = vsel %vm568, %v564, 0
      %v591 = vsel %vm568, %v565, 0
      %v594 = vsel %vm568, %v566, 0
      %v597 = vsel %vm568, %v567, 0
      %vm599 = vcmask 1043456
      %v601 = vsel %vm599, %v519, 0
      %603 = vmatprep.subr.bf16.mxu0 0
      %604 = vmatpush1.bf16.msra.mxu0 0
      %605 = vmatprep.subr.bf16.mxu0 0
      %606 = vmatpush1.bf16.msra.mxu0 0
      %607 = vmatprep.subr.bf16.mxu0 0
      %608 = vmatpush1.bf16.msra.mxu0 0
      %609 = vmatprep.subr.bf16.mxu0 0
      %610 = vmatpush1.bf16.msra.mxu0 0
      %611 = vmatprep.subr.bf16.mxu0 0
      %612 = vmatpush1.bf16.msra.mxu0 0
      %613 = vmatprep.subr.bf16.mxu0 0
      %614 = vmatpush1.bf16.msra.mxu0 0
      %615 = vmatprep.subr.bf16.mxu0 0
      %616 = vmatpush1.bf16.msra.mxu0 0
      %617 = vmatprep.subr.bf16.mxu0 0
      %618 = vmatpush1.bf16.msra.mxu0 %v601
      %619 = vmatprep.subr.bf16.mxu0 0
      %620 = vmatpush2.bf16.msra.mxu0 0
      %621 = vmatprep.subr.bf16.mxu0 0
      %622 = vmatpush2.bf16.msra.mxu0 0
      %623 = vmatprep.subr.bf16.mxu0 0
      %624 = vmatpush2.bf16.msra.mxu0 0
      %625 = vmatprep.subr.bf16.mxu0 0
      %626 = vmatpush2.bf16.msra.mxu0 0
      %627 = vmatprep.subr.bf16.mxu0 0
      %628 = vmatpush2.bf16.msra.mxu0 0
      %629 = vmatprep.subr.bf16.mxu0 0
      %630 = vmatpush2.bf16.msra.mxu0 0
      %631 = vmatprep.subr.bf16.mxu0 0
      %632 = vmatpush2.bf16.msra.mxu0 0
      %633 = vmatprep.subr.bf16.mxu0 0
      %634 = vmatpush2.bf16.msra.mxu0 0
      %635 = vmatprep.mubr.bf16.mxu0 0
      %636 = vmatmul.mubr.bf16.gmra.mxu0 %v570
      %v637 = vpop.f32.mrf.mxu0
      %v638 = vadd.f32 0.0, %v637
      %v639 = vpop.f32.mrf.mxu0
      %v640 = vpop.f32.mrf.mxu0
      %v641 = vadd.f32 0.0, %v640
      %v642 = vpop.f32.mrf.mxu0
      %643 = vmatprep.mubr.bf16.mxu0 0
      %644 = vmatmul.mubr.bf16.gmra.mxu0 %v573
      %v645 = vpop.f32.mrf.mxu0
      %v646 = vadd.f32 0.0, %v645
      %v647 = vpop.f32.mrf.mxu0
      %v648 = vpop.f32.mrf.mxu0
      %v649 = vadd.f32 0.0, %v648
      %v650 = vpop.f32.mrf.mxu0
      %651 = vmatprep.mubr.bf16.mxu0 0
      %652 = vmatmul.mubr.bf16.gmra.mxu0 %v576
      %v653 = vpop.f32.mrf.mxu0
      %v654 = vadd.f32 0.0, %v653
      %v655 = vpop.f32.mrf.mxu0
      %v656 = vpop.f32.mrf.mxu0
      %v657 = vadd.f32 0.0, %v656
      %v658 = vpop.f32.mrf.mxu0
      %659 = vmatprep.mubr.bf16.mxu0 0
      %660 = vmatmul.mubr.bf16.gmra.mxu0 %v579
      %v661 = vpop.f32.mrf.mxu0
      %v662 = vadd.f32 0.0, %v661
      %v663 = vpop.f32.mrf.mxu0
      %v664 = vpop.f32.mrf.mxu0
      %v665 = vadd.f32 0.0, %v664
      %v666 = vpop.f32.mrf.mxu0
      %667 = vmatprep.mubr.bf16.mxu0 0
      %668 = vmatmul.mubr.bf16.gmra.mxu0 %v582
      %v669 = vpop.f32.mrf.mxu0
      %v670 = vadd.f32 0.0, %v669
      %v671 = vpop.f32.mrf.mxu0
      %v672 = vpop.f32.mrf.mxu0
      %v673 = vadd.f32 0.0, %v672
      %v674 = vpop.f32.mrf.mxu0
      %675 = vmatprep.mubr.bf16.mxu0 0
      %676 = vmatmul.mubr.bf16.gmra.mxu0 %v585
      %v677 = vpop.f32.mrf.mxu0
      %v678 = vadd.f32 0.0, %v677
      %v679 = vpop.f32.mrf.mxu0
      %v680 = vpop.f32.mrf.mxu0
      %v681 = vadd.f32 0.0, %v680
      %v682 = vpop.f32.mrf.mxu0
      %683 = vmatprep.mubr.bf16.mxu0 0
      %684 = vmatmul.mubr.bf16.gmra.mxu0 %v588
      %v685 = vpop.f32.mrf.mxu0
      %v686 = vadd.f32 0.0, %v685
      %v687 = vpop.f32.mrf.mxu0
      %v688 = vpop.f32.mrf.mxu0
      %v689 = vadd.f32 0.0, %v688
      %v690 = vpop.f32.mrf.mxu0
      %691 = vmatprep.mubr.bf16.mxu0 0
      %692 = vmatmul.mubr.bf16.gmra.mxu0 %v591
      %v693 = vpop.f32.mrf.mxu0
      %v694 = vadd.f32 0.0, %v693
      %v695 = vpop.f32.mrf.mxu0
      %v696 = vpop.f32.mrf.mxu0
      %v697 = vpop.f32.mrf.mxu0
      %698 = vmatprep.mubr.bf16.mxu0 0
      %699 = vmatmul.mubr.bf16.gmra.mxu0 %v594
      %v700 = vpop.f32.mrf.mxu0
      %v701 = vpop.f32.mrf.mxu0
      %v702 = vpop.f32.mrf.mxu0
      %v703 = vpop.f32.mrf.mxu0
      %704 = vmatprep.mubr.bf16.mxu0 0
      %705 = vmatmul.mubr.bf16.gmra.mxu0 %v597
      %v706 = vpop.f32.mrf.mxu0
      %v707 = vpop.f32.mrf.mxu0
      %v708 = vpop.f32.mrf.mxu0
      %v709 = vpop.f32.mrf.mxu0
      %710 = vdwg.mxu0
      %v711 = vadd.f32 %v638, 0.0
      %v712 = vadd.f32 %v641, 0.0
      %v713 = vadd.f32 %v646, 0.0
      %v714 = vadd.f32 %v649, 0.0
      %v715 = vadd.f32 %v654, 0.0
      %v716 = vadd.f32 %v657, 0.0
      %v717 = vadd.f32 %v662, 0.0
      %v718 = vadd.f32 %v665, 0.0
      %v719 = vadd.f32 %v670, 0.0
      %v720 = vadd.f32 %v673, 0.0
      %v721 = vadd.f32 %v678, 0.0
      %v722 = vadd.f32 %v681, 0.0
      %v723 = vadd.f32 %v686, 0.0
      %v724 = vadd.f32 %v689, 0.0
      %v725 = vadd.f32 %v694, 0.0
      %s726 = scalar_lea.vmem %s3, 4
      %v727 = vld [vmem:[%s726] sm:$0xf]
      %v729 = vsel %vm599, %v727, 0
      %731 = vmatprep.subr.bf16.mxu0 0
      %732 = vmatpush1.bf16.msra.mxu0 0
      %733 = vmatprep.subr.bf16.mxu0 0
      %734 = vmatpush1.bf16.msra.mxu0 0
      %735 = vmatprep.subr.bf16.mxu0 0
      %736 = vmatpush1.bf16.msra.mxu0 0
      %737 = vmatprep.subr.bf16.mxu0 0
      %738 = vmatpush1.bf16.msra.mxu0 0
      %739 = vmatprep.subr.bf16.mxu0 0
      %740 = vmatpush1.bf16.msra.mxu0 0
      %741 = vmatprep.subr.bf16.mxu0 0
      %742 = vmatpush1.bf16.msra.mxu0 0
      %743 = vmatprep.subr.bf16.mxu0 0
      %744 = vmatpush1.bf16.msra.mxu0 0
      %745 = vmatprep.subr.bf16.mxu0 0
      %746 = vmatpush1.bf16.msra.mxu0 %v729
      %747 = vmatprep.subr.bf16.mxu0 0
      %748 = vmatpush2.bf16.msra.mxu0 0
      %749 = vmatprep.subr.bf16.mxu0 0
      %750 = vmatpush2.bf16.msra.mxu0 0
      %751 = vmatprep.subr.bf16.mxu0 0
      %752 = vmatpush2.bf16.msra.mxu0 0
      %753 = vmatprep.subr.bf16.mxu0 0
      %754 = vmatpush2.bf16.msra.mxu0 0
      %755 = vmatprep.subr.bf16.mxu0 0
      %756 = vmatpush2.bf16.msra.mxu0 0
      %757 = vmatprep.subr.bf16.mxu0 0
      %758 = vmatpush2.bf16.msra.mxu0 0
      %759 = vmatprep.subr.bf16.mxu0 0
      %760 = vmatpush2.bf16.msra.mxu0 0
      %761 = vmatprep.subr.bf16.mxu0 0
      %762 = vmatpush2.bf16.msra.mxu0 0
      %763 = vmatprep.mubr.bf16.mxu0 0
      %764 = vmatmul.mubr.bf16.gmra.mxu0 %v570
      %v765 = vpop.f32.mrf.mxu0
      %v766 = vadd.f32 0.0, %v765
      %v767 = vpop.f32.mrf.mxu0
      %v768 = vpop.f32.mrf.mxu0
      %v769 = vadd.f32 0.0, %v768
      %v770 = vpop.f32.mrf.mxu0
      %771 = vmatprep.mubr.bf16.mxu0 0
      %772 = vmatmul.mubr.bf16.gmra.mxu0 %v573
      %v773 = vpop.f32.mrf.mxu0
      %v774 = vadd.f32 0.0, %v773
      %v775 = vpop.f32.mrf.mxu0
      %v776 = vpop.f32.mrf.mxu0
      %v777 = vadd.f32 0.0, %v776
      %v778 = vpop.f32.mrf.mxu0
      %779 = vmatprep.mubr.bf16.mxu0 0
      %780 = vmatmul.mubr.bf16.gmra.mxu0 %v576
      %v781 = vpop.f32.mrf.mxu0
      %v782 = vadd.f32 0.0, %v781
      %v783 = vpop.f32.mrf.mxu0
      %v784 = vpop.f32.mrf.mxu0
      %v785 = vadd.f32 0.0, %v784
      %v786 = vpop.f32.mrf.mxu0
      %787 = vmatprep.mubr.bf16.mxu0 0
      %788 = vmatmul.mubr.bf16.gmra.mxu0 %v579
      %v789 = vpop.f32.mrf.mxu0
      %v790 = vadd.f32 0.0, %v789
      %v791 = vpop.f32.mrf.mxu0
      %v792 = vpop.f32.mrf.mxu0
      %v793 = vadd.f32 0.0, %v792
      %v794 = vpop.f32.mrf.mxu0
      %795 = vmatprep.mubr.bf16.mxu0 0
      %796 = vmatmul.mubr.bf16.gmra.mxu0 %v582
      %v797 = vpop.f32.mrf.mxu0
      %v798 = vadd.f32 0.0, %v797
      %v799 = vpop.f32.mrf.mxu0
      %v800 = vpop.f32.mrf.mxu0
      %v801 = vadd.f32 0.0, %v800
      %v802 = vpop.f32.mrf.mxu0
      %803 = vmatprep.mubr.bf16.mxu0 0
      %804 = vmatmul.mubr.bf16.gmra.mxu0 %v585
      %v805 = vpop.f32.mrf.mxu0
      %v806 = vadd.f32 0.0, %v805
      %v807 = vpop.f32.mrf.mxu0
      %v808 = vpop.f32.mrf.mxu0
      %v809 = vadd.f32 0.0, %v808
      %v810 = vpop.f32.mrf.mxu0
      %811 = vmatprep.mubr.bf16.mxu0 0
      %812 = vmatmul.mubr.bf16.gmra.mxu0 %v588
      %v813 = vpop.f32.mrf.mxu0
      %v814 = vadd.f32 0.0, %v813
      %v815 = vpop.f32.mrf.mxu0
      %v816 = vpop.f32.mrf.mxu0
      %v817 = vadd.f32 0.0, %v816
      %v818 = vpop.f32.mrf.mxu0
      %819 = vmatprep.mubr.bf16.mxu0 0
      %820 = vmatmul.mubr.bf16.gmra.mxu0 %v591
      %v821 = vpop.f32.mrf.mxu0
      %v822 = vadd.f32 0.0, %v821
      %v823 = vpop.f32.mrf.mxu0
      %v824 = vpop.f32.mrf.mxu0
      %v825 = vadd.f32 0.0, %v824
      %v826 = vpop.f32.mrf.mxu0
      %827 = vmatprep.mubr.bf16.mxu0 0
      %828 = vmatmul.mubr.bf16.gmra.mxu0 %v594
      %v829 = vpop.f32.mrf.mxu0
      %v830 = vpop.f32.mrf.mxu0
      %v831 = vpop.f32.mrf.mxu0
      %v832 = vpop.f32.mrf.mxu0
      %833 = vmatprep.mubr.bf16.mxu0 0
      %834 = vmatmul.mubr.bf16.gmra.mxu0 %v597
      %v835 = vpop.f32.mrf.mxu0
      %v836 = vpop.f32.mrf.mxu0
      %v837 = vpop.f32.mrf.mxu0
      %v838 = vpop.f32.mrf.mxu0
      %839 = vdwg.mxu0
      %vm856 = vcmask 1046528
      %v857 = vrot.slane %v766, 1
      %v858 = vrot.slane %v769, 1
      %v859 = vsel %vm856, %v857, %v858
      %v860 = vrot.slane %v774, 1
      %v861 = vsel %vm856, %v858, %v860
      %v862 = vrot.slane %v777, 1
      %v863 = vsel %vm856, %v860, %v862
      %v864 = vrot.slane %v782, 1
      %v865 = vsel %vm856, %v862, %v864
      %v866 = vrot.slane %v785, 1
      %v867 = vsel %vm856, %v864, %v866
      %v868 = vrot.slane %v790, 1
      %v869 = vsel %vm856, %v866, %v868
      %v870 = vrot.slane %v793, 1
      %v871 = vsel %vm856, %v868, %v870
      %v872 = vrot.slane %v798, 1
      %v873 = vsel %vm856, %v870, %v872
      %v874 = vrot.slane %v801, 1
      %v875 = vsel %vm856, %v872, %v874
      %v876 = vrot.slane %v806, 1
      %v877 = vsel %vm856, %v874, %v876
      %v878 = vrot.slane %v809, 1
      %v879 = vsel %vm856, %v876, %v878
      %v880 = vrot.slane %v814, 1
      %v881 = vsel %vm856, %v878, %v880
      %v882 = vrot.slane %v817, 1
      %v883 = vsel %vm856, %v880, %v882
      %v884 = vrot.slane %v822, 1
      %v885 = vsel %vm856, %v882, %v884
      %v886 = vrot.slane %v825, 1
      %v887 = vsel %vm856, %v884, %v886
      %v903 = vadd.f32 %v711, %v859
      %v904 = vadd.f32 %v712, %v861
      %v905 = vadd.f32 %v713, %v863
      %v906 = vadd.f32 %v714, %v865
      %v907 = vadd.f32 %v715, %v867
      %v908 = vadd.f32 %v716, %v869
      %v909 = vadd.f32 %v717, %v871
      %v910 = vadd.f32 %v718, %v873
      %v911 = vadd.f32 %v719, %v875
      %v912 = vadd.f32 %v720, %v877
      %v913 = vadd.f32 %v721, %v879
      %v914 = vadd.f32 %v722, %v881
      %v915 = vadd.f32 %v723, %v883
      %v916 = vadd.f32 %v724, %v885
      %v917 = vadd.f32 %v725, %v887
      %s918 = scalar_lea.vmem %s3, 8
      %v919 = vld [vmem:[%s918] sm:$0xf]
      %v921 = vsel %vm599, %v919, 0
      %923 = vmatprep.subr.bf16.mxu0 0
      %924 = vmatpush1.bf16.msra.mxu0 0
      %925 = vmatprep.subr.bf16.mxu0 0
      %926 = vmatpush1.bf16.msra.mxu0 0
      %927 = vmatprep.subr.bf16.mxu0 0
      %928 = vmatpush1.bf16.msra.mxu0 0
      %929 = vmatprep.subr.bf16.mxu0 0
      %930 = vmatpush1.bf16.msra.mxu0 0
      %931 = vmatprep.subr.bf16.mxu0 0
      %932 = vmatpush1.bf16.msra.mxu0 0
      %933 = vmatprep.subr.bf16.mxu0 0
      %934 = vmatpush1.bf16.msra.mxu0 0
      %935 = vmatprep.subr.bf16.mxu0 0
      %936 = vmatpush1.bf16.msra.mxu0 0
      %937 = vmatprep.subr.bf16.mxu0 0
      %938 = vmatpush1.bf16.msra.mxu0 %v921
      %939 = vmatprep.subr.bf16.mxu0 0
      %940 = vmatpush2.bf16.msra.mxu0 0
      %941 = vmatprep.subr.bf16.mxu0 0
      %942 = vmatpush2.bf16.msra.mxu0 0
      %943 = vmatprep.subr.bf16.mxu0 0
      %944 = vmatpush2.bf16.msra.mxu0 0
      %945 = vmatprep.subr.bf16.mxu0 0
      %946 = vmatpush2.bf16.msra.mxu0 0
      %947 = vmatprep.subr.bf16.mxu0 0
      %948 = vmatpush2.bf16.msra.mxu0 0
      %949 = vmatprep.subr.bf16.mxu0 0
      %950 = vmatpush2.bf16.msra.mxu0 0
      %951 = vmatprep.subr.bf16.mxu0 0
      %952 = vmatpush2.bf16.msra.mxu0 0
      %953 = vmatprep.subr.bf16.mxu0 0
      %954 = vmatpush2.bf16.msra.mxu0 0
      %955 = vmatprep.mubr.bf16.mxu0 0
      %956 = vmatmul.mubr.bf16.gmra.mxu0 %v570
      %v957 = vpop.f32.mrf.mxu0
      %v958 = vadd.f32 0.0, %v957
      %v959 = vpop.f32.mrf.mxu0
      %v960 = vpop.f32.mrf.mxu0
      %v961 = vadd.f32 0.0, %v960
      %v962 = vpop.f32.mrf.mxu0
      %963 = vmatprep.mubr.bf16.mxu0 0
      %964 = vmatmul.mubr.bf16.gmra.mxu0 %v573
      %v965 = vpop.f32.mrf.mxu0
      %v966 = vadd.f32 0.0, %v965
      %v967 = vpop.f32.mrf.mxu0
      %v968 = vpop.f32.mrf.mxu0
      %v969 = vadd.f32 0.0, %v968
      %v970 = vpop.f32.mrf.mxu0
      %971 = vmatprep.mubr.bf16.mxu0 0
      %972 = vmatmul.mubr.bf16.gmra.mxu0 %v576
      %v973 = vpop.f32.mrf.mxu0
      %v974 = vadd.f32 0.0, %v973
      %v975 = vpop.f32.mrf.mxu0
      %v976 = vpop.f32.mrf.mxu0
      %v977 = vadd.f32 0.0, %v976
      %v978 = vpop.f32.mrf.mxu0
      %979 = vmatprep.mubr.bf16.mxu0 0
      %980 = vmatmul.mubr.bf16.gmra.mxu0 %v579
      %v981 = vpop.f32.mrf.mxu0
      %v982 = vadd.f32 0.0, %v981
      %v983 = vpop.f32.mrf.mxu0
      %v984 = vpop.f32.mrf.mxu0
      %v985 = vadd.f32 0.0, %v984
      %v986 = vpop.f32.mrf.mxu0
      %987 = vmatprep.mubr.bf16.mxu0 0
      %988 = vmatmul.mubr.bf16.gmra.mxu0 %v582
      %v989 = vpop.f32.mrf.mxu0
      %v990 = vadd.f32 0.0, %v989
      %v991 = vpop.f32.mrf.mxu0
      %v992 = vpop.f32.mrf.mxu0
      %v993 = vadd.f32 0.0, %v992
      %v994 = vpop.f32.mrf.mxu0
      %995 = vmatprep.mubr.bf16.mxu0 0
      %996 = vmatmul.mubr.bf16.gmra.mxu0 %v585
      %v997 = vpop.f32.mrf.mxu0
      %v998 = vadd.f32 0.0, %v997
      %v999 = vpop.f32.mrf.mxu0
      %v1000 = vpop.f32.mrf.mxu0
      %v1001 = vadd.f32 0.0, %v1000
      %v1002 = vpop.f32.mrf.mxu0
      %1003 = vmatprep.mubr.bf16.mxu0 0
      %1004 = vmatmul.mubr.bf16.gmra.mxu0 %v588
      %v1005 = vpop.f32.mrf.mxu0
      %v1006 = vadd.f32 0.0, %v1005
      %v1007 = vpop.f32.mrf.mxu0
      %v1008 = vpop.f32.mrf.mxu0
      %v1009 = vadd.f32 0.0, %v1008
      %v1010 = vpop.f32.mrf.mxu0
      %1011 = vmatprep.mubr.bf16.mxu0 0
      %1012 = vmatmul.mubr.bf16.gmra.mxu0 %v591
      %v1013 = vpop.f32.mrf.mxu0
      %v1014 = vadd.f32 0.0, %v1013
      %v1015 = vpop.f32.mrf.mxu0
      %v1016 = vpop.f32.mrf.mxu0
      %v1017 = vadd.f32 0.0, %v1016
      %v1018 = vpop.f32.mrf.mxu0
      %1019 = vmatprep.mubr.bf16.mxu0 0
      %1020 = vmatmul.mubr.bf16.gmra.mxu0 %v594
      %v1021 = vpop.f32.mrf.mxu0
      %v1022 = vpop.f32.mrf.mxu0
      %v1023 = vpop.f32.mrf.mxu0
      %v1024 = vpop.f32.mrf.mxu0
      %1025 = vmatprep.mubr.bf16.mxu0 0
      %1026 = vmatmul.mubr.bf16.gmra.mxu0 %v597
      %v1027 = vpop.f32.mrf.mxu0
      %v1028 = vpop.f32.mrf.mxu0
      %v1029 = vpop.f32.mrf.mxu0
      %v1030 = vpop.f32.mrf.mxu0
      %1031 = vdwg.mxu0
      %vm1048 = vcmask 1045504
      %v1049 = vrot.slane %v958, 2
      %v1050 = vrot.slane %v961, 2
      %v1051 = vsel %vm1048, %v1049, %v1050
      %v1052 = vrot.slane %v966, 2
      %v1053 = vsel %vm1048, %v1050, %v1052
      %v1054 = vrot.slane %v969, 2
      %v1055 = vsel %vm1048, %v1052, %v1054
      %v1056 = vrot.slane %v974, 2
      %v1057 = vsel %vm1048, %v1054, %v1056
      %v1058 = vrot.slane %v977, 2
      %v1059 = vsel %vm1048, %v1056, %v1058
      %v1060 = vrot.slane %v982, 2
      %v1061 = vsel %vm1048, %v1058, %v1060
      %v1062 = vrot.slane %v985, 2
      %v1063 = vsel %vm1048, %v1060, %v1062
      %v1064 = vrot.slane %v990, 2
      %v1065 = vsel %vm1048, %v1062, %v1064
      %v1066 = vrot.slane %v993, 2
      %v1067 = vsel %vm1048, %v1064, %v1066
      %v1068 = vrot.slane %v998, 2
      %v1069 = vsel %vm1048, %v1066, %v1068
      %v1070 = vrot.slane %v1001, 2
      %v1071 = vsel %vm1048, %v1068, %v1070
      %v1072 = vrot.slane %v1006, 2
      %v1073 = vsel %vm1048, %v1070, %v1072
      %v1074 = vrot.slane %v1009, 2
      %v1075 = vsel %vm1048, %v1072, %v1074
      %v1076 = vrot.slane %v1014, 2
      %v1077 = vsel %vm1048, %v1074, %v1076
      %v1078 = vrot.slane %v1017, 2
      %v1079 = vsel %vm1048, %v1076, %v1078
      %v1095 = vadd.f32 %v903, %v1051
      %v1096 = vadd.f32 %v904, %v1053
      %v1097 = vadd.f32 %v905, %v1055
      %v1098 = vadd.f32 %v906, %v1057
      %v1099 = vadd.f32 %v907, %v1059
      %v1100 = vadd.f32 %v908, %v1061
      %v1101 = vadd.f32 %v909, %v1063
      %v1102 = vadd.f32 %v910, %v1065
      %v1103 = vadd.f32 %v911, %v1067
      %v1104 = vadd.f32 %v912, %v1069
      %v1105 = vadd.f32 %v913, %v1071
      %v1106 = vadd.f32 %v914, %v1073
      %v1107 = vadd.f32 %v915, %v1075
      %v1108 = vadd.f32 %v916, %v1077
      %v1109 = vadd.f32 %v917, %v1079
      %s1110 = scalar_lea.vmem %s3, 12
      %v1111 = vld [vmem:[%s1110] sm:$0xf]
      %v1113 = vsel %vm599, %v1111, 0
      %1115 = vmatprep.subr.bf16.mxu0 0
      %1116 = vmatpush1.bf16.msra.mxu0 0
      %1117 = vmatprep.subr.bf16.mxu0 0
      %1118 = vmatpush1.bf16.msra.mxu0 0
      %1119 = vmatprep.subr.bf16.mxu0 0
      %1120 = vmatpush1.bf16.msra.mxu0 0
      %1121 = vmatprep.subr.bf16.mxu0 0
      %1122 = vmatpush1.bf16.msra.mxu0 0
      %1123 = vmatprep.subr.bf16.mxu0 0
      %1124 = vmatpush1.bf16.msra.mxu0 0
      %1125 = vmatprep.subr.bf16.mxu0 0
      %1126 = vmatpush1.bf16.msra.mxu0 0
      %1127 = vmatprep.subr.bf16.mxu0 0
      %1128 = vmatpush1.bf16.msra.mxu0 0
      %1129 = vmatprep.subr.bf16.mxu0 0
      %1130 = vmatpush1.bf16.msra.mxu0 %v1113
      %1131 = vmatprep.subr.bf16.mxu0 0
      %1132 = vmatpush2.bf16.msra.mxu0 0
      %1133 = vmatprep.subr.bf16.mxu0 0
      %1134 = vmatpush2.bf16.msra.mxu0 0
      %1135 = vmatprep.subr.bf16.mxu0 0
      %1136 = vmatpush2.bf16.msra.mxu0 0
      %1137 = vmatprep.subr.bf16.mxu0 0
      %1138 = vmatpush2.bf16.msra.mxu0 0
      %1139 = vmatprep.subr.bf16.mxu0 0
      %1140 = vmatpush2.bf16.msra.mxu0 0
      %1141 = vmatprep.subr.bf16.mxu0 0
      %1142 = vmatpush2.bf16.msra.mxu0 0
      %1143 = vmatprep.subr.bf16.mxu0 0
      %1144 = vmatpush2.bf16.msra.mxu0 0
      %1145 = vmatprep.subr.bf16.mxu0 0
      %1146 = vmatpush2.bf16.msra.mxu0 0
      %1147 = vmatprep.mubr.bf16.mxu0 0
      %1148 = vmatmul.mubr.bf16.gmra.mxu0 %v570
      %v1149 = vpop.f32.mrf.mxu0
      %v1150 = vpop.f32.mrf.mxu0
      %v1151 = vpop.f32.mrf.mxu0
      %v1152 = vadd.f32 0.0, %v1151
      %v1153 = vpop.f32.mrf.mxu0
      %1154 = vmatprep.mubr.bf16.mxu0 0
      %1155 = vmatmul.mubr.bf16.gmra.mxu0 %v573
      %v1156 = vpop.f32.mrf.mxu0
      %v1157 = vadd.f32 0.0, %v1156
      %v1158 = vpop.f32.mrf.mxu0
      %v1159 = vpop.f32.mrf.mxu0
      %v1160 = vadd.f32 0.0, %v1159
      %v1161 = vpop.f32.mrf.mxu0
      %1162 = vmatprep.mubr.bf16.mxu0 0
      %1163 = vmatmul.mubr.bf16.gmra.mxu0 %v576
      %v1164 = vpop.f32.mrf.mxu0
      %v1165 = vadd.f32 0.0, %v1164
      %v1166 = vpop.f32.mrf.mxu0
      %v1167 = vpop.f32.mrf.mxu0
      %v1168 = vadd.f32 0.0, %v1167
      %v1169 = vpop.f32.mrf.mxu0
      %1170 = vmatprep.mubr.bf16.mxu0 0
      %1171 = vmatmul.mubr.bf16.gmra.mxu0 %v579
      %v1172 = vpop.f32.mrf.mxu0
      %v1173 = vadd.f32 0.0, %v1172
      %v1174 = vpop.f32.mrf.mxu0
      %v1175 = vpop.f32.mrf.mxu0
      %v1176 = vadd.f32 0.0, %v1175
      %v1177 = vpop.f32.mrf.mxu0
      %1178 = vmatprep.mubr.bf16.mxu0 0
      %1179 = vmatmul.mubr.bf16.gmra.mxu0 %v582
      %v1180 = vpop.f32.mrf.mxu0
      %v1181 = vadd.f32 0.0, %v1180
      %v1182 = vpop.f32.mrf.mxu0
      %v1183 = vpop.f32.mrf.mxu0
      %v1184 = vadd.f32 0.0, %v1183
      %v1185 = vpop.f32.mrf.mxu0
      %1186 = vmatprep.mubr.bf16.mxu0 0
      %1187 = vmatmul.mubr.bf16.gmra.mxu0 %v585
      %v1188 = vpop.f32.mrf.mxu0
      %v1189 = vadd.f32 0.0, %v1188
      %v1190 = vpop.f32.mrf.mxu0
      %v1191 = vpop.f32.mrf.mxu0
      %v1192 = vadd.f32 0.0, %v1191
      %v1193 = vpop.f32.mrf.mxu0
      %1194 = vmatprep.mubr.bf16.mxu0 0
      %1195 = vmatmul.mubr.bf16.gmra.mxu0 %v588
      %v1196 = vpop.f32.mrf.mxu0
      %v1197 = vadd.f32 0.0, %v1196
      %v1198 = vpop.f32.mrf.mxu0
      %v1199 = vpop.f32.mrf.mxu0
      %v1200 = vadd.f32 0.0, %v1199
      %v1201 = vpop.f32.mrf.mxu0
      %1202 = vmatprep.mubr.bf16.mxu0 0
      %1203 = vmatmul.mubr.bf16.gmra.mxu0 %v591
      %v1204 = vpop.f32.mrf.mxu0
      %v1205 = vadd.f32 0.0, %v1204
      %v1206 = vpop.f32.mrf.mxu0
      %v1207 = vpop.f32.mrf.mxu0
      %v1208 = vadd.f32 0.0, %v1207
      %v1209 = vpop.f32.mrf.mxu0
      %1210 = vmatprep.mubr.bf16.mxu0 0
      %1211 = vmatmul.mubr.bf16.gmra.mxu0 %v594
      %v1212 = vpop.f32.mrf.mxu0
      %v1213 = vadd.f32 0.0, %v1212
      %v1214 = vpop.f32.mrf.mxu0
      %v1215 = vpop.f32.mrf.mxu0
      %v1216 = vpop.f32.mrf.mxu0
      %1217 = vmatprep.mubr.bf16.mxu0 0
      %1218 = vmatmul.mubr.bf16.gmra.mxu0 %v597
      %v1219 = vpop.f32.mrf.mxu0
      %v1220 = vpop.f32.mrf.mxu0
      %v1221 = vpop.f32.mrf.mxu0
      %v1222 = vpop.f32.mrf.mxu0
      %1223 = vdwg.mxu0
      %v1240 = vrot.slane %v1152, 4
      %v1241 = vrot.slane %v1157, 4
      %v1242 = vsel %vm599, %v1240, %v1241
      %v1243 = vrot.slane %v1160, 4
      %v1244 = vsel %vm599, %v1241, %v1243
      %v1245 = vrot.slane %v1165, 4
      %v1246 = vsel %vm599, %v1243, %v1245
      %v1247 = vrot.slane %v1168, 4
      %v1248 = vsel %vm599, %v1245, %v1247
      %v1249 = vrot.slane %v1173, 4
      %v1250 = vsel %vm599, %v1247, %v1249
      %v1251 = vrot.slane %v1176, 4
      %v1252 = vsel %vm599, %v1249, %v1251
      %v1253 = vrot.slane %v1181, 4
      %v1254 = vsel %vm599, %v1251, %v1253
      %v1255 = vrot.slane %v1184, 4
      %v1256 = vsel %vm599, %v1253, %v1255
      %v1257 = vrot.slane %v1189, 4
      %v1258 = vsel %vm599, %v1255, %v1257
      %v1259 = vrot.slane %v1192, 4
      %v1260 = vsel %vm599, %v1257, %v1259
      %v1261 = vrot.slane %v1197, 4
      %v1262 = vsel %vm599, %v1259, %v1261
      %v1263 = vrot.slane %v1200, 4
      %v1264 = vsel %vm599, %v1261, %v1263
      %v1265 = vrot.slane %v1205, 4
      %v1266 = vsel %vm599, %v1263, %v1265
      %v1267 = vrot.slane %v1208, 4
      %v1268 = vsel %vm599, %v1265, %v1267
      %v1269 = vrot.slane %v1213, 4
      %v1270 = vsel %vm599, %v1267, %v1269
      %v1286 = vadd.f32 %v1095, %v1242
      %v1287 = vadd.f32 %v1096, %v1244
      %v1288 = vadd.f32 %v1097, %v1246
      %v1289 = vadd.f32 %v1098, %v1248
      %v1290 = vadd.f32 %v1099, %v1250
      %v1291 = vadd.f32 %v1100, %v1252
      %v1292 = vadd.f32 %v1101, %v1254
      %v1293 = vadd.f32 %v1102, %v1256
      %v1294 = vadd.f32 %v1103, %v1258
      %v1295 = vadd.f32 %v1104, %v1260
      %v1296 = vadd.f32 %v1105, %v1262
      %v1297 = vadd.f32 %v1106, %v1264
      %v1298 = vadd.f32 %v1107, %v1266
      %v1299 = vadd.f32 %v1108, %v1268
      %v1300 = vadd.f32 %v1109, %v1270
      %s1301 = scalar_lea.vmem %s3, 16
      %v1302 = vld [vmem:[%s1301] sm:$0xf]
      %v1304 = vsel %vm599, %v1302, 0
      %1306 = vmatprep.subr.bf16.mxu0 0
      %1307 = vmatpush1.bf16.msra.mxu0 0
      %1308 = vmatprep.subr.bf16.mxu0 0
      %1309 = vmatpush1.bf16.msra.mxu0 0
      %1310 = vmatprep.subr.bf16.mxu0 0
      %1311 = vmatpush1.bf16.msra.mxu0 0
      %1312 = vmatprep.subr.bf16.mxu0 0
      %1313 = vmatpush1.bf16.msra.mxu0 0
      %1314 = vmatprep.subr.bf16.mxu0 0
      %1315 = vmatpush1.bf16.msra.mxu0 0
      %1316 = vmatprep.subr.bf16.mxu0 0
      %1317 = vmatpush1.bf16.msra.mxu0 0
      %1318 = vmatprep.subr.bf16.mxu0 0
      %1319 = vmatpush1.bf16.msra.mxu0 0
      %1320 = vmatprep.subr.bf16.mxu0 0
      %1321 = vmatpush1.bf16.msra.mxu0 %v1304
      %1322 = vmatprep.subr.bf16.mxu0 0
      %1323 = vmatpush2.bf16.msra.mxu0 0
      %1324 = vmatprep.subr.bf16.mxu0 0
      %1325 = vmatpush2.bf16.msra.mxu0 0
      %1326 = vmatprep.subr.bf16.mxu0 0
      %1327 = vmatpush2.bf16.msra.mxu0 0
      %1328 = vmatprep.subr.bf16.mxu0 0
      %1329 = vmatpush2.bf16.msra.mxu0 0
      %1330 = vmatprep.subr.bf16.mxu0 0
      %1331 = vmatpush2.bf16.msra.mxu0 0
      %1332 = vmatprep.subr.bf16.mxu0 0
      %1333 = vmatpush2.bf16.msra.mxu0 0
      %1334 = vmatprep.subr.bf16.mxu0 0
      %1335 = vmatpush2.bf16.msra.mxu0 0
      %1336 = vmatprep.subr.bf16.mxu0 0
      %1337 = vmatpush2.bf16.msra.mxu0 0
      %1338 = vmatprep.mubr.bf16.mxu0 0
      %1339 = vmatmul.mubr.bf16.gmra.mxu0 %v570
      %v1340 = vpop.f32.mrf.mxu0
      %v1341 = vpop.f32.mrf.mxu0
      %v1342 = vpop.f32.mrf.mxu0
      %v1343 = vadd.f32 0.0, %v1342
      %v1344 = vpop.f32.mrf.mxu0
      %1345 = vmatprep.mubr.bf16.mxu0 0
      %1346 = vmatmul.mubr.bf16.gmra.mxu0 %v573
      %v1347 = vpop.f32.mrf.mxu0
      %v1348 = vadd.f32 0.0, %v1347
      %v1349 = vpop.f32.mrf.mxu0
      %v1350 = vpop.f32.mrf.mxu0
      %v1351 = vadd.f32 0.0, %v1350
      %v1352 = vpop.f32.mrf.mxu0
      %1353 = vmatprep.mubr.bf16.mxu0 0
      %1354 = vmatmul.mubr.bf16.gmra.mxu0 %v576
      %v1355 = vpop.f32.mrf.mxu0
      %v1356 = vadd.f32 0.0, %v1355
      %v1357 = vpop.f32.mrf.mxu0
      %v1358 = vpop.f32.mrf.mxu0
      %v1359 = vadd.f32 0.0, %v1358
      %v1360 = vpop.f32.mrf.mxu0
      %1361 = vmatprep.mubr.bf16.mxu0 0
      %1362 = vmatmul.mubr.bf16.gmra.mxu0 %v579
      %v1363 = vpop.f32.mrf.mxu0
      %v1364 = vadd.f32 0.0, %v1363
      %v1365 = vpop.f32.mrf.mxu0
      %v1366 = vpop.f32.mrf.mxu0
      %v1367 = vadd.f32 0.0, %v1366
      %v1368 = vpop.f32.mrf.mxu0
      %1369 = vmatprep.mubr.bf16.mxu0 0
      %1370 = vmatmul.mubr.bf16.gmra.mxu0 %v582
      %v1371 = vpop.f32.mrf.mxu0
      %v1372 = vadd.f32 0.0, %v1371
      %v1373 = vpop.f32.mrf.mxu0
      %v1374 = vpop.f32.mrf.mxu0
      %v1375 = vadd.f32 0.0, %v1374
      %v1376 = vpop.f32.mrf.mxu0
      %1377 = vmatprep.mubr.bf16.mxu0 0
      %1378 = vmatmul.mubr.bf16.gmra.mxu0 %v585
      %v1379 = vpop.f32.mrf.mxu0
      %v1380 = vadd.f32 0.0, %v1379
      %v1381 = vpop.f32.mrf.mxu0
      %v1382 = vpop.f32.mrf.mxu0
      %v1383 = vadd.f32 0.0, %v1382
      %v1384 = vpop.f32.mrf.mxu0
      %1385 = vmatprep.mubr.bf16.mxu0 0
      %1386 = vmatmul.mubr.bf16.gmra.mxu0 %v588
      %v1387 = vpop.f32.mrf.mxu0
      %v1388 = vadd.f32 0.0, %v1387
      %v1389 = vpop.f32.mrf.mxu0
      %v1390 = vpop.f32.mrf.mxu0
      %v1391 = vadd.f32 0.0, %v1390
      %v1392 = vpop.f32.mrf.mxu0
      %1393 = vmatprep.mubr.bf16.mxu0 0
      %1394 = vmatmul.mubr.bf16.gmra.mxu0 %v591
      %v1395 = vpop.f32.mrf.mxu0
      %v1396 = vadd.f32 0.0, %v1395
      %v1397 = vpop.f32.mrf.mxu0
      %v1398 = vpop.f32.mrf.mxu0
      %v1399 = vadd.f32 0.0, %v1398
      %v1400 = vpop.f32.mrf.mxu0
      %1401 = vmatprep.mubr.bf16.mxu0 0
      %1402 = vmatmul.mubr.bf16.gmra.mxu0 %v594
      %v1403 = vpop.f32.mrf.mxu0
      %v1404 = vadd.f32 0.0, %v1403
      %v1405 = vpop.f32.mrf.mxu0
      %v1406 = vpop.f32.mrf.mxu0
      %v1407 = vpop.f32.mrf.mxu0
      %1408 = vmatprep.mubr.bf16.mxu0 0
      %1409 = vmatmul.mubr.bf16.gmra.mxu0 %v597
      %v1410 = vpop.f32.mrf.mxu0
      %v1411 = vpop.f32.mrf.mxu0
      %v1412 = vpop.f32.mrf.mxu0
      %v1413 = vpop.f32.mrf.mxu0
      %1414 = vdwg.mxu0
      %vm1431 = vcmask 1042432
      %v1432 = vrot.slane %v1343, 5
      %v1433 = vrot.slane %v1348, 5
      %v1434 = vsel %vm1431, %v1432, %v1433
      %v1435 = vrot.slane %v1351, 5
      %v1436 = vsel %vm1431, %v1433, %v1435
      %v1437 = vrot.slane %v1356, 5
      %v1438 = vsel %vm1431, %v1435, %v1437
      %v1439 = vrot.slane %v1359, 5
      %v1440 = vsel %vm1431, %v1437, %v1439
      %v1441 = vrot.slane %v1364, 5
      %v1442 = vsel %vm1431, %v1439, %v1441
      %v1443 = vrot.slane %v1367, 5
      %v1444 = vsel %vm1431, %v1441, %v1443
      %v1445 = vrot.slane %v1372, 5
      %v1446 = vsel %vm1431, %v1443, %v1445
      %v1447 = vrot.slane %v1375, 5
      %v1448 = vsel %vm1431, %v1445, %v1447
      %v1449 = vrot.slane %v1380, 5
      %v1450 = vsel %vm1431, %v1447, %v1449
      %v1451 = vrot.slane %v1383, 5
      %v1452 = vsel %vm1431, %v1449, %v1451
      %v1453 = vrot.slane %v1388, 5
      %v1454 = vsel %vm1431, %v1451, %v1453
      %v1455 = vrot.slane %v1391, 5
      %v1456 = vsel %vm1431, %v1453, %v1455
      %v1457 = vrot.slane %v1396, 5
      %v1458 = vsel %vm1431, %v1455, %v1457
      %v1459 = vrot.slane %v1399, 5
      %v1460 = vsel %vm1431, %v1457, %v1459
      %v1461 = vrot.slane %v1404, 5
      %v1462 = vsel %vm1431, %v1459, %v1461
      %v1478 = vadd.f32 %v1286, %v1434
      %v1479 = vadd.f32 %v1287, %v1436
      %v1480 = vadd.f32 %v1288, %v1438
      %v1481 = vadd.f32 %v1289, %v1440
      %v1482 = vadd.f32 %v1290, %v1442
      %v1483 = vadd.f32 %v1291, %v1444
      %v1484 = vadd.f32 %v1292, %v1446
      %v1485 = vadd.f32 %v1293, %v1448
      %v1486 = vadd.f32 %v1294, %v1450
      %v1487 = vadd.f32 %v1295, %v1452
      %v1488 = vadd.f32 %v1296, %v1454
      %v1489 = vadd.f32 %v1297, %v1456
      %v1490 = vadd.f32 %v1298, %v1458
      %v1491 = vadd.f32 %v1299, %v1460
      %v1492 = vadd.f32 %v1300, %v1462
      %s1493 = scalar_lea.vmem %s3, 20
      %v1494 = vld [vmem:[%s1493] sm:$0xf]
      %v1496 = vsel %vm599, %v1494, 0
      %1498 = vmatprep.subr.bf16.mxu0 0
      %1499 = vmatpush1.bf16.msra.mxu0 0
      %1500 = vmatprep.subr.bf16.mxu0 0
      %1501 = vmatpush1.bf16.msra.mxu0 0
      %1502 = vmatprep.subr.bf16.mxu0 0
      %1503 = vmatpush1.bf16.msra.mxu0 0
      %1504 = vmatprep.subr.bf16.mxu0 0
      %1505 = vmatpush1.bf16.msra.mxu0 0
      %1506 = vmatprep.subr.bf16.mxu0 0
      %1507 = vmatpush1.bf16.msra.mxu0 0
      %1508 = vmatprep.subr.bf16.mxu0 0
      %1509 = vmatpush1.bf16.msra.mxu0 0
      %1510 = vmatprep.subr.bf16.mxu0 0
      %1511 = vmatpush1.bf16.msra.mxu0 0
      %1512 = vmatprep.subr.bf16.mxu0 0
      %1513 = vmatpush1.bf16.msra.mxu0 %v1496
      %1514 = vmatprep.subr.bf16.mxu0 0
      %1515 = vmatpush2.bf16.msra.mxu0 0
      %1516 = vmatprep.subr.bf16.mxu0 0
      %1517 = vmatpush2.bf16.msra.mxu0 0
      %1518 = vmatprep.subr.bf16.mxu0 0
      %1519 = vmatpush2.bf16.msra.mxu0 0
      %1520 = vmatprep.subr.bf16.mxu0 0
      %1521 = vmatpush2.bf16.msra.mxu0 0
      %1522 = vmatprep.subr.bf16.mxu0 0
      %1523 = vmatpush2.bf16.msra.mxu0 0
      %1524 = vmatprep.subr.bf16.mxu0 0
      %1525 = vmatpush2.bf16.msra.mxu0 0
      %1526 = vmatprep.subr.bf16.mxu0 0
      %1527 = vmatpush2.bf16.msra.mxu0 0
      %1528 = vmatprep.subr.bf16.mxu0 0
      %1529 = vmatpush2.bf16.msra.mxu0 0
      %1530 = vmatprep.mubr.bf16.mxu0 0
      %1531 = vmatmul.mubr.bf16.gmra.mxu0 %v570
      %v1532 = vpop.f32.mrf.mxu0
      %v1533 = vpop.f32.mrf.mxu0
      %v1534 = vpop.f32.mrf.mxu0
      %v1535 = vadd.f32 0.0, %v1534
      %v1536 = vpop.f32.mrf.mxu0
      %1537 = vmatprep.mubr.bf16.mxu0 0
      %1538 = vmatmul.mubr.bf16.gmra.mxu0 %v573
      %v1539 = vpop.f32.mrf.mxu0
      %v1540 = vadd.f32 0.0, %v1539
      %v1541 = vpop.f32.mrf.mxu0
      %v1542 = vpop.f32.mrf.mxu0
      %v1543 = vadd.f32 0.0, %v1542
      %v1544 = vpop.f32.mrf.mxu0
      %1545 = vmatprep.mubr.bf16.mxu0 0
      %1546 = vmatmul.mubr.bf16.gmra.mxu0 %v576
      %v1547 = vpop.f32.mrf.mxu0
      %v1548 = vadd.f32 0.0, %v1547
      %v1549 = vpop.f32.mrf.mxu0
      %v1550 = vpop.f32.mrf.mxu0
      %v1551 = vadd.f32 0.0, %v1550
      %v1552 = vpop.f32.mrf.mxu0
      %1553 = vmatprep.mubr.bf16.mxu0 0
      %1554 = vmatmul.mubr.bf16.gmra.mxu0 %v579
      %v1555 = vpop.f32.mrf.mxu0
      %v1556 = vadd.f32 0.0, %v1555
      %v1557 = vpop.f32.mrf.mxu0
      %v1558 = vpop.f32.mrf.mxu0
      %v1559 = vadd.f32 0.0, %v1558
      %v1560 = vpop.f32.mrf.mxu0
      %1561 = vmatprep.mubr.bf16.mxu0 0
      %1562 = vmatmul.mubr.bf16.gmra.mxu0 %v582
      %v1563 = vpop.f32.mrf.mxu0
      %v1564 = vadd.f32 0.0, %v1563
      %v1565 = vpop.f32.mrf.mxu0
      %v1566 = vpop.f32.mrf.mxu0
      %v1567 = vadd.f32 0.0, %v1566
      %v1568 = vpop.f32.mrf.mxu0
      %1569 = vmatprep.mubr.bf16.mxu0 0
      %1570 = vmatmul.mubr.bf16.gmra.mxu0 %v585
      %v1571 = vpop.f32.mrf.mxu0
      %v1572 = vadd.f32 0.0, %v1571
      %v1573 = vpop.f32.mrf.mxu0
      %v1574 = vpop.f32.mrf.mxu0
      %v1575 = vadd.f32 0.0, %v1574
      %v1576 = vpop.f32.mrf.mxu0
      %1577 = vmatprep.mubr.bf16.mxu0 0
      %1578 = vmatmul.mubr.bf16.gmra.mxu0 %v588
      %v1579 = vpop.f32.mrf.mxu0
      %v1580 = vadd.f32 0.0, %v1579
      %v1581 = vpop.f32.mrf.mxu0
      %v1582 = vpop.f32.mrf.mxu0
      %v1583 = vadd.f32 0.0, %v1582
      %v1584 = vpop.f32.mrf.mxu0
      %1585 = vmatprep.mubr.bf16.mxu0 0
      %1586 = vmatmul.mubr.bf16.gmra.mxu0 %v591
      %v1587 = vpop.f32.mrf.mxu0
      %v1588 = vadd.f32 0.0, %v1587
      %v1589 = vpop.f32.mrf.mxu0
      %v1590 = vpop.f32.mrf.mxu0
      %v1591 = vadd.f32 0.0, %v1590
      %v1592 = vpop.f32.mrf.mxu0
      %1593 = vmatprep.mubr.bf16.mxu0 0
      %1594 = vmatmul.mubr.bf16.gmra.mxu0 %v594
      %v1595 = vpop.f32.mrf.mxu0
      %v1596 = vadd.f32 0.0, %v1595
      %v1597 = vpop.f32.mrf.mxu0
      %v1598 = vpop.f32.mrf.mxu0
      %v1599 = vpop.f32.mrf.mxu0
      %1600 = vmatprep.mubr.bf16.mxu0 0
      %1601 = vmatmul.mubr.bf16.gmra.mxu0 %v597
      %v1602 = vpop.f32.mrf.mxu0
      %v1603 = vpop.f32.mrf.mxu0
      %v1604 = vpop.f32.mrf.mxu0
      %v1605 = vpop.f32.mrf.mxu0
      %1606 = vdwg.mxu0
      %vm1623 = vcmask 1041408
      %v1624 = vrot.slane %v1535, 6
      %v1625 = vrot.slane %v1540, 6
      %v1626 = vsel %vm1623, %v1624, %v1625
      %v1627 = vrot.slane %v1543, 6
      %v1628 = vsel %vm1623, %v1625, %v1627
      %v1629 = vrot.slane %v1548, 6
      %v1630 = vsel %vm1623, %v1627, %v1629
      %v1631 = vrot.slane %v1551, 6
      %v1632 = vsel %vm1623, %v1629, %v1631
      %v1633 = vrot.slane %v1556, 6
      %v1634 = vsel %vm1623, %v1631, %v1633
      %v1635 = vrot.slane %v1559, 6
      %v1636 = vsel %vm1623, %v1633, %v1635
      %v1637 = vrot.slane %v1564, 6
      %v1638 = vsel %vm1623, %v1635, %v1637
      %v1639 = vrot.slane %v1567, 6
      %v1640 = vsel %vm1623, %v1637, %v1639
      %v1641 = vrot.slane %v1572, 6
      %v1642 = vsel %vm1623, %v1639, %v1641
      %v1643 = vrot.slane %v1575, 6
      %v1644 = vsel %vm1623, %v1641, %v1643
      %v1645 = vrot.slane %v1580, 6
      %v1646 = vsel %vm1623, %v1643, %v1645
      %v1647 = vrot.slane %v1583, 6
      %v1648 = vsel %vm1623, %v1645, %v1647
      %v1649 = vrot.slane %v1588, 6
      %v1650 = vsel %vm1623, %v1647, %v1649
      %v1651 = vrot.slane %v1591, 6
      %v1652 = vsel %vm1623, %v1649, %v1651
      %v1653 = vrot.slane %v1596, 6
      %v1654 = vsel %vm1623, %v1651, %v1653
      %v1670 = vadd.f32 %v1478, %v1626
      %v1671 = vadd.f32 %v1479, %v1628
      %v1672 = vadd.f32 %v1480, %v1630
      %v1673 = vadd.f32 %v1481, %v1632
      %v1674 = vadd.f32 %v1482, %v1634
      %v1675 = vadd.f32 %v1483, %v1636
      %v1676 = vadd.f32 %v1484, %v1638
      %v1677 = vadd.f32 %v1485, %v1640
      %v1678 = vadd.f32 %v1486, %v1642
      %v1679 = vadd.f32 %v1487, %v1644
      %v1680 = vadd.f32 %v1488, %v1646
      %v1681 = vadd.f32 %v1489, %v1648
      %v1682 = vadd.f32 %v1490, %v1650
      %v1683 = vadd.f32 %v1491, %v1652
      %v1684 = vadd.f32 %v1492, %v1654
      %s1685 = scalar_lea.vmem %s3, 24
      %v1686 = vld [vmem:[%s1685] sm:$0xf]
      %v1688 = vsel %vm599, %v1686, 0
      %1690 = vmatprep.subr.bf16.mxu0 0
      %1691 = vmatpush1.bf16.msra.mxu0 0
      %1692 = vmatprep.subr.bf16.mxu0 0
      %1693 = vmatpush1.bf16.msra.mxu0 0
      %1694 = vmatprep.subr.bf16.mxu0 0
      %1695 = vmatpush1.bf16.msra.mxu0 0
      %1696 = vmatprep.subr.bf16.mxu0 0
      %1697 = vmatpush1.bf16.msra.mxu0 0
      %1698 = vmatprep.subr.bf16.mxu0 0
      %1699 = vmatpush1.bf16.msra.mxu0 0
      %1700 = vmatprep.subr.bf16.mxu0 0
      %1701 = vmatpush1.bf16.msra.mxu0 0
      %1702 = vmatprep.subr.bf16.mxu0 0
      %1703 = vmatpush1.bf16.msra.mxu0 0
      %1704 = vmatprep.subr.bf16.mxu0 0
      %1705 = vmatpush1.bf16.msra.mxu0 %v1688
      %1706 = vmatprep.subr.bf16.mxu0 0
      %1707 = vmatpush2.bf16.msra.mxu0 0
      %1708 = vmatprep.subr.bf16.mxu0 0
      %1709 = vmatpush2.bf16.msra.mxu0 0
      %1710 = vmatprep.subr.bf16.mxu0 0
      %1711 = vmatpush2.bf16.msra.mxu0 0
      %1712 = vmatprep.subr.bf16.mxu0 0
      %1713 = vmatpush2.bf16.msra.mxu0 0
      %1714 = vmatprep.subr.bf16.mxu0 0
      %1715 = vmatpush2.bf16.msra.mxu0 0
      %1716 = vmatprep.subr.bf16.mxu0 0
      %1717 = vmatpush2.bf16.msra.mxu0 0
      %1718 = vmatprep.subr.bf16.mxu0 0
      %1719 = vmatpush2.bf16.msra.mxu0 0
      %1720 = vmatprep.subr.bf16.mxu0 0
      %1721 = vmatpush2.bf16.msra.mxu0 0
      %1722 = vmatprep.mubr.bf16.mxu0 0
      %1723 = vmatmul.mubr.bf16.gmra.mxu0 %v570
      %v1724 = vpop.f32.mrf.mxu0
      %v1725 = vpop.f32.mrf.mxu0
      %v1726 = vpop.f32.mrf.mxu0
      %v1727 = vpop.f32.mrf.mxu0
      %1728 = vmatprep.mubr.bf16.mxu0 0
      %1729 = vmatmul.mubr.bf16.gmra.mxu0 %v573
      %v1730 = vpop.f32.mrf.mxu0
      %v1731 = vpop.f32.mrf.mxu0
      %v1732 = vpop.f32.mrf.mxu0
      %v1733 = vadd.f32 0.0, %v1732
      %v1734 = vpop.f32.mrf.mxu0
      %1735 = vmatprep.mubr.bf16.mxu0 0
      %1736 = vmatmul.mubr.bf16.gmra.mxu0 %v576
      %v1737 = vpop.f32.mrf.mxu0
      %v1738 = vadd.f32 0.0, %v1737
      %v1739 = vpop.f32.mrf.mxu0
      %v1740 = vpop.f32.mrf.mxu0
      %v1741 = vadd.f32 0.0, %v1740
      %v1742 = vpop.f32.mrf.mxu0
      %1743 = vmatprep.mubr.bf16.mxu0 0
      %1744 = vmatmul.mubr.bf16.gmra.mxu0 %v579
      %v1745 = vpop.f32.mrf.mxu0
      %v1746 = vadd.f32 0.0, %v1745
      %v1747 = vpop.f32.mrf.mxu0
      %v1748 = vpop.f32.mrf.mxu0
      %v1749 = vadd.f32 0.0, %v1748
      %v1750 = vpop.f32.mrf.mxu0
      %1751 = vmatprep.mubr.bf16.mxu0 0
      %1752 = vmatmul.mubr.bf16.gmra.mxu0 %v582
      %v1753 = vpop.f32.mrf.mxu0
      %v1754 = vadd.f32 0.0, %v1753
      %v1755 = vpop.f32.mrf.mxu0
      %v1756 = vpop.f32.mrf.mxu0
      %v1757 = vadd.f32 0.0, %v1756
      %v1758 = vpop.f32.mrf.mxu0
      %1759 = vmatprep.mubr.bf16.mxu0 0
      %1760 = vmatmul.mubr.bf16.gmra.mxu0 %v585
      %v1761 = vpop.f32.mrf.mxu0
      %v1762 = vadd.f32 0.0, %v1761
      %v1763 = vpop.f32.mrf.mxu0
      %v1764 = vpop.f32.mrf.mxu0
      %v1765 = vadd.f32 0.0, %v1764
      %v1766 = vpop.f32.mrf.mxu0
      %1767 = vmatprep.mubr.bf16.mxu0 0
      %1768 = vmatmul.mubr.bf16.gmra.mxu0 %v588
      %v1769 = vpop.f32.mrf.mxu0
      %v1770 = vadd.f32 0.0, %v1769
      %v1771 = vpop.f32.mrf.mxu0
      %v1772 = vpop.f32.mrf.mxu0
      %v1773 = vadd.f32 0.0, %v1772
      %v1774 = vpop.f32.mrf.mxu0
      %1775 = vmatprep.mubr.bf16.mxu0 0
      %1776 = vmatmul.mubr.bf16.gmra.mxu0 %v591
      %v1777 = vpop.f32.mrf.mxu0
      %v1778 = vadd.f32 0.0, %v1777
      %v1779 = vpop.f32.mrf.mxu0
      %v1780 = vpop.f32.mrf.mxu0
      %v1781 = vadd.f32 0.0, %v1780
      %v1782 = vpop.f32.mrf.mxu0
      %1783 = vmatprep.mubr.bf16.mxu0 0
      %1784 = vmatmul.mubr.bf16.gmra.mxu0 %v594
      %v1785 = vpop.f32.mrf.mxu0
      %v1786 = vadd.f32 0.0, %v1785
      %v1787 = vpop.f32.mrf.mxu0
      %v1788 = vpop.f32.mrf.mxu0
      %v1789 = vadd.f32 0.0, %v1788
      %v1790 = vpop.f32.mrf.mxu0
      %1791 = vmatprep.mubr.bf16.mxu0 0
      %1792 = vmatmul.mubr.bf16.gmra.mxu0 %v597
      %v1793 = vpop.f32.mrf.mxu0
      %v1794 = vpop.f32.mrf.mxu0
      %v1795 = vpop.f32.mrf.mxu0
      %v1796 = vpop.f32.mrf.mxu0
      %1797 = vdwg.mxu0
      %v1798 = vadd.f32 %v1670, %v1733
      %v1799 = vadd.f32 %v1671, %v1738
      %v1800 = vadd.f32 %v1672, %v1741
      %v1801 = vadd.f32 %v1673, %v1746
      %v1802 = vadd.f32 %v1674, %v1749
      %v1803 = vadd.f32 %v1675, %v1754
      %v1804 = vadd.f32 %v1676, %v1757
      %v1805 = vadd.f32 %v1677, %v1762
      %v1806 = vadd.f32 %v1678, %v1765
      %v1807 = vadd.f32 %v1679, %v1770
      %v1808 = vadd.f32 %v1680, %v1773
      %v1809 = vadd.f32 %v1681, %v1778
      %v1810 = vadd.f32 %v1682, %v1781
      %v1811 = vadd.f32 %v1683, %v1786
      %v1812 = vadd.f32 %v1684, %v1789
      %s1813 = scalar_lea.vmem %s3, 28
      %v1814 = vld [vmem:[%s1813] sm:$0xf]
      %v1816 = vsel %vm599, %v1814, 0
      %1818 = vmatprep.subr.bf16.mxu0 0
      %1819 = vmatpush1.bf16.msra.mxu0 0
      %1820 = vmatprep.subr.bf16.mxu0 0
      %1821 = vmatpush1.bf16.msra.mxu0 0
      %1822 = vmatprep.subr.bf16.mxu0 0
      %1823 = vmatpush1.bf16.msra.mxu0 0
      %1824 = vmatprep.subr.bf16.mxu0 0
      %1825 = vmatpush1.bf16.msra.mxu0 0
      %1826 = vmatprep.subr.bf16.mxu0 0
      %1827 = vmatpush1.bf16.msra.mxu0 0
      %1828 = vmatprep.subr.bf16.mxu0 0
      %1829 = vmatpush1.bf16.msra.mxu0 0
      %1830 = vmatprep.subr.bf16.mxu0 0
      %1831 = vmatpush1.bf16.msra.mxu0 0
      %1832 = vmatprep.subr.bf16.mxu0 0
      %1833 = vmatpush1.bf16.msra.mxu0 %v1816
      %1834 = vmatprep.subr.bf16.mxu0 0
      %1835 = vmatpush2.bf16.msra.mxu0 0
      %1836 = vmatprep.subr.bf16.mxu0 0
      %1837 = vmatpush2.bf16.msra.mxu0 0
      %1838 = vmatprep.subr.bf16.mxu0 0
      %1839 = vmatpush2.bf16.msra.mxu0 0
      %1840 = vmatprep.subr.bf16.mxu0 0
      %1841 = vmatpush2.bf16.msra.mxu0 0
      %1842 = vmatprep.subr.bf16.mxu0 0
      %1843 = vmatpush2.bf16.msra.mxu0 0
      %1844 = vmatprep.subr.bf16.mxu0 0
      %1845 = vmatpush2.bf16.msra.mxu0 0
      %1846 = vmatprep.subr.bf16.mxu0 0
      %1847 = vmatpush2.bf16.msra.mxu0 0
      %1848 = vmatprep.subr.bf16.mxu0 0
      %1849 = vmatpush2.bf16.msra.mxu0 0
      %1850 = vmatprep.mubr.bf16.mxu0 0
      %1851 = vmatmul.mubr.bf16.gmra.mxu0 %v570
      %v1852 = vpop.f32.mrf.mxu0
      %v1853 = vpop.f32.mrf.mxu0
      %v1854 = vpop.f32.mrf.mxu0
      %v1855 = vpop.f32.mrf.mxu0
      %1856 = vmatprep.mubr.bf16.mxu0 0
      %1857 = vmatmul.mubr.bf16.gmra.mxu0 %v573
      %v1858 = vpop.f32.mrf.mxu0
      %v1859 = vpop.f32.mrf.mxu0
      %v1860 = vpop.f32.mrf.mxu0
      %v1861 = vadd.f32 0.0, %v1860
      %v1862 = vpop.f32.mrf.mxu0
      %1863 = vmatprep.mubr.bf16.mxu0 0
      %1864 = vmatmul.mubr.bf16.gmra.mxu0 %v576
      %v1865 = vpop.f32.mrf.mxu0
      %v1866 = vadd.f32 0.0, %v1865
      %v1867 = vpop.f32.mrf.mxu0
      %v1868 = vpop.f32.mrf.mxu0
      %v1869 = vadd.f32 0.0, %v1868
      %v1870 = vpop.f32.mrf.mxu0
      %1871 = vmatprep.mubr.bf16.mxu0 0
      %1872 = vmatmul.mubr.bf16.gmra.mxu0 %v579
      %v1873 = vpop.f32.mrf.mxu0
      %v1874 = vadd.f32 0.0, %v1873
      %v1875 = vpop.f32.mrf.mxu0
      %v1876 = vpop.f32.mrf.mxu0
      %v1877 = vadd.f32 0.0, %v1876
      %v1878 = vpop.f32.mrf.mxu0
      %1879 = vmatprep.mubr.bf16.mxu0 0
      %1880 = vmatmul.mubr.bf16.gmra.mxu0 %v582
      %v1881 = vpop.f32.mrf.mxu0
      %v1882 = vadd.f32 0.0, %v1881
      %v1883 = vpop.f32.mrf.mxu0
      %v1884 = vpop.f32.mrf.mxu0
      %v1885 = vadd.f32 0.0, %v1884
      %v1886 = vpop.f32.mrf.mxu0
      %1887 = vmatprep.mubr.bf16.mxu0 0
      %1888 = vmatmul.mubr.bf16.gmra.mxu0 %v585
      %v1889 = vpop.f32.mrf.mxu0
      %v1890 = vadd.f32 0.0, %v1889
      %v1891 = vpop.f32.mrf.mxu0
      %v1892 = vpop.f32.mrf.mxu0
      %v1893 = vadd.f32 0.0, %v1892
      %v1894 = vpop.f32.mrf.mxu0
      %1895 = vmatprep.mubr.bf16.mxu0 0
      %1896 = vmatmul.mubr.bf16.gmra.mxu0 %v588
      %v1897 = vpop.f32.mrf.mxu0
      %v1898 = vadd.f32 0.0, %v1897
      %v1899 = vpop.f32.mrf.mxu0
      %v1900 = vpop.f32.mrf.mxu0
      %v1901 = vadd.f32 0.0, %v1900
      %v1902 = vpop.f32.mrf.mxu0
      %1903 = vmatprep.mubr.bf16.mxu0 0
      %1904 = vmatmul.mubr.bf16.gmra.mxu0 %v591
      %v1905 = vpop.f32.mrf.mxu0
      %v1906 = vadd.f32 0.0, %v1905
      %v1907 = vpop.f32.mrf.mxu0
      %v1908 = vpop.f32.mrf.mxu0
      %v1909 = vadd.f32 0.0, %v1908
      %v1910 = vpop.f32.mrf.mxu0
      %1911 = vmatprep.mubr.bf16.mxu0 0
      %1912 = vmatmul.mubr.bf16.gmra.mxu0 %v594
      %v1913 = vpop.f32.mrf.mxu0
      %v1914 = vadd.f32 0.0, %v1913
      %v1915 = vpop.f32.mrf.mxu0
      %v1916 = vpop.f32.mrf.mxu0
      %v1917 = vadd.f32 0.0, %v1916
      %v1918 = vpop.f32.mrf.mxu0
      %1919 = vmatprep.mubr.bf16.mxu0 0
      %1920 = vmatmul.mubr.bf16.gmra.mxu0 %v597
      %v1921 = vpop.f32.mrf.mxu0
      %v1922 = vadd.f32 0.0, %v1921
      %v1923 = vpop.f32.mrf.mxu0
      %v1924 = vpop.f32.mrf.mxu0
      %v1925 = vpop.f32.mrf.mxu0
      %1926 = vdwg.mxu0
      %v1943 = vrot.slane %v1861, 1
      %v1944 = vrot.slane %v1866, 1
      %v1945 = vsel %vm856, %v1943, %v1944
      %v1946 = vrot.slane %v1869, 1
      %v1947 = vsel %vm856, %v1944, %v1946
      %v1948 = vrot.slane %v1874, 1
      %v1949 = vsel %vm856, %v1946, %v1948
      %v1950 = vrot.slane %v1877, 1
      %v1951 = vsel %vm856, %v1948, %v1950
      %v1952 = vrot.slane %v1882, 1
      %v1953 = vsel %vm856, %v1950, %v1952
      %v1954 = vrot.slane %v1885, 1
      %v1955 = vsel %vm856, %v1952, %v1954
      %v1956 = vrot.slane %v1890, 1
      %v1957 = vsel %vm856, %v1954, %v1956
      %v1958 = vrot.slane %v1893, 1
      %v1959 = vsel %vm856, %v1956, %v1958
      %v1960 = vrot.slane %v1898, 1
      %v1961 = vsel %vm856, %v1958, %v1960
      %v1962 = vrot.slane %v1901, 1
      %v1963 = vsel %vm856, %v1960, %v1962
      %v1964 = vrot.slane %v1906, 1
      %v1965 = vsel %vm856, %v1962, %v1964
      %v1966 = vrot.slane %v1909, 1
      %v1967 = vsel %vm856, %v1964, %v1966
      %v1968 = vrot.slane %v1914, 1
      %v1969 = vsel %vm856, %v1966, %v1968
      %v1970 = vrot.slane %v1917, 1
      %v1971 = vsel %vm856, %v1968, %v1970
      %v1972 = vrot.slane %v1922, 1
      %v1973 = vsel %vm856, %v1970, %v1972
      %v1989 = vadd.f32 %v1798, %v1945
      %v1990 = vadd.f32 %v1799, %v1947
      %v1991 = vadd.f32 %v1800, %v1949
      %v1992 = vadd.f32 %v1801, %v1951
      %v1993 = vadd.f32 %v1802, %v1953
      %v1994 = vadd.f32 %v1803, %v1955
      %v1995 = vadd.f32 %v1804, %v1957
      %v1996 = vadd.f32 %v1805, %v1959
      %v1997 = vadd.f32 %v1806, %v1961
      %v1998 = vadd.f32 %v1807, %v1963
      %v1999 = vadd.f32 %v1808, %v1965
      %v2000 = vadd.f32 %v1809, %v1967
      %v2001 = vadd.f32 %v1810, %v1969
      %v2002 = vadd.f32 %v1811, %v1971
      %v2003 = vadd.f32 %v1812, %v1973
      %s2004 = scalar_lea.vmem %s3, 32
      %v2005 = vld [vmem:[%s2004] sm:$0xf]
      %v2007 = vsel %vm599, %v2005, 0
      %2009 = vmatprep.subr.bf16.mxu0 0
      %2010 = vmatpush1.bf16.msra.mxu0 0
      %2011 = vmatprep.subr.bf16.mxu0 0
      %2012 = vmatpush1.bf16.msra.mxu0 0
      %2013 = vmatprep.subr.bf16.mxu0 0
      %2014 = vmatpush1.bf16.msra.mxu0 0
      %2015 = vmatprep.subr.bf16.mxu0 0
      %2016 = vmatpush1.bf16.msra.mxu0 0
      %2017 = vmatprep.subr.bf16.mxu0 0
      %2018 = vmatpush1.bf16.msra.mxu0 0
      %2019 = vmatprep.subr.bf16.mxu0 0
      %2020 = vmatpush1.bf16.msra.mxu0 0
      %2021 = vmatprep.subr.bf16.mxu0 0
      %2022 = vmatpush1.bf16.msra.mxu0 0
      %2023 = vmatprep.subr.bf16.mxu0 0
      %2024 = vmatpush1.bf16.msra.mxu0 %v2007
      %2025 = vmatprep.subr.bf16.mxu0 0
      %2026 = vmatpush2.bf16.msra.mxu0 0
      %2027 = vmatprep.subr.bf16.mxu0 0
      %2028 = vmatpush2.bf16.msra.mxu0 0
      %2029 = vmatprep.subr.bf16.mxu0 0
      %2030 = vmatpush2.bf16.msra.mxu0 0
      %2031 = vmatprep.subr.bf16.mxu0 0
      %2032 = vmatpush2.bf16.msra.mxu0 0
      %2033 = vmatprep.subr.bf16.mxu0 0
      %2034 = vmatpush2.bf16.msra.mxu0 0
      %2035 = vmatprep.subr.bf16.mxu0 0
      %2036 = vmatpush2.bf16.msra.mxu0 0
      %2037 = vmatprep.subr.bf16.mxu0 0
      %2038 = vmatpush2.bf16.msra.mxu0 0
      %2039 = vmatprep.subr.bf16.mxu0 0
      %2040 = vmatpush2.bf16.msra.mxu0 0
      %2041 = vmatprep.mubr.bf16.mxu0 0
      %2042 = vmatmul.mubr.bf16.gmra.mxu0 %v570
      %v2043 = vpop.f32.mrf.mxu0
      %v2044 = vpop.f32.mrf.mxu0
      %v2045 = vpop.f32.mrf.mxu0
      %v2046 = vpop.f32.mrf.mxu0
      %2047 = vmatprep.mubr.bf16.mxu0 0
      %2048 = vmatmul.mubr.bf16.gmra.mxu0 %v573
      %v2049 = vpop.f32.mrf.mxu0
      %v2050 = vpop.f32.mrf.mxu0
      %v2051 = vpop.f32.mrf.mxu0
      %v2052 = vadd.f32 0.0, %v2051
      %v2053 = vpop.f32.mrf.mxu0
      %2054 = vmatprep.mubr.bf16.mxu0 0
      %2055 = vmatmul.mubr.bf16.gmra.mxu0 %v576
      %v2056 = vpop.f32.mrf.mxu0
      %v2057 = vadd.f32 0.0, %v2056
      %v2058 = vpop.f32.mrf.mxu0
      %v2059 = vpop.f32.mrf.mxu0
      %v2060 = vadd.f32 0.0, %v2059
      %v2061 = vpop.f32.mrf.mxu0
      %2062 = vmatprep.mubr.bf16.mxu0 0
      %2063 = vmatmul.mubr.bf16.gmra.mxu0 %v579
      %v2064 = vpop.f32.mrf.mxu0
      %v2065 = vadd.f32 0.0, %v2064
      %v2066 = vpop.f32.mrf.mxu0
      %v2067 = vpop.f32.mrf.mxu0
      %v2068 = vadd.f32 0.0, %v2067
      %v2069 = vpop.f32.mrf.mxu0
      %2070 = vmatprep.mubr.bf16.mxu0 0
      %2071 = vmatmul.mubr.bf16.gmra.mxu0 %v582
      %v2072 = vpop.f32.mrf.mxu0
      %v2073 = vadd.f32 0.0, %v2072
      %v2074 = vpop.f32.mrf.mxu0
      %v2075 = vpop.f32.mrf.mxu0
      %v2076 = vadd.f32 0.0, %v2075
      %v2077 = vpop.f32.mrf.mxu0
      %2078 = vmatprep.mubr.bf16.mxu0 0
      %2079 = vmatmul.mubr.bf16.gmra.mxu0 %v585
      %v2080 = vpop.f32.mrf.mxu0
      %v2081 = vadd.f32 0.0, %v2080
      %v2082 = vpop.f32.mrf.mxu0
      %v2083 = vpop.f32.mrf.mxu0
      %v2084 = vadd.f32 0.0, %v2083
      %v2085 = vpop.f32.mrf.mxu0
      %2086 = vmatprep.mubr.bf16.mxu0 0
      %2087 = vmatmul.mubr.bf16.gmra.mxu0 %v588
      %v2088 = vpop.f32.mrf.mxu0
      %v2089 = vadd.f32 0.0, %v2088
      %v2090 = vpop.f32.mrf.mxu0
      %v2091 = vpop.f32.mrf.mxu0
      %v2092 = vadd.f32 0.0, %v2091
      %v2093 = vpop.f32.mrf.mxu0
      %2094 = vmatprep.mubr.bf16.mxu0 0
      %2095 = vmatmul.mubr.bf16.gmra.mxu0 %v591
      %v2096 = vpop.f32.mrf.mxu0
      %v2097 = vadd.f32 0.0, %v2096
      %v2098 = vpop.f32.mrf.mxu0
      %v2099 = vpop.f32.mrf.mxu0
      %v2100 = vadd.f32 0.0, %v2099
      %v2101 = vpop.f32.mrf.mxu0
      %2102 = vmatprep.mubr.bf16.mxu0 0
      %2103 = vmatmul.mubr.bf16.gmra.mxu0 %v594
      %v2104 = vpop.f32.mrf.mxu0
      %v2105 = vadd.f32 0.0, %v2104
      %v2106 = vpop.f32.mrf.mxu0
      %v2107 = vpop.f32.mrf.mxu0
      %v2108 = vadd.f32 0.0, %v2107
      %v2109 = vpop.f32.mrf.mxu0
      %2110 = vmatprep.mubr.bf16.mxu0 0
      %2111 = vmatmul.mubr.bf16.gmra.mxu0 %v597
      %v2112 = vpop.f32.mrf.mxu0
      %v2113 = vadd.f32 0.0, %v2112
      %v2114 = vpop.f32.mrf.mxu0
      %v2115 = vpop.f32.mrf.mxu0
      %v2116 = vpop.f32.mrf.mxu0
      %2117 = vdwg.mxu0
      %v2134 = vrot.slane %v2052, 2
      %v2135 = vrot.slane %v2057, 2
      %v2136 = vsel %vm1048, %v2134, %v2135
      %v2137 = vrot.slane %v2060, 2
      %v2138 = vsel %vm1048, %v2135, %v2137
      %v2139 = vrot.slane %v2065, 2
      %v2140 = vsel %vm1048, %v2137, %v2139
      %v2141 = vrot.slane %v2068, 2
      %v2142 = vsel %vm1048, %v2139, %v2141
      %v2143 = vrot.slane %v2073, 2
      %v2144 = vsel %vm1048, %v2141, %v2143
      %v2145 = vrot.slane %v2076, 2
      %v2146 = vsel %vm1048, %v2143, %v2145
      %v2147 = vrot.slane %v2081, 2
      %v2148 = vsel %vm1048, %v2145, %v2147
      %v2149 = vrot.slane %v2084, 2
      %v2150 = vsel %vm1048, %v2147, %v2149
      %v2151 = vrot.slane %v2089, 2
      %v2152 = vsel %vm1048, %v2149, %v2151
      %v2153 = vrot.slane %v2092, 2
      %v2154 = vsel %vm1048, %v2151, %v2153
      %v2155 = vrot.slane %v2097, 2
      %v2156 = vsel %vm1048, %v2153, %v2155
      %v2157 = vrot.slane %v2100, 2
      %v2158 = vsel %vm1048, %v2155, %v2157
      %v2159 = vrot.slane %v2105, 2
      %v2160 = vsel %vm1048, %v2157, %v2159
      %v2161 = vrot.slane %v2108, 2
      %v2162 = vsel %vm1048, %v2159, %v2161
      %v2163 = vrot.slane %v2113, 2
      %v2164 = vsel %vm1048, %v2161, %v2163
      %v2180 = vadd.f32 %v1989, %v2136
      %v2181 = vadd.f32 %v1990, %v2138
      %v2182 = vadd.f32 %v1991, %v2140
      %v2183 = vadd.f32 %v1992, %v2142
      %v2184 = vadd.f32 %v1993, %v2144
      %v2185 = vadd.f32 %v1994, %v2146
      %v2186 = vadd.f32 %v1995, %v2148
      %v2187 = vadd.f32 %v1996, %v2150
      %v2188 = vadd.f32 %v1997, %v2152
      %v2189 = vadd.f32 %v1998, %v2154
      %v2190 = vadd.f32 %v1999, %v2156
      %v2191 = vadd.f32 %v2000, %v2158
      %v2192 = vadd.f32 %v2001, %v2160
      %v2193 = vadd.f32 %v2002, %v2162
      %v2194 = vadd.f32 %v2003, %v2164
      %s2195 = scalar_lea.vmem %s3, 36
      %v2196 = vld [vmem:[%s2195] sm:$0xf]
      %v2216 = vunpack.c.l.b16 %v481
      %v2217 = vunpack.c.l.b16 %v482
      %v2218 = vunpack.c.l.b16 %v483
      %v2219 = vunpack.c.l.b16 %v484
      %v2220 = vunpack.c.l.b16 %v485
      %v2221 = vunpack.c.l.b16 %v486
      %v2222 = vunpack.c.l.b16 %v487
      %v2223 = vunpack.c.l.b16 %v488
      %v2224 = vunpack.c.l.b16 %v489
      %v2225 = vunpack.c.l.b16 %v490
      %v2226 = vunpack.c.l.b16 %v491
      %v2227 = vunpack.c.l.b16 %v492
      %v2228 = vunpack.c.l.b16 %v493
      %v2229 = vunpack.c.l.b16 %v494
      %v2230 = vunpack.c.l.b16 %v495
      %v2231 = vunpack.c.l.b16 %v496
      %v2232 = vunpack.c.l.b16 %v497
      %v2233 = vunpack.c.l.b16 %v498
      %v2234 = vunpack.c.l.b16 %v499
      %v2235 = vpack.c.b16 %v2217, %v2216
      %v2236 = vpack.c.b16 %v2219, %v2218
      %v2237 = vpack.c.b16 %v2221, %v2220
      %v2238 = vpack.c.b16 %v2223, %v2222
      %v2239 = vpack.c.b16 %v2225, %v2224
      %v2240 = vpack.c.b16 %v2227, %v2226
      %v2241 = vpack.c.b16 %v2229, %v2228
      %v2242 = vpack.c.b16 %v2231, %v2230
      %v2243 = vpack.c.b16 %v2233, %v2232
      %v2244 = vpack.c.b16 %v2234, %v2234
      %v2246 = vsel %vm568, %v2235, 0
      %v2249 = vsel %vm568, %v2236, 0
      %v2252 = vsel %vm568, %v2237, 0
      %v2255 = vsel %vm568, %v2238, 0
      %v2258 = vsel %vm568, %v2239, 0
      %v2261 = vsel %vm568, %v2240, 0
      %v2264 = vsel %vm568, %v2241, 0
      %v2267 = vsel %vm568, %v2242, 0
      %v2270 = vsel %vm568, %v2243, 0
      %v2273 = vsel %vm568, %v2244, 0
      %v2276 = vsel %vm599, %v2196, 0
      %2278 = vmatprep.subr.bf16.mxu0 0
      %2279 = vmatpush1.bf16.msra.mxu0 0
      %2280 = vmatprep.subr.bf16.mxu0 0
      %2281 = vmatpush1.bf16.msra.mxu0 0
      %2282 = vmatprep.subr.bf16.mxu0 0
      %2283 = vmatpush1.bf16.msra.mxu0 0
      %2284 = vmatprep.subr.bf16.mxu0 0
      %2285 = vmatpush1.bf16.msra.mxu0 0
      %2286 = vmatprep.subr.bf16.mxu0 0
      %2287 = vmatpush1.bf16.msra.mxu0 0
      %2288 = vmatprep.subr.bf16.mxu0 0
      %2289 = vmatpush1.bf16.msra.mxu0 0
      %2290 = vmatprep.subr.bf16.mxu0 0
      %2291 = vmatpush1.bf16.msra.mxu0 0
      %2292 = vmatprep.subr.bf16.mxu0 0
      %2293 = vmatpush1.bf16.msra.mxu0 %v2276
      %2294 = vmatprep.subr.bf16.mxu0 0
      %2295 = vmatpush2.bf16.msra.mxu0 0
      %2296 = vmatprep.subr.bf16.mxu0 0
      %2297 = vmatpush2.bf16.msra.mxu0 0
      %2298 = vmatprep.subr.bf16.mxu0 0
      %2299 = vmatpush2.bf16.msra.mxu0 0
      %2300 = vmatprep.subr.bf16.mxu0 0
      %2301 = vmatpush2.bf16.msra.mxu0 0
      %2302 = vmatprep.subr.bf16.mxu0 0
      %2303 = vmatpush2.bf16.msra.mxu0 0
      %2304 = vmatprep.subr.bf16.mxu0 0
      %2305 = vmatpush2.bf16.msra.mxu0 0
      %2306 = vmatprep.subr.bf16.mxu0 0
      %2307 = vmatpush2.bf16.msra.mxu0 0
      %2308 = vmatprep.subr.bf16.mxu0 0
      %2309 = vmatpush2.bf16.msra.mxu0 0
      %2310 = vmatprep.mubr.bf16.mxu0 0
      %2311 = vmatmul.mubr.bf16.gmra.mxu0 %v2246
      %v2312 = vpop.f32.mrf.mxu0
      %v2313 = vadd.f32 0.0, %v2312
      %v2314 = vpop.f32.mrf.mxu0
      %v2315 = vpop.f32.mrf.mxu0
      %v2316 = vadd.f32 0.0, %v2315
      %v2317 = vpop.f32.mrf.mxu0
      %2318 = vmatprep.mubr.bf16.mxu0 0
      %2319 = vmatmul.mubr.bf16.gmra.mxu0 %v2249
      %v2320 = vpop.f32.mrf.mxu0
      %v2321 = vadd.f32 0.0, %v2320
      %v2322 = vpop.f32.mrf.mxu0
      %v2323 = vpop.f32.mrf.mxu0
      %v2324 = vadd.f32 0.0, %v2323
      %v2325 = vpop.f32.mrf.mxu0
      %2326 = vmatprep.mubr.bf16.mxu0 0
      %2327 = vmatmul.mubr.bf16.gmra.mxu0 %v2252
      %v2328 = vpop.f32.mrf.mxu0
      %v2329 = vadd.f32 0.0, %v2328
      %v2330 = vpop.f32.mrf.mxu0
      %v2331 = vpop.f32.mrf.mxu0
      %v2332 = vadd.f32 0.0, %v2331
      %v2333 = vpop.f32.mrf.mxu0
      %2334 = vmatprep.mubr.bf16.mxu0 0
      %2335 = vmatmul.mubr.bf16.gmra.mxu0 %v2255
      %v2336 = vpop.f32.mrf.mxu0
      %v2337 = vadd.f32 0.0, %v2336
      %v2338 = vpop.f32.mrf.mxu0
      %v2339 = vpop.f32.mrf.mxu0
      %v2340 = vadd.f32 0.0, %v2339
      %v2341 = vpop.f32.mrf.mxu0
      %2342 = vmatprep.mubr.bf16.mxu0 0
      %2343 = vmatmul.mubr.bf16.gmra.mxu0 %v2258
      %v2344 = vpop.f32.mrf.mxu0
      %v2345 = vadd.f32 0.0, %v2344
      %v2346 = vpop.f32.mrf.mxu0
      %v2347 = vpop.f32.mrf.mxu0
      %v2348 = vadd.f32 0.0, %v2347
      %v2349 = vpop.f32.mrf.mxu0
      %2350 = vmatprep.mubr.bf16.mxu0 0
      %2351 = vmatmul.mubr.bf16.gmra.mxu0 %v2261
      %v2352 = vpop.f32.mrf.mxu0
      %v2353 = vadd.f32 0.0, %v2352
      %v2354 = vpop.f32.mrf.mxu0
      %v2355 = vpop.f32.mrf.mxu0
      %v2356 = vadd.f32 0.0, %v2355
      %v2357 = vpop.f32.mrf.mxu0
      %2358 = vmatprep.mubr.bf16.mxu0 0
      %2359 = vmatmul.mubr.bf16.gmra.mxu0 %v2264
      %v2360 = vpop.f32.mrf.mxu0
      %v2361 = vadd.f32 0.0, %v2360
      %v2362 = vpop.f32.mrf.mxu0
      %v2363 = vpop.f32.mrf.mxu0
      %v2364 = vadd.f32 0.0, %v2363
      %v2365 = vpop.f32.mrf.mxu0
      %2366 = vmatprep.mubr.bf16.mxu0 0
      %2367 = vmatmul.mubr.bf16.gmra.mxu0 %v2267
      %v2368 = vpop.f32.mrf.mxu0
      %v2369 = vadd.f32 0.0, %v2368
      %v2370 = vpop.f32.mrf.mxu0
      %v2371 = vpop.f32.mrf.mxu0
      %v2372 = vpop.f32.mrf.mxu0
      %2373 = vmatprep.mubr.bf16.mxu0 0
      %2374 = vmatmul.mubr.bf16.gmra.mxu0 %v2270
      %v2375 = vpop.f32.mrf.mxu0
      %v2376 = vpop.f32.mrf.mxu0
      %v2377 = vpop.f32.mrf.mxu0
      %v2378 = vpop.f32.mrf.mxu0
      %2379 = vmatprep.mubr.bf16.mxu0 0
      %2380 = vmatmul.mubr.bf16.gmra.mxu0 %v2273
      %v2381 = vpop.f32.mrf.mxu0
      %v2382 = vpop.f32.mrf.mxu0
      %v2383 = vpop.f32.mrf.mxu0
      %v2384 = vpop.f32.mrf.mxu0
      %2385 = vdwg.mxu0
      %v2386 = vadd.f32 %v2180, %v2313
      %v2387 = vadd.f32 %v2181, %v2316
      %v2388 = vadd.f32 %v2182, %v2321
      %v2389 = vadd.f32 %v2183, %v2324
      %v2390 = vadd.f32 %v2184, %v2329
      %v2391 = vadd.f32 %v2185, %v2332
      %v2392 = vadd.f32 %v2186, %v2337
      %v2393 = vadd.f32 %v2187, %v2340
      %v2394 = vadd.f32 %v2188, %v2345
      %v2395 = vadd.f32 %v2189, %v2348
      %v2396 = vadd.f32 %v2190, %v2353
      %v2397 = vadd.f32 %v2191, %v2356
      %v2398 = vadd.f32 %v2192, %v2361
      %v2399 = vadd.f32 %v2193, %v2364
      %v2400 = vadd.f32 %v2194, %v2369
      %s2401 = scalar_lea.vmem %s3, 40
      %v2402 = vld [vmem:[%s2401] sm:$0xf]
      %v2404 = vsel %vm599, %v2402, 0
      %2406 = vmatprep.subr.bf16.mxu0 0
      %2407 = vmatpush1.bf16.msra.mxu0 0
      %2408 = vmatprep.subr.bf16.mxu0 0
      %2409 = vmatpush1.bf16.msra.mxu0 0
      %2410 = vmatprep.subr.bf16.mxu0 0
      %2411 = vmatpush1.bf16.msra.mxu0 0
      %2412 = vmatprep.subr.bf16.mxu0 0
      %2413 = vmatpush1.bf16.msra.mxu0 0
      %2414 = vmatprep.subr.bf16.mxu0 0
      %2415 = vmatpush1.bf16.msra.mxu0 0
      %2416 = vmatprep.subr.bf16.mxu0 0
      %2417 = vmatpush1.bf16.msra.mxu0 0
      %2418 = vmatprep.subr.bf16.mxu0 0
      %2419 = vmatpush1.bf16.msra.mxu0 0
      %2420 = vmatprep.subr.bf16.mxu0 0
      %2421 = vmatpush1.bf16.msra.mxu0 %v2404
      %2422 = vmatprep.subr.bf16.mxu0 0
      %2423 = vmatpush2.bf16.msra.mxu0 0
      %2424 = vmatprep.subr.bf16.mxu0 0
      %2425 = vmatpush2.bf16.msra.mxu0 0
      %2426 = vmatprep.subr.bf16.mxu0 0
      %2427 = vmatpush2.bf16.msra.mxu0 0
      %2428 = vmatprep.subr.bf16.mxu0 0
      %2429 = vmatpush2.bf16.msra.mxu0 0
      %2430 = vmatprep.subr.bf16.mxu0 0
      %2431 = vmatpush2.bf16.msra.mxu0 0
      %2432 = vmatprep.subr.bf16.mxu0 0
      %2433 = vmatpush2.bf16.msra.mxu0 0
      %2434 = vmatprep.subr.bf16.mxu0 0
      %2435 = vmatpush2.bf16.msra.mxu0 0
      %2436 = vmatprep.subr.bf16.mxu0 0
      %2437 = vmatpush2.bf16.msra.mxu0 0
      %2438 = vmatprep.mubr.bf16.mxu0 0
      %2439 = vmatmul.mubr.bf16.gmra.mxu0 %v2246
      %v2440 = vpop.f32.mrf.mxu0
      %v2441 = vadd.f32 0.0, %v2440
      %v2442 = vpop.f32.mrf.mxu0
      %v2443 = vpop.f32.mrf.mxu0
      %v2444 = vadd.f32 0.0, %v2443
      %v2445 = vpop.f32.mrf.mxu0
      %2446 = vmatprep.mubr.bf16.mxu0 0
      %2447 = vmatmul.mubr.bf16.gmra.mxu0 %v2249
      %v2448 = vpop.f32.mrf.mxu0
      %v2449 = vadd.f32 0.0, %v2448
      %v2450 = vpop.f32.mrf.mxu0
      %v2451 = vpop.f32.mrf.mxu0
      %v2452 = vadd.f32 0.0, %v2451
      %v2453 = vpop.f32.mrf.mxu0
      %2454 = vmatprep.mubr.bf16.mxu0 0
      %2455 = vmatmul.mubr.bf16.gmra.mxu0 %v2252
      %v2456 = vpop.f32.mrf.mxu0
      %v2457 = vadd.f32 0.0, %v2456
      %v2458 = vpop.f32.mrf.mxu0
      %v2459 = vpop.f32.mrf.mxu0
      %v2460 = vadd.f32 0.0, %v2459
      %v2461 = vpop.f32.mrf.mxu0
      %2462 = vmatprep.mubr.bf16.mxu0 0
      %2463 = vmatmul.mubr.bf16.gmra.mxu0 %v2255
      %v2464 = vpop.f32.mrf.mxu0
      %v2465 = vadd.f32 0.0, %v2464
      %v2466 = vpop.f32.mrf.mxu0
      %v2467 = vpop.f32.mrf.mxu0
      %v2468 = vadd.f32 0.0, %v2467
      %v2469 = vpop.f32.mrf.mxu0
      %2470 = vmatprep.mubr.bf16.mxu0 0
      %2471 = vmatmul.mubr.bf16.gmra.mxu0 %v2258
      %v2472 = vpop.f32.mrf.mxu0
      %v2473 = vadd.f32 0.0, %v2472
      %v2474 = vpop.f32.mrf.mxu0
      %v2475 = vpop.f32.mrf.mxu0
      %v2476 = vadd.f32 0.0, %v2475
      %v2477 = vpop.f32.mrf.mxu0
      %2478 = vmatprep.mubr.bf16.mxu0 0
      %2479 = vmatmul.mubr.bf16.gmra.mxu0 %v2261
      %v2480 = vpop.f32.mrf.mxu0
      %v2481 = vadd.f32 0.0, %v2480
      %v2482 = vpop.f32.mrf.mxu0
      %v2483 = vpop.f32.mrf.mxu0
      %v2484 = vadd.f32 0.0, %v2483
      %v2485 = vpop.f32.mrf.mxu0
      %2486 = vmatprep.mubr.bf16.mxu0 0
      %2487 = vmatmul.mubr.bf16.gmra.mxu0 %v2264
      %v2488 = vpop.f32.mrf.mxu0
      %v2489 = vadd.f32 0.0, %v2488
      %v2490 = vpop.f32.mrf.mxu0
      %v2491 = vpop.f32.mrf.mxu0
      %v2492 = vadd.f32 0.0, %v2491
      %v2493 = vpop.f32.mrf.mxu0
      %2494 = vmatprep.mubr.bf16.mxu0 0
      %2495 = vmatmul.mubr.bf16.gmra.mxu0 %v2267
      %v2496 = vpop.f32.mrf.mxu0
      %v2497 = vadd.f32 0.0, %v2496
      %v2498 = vpop.f32.mrf.mxu0
      %v2499 = vpop.f32.mrf.mxu0
      %v2500 = vadd.f32 0.0, %v2499
      %v2501 = vpop.f32.mrf.mxu0
      %2502 = vmatprep.mubr.bf16.mxu0 0
      %2503 = vmatmul.mubr.bf16.gmra.mxu0 %v2270
      %v2504 = vpop.f32.mrf.mxu0
      %v2505 = vpop.f32.mrf.mxu0
      %v2506 = vpop.f32.mrf.mxu0
      %v2507 = vpop.f32.mrf.mxu0
      %2508 = vmatprep.mubr.bf16.mxu0 0
      %2509 = vmatmul.mubr.bf16.gmra.mxu0 %v2273
      %v2510 = vpop.f32.mrf.mxu0
      %v2511 = vpop.f32.mrf.mxu0
      %v2512 = vpop.f32.mrf.mxu0
      %v2513 = vpop.f32.mrf.mxu0
      %2514 = vdwg.mxu0
      %v2531 = vrot.slane %v2441, 1
      %v2532 = vrot.slane %v2444, 1
      %v2533 = vsel %vm856, %v2531, %v2532
      %v2534 = vrot.slane %v2449, 1
      %v2535 = vsel %vm856, %v2532, %v2534
      %v2536 = vrot.slane %v2452, 1
      %v2537 = vsel %vm856, %v2534, %v2536
      %v2538 = vrot.slane %v2457, 1
      %v2539 = vsel %vm856, %v2536, %v2538
      %v2540 = vrot.slane %v2460, 1
      %v2541 = vsel %vm856, %v2538, %v2540
      %v2542 = vrot.slane %v2465, 1
      %v2543 = vsel %vm856, %v2540, %v2542
      %v2544 = vrot.slane %v2468, 1
      %v2545 = vsel %vm856, %v2542, %v2544
      %v2546 = vrot.slane %v2473, 1
      %v2547 = vsel %vm856, %v2544, %v2546
      %v2548 = vrot.slane %v2476, 1
      %v2549 = vsel %vm856, %v2546, %v2548
      %v2550 = vrot.slane %v2481, 1
      %v2551 = vsel %vm856, %v2548, %v2550
      %v2552 = vrot.slane %v2484, 1
      %v2553 = vsel %vm856, %v2550, %v2552
      %v2554 = vrot.slane %v2489, 1
      %v2555 = vsel %vm856, %v2552, %v2554
      %v2556 = vrot.slane %v2492, 1
      %v2557 = vsel %vm856, %v2554, %v2556
      %v2558 = vrot.slane %v2497, 1
      %v2559 = vsel %vm856, %v2556, %v2558
      %v2560 = vrot.slane %v2500, 1
      %v2561 = vsel %vm856, %v2558, %v2560
      %v2577 = vadd.f32 %v2386, %v2533
      %v2578 = vadd.f32 %v2387, %v2535
      %v2579 = vadd.f32 %v2388, %v2537
      %v2580 = vadd.f32 %v2389, %v2539
      %v2581 = vadd.f32 %v2390, %v2541
      %v2582 = vadd.f32 %v2391, %v2543
      %v2583 = vadd.f32 %v2392, %v2545
      %v2584 = vadd.f32 %v2393, %v2547
      %v2585 = vadd.f32 %v2394, %v2549
      %v2586 = vadd.f32 %v2395, %v2551
      %v2587 = vadd.f32 %v2396, %v2553
      %v2588 = vadd.f32 %v2397, %v2555
      %v2589 = vadd.f32 %v2398, %v2557
      %v2590 = vadd.f32 %v2399, %v2559
      %v2591 = vadd.f32 %v2400, %v2561
      %s2592 = scalar_lea.vmem %s3, 44
      %v2593 = vld [vmem:[%s2592] sm:$0xf]
      %v2595 = vsel %vm599, %v2593, 0
      %2597 = vmatprep.subr.bf16.mxu0 0
      %2598 = vmatpush1.bf16.msra.mxu0 0
      %2599 = vmatprep.subr.bf16.mxu0 0
      %2600 = vmatpush1.bf16.msra.mxu0 0
      %2601 = vmatprep.subr.bf16.mxu0 0
      %2602 = vmatpush1.bf16.msra.mxu0 0
      %2603 = vmatprep.subr.bf16.mxu0 0
      %2604 = vmatpush1.bf16.msra.mxu0 0
      %2605 = vmatprep.subr.bf16.mxu0 0
      %2606 = vmatpush1.bf16.msra.mxu0 0
      %2607 = vmatprep.subr.bf16.mxu0 0
      %2608 = vmatpush1.bf16.msra.mxu0 0
      %2609 = vmatprep.subr.bf16.mxu0 0
      %2610 = vmatpush1.bf16.msra.mxu0 0
      %2611 = vmatprep.subr.bf16.mxu0 0
      %2612 = vmatpush1.bf16.msra.mxu0 %v2595
      %2613 = vmatprep.subr.bf16.mxu0 0
      %2614 = vmatpush2.bf16.msra.mxu0 0
      %2615 = vmatprep.subr.bf16.mxu0 0
      %2616 = vmatpush2.bf16.msra.mxu0 0
      %2617 = vmatprep.subr.bf16.mxu0 0
      %2618 = vmatpush2.bf16.msra.mxu0 0
      %2619 = vmatprep.subr.bf16.mxu0 0
      %2620 = vmatpush2.bf16.msra.mxu0 0
      %2621 = vmatprep.subr.bf16.mxu0 0
      %2622 = vmatpush2.bf16.msra.mxu0 0
      %2623 = vmatprep.subr.bf16.mxu0 0
      %2624 = vmatpush2.bf16.msra.mxu0 0
      %2625 = vmatprep.subr.bf16.mxu0 0
      %2626 = vmatpush2.bf16.msra.mxu0 0
      %2627 = vmatprep.subr.bf16.mxu0 0
      %2628 = vmatpush2.bf16.msra.mxu0 0
      %2629 = vmatprep.mubr.bf16.mxu0 0
      %2630 = vmatmul.mubr.bf16.gmra.mxu0 %v2246
      %v2631 = vpop.f32.mrf.mxu0
      %v2632 = vadd.f32 0.0, %v2631
      %v2633 = vpop.f32.mrf.mxu0
      %v2634 = vpop.f32.mrf.mxu0
      %v2635 = vadd.f32 0.0, %v2634
      %v2636 = vpop.f32.mrf.mxu0
      %2637 = vmatprep.mubr.bf16.mxu0 0
      %2638 = vmatmul.mubr.bf16.gmra.mxu0 %v2249
      %v2639 = vpop.f32.mrf.mxu0
      %v2640 = vadd.f32 0.0, %v2639
      %v2641 = vpop.f32.mrf.mxu0
      %v2642 = vpop.f32.mrf.mxu0
      %v2643 = vadd.f32 0.0, %v2642
      %v2644 = vpop.f32.mrf.mxu0
      %2645 = vmatprep.mubr.bf16.mxu0 0
      %2646 = vmatmul.mubr.bf16.gmra.mxu0 %v2252
      %v2647 = vpop.f32.mrf.mxu0
      %v2648 = vadd.f32 0.0, %v2647
      %v2649 = vpop.f32.mrf.mxu0
      %v2650 = vpop.f32.mrf.mxu0
      %v2651 = vadd.f32 0.0, %v2650
      %v2652 = vpop.f32.mrf.mxu0
      %2653 = vmatprep.mubr.bf16.mxu0 0
      %2654 = vmatmul.mubr.bf16.gmra.mxu0 %v2255
      %v2655 = vpop.f32.mrf.mxu0
      %v2656 = vadd.f32 0.0, %v2655
      %v2657 = vpop.f32.mrf.mxu0
      %v2658 = vpop.f32.mrf.mxu0
      %v2659 = vadd.f32 0.0, %v2658
      %v2660 = vpop.f32.mrf.mxu0
      %2661 = vmatprep.mubr.bf16.mxu0 0
      %2662 = vmatmul.mubr.bf16.gmra.mxu0 %v2258
      %v2663 = vpop.f32.mrf.mxu0
      %v2664 = vadd.f32 0.0, %v2663
      %v2665 = vpop.f32.mrf.mxu0
      %v2666 = vpop.f32.mrf.mxu0
      %v2667 = vadd.f32 0.0, %v2666
      %v2668 = vpop.f32.mrf.mxu0
      %2669 = vmatprep.mubr.bf16.mxu0 0
      %2670 = vmatmul.mubr.bf16.gmra.mxu0 %v2261
      %v2671 = vpop.f32.mrf.mxu0
      %v2672 = vadd.f32 0.0, %v2671
      %v2673 = vpop.f32.mrf.mxu0
      %v2674 = vpop.f32.mrf.mxu0
      %v2675 = vadd.f32 0.0, %v2674
      %v2676 = vpop.f32.mrf.mxu0
      %2677 = vmatprep.mubr.bf16.mxu0 0
      %2678 = vmatmul.mubr.bf16.gmra.mxu0 %v2264
      %v2679 = vpop.f32.mrf.mxu0
      %v2680 = vadd.f32 0.0, %v2679
      %v2681 = vpop.f32.mrf.mxu0
      %v2682 = vpop.f32.mrf.mxu0
      %v2683 = vadd.f32 0.0, %v2682
      %v2684 = vpop.f32.mrf.mxu0
      %2685 = vmatprep.mubr.bf16.mxu0 0
      %2686 = vmatmul.mubr.bf16.gmra.mxu0 %v2267
      %v2687 = vpop.f32.mrf.mxu0
      %v2688 = vadd.f32 0.0, %v2687
      %v2689 = vpop.f32.mrf.mxu0
      %v2690 = vpop.f32.mrf.mxu0
      %v2691 = vadd.f32 0.0, %v2690
      %v2692 = vpop.f32.mrf.mxu0
      %2693 = vmatprep.mubr.bf16.mxu0 0
      %2694 = vmatmul.mubr.bf16.gmra.mxu0 %v2270
      %v2695 = vpop.f32.mrf.mxu0
      %v2696 = vpop.f32.mrf.mxu0
      %v2697 = vpop.f32.mrf.mxu0
      %v2698 = vpop.f32.mrf.mxu0
      %2699 = vmatprep.mubr.bf16.mxu0 0
      %2700 = vmatmul.mubr.bf16.gmra.mxu0 %v2273
      %v2701 = vpop.f32.mrf.mxu0
      %v2702 = vpop.f32.mrf.mxu0
      %v2703 = vpop.f32.mrf.mxu0
      %v2704 = vpop.f32.mrf.mxu0
      %2705 = vdwg.mxu0
      %v2722 = vrot.slane %v2632, 2
      %v2723 = vrot.slane %v2635, 2
      %v2724 = vsel %vm1048, %v2722, %v2723
      %v2725 = vrot.slane %v2640, 2
      %v2726 = vsel %vm1048, %v2723, %v2725
      %v2727 = vrot.slane %v2643, 2
      %v2728 = vsel %vm1048, %v2725, %v2727
      %v2729 = vrot.slane %v2648, 2
      %v2730 = vsel %vm1048, %v2727, %v2729
      %v2731 = vrot.slane %v2651, 2
      %v2732 = vsel %vm1048, %v2729, %v2731
      %v2733 = vrot.slane %v2656, 2
      %v2734 = vsel %vm1048, %v2731, %v2733
      %v2735 = vrot.slane %v2659, 2
      %v2736 = vsel %vm1048, %v2733, %v2735
      %v2737 = vrot.slane %v2664, 2
      %v2738 = vsel %vm1048, %v2735, %v2737
      %v2739 = vrot.slane %v2667, 2
      %v2740 = vsel %vm1048, %v2737, %v2739
      %v2741 = vrot.slane %v2672, 2
      %v2742 = vsel %vm1048, %v2739, %v2741
      %v2743 = vrot.slane %v2675, 2
      %v2744 = vsel %vm1048, %v2741, %v2743
      %v2745 = vrot.slane %v2680, 2
      %v2746 = vsel %vm1048, %v2743, %v2745
      %v2747 = vrot.slane %v2683, 2
      %v2748 = vsel %vm1048, %v2745, %v2747
      %v2749 = vrot.slane %v2688, 2
      %v2750 = vsel %vm1048, %v2747, %v2749
      %v2751 = vrot.slane %v2691, 2
      %v2752 = vsel %vm1048, %v2749, %v2751
      %v2768 = vadd.f32 %v2577, %v2724
      %v2769 = vadd.f32 %v2578, %v2726
      %v2770 = vadd.f32 %v2579, %v2728
      %v2771 = vadd.f32 %v2580, %v2730
      %v2772 = vadd.f32 %v2581, %v2732
      %v2773 = vadd.f32 %v2582, %v2734
      %v2774 = vadd.f32 %v2583, %v2736
      %v2775 = vadd.f32 %v2584, %v2738
      %v2776 = vadd.f32 %v2585, %v2740
      %v2777 = vadd.f32 %v2586, %v2742
      %v2778 = vadd.f32 %v2587, %v2744
      %v2779 = vadd.f32 %v2588, %v2746
      %v2780 = vadd.f32 %v2589, %v2748
      %v2781 = vadd.f32 %v2590, %v2750
      %v2782 = vadd.f32 %v2591, %v2752
      %s2783 = scalar_lea.vmem %s3, 48
      %v2784 = vld [vmem:[%s2783] sm:$0xf]
      %v2786 = vsel %vm599, %v2784, 0
      %2788 = vmatprep.subr.bf16.mxu0 0
      %2789 = vmatpush1.bf16.msra.mxu0 0
      %2790 = vmatprep.subr.bf16.mxu0 0
      %2791 = vmatpush1.bf16.msra.mxu0 0
      %2792 = vmatprep.subr.bf16.mxu0 0
      %2793 = vmatpush1.bf16.msra.mxu0 0
      %2794 = vmatprep.subr.bf16.mxu0 0
      %2795 = vmatpush1.bf16.msra.mxu0 0
      %2796 = vmatprep.subr.bf16.mxu0 0
      %2797 = vmatpush1.bf16.msra.mxu0 0
      %2798 = vmatprep.subr.bf16.mxu0 0
      %2799 = vmatpush1.bf16.msra.mxu0 0
      %2800 = vmatprep.subr.bf16.mxu0 0
      %2801 = vmatpush1.bf16.msra.mxu0 0
      %2802 = vmatprep.subr.bf16.mxu0 0
      %2803 = vmatpush1.bf16.msra.mxu0 %v2786
      %2804 = vmatprep.subr.bf16.mxu0 0
      %2805 = vmatpush2.bf16.msra.mxu0 0
      %2806 = vmatprep.subr.bf16.mxu0 0
      %2807 = vmatpush2.bf16.msra.mxu0 0
      %2808 = vmatprep.subr.bf16.mxu0 0
      %2809 = vmatpush2.bf16.msra.mxu0 0
      %2810 = vmatprep.subr.bf16.mxu0 0
      %2811 = vmatpush2.bf16.msra.mxu0 0
      %2812 = vmatprep.subr.bf16.mxu0 0
      %2813 = vmatpush2.bf16.msra.mxu0 0
      %2814 = vmatprep.subr.bf16.mxu0 0
      %2815 = vmatpush2.bf16.msra.mxu0 0
      %2816 = vmatprep.subr.bf16.mxu0 0
      %2817 = vmatpush2.bf16.msra.mxu0 0
      %2818 = vmatprep.subr.bf16.mxu0 0
      %2819 = vmatpush2.bf16.msra.mxu0 0
      %2820 = vmatprep.mubr.bf16.mxu0 0
      %2821 = vmatmul.mubr.bf16.gmra.mxu0 %v2246
      %v2822 = vpop.f32.mrf.mxu0
      %v2823 = vpop.f32.mrf.mxu0
      %v2824 = vpop.f32.mrf.mxu0
      %v2825 = vadd.f32 0.0, %v2824
      %v2826 = vpop.f32.mrf.mxu0
      %2827 = vmatprep.mubr.bf16.mxu0 0
      %2828 = vmatmul.mubr.bf16.gmra.mxu0 %v2249
      %v2829 = vpop.f32.mrf.mxu0
      %v2830 = vadd.f32 0.0, %v2829
      %v2831 = vpop.f32.mrf.mxu0
      %v2832 = vpop.f32.mrf.mxu0
      %v2833 = vadd.f32 0.0, %v2832
      %v2834 = vpop.f32.mrf.mxu0
      %2835 = vmatprep.mubr.bf16.mxu0 0
      %2836 = vmatmul.mubr.bf16.gmra.mxu0 %v2252
      %v2837 = vpop.f32.mrf.mxu0
      %v2838 = vadd.f32 0.0, %v2837
      %v2839 = vpop.f32.mrf.mxu0
      %v2840 = vpop.f32.mrf.mxu0
      %v2841 = vadd.f32 0.0, %v2840
      %v2842 = vpop.f32.mrf.mxu0
      %2843 = vmatprep.mubr.bf16.mxu0 0
      %2844 = vmatmul.mubr.bf16.gmra.mxu0 %v2255
      %v2845 = vpop.f32.mrf.mxu0
      %v2846 = vadd.f32 0.0, %v2845
      %v2847 = vpop.f32.mrf.mxu0
      %v2848 = vpop.f32.mrf.mxu0
      %v2849 = vadd.f32 0.0, %v2848
      %v2850 = vpop.f32.mrf.mxu0
      %2851 = vmatprep.mubr.bf16.mxu0 0
      %2852 = vmatmul.mubr.bf16.gmra.mxu0 %v2258
      %v2853 = vpop.f32.mrf.mxu0
      %v2854 = vadd.f32 0.0, %v2853
      %v2855 = vpop.f32.mrf.mxu0
      %v2856 = vpop.f32.mrf.mxu0
      %v2857 = vadd.f32 0.0, %v2856
      %v2858 = vpop.f32.mrf.mxu0
      %2859 = vmatprep.mubr.bf16.mxu0 0
      %2860 = vmatmul.mubr.bf16.gmra.mxu0 %v2261
      %v2861 = vpop.f32.mrf.mxu0
      %v2862 = vadd.f32 0.0, %v2861
      %v2863 = vpop.f32.mrf.mxu0
      %v2864 = vpop.f32.mrf.mxu0
      %v2865 = vadd.f32 0.0, %v2864
      %v2866 = vpop.f32.mrf.mxu0
      %2867 = vmatprep.mubr.bf16.mxu0 0
      %2868 = vmatmul.mubr.bf16.gmra.mxu0 %v2264
      %v2869 = vpop.f32.mrf.mxu0
      %v2870 = vadd.f32 0.0, %v2869
      %v2871 = vpop.f32.mrf.mxu0
      %v2872 = vpop.f32.mrf.mxu0
      %v2873 = vadd.f32 0.0, %v2872
      %v2874 = vpop.f32.mrf.mxu0
      %2875 = vmatprep.mubr.bf16.mxu0 0
      %2876 = vmatmul.mubr.bf16.gmra.mxu0 %v2267
      %v2877 = vpop.f32.mrf.mxu0
      %v2878 = vadd.f32 0.0, %v2877
      %v2879 = vpop.f32.mrf.mxu0
      %v2880 = vpop.f32.mrf.mxu0
      %v2881 = vadd.f32 0.0, %v2880
      %v2882 = vpop.f32.mrf.mxu0
      %2883 = vmatprep.mubr.bf16.mxu0 0
      %2884 = vmatmul.mubr.bf16.gmra.mxu0 %v2270
      %v2885 = vpop.f32.mrf.mxu0
      %v2886 = vadd.f32 0.0, %v2885
      %v2887 = vpop.f32.mrf.mxu0
      %v2888 = vpop.f32.mrf.mxu0
      %v2889 = vpop.f32.mrf.mxu0
      %2890 = vmatprep.mubr.bf16.mxu0 0
      %2891 = vmatmul.mubr.bf16.gmra.mxu0 %v2273
      %v2892 = vpop.f32.mrf.mxu0
      %v2893 = vpop.f32.mrf.mxu0
      %v2894 = vpop.f32.mrf.mxu0
      %v2895 = vpop.f32.mrf.mxu0
      %2896 = vdwg.mxu0
      %v2913 = vrot.slane %v2825, 4
      %v2914 = vrot.slane %v2830, 4
      %v2915 = vsel %vm599, %v2913, %v2914
      %v2916 = vrot.slane %v2833, 4
      %v2917 = vsel %vm599, %v2914, %v2916
      %v2918 = vrot.slane %v2838, 4
      %v2919 = vsel %vm599, %v2916, %v2918
      %v2920 = vrot.slane %v2841, 4
      %v2921 = vsel %vm599, %v2918, %v2920
      %v2922 = vrot.slane %v2846, 4
      %v2923 = vsel %vm599, %v2920, %v2922
      %v2924 = vrot.slane %v2849, 4
      %v2925 = vsel %vm599, %v2922, %v2924
      %v2926 = vrot.slane %v2854, 4
      %v2927 = vsel %vm599, %v2924, %v2926
      %v2928 = vrot.slane %v2857, 4
      %v2929 = vsel %vm599, %v2926, %v2928
      %v2930 = vrot.slane %v2862, 4
      %v2931 = vsel %vm599, %v2928, %v2930
      %v2932 = vrot.slane %v2865, 4
      %v2933 = vsel %vm599, %v2930, %v2932
      %v2934 = vrot.slane %v2870, 4
      %v2935 = vsel %vm599, %v2932, %v2934
      %v2936 = vrot.slane %v2873, 4
      %v2937 = vsel %vm599, %v2934, %v2936
      %v2938 = vrot.slane %v2878, 4
      %v2939 = vsel %vm599, %v2936, %v2938
      %v2940 = vrot.slane %v2881, 4
      %v2941 = vsel %vm599, %v2938, %v2940
      %v2942 = vrot.slane %v2886, 4
      %v2943 = vsel %vm599, %v2940, %v2942
      %v2959 = vadd.f32 %v2768, %v2915
      %v2960 = vadd.f32 %v2769, %v2917
      %v2961 = vadd.f32 %v2770, %v2919
      %v2962 = vadd.f32 %v2771, %v2921
      %v2963 = vadd.f32 %v2772, %v2923
      %v2964 = vadd.f32 %v2773, %v2925
      %v2965 = vadd.f32 %v2774, %v2927
      %v2966 = vadd.f32 %v2775, %v2929
      %v2967 = vadd.f32 %v2776, %v2931
      %v2968 = vadd.f32 %v2777, %v2933
      %v2969 = vadd.f32 %v2778, %v2935
      %v2970 = vadd.f32 %v2779, %v2937
      %v2971 = vadd.f32 %v2780, %v2939
      %v2972 = vadd.f32 %v2781, %v2941
      %v2973 = vadd.f32 %v2782, %v2943
      %s2974 = scalar_lea.vmem %s3, 52
      %v2975 = vld [vmem:[%s2974] sm:$0xf]
      %v2977 = vsel %vm599, %v2975, 0
      %2979 = vmatprep.subr.bf16.mxu0 0
      %2980 = vmatpush1.bf16.msra.mxu0 0
      %2981 = vmatprep.subr.bf16.mxu0 0
      %2982 = vmatpush1.bf16.msra.mxu0 0
      %2983 = vmatprep.subr.bf16.mxu0 0
      %2984 = vmatpush1.bf16.msra.mxu0 0
      %2985 = vmatprep.subr.bf16.mxu0 0
      %2986 = vmatpush1.bf16.msra.mxu0 0
      %2987 = vmatprep.subr.bf16.mxu0 0
      %2988 = vmatpush1.bf16.msra.mxu0 0
      %2989 = vmatprep.subr.bf16.mxu0 0
      %2990 = vmatpush1.bf16.msra.mxu0 0
      %2991 = vmatprep.subr.bf16.mxu0 0
      %2992 = vmatpush1.bf16.msra.mxu0 0
      %2993 = vmatprep.subr.bf16.mxu0 0
      %2994 = vmatpush1.bf16.msra.mxu0 %v2977
      %2995 = vmatprep.subr.bf16.mxu0 0
      %2996 = vmatpush2.bf16.msra.mxu0 0
      %2997 = vmatprep.subr.bf16.mxu0 0
      %2998 = vmatpush2.bf16.msra.mxu0 0
      %2999 = vmatprep.subr.bf16.mxu0 0
      %3000 = vmatpush2.bf16.msra.mxu0 0
      %3001 = vmatprep.subr.bf16.mxu0 0
      %3002 = vmatpush2.bf16.msra.mxu0 0
      %3003 = vmatprep.subr.bf16.mxu0 0
      %3004 = vmatpush2.bf16.msra.mxu0 0
      %3005 = vmatprep.subr.bf16.mxu0 0
      %3006 = vmatpush2.bf16.msra.mxu0 0
      %3007 = vmatprep.subr.bf16.mxu0 0
      %3008 = vmatpush2.bf16.msra.mxu0 0
      %3009 = vmatprep.subr.bf16.mxu0 0
      %3010 = vmatpush2.bf16.msra.mxu0 0
      %3011 = vmatprep.mubr.bf16.mxu0 0
      %3012 = vmatmul.mubr.bf16.gmra.mxu0 %v2246
      %v3013 = vpop.f32.mrf.mxu0
      %v3014 = vpop.f32.mrf.mxu0
      %v3015 = vpop.f32.mrf.mxu0
      %v3016 = vadd.f32 0.0, %v3015
      %v3017 = vpop.f32.mrf.mxu0
      %3018 = vmatprep.mubr.bf16.mxu0 0
      %3019 = vmatmul.mubr.bf16.gmra.mxu0 %v2249
      %v3020 = vpop.f32.mrf.mxu0
      %v3021 = vadd.f32 0.0, %v3020
      %v3022 = vpop.f32.mrf.mxu0
      %v3023 = vpop.f32.mrf.mxu0
      %v3024 = vadd.f32 0.0, %v3023
      %v3025 = vpop.f32.mrf.mxu0
      %3026 = vmatprep.mubr.bf16.mxu0 0
      %3027 = vmatmul.mubr.bf16.gmra.mxu0 %v2252
      %v3028 = vpop.f32.mrf.mxu0
      %v3029 = vadd.f32 0.0, %v3028
      %v3030 = vpop.f32.mrf.mxu0
      %v3031 = vpop.f32.mrf.mxu0
      %v3032 = vadd.f32 0.0, %v3031
      %v3033 = vpop.f32.mrf.mxu0
      %3034 = vmatprep.mubr.bf16.mxu0 0
      %3035 = vmatmul.mubr.bf16.gmra.mxu0 %v2255
      %v3036 = vpop.f32.mrf.mxu0
      %v3037 = vadd.f32 0.0, %v3036
      %v3038 = vpop.f32.mrf.mxu0
      %v3039 = vpop.f32.mrf.mxu0
      %v3040 = vadd.f32 0.0, %v3039
      %v3041 = vpop.f32.mrf.mxu0
      %3042 = vmatprep.mubr.bf16.mxu0 0
      %3043 = vmatmul.mubr.bf16.gmra.mxu0 %v2258
      %v3044 = vpop.f32.mrf.mxu0
      %v3045 = vadd.f32 0.0, %v3044
      %v3046 = vpop.f32.mrf.mxu0
      %v3047 = vpop.f32.mrf.mxu0
      %v3048 = vadd.f32 0.0, %v3047
      %v3049 = vpop.f32.mrf.mxu0
      %3050 = vmatprep.mubr.bf16.mxu0 0
      %3051 = vmatmul.mubr.bf16.gmra.mxu0 %v2261
      %v3052 = vpop.f32.mrf.mxu0
      %v3053 = vadd.f32 0.0, %v3052
      %v3054 = vpop.f32.mrf.mxu0
      %v3055 = vpop.f32.mrf.mxu0
      %v3056 = vadd.f32 0.0, %v3055
      %v3057 = vpop.f32.mrf.mxu0
      %3058 = vmatprep.mubr.bf16.mxu0 0
      %3059 = vmatmul.mubr.bf16.gmra.mxu0 %v2264
      %v3060 = vpop.f32.mrf.mxu0
      %v3061 = vadd.f32 0.0, %v3060
      %v3062 = vpop.f32.mrf.mxu0
      %v3063 = vpop.f32.mrf.mxu0
      %v3064 = vadd.f32 0.0, %v3063
      %v3065 = vpop.f32.mrf.mxu0
      %3066 = vmatprep.mubr.bf16.mxu0 0
      %3067 = vmatmul.mubr.bf16.gmra.mxu0 %v2267
      %v3068 = vpop.f32.mrf.mxu0
      %v3069 = vadd.f32 0.0, %v3068
      %v3070 = vpop.f32.mrf.mxu0
      %v3071 = vpop.f32.mrf.mxu0
      %v3072 = vadd.f32 0.0, %v3071
      %v3073 = vpop.f32.mrf.mxu0
      %3074 = vmatprep.mubr.bf16.mxu0 0
      %3075 = vmatmul.mubr.bf16.gmra.mxu0 %v2270
      %v3076 = vpop.f32.mrf.mxu0
      %v3077 = vadd.f32 0.0, %v3076
      %v3078 = vpop.f32.mrf.mxu0
      %v3079 = vpop.f32.mrf.mxu0
      %v3080 = vpop.f32.mrf.mxu0
      %3081 = vmatprep.mubr.bf16.mxu0 0
      %3082 = vmatmul.mubr.bf16.gmra.mxu0 %v2273
      %v3083 = vpop.f32.mrf.mxu0
      %v3084 = vpop.f32.mrf.mxu0
      %v3085 = vpop.f32.mrf.mxu0
      %v3086 = vpop.f32.mrf.mxu0
      %3087 = vdwg.mxu0
      %v3104 = vrot.slane %v3016, 5
      %v3105 = vrot.slane %v3021, 5
      %v3106 = vsel %vm1431, %v3104, %v3105
      %v3107 = vrot.slane %v3024, 5
      %v3108 = vsel %vm1431, %v3105, %v3107
      %v3109 = vrot.slane %v3029, 5
      %v3110 = vsel %vm1431, %v3107, %v3109
      %v3111 = vrot.slane %v3032, 5
      %v3112 = vsel %vm1431, %v3109, %v3111
      %v3113 = vrot.slane %v3037, 5
      %v3114 = vsel %vm1431, %v3111, %v3113
      %v3115 = vrot.slane %v3040, 5
      %v3116 = vsel %vm1431, %v3113, %v3115
      %v3117 = vrot.slane %v3045, 5
      %v3118 = vsel %vm1431, %v3115, %v3117
      %v3119 = vrot.slane %v3048, 5
      %v3120 = vsel %vm1431, %v3117, %v3119
      %v3121 = vrot.slane %v3053, 5
      %v3122 = vsel %vm1431, %v3119, %v3121
      %v3123 = vrot.slane %v3056, 5
      %v3124 = vsel %vm1431, %v3121, %v3123
      %v3125 = vrot.slane %v3061, 5
      %v3126 = vsel %vm1431, %v3123, %v3125
      %v3127 = vrot.slane %v3064, 5
      %v3128 = vsel %vm1431, %v3125, %v3127
      %v3129 = vrot.slane %v3069, 5
      %v3130 = vsel %vm1431, %v3127, %v3129
      %v3131 = vrot.slane %v3072, 5
      %v3132 = vsel %vm1431, %v3129, %v3131
      %v3133 = vrot.slane %v3077, 5
      %v3134 = vsel %vm1431, %v3131, %v3133
      %v3150 = vadd.f32 %v2959, %v3106
      %v3151 = vadd.f32 %v2960, %v3108
      %v3152 = vadd.f32 %v2961, %v3110
      %v3153 = vadd.f32 %v2962, %v3112
      %v3154 = vadd.f32 %v2963, %v3114
      %v3155 = vadd.f32 %v2964, %v3116
      %v3156 = vadd.f32 %v2965, %v3118
      %v3157 = vadd.f32 %v2966, %v3120
      %v3158 = vadd.f32 %v2967, %v3122
      %v3159 = vadd.f32 %v2968, %v3124
      %v3160 = vadd.f32 %v2969, %v3126
      %v3161 = vadd.f32 %v2970, %v3128
      %v3162 = vadd.f32 %v2971, %v3130
      %v3163 = vadd.f32 %v2972, %v3132
      %v3164 = vadd.f32 %v2973, %v3134
      %s3165 = scalar_lea.vmem %s3, 56
      %v3166 = vld [vmem:[%s3165] sm:$0xf]
      %v3168 = vsel %vm599, %v3166, 0
      %3170 = vmatprep.subr.bf16.mxu0 0
      %3171 = vmatpush1.bf16.msra.mxu0 0
      %3172 = vmatprep.subr.bf16.mxu0 0
      %3173 = vmatpush1.bf16.msra.mxu0 0
      %3174 = vmatprep.subr.bf16.mxu0 0
      %3175 = vmatpush1.bf16.msra.mxu0 0
      %3176 = vmatprep.subr.bf16.mxu0 0
      %3177 = vmatpush1.bf16.msra.mxu0 0
      %3178 = vmatprep.subr.bf16.mxu0 0
      %3179 = vmatpush1.bf16.msra.mxu0 0
      %3180 = vmatprep.subr.bf16.mxu0 0
      %3181 = vmatpush1.bf16.msra.mxu0 0
      %3182 = vmatprep.subr.bf16.mxu0 0
      %3183 = vmatpush1.bf16.msra.mxu0 0
      %3184 = vmatprep.subr.bf16.mxu0 0
      %3185 = vmatpush1.bf16.msra.mxu0 %v3168
      %3186 = vmatprep.subr.bf16.mxu0 0
      %3187 = vmatpush2.bf16.msra.mxu0 0
      %3188 = vmatprep.subr.bf16.mxu0 0
      %3189 = vmatpush2.bf16.msra.mxu0 0
      %3190 = vmatprep.subr.bf16.mxu0 0
      %3191 = vmatpush2.bf16.msra.mxu0 0
      %3192 = vmatprep.subr.bf16.mxu0 0
      %3193 = vmatpush2.bf16.msra.mxu0 0
      %3194 = vmatprep.subr.bf16.mxu0 0
      %3195 = vmatpush2.bf16.msra.mxu0 0
      %3196 = vmatprep.subr.bf16.mxu0 0
      %3197 = vmatpush2.bf16.msra.mxu0 0
      %3198 = vmatprep.subr.bf16.mxu0 0
      %3199 = vmatpush2.bf16.msra.mxu0 0
      %3200 = vmatprep.subr.bf16.mxu0 0
      %3201 = vmatpush2.bf16.msra.mxu0 0
      %3202 = vmatprep.mubr.bf16.mxu0 0
      %3203 = vmatmul.mubr.bf16.gmra.mxu0 %v2246
      %v3204 = vpop.f32.mrf.mxu0
      %v3205 = vpop.f32.mrf.mxu0
      %v3206 = vpop.f32.mrf.mxu0
      %v3207 = vadd.f32 0.0, %v3206
      %v3208 = vpop.f32.mrf.mxu0
      %3209 = vmatprep.mubr.bf16.mxu0 0
      %3210 = vmatmul.mubr.bf16.gmra.mxu0 %v2249
      %v3211 = vpop.f32.mrf.mxu0
      %v3212 = vadd.f32 0.0, %v3211
      %v3213 = vpop.f32.mrf.mxu0
      %v3214 = vpop.f32.mrf.mxu0
      %v3215 = vadd.f32 0.0, %v3214
      %v3216 = vpop.f32.mrf.mxu0
      %3217 = vmatprep.mubr.bf16.mxu0 0
      %3218 = vmatmul.mubr.bf16.gmra.mxu0 %v2252
      %v3219 = vpop.f32.mrf.mxu0
      %v3220 = vadd.f32 0.0, %v3219
      %v3221 = vpop.f32.mrf.mxu0
      %v3222 = vpop.f32.mrf.mxu0
      %v3223 = vadd.f32 0.0, %v3222
      %v3224 = vpop.f32.mrf.mxu0
      %3225 = vmatprep.mubr.bf16.mxu0 0
      %3226 = vmatmul.mubr.bf16.gmra.mxu0 %v2255
      %v3227 = vpop.f32.mrf.mxu0
      %v3228 = vadd.f32 0.0, %v3227
      %v3229 = vpop.f32.mrf.mxu0
      %v3230 = vpop.f32.mrf.mxu0
      %v3231 = vadd.f32 0.0, %v3230
      %v3232 = vpop.f32.mrf.mxu0
      %3233 = vmatprep.mubr.bf16.mxu0 0
      %3234 = vmatmul.mubr.bf16.gmra.mxu0 %v2258
      %v3235 = vpop.f32.mrf.mxu0
      %v3236 = vadd.f32 0.0, %v3235
      %v3237 = vpop.f32.mrf.mxu0
      %v3238 = vpop.f32.mrf.mxu0
      %v3239 = vadd.f32 0.0, %v3238
      %v3240 = vpop.f32.mrf.mxu0
      %3241 = vmatprep.mubr.bf16.mxu0 0
      %3242 = vmatmul.mubr.bf16.gmra.mxu0 %v2261
      %v3243 = vpop.f32.mrf.mxu0
      %v3244 = vadd.f32 0.0, %v3243
      %v3245 = vpop.f32.mrf.mxu0
      %v3246 = vpop.f32.mrf.mxu0
      %v3247 = vadd.f32 0.0, %v3246
      %v3248 = vpop.f32.mrf.mxu0
      %3249 = vmatprep.mubr.bf16.mxu0 0
      %3250 = vmatmul.mubr.bf16.gmra.mxu0 %v2264
      %v3251 = vpop.f32.mrf.mxu0
      %v3252 = vadd.f32 0.0, %v3251
      %v3253 = vpop.f32.mrf.mxu0
      %v3254 = vpop.f32.mrf.mxu0
      %v3255 = vadd.f32 0.0, %v3254
      %v3256 = vpop.f32.mrf.mxu0
      %3257 = vmatprep.mubr.bf16.mxu0 0
      %3258 = vmatmul.mubr.bf16.gmra.mxu0 %v2267
      %v3259 = vpop.f32.mrf.mxu0
      %v3260 = vadd.f32 0.0, %v3259
      %v3261 = vpop.f32.mrf.mxu0
      %v3262 = vpop.f32.mrf.mxu0
      %v3263 = vadd.f32 0.0, %v3262
      %v3264 = vpop.f32.mrf.mxu0
      %3265 = vmatprep.mubr.bf16.mxu0 0
      %3266 = vmatmul.mubr.bf16.gmra.mxu0 %v2270
      %v3267 = vpop.f32.mrf.mxu0
      %v3268 = vadd.f32 0.0, %v3267
      %v3269 = vpop.f32.mrf.mxu0
      %v3270 = vpop.f32.mrf.mxu0
      %v3271 = vpop.f32.mrf.mxu0
      %3272 = vmatprep.mubr.bf16.mxu0 0
      %3273 = vmatmul.mubr.bf16.gmra.mxu0 %v2273
      %v3274 = vpop.f32.mrf.mxu0
      %v3275 = vpop.f32.mrf.mxu0
      %v3276 = vpop.f32.mrf.mxu0
      %v3277 = vpop.f32.mrf.mxu0
      %3278 = vdwg.mxu0
      %v3295 = vrot.slane %v3207, 6
      %v3296 = vrot.slane %v3212, 6
      %v3297 = vsel %vm1623, %v3295, %v3296
      %v3298 = vrot.slane %v3215, 6
      %v3299 = vsel %vm1623, %v3296, %v3298
      %v3300 = vrot.slane %v3220, 6
      %v3301 = vsel %vm1623, %v3298, %v3300
      %v3302 = vrot.slane %v3223, 6
      %v3303 = vsel %vm1623, %v3300, %v3302
      %v3304 = vrot.slane %v3228, 6
      %v3305 = vsel %vm1623, %v3302, %v3304
      %v3306 = vrot.slane %v3231, 6
      %v3307 = vsel %vm1623, %v3304, %v3306
      %v3308 = vrot.slane %v3236, 6
      %v3309 = vsel %vm1623, %v3306, %v3308
      %v3310 = vrot.slane %v3239, 6
      %v3311 = vsel %vm1623, %v3308, %v3310
      %v3312 = vrot.slane %v3244, 6
      %v3313 = vsel %vm1623, %v3310, %v3312
      %v3314 = vrot.slane %v3247, 6
      %v3315 = vsel %vm1623, %v3312, %v3314
      %v3316 = vrot.slane %v3252, 6
      %v3317 = vsel %vm1623, %v3314, %v3316
      %v3318 = vrot.slane %v3255, 6
      %v3319 = vsel %vm1623, %v3316, %v3318
      %v3320 = vrot.slane %v3260, 6
      %v3321 = vsel %vm1623, %v3318, %v3320
      %v3322 = vrot.slane %v3263, 6
      %v3323 = vsel %vm1623, %v3320, %v3322
      %v3324 = vrot.slane %v3268, 6
      %v3325 = vsel %vm1623, %v3322, %v3324
      %v3341 = vadd.f32 %v3150, %v3297
      %v3342 = vadd.f32 %v3151, %v3299
      %v3343 = vadd.f32 %v3152, %v3301
      %v3344 = vadd.f32 %v3153, %v3303
      %v3345 = vadd.f32 %v3154, %v3305
      %v3346 = vadd.f32 %v3155, %v3307
      %v3347 = vadd.f32 %v3156, %v3309
      %v3348 = vadd.f32 %v3157, %v3311
      %v3349 = vadd.f32 %v3158, %v3313
      %v3350 = vadd.f32 %v3159, %v3315
      %v3351 = vadd.f32 %v3160, %v3317
      %v3352 = vadd.f32 %v3161, %v3319
      %v3353 = vadd.f32 %v3162, %v3321
      %v3354 = vadd.f32 %v3163, %v3323
      %v3355 = vadd.f32 %v3164, %v3325
      %s3356 = scalar_lea.vmem %s3, 60
      %v3357 = vld [vmem:[%s3356] sm:$0xf]
      %v3359 = vsel %vm599, %v3357, 0
      %3361 = vmatprep.subr.bf16.mxu0 0
      %3362 = vmatpush1.bf16.msra.mxu0 0
      %3363 = vmatprep.subr.bf16.mxu0 0
      %3364 = vmatpush1.bf16.msra.mxu0 0
      %3365 = vmatprep.subr.bf16.mxu0 0
      %3366 = vmatpush1.bf16.msra.mxu0 0
      %3367 = vmatprep.subr.bf16.mxu0 0
      %3368 = vmatpush1.bf16.msra.mxu0 0
      %3369 = vmatprep.subr.bf16.mxu0 0
      %3370 = vmatpush1.bf16.msra.mxu0 0
      %3371 = vmatprep.subr.bf16.mxu0 0
      %3372 = vmatpush1.bf16.msra.mxu0 0
      %3373 = vmatprep.subr.bf16.mxu0 0
      %3374 = vmatpush1.bf16.msra.mxu0 0
      %3375 = vmatprep.subr.bf16.mxu0 0
      %3376 = vmatpush1.bf16.msra.mxu0 %v3359
      %3377 = vmatprep.subr.bf16.mxu0 0
      %3378 = vmatpush2.bf16.msra.mxu0 0
      %3379 = vmatprep.subr.bf16.mxu0 0
      %3380 = vmatpush2.bf16.msra.mxu0 0
      %3381 = vmatprep.subr.bf16.mxu0 0
      %3382 = vmatpush2.bf16.msra.mxu0 0
      %3383 = vmatprep.subr.bf16.mxu0 0
      %3384 = vmatpush2.bf16.msra.mxu0 0
      %3385 = vmatprep.subr.bf16.mxu0 0
      %3386 = vmatpush2.bf16.msra.mxu0 0
      %3387 = vmatprep.subr.bf16.mxu0 0
      %3388 = vmatpush2.bf16.msra.mxu0 0
      %3389 = vmatprep.subr.bf16.mxu0 0
      %3390 = vmatpush2.bf16.msra.mxu0 0
      %3391 = vmatprep.subr.bf16.mxu0 0
      %3392 = vmatpush2.bf16.msra.mxu0 0
      %3393 = vmatprep.mubr.bf16.mxu0 0
      %3394 = vmatmul.mubr.bf16.gmra.mxu0 %v2246
      %v3395 = vpop.f32.mrf.mxu0
      %v3396 = vpop.f32.mrf.mxu0
      %v3397 = vpop.f32.mrf.mxu0
      %v3398 = vpop.f32.mrf.mxu0
      %3399 = vmatprep.mubr.bf16.mxu0 0
      %3400 = vmatmul.mubr.bf16.gmra.mxu0 %v2249
      %v3401 = vpop.f32.mrf.mxu0
      %v3402 = vpop.f32.mrf.mxu0
      %v3403 = vpop.f32.mrf.mxu0
      %v3404 = vadd.f32 0.0, %v3403
      %v3405 = vpop.f32.mrf.mxu0
      %3406 = vmatprep.mubr.bf16.mxu0 0
      %3407 = vmatmul.mubr.bf16.gmra.mxu0 %v2252
      %v3408 = vpop.f32.mrf.mxu0
      %v3409 = vadd.f32 0.0, %v3408
      %v3410 = vpop.f32.mrf.mxu0
      %v3411 = vpop.f32.mrf.mxu0
      %v3412 = vadd.f32 0.0, %v3411
      %v3413 = vpop.f32.mrf.mxu0
      %3414 = vmatprep.mubr.bf16.mxu0 0
      %3415 = vmatmul.mubr.bf16.gmra.mxu0 %v2255
      %v3416 = vpop.f32.mrf.mxu0
      %v3417 = vadd.f32 0.0, %v3416
      %v3418 = vpop.f32.mrf.mxu0
      %v3419 = vpop.f32.mrf.mxu0
      %v3420 = vadd.f32 0.0, %v3419
      %v3421 = vpop.f32.mrf.mxu0
      %3422 = vmatprep.mubr.bf16.mxu0 0
      %3423 = vmatmul.mubr.bf16.gmra.mxu0 %v2258
      %v3424 = vpop.f32.mrf.mxu0
      %v3425 = vadd.f32 0.0, %v3424
      %v3426 = vpop.f32.mrf.mxu0
      %v3427 = vpop.f32.mrf.mxu0
      %v3428 = vadd.f32 0.0, %v3427
      %v3429 = vpop.f32.mrf.mxu0
      %3430 = vmatprep.mubr.bf16.mxu0 0
      %3431 = vmatmul.mubr.bf16.gmra.mxu0 %v2261
      %v3432 = vpop.f32.mrf.mxu0
      %v3433 = vadd.f32 0.0, %v3432
      %v3434 = vpop.f32.mrf.mxu0
      %v3435 = vpop.f32.mrf.mxu0
      %v3436 = vadd.f32 0.0, %v3435
      %v3437 = vpop.f32.mrf.mxu0
      %3438 = vmatprep.mubr.bf16.mxu0 0
      %3439 = vmatmul.mubr.bf16.gmra.mxu0 %v2264
      %v3440 = vpop.f32.mrf.mxu0
      %v3441 = vadd.f32 0.0, %v3440
      %v3442 = vpop.f32.mrf.mxu0
      %v3443 = vpop.f32.mrf.mxu0
      %v3444 = vadd.f32 0.0, %v3443
      %v3445 = vpop.f32.mrf.mxu0
      %3446 = vmatprep.mubr.bf16.mxu0 0
      %3447 = vmatmul.mubr.bf16.gmra.mxu0 %v2267
      %v3448 = vpop.f32.mrf.mxu0
      %v3449 = vadd.f32 0.0, %v3448
      %v3450 = vpop.f32.mrf.mxu0
      %v3451 = vpop.f32.mrf.mxu0
      %v3452 = vadd.f32 0.0, %v3451
      %v3453 = vpop.f32.mrf.mxu0
      %3454 = vmatprep.mubr.bf16.mxu0 0
      %3455 = vmatmul.mubr.bf16.gmra.mxu0 %v2270
      %v3456 = vpop.f32.mrf.mxu0
      %v3457 = vadd.f32 0.0, %v3456
      %v3458 = vpop.f32.mrf.mxu0
      %v3459 = vpop.f32.mrf.mxu0
      %v3460 = vadd.f32 0.0, %v3459
      %v3461 = vpop.f32.mrf.mxu0
      %3462 = vmatprep.mubr.bf16.mxu0 0
      %3463 = vmatmul.mubr.bf16.gmra.mxu0 %v2273
      %v3464 = vpop.f32.mrf.mxu0
      %v3465 = vpop.f32.mrf.mxu0
      %v3466 = vpop.f32.mrf.mxu0
      %v3467 = vpop.f32.mrf.mxu0
      %3468 = vdwg.mxu0
      %v3469 = vadd.f32 %v3341, %v3404
      %v3470 = vadd.f32 %v3342, %v3409
      %v3471 = vadd.f32 %v3343, %v3412
      %v3472 = vadd.f32 %v3344, %v3417
      %v3473 = vadd.f32 %v3345, %v3420
      %v3474 = vadd.f32 %v3346, %v3425
      %v3475 = vadd.f32 %v3347, %v3428
      %v3476 = vadd.f32 %v3348, %v3433
      %v3477 = vadd.f32 %v3349, %v3436
      %v3478 = vadd.f32 %v3350, %v3441
      %v3479 = vadd.f32 %v3351, %v3444
      %v3480 = vadd.f32 %v3352, %v3449
      %v3481 = vadd.f32 %v3353, %v3452
      %v3482 = vadd.f32 %v3354, %v3457
      %v3483 = vadd.f32 %v3355, %v3460
      %s3484 = scalar_lea.vmem %s3, 64
      %v3485 = vld [vmem:[%s3484] sm:$0xf]
      %v3487 = vsel %vm599, %v3485, 0
      %3489 = vmatprep.subr.bf16.mxu0 0
      %3490 = vmatpush1.bf16.msra.mxu0 0
      %3491 = vmatprep.subr.bf16.mxu0 0
      %3492 = vmatpush1.bf16.msra.mxu0 0
      %3493 = vmatprep.subr.bf16.mxu0 0
      %3494 = vmatpush1.bf16.msra.mxu0 0
      %3495 = vmatprep.subr.bf16.mxu0 0
      %3496 = vmatpush1.bf16.msra.mxu0 0
      %3497 = vmatprep.subr.bf16.mxu0 0
      %3498 = vmatpush1.bf16.msra.mxu0 0
      %3499 = vmatprep.subr.bf16.mxu0 0
      %3500 = vmatpush1.bf16.msra.mxu0 0
      %3501 = vmatprep.subr.bf16.mxu0 0
      %3502 = vmatpush1.bf16.msra.mxu0 0
      %3503 = vmatprep.subr.bf16.mxu0 0
      %3504 = vmatpush1.bf16.msra.mxu0 %v3487
      %3505 = vmatprep.subr.bf16.mxu0 0
      %3506 = vmatpush2.bf16.msra.mxu0 0
      %3507 = vmatprep.subr.bf16.mxu0 0
      %3508 = vmatpush2.bf16.msra.mxu0 0
      %3509 = vmatprep.subr.bf16.mxu0 0
      %3510 = vmatpush2.bf16.msra.mxu0 0
      %3511 = vmatprep.subr.bf16.mxu0 0
      %3512 = vmatpush2.bf16.msra.mxu0 0
      %3513 = vmatprep.subr.bf16.mxu0 0
      %3514 = vmatpush2.bf16.msra.mxu0 0
      %3515 = vmatprep.subr.bf16.mxu0 0
      %3516 = vmatpush2.bf16.msra.mxu0 0
      %3517 = vmatprep.subr.bf16.mxu0 0
      %3518 = vmatpush2.bf16.msra.mxu0 0
      %3519 = vmatprep.subr.bf16.mxu0 0
      %3520 = vmatpush2.bf16.msra.mxu0 0
      %3521 = vmatprep.mubr.bf16.mxu0 0
      %3522 = vmatmul.mubr.bf16.gmra.mxu0 %v2246
      %v3523 = vpop.f32.mrf.mxu0
      %v3524 = vpop.f32.mrf.mxu0
      %v3525 = vpop.f32.mrf.mxu0
      %v3526 = vpop.f32.mrf.mxu0
      %3527 = vmatprep.mubr.bf16.mxu0 0
      %3528 = vmatmul.mubr.bf16.gmra.mxu0 %v2249
      %v3529 = vpop.f32.mrf.mxu0
      %v3530 = vpop.f32.mrf.mxu0
      %v3531 = vpop.f32.mrf.mxu0
      %v3532 = vadd.f32 0.0, %v3531
      %v3533 = vpop.f32.mrf.mxu0
      %3534 = vmatprep.mubr.bf16.mxu0 0
      %3535 = vmatmul.mubr.bf16.gmra.mxu0 %v2252
      %v3536 = vpop.f32.mrf.mxu0
      %v3537 = vadd.f32 0.0, %v3536
      %v3538 = vpop.f32.mrf.mxu0
      %v3539 = vpop.f32.mrf.mxu0
      %v3540 = vadd.f32 0.0, %v3539
      %v3541 = vpop.f32.mrf.mxu0
      %3542 = vmatprep.mubr.bf16.mxu0 0
      %3543 = vmatmul.mubr.bf16.gmra.mxu0 %v2255
      %v3544 = vpop.f32.mrf.mxu0
      %v3545 = vadd.f32 0.0, %v3544
      %v3546 = vpop.f32.mrf.mxu0
      %v3547 = vpop.f32.mrf.mxu0
      %v3548 = vadd.f32 0.0, %v3547
      %v3549 = vpop.f32.mrf.mxu0
      %3550 = vmatprep.mubr.bf16.mxu0 0
      %3551 = vmatmul.mubr.bf16.gmra.mxu0 %v2258
      %v3552 = vpop.f32.mrf.mxu0
      %v3553 = vadd.f32 0.0, %v3552
      %v3554 = vpop.f32.mrf.mxu0
      %v3555 = vpop.f32.mrf.mxu0
      %v3556 = vadd.f32 0.0, %v3555
      %v3557 = vpop.f32.mrf.mxu0
      %3558 = vmatprep.mubr.bf16.mxu0 0
      %3559 = vmatmul.mubr.bf16.gmra.mxu0 %v2261
      %v3560 = vpop.f32.mrf.mxu0
      %v3561 = vadd.f32 0.0, %v3560
      %v3562 = vpop.f32.mrf.mxu0
      %v3563 = vpop.f32.mrf.mxu0
      %v3564 = vadd.f32 0.0, %v3563
      %v3565 = vpop.f32.mrf.mxu0
      %3566 = vmatprep.mubr.bf16.mxu0 0
      %3567 = vmatmul.mubr.bf16.gmra.mxu0 %v2264
      %v3568 = vpop.f32.mrf.mxu0
      %v3569 = vadd.f32 0.0, %v3568
      %v3570 = vpop.f32.mrf.mxu0
      %v3571 = vpop.f32.mrf.mxu0
      %v3572 = vadd.f32 0.0, %v3571
      %v3573 = vpop.f32.mrf.mxu0
      %3574 = vmatprep.mubr.bf16.mxu0 0
      %3575 = vmatmul.mubr.bf16.gmra.mxu0 %v2267
      %v3576 = vpop.f32.mrf.mxu0
      %v3577 = vadd.f32 0.0, %v3576
      %v3578 = vpop.f32.mrf.mxu0
      %v3579 = vpop.f32.mrf.mxu0
      %v3580 = vadd.f32 0.0, %v3579
      %v3581 = vpop.f32.mrf.mxu0
      %3582 = vmatprep.mubr.bf16.mxu0 0
      %3583 = vmatmul.mubr.bf16.gmra.mxu0 %v2270
      %v3584 = vpop.f32.mrf.mxu0
      %v3585 = vadd.f32 0.0, %v3584
      %v3586 = vpop.f32.mrf.mxu0
      %v3587 = vpop.f32.mrf.mxu0
      %v3588 = vadd.f32 0.0, %v3587
      %v3589 = vpop.f32.mrf.mxu0
      %3590 = vmatprep.mubr.bf16.mxu0 0
      %3591 = vmatmul.mubr.bf16.gmra.mxu0 %v2273
      %v3592 = vpop.f32.mrf.mxu0
      %v3593 = vadd.f32 0.0, %v3592
      %v3594 = vpop.f32.mrf.mxu0
      %v3595 = vpop.f32.mrf.mxu0
      %v3596 = vpop.f32.mrf.mxu0
      %3597 = vdwg.mxu0
      %v3614 = vrot.slane %v3532, 1
      %v3615 = vrot.slane %v3537, 1
      %v3616 = vsel %vm856, %v3614, %v3615
      %v3617 = vrot.slane %v3540, 1
      %v3618 = vsel %vm856, %v3615, %v3617
      %v3619 = vrot.slane %v3545, 1
      %v3620 = vsel %vm856, %v3617, %v3619
      %v3621 = vrot.slane %v3548, 1
      %v3622 = vsel %vm856, %v3619, %v3621
      %v3623 = vrot.slane %v3553, 1
      %v3624 = vsel %vm856, %v3621, %v3623
      %v3625 = vrot.slane %v3556, 1
      %v3626 = vsel %vm856, %v3623, %v3625
      %v3627 = vrot.slane %v3561, 1
      %v3628 = vsel %vm856, %v3625, %v3627
      %v3629 = vrot.slane %v3564, 1
      %v3630 = vsel %vm856, %v3627, %v3629
      %v3631 = vrot.slane %v3569, 1
      %v3632 = vsel %vm856, %v3629, %v3631
      %v3633 = vrot.slane %v3572, 1
      %v3634 = vsel %vm856, %v3631, %v3633
      %v3635 = vrot.slane %v3577, 1
      %v3636 = vsel %vm856, %v3633, %v3635
      %v3637 = vrot.slane %v3580, 1
      %v3638 = vsel %vm856, %v3635, %v3637
      %v3639 = vrot.slane %v3585, 1
      %v3640 = vsel %vm856, %v3637, %v3639
      %v3641 = vrot.slane %v3588, 1
      %v3642 = vsel %vm856, %v3639, %v3641
      %v3643 = vrot.slane %v3593, 1
      %v3644 = vsel %vm856, %v3641, %v3643
      %v3660 = vadd.f32 %v3469, %v3616
      %v3661 = vadd.f32 %v3470, %v3618
      %v3662 = vadd.f32 %v3471, %v3620
      %v3663 = vadd.f32 %v3472, %v3622
      %v3664 = vadd.f32 %v3473, %v3624
      %v3665 = vadd.f32 %v3474, %v3626
      %v3666 = vadd.f32 %v3475, %v3628
      %v3667 = vadd.f32 %v3476, %v3630
      %v3668 = vadd.f32 %v3477, %v3632
      %v3669 = vadd.f32 %v3478, %v3634
      %v3670 = vadd.f32 %v3479, %v3636
      %v3671 = vadd.f32 %v3480, %v3638
      %v3672 = vadd.f32 %v3481, %v3640
      %v3673 = vadd.f32 %v3482, %v3642
      %v3674 = vadd.f32 %v3483, %v3644
      %s3675 = scalar_lea.vmem %s3, 68
      %v3676 = vld [vmem:[%s3675] sm:$0xf]
      %v3678 = vsel %vm599, %v3676, 0
      %3680 = vmatprep.subr.bf16.mxu0 0
      %3681 = vmatpush1.bf16.msra.mxu0 0
      %3682 = vmatprep.subr.bf16.mxu0 0
      %3683 = vmatpush1.bf16.msra.mxu0 0
      %3684 = vmatprep.subr.bf16.mxu0 0
      %3685 = vmatpush1.bf16.msra.mxu0 0
      %3686 = vmatprep.subr.bf16.mxu0 0
      %3687 = vmatpush1.bf16.msra.mxu0 0
      %3688 = vmatprep.subr.bf16.mxu0 0
      %3689 = vmatpush1.bf16.msra.mxu0 0
      %3690 = vmatprep.subr.bf16.mxu0 0
      %3691 = vmatpush1.bf16.msra.mxu0 0
      %3692 = vmatprep.subr.bf16.mxu0 0
      %3693 = vmatpush1.bf16.msra.mxu0 0
      %3694 = vmatprep.subr.bf16.mxu0 0
      %3695 = vmatpush1.bf16.msra.mxu0 %v3678
      %3696 = vmatprep.subr.bf16.mxu0 0
      %3697 = vmatpush2.bf16.msra.mxu0 0
      %3698 = vmatprep.subr.bf16.mxu0 0
      %3699 = vmatpush2.bf16.msra.mxu0 0
      %3700 = vmatprep.subr.bf16.mxu0 0
      %3701 = vmatpush2.bf16.msra.mxu0 0
      %3702 = vmatprep.subr.bf16.mxu0 0
      %3703 = vmatpush2.bf16.msra.mxu0 0
      %3704 = vmatprep.subr.bf16.mxu0 0
      %3705 = vmatpush2.bf16.msra.mxu0 0
      %3706 = vmatprep.subr.bf16.mxu0 0
      %3707 = vmatpush2.bf16.msra.mxu0 0
      %3708 = vmatprep.subr.bf16.mxu0 0
      %3709 = vmatpush2.bf16.msra.mxu0 0
      %3710 = vmatprep.subr.bf16.mxu0 0
      %3711 = vmatpush2.bf16.msra.mxu0 0
      %3712 = vmatprep.mubr.bf16.mxu0 0
      %3713 = vmatmul.mubr.bf16.gmra.mxu0 %v2246
      %v3714 = vpop.f32.mrf.mxu0
      %v3715 = vpop.f32.mrf.mxu0
      %v3716 = vpop.f32.mrf.mxu0
      %v3717 = vpop.f32.mrf.mxu0
      %3718 = vmatprep.mubr.bf16.mxu0 0
      %3719 = vmatmul.mubr.bf16.gmra.mxu0 %v2249
      %v3720 = vpop.f32.mrf.mxu0
      %v3721 = vpop.f32.mrf.mxu0
      %v3722 = vpop.f32.mrf.mxu0
      %v3723 = vadd.f32 0.0, %v3722
      %v3724 = vpop.f32.mrf.mxu0
      %3725 = vmatprep.mubr.bf16.mxu0 0
      %3726 = vmatmul.mubr.bf16.gmra.mxu0 %v2252
      %v3727 = vpop.f32.mrf.mxu0
      %v3728 = vadd.f32 0.0, %v3727
      %v3729 = vpop.f32.mrf.mxu0
      %v3730 = vpop.f32.mrf.mxu0
      %v3731 = vadd.f32 0.0, %v3730
      %v3732 = vpop.f32.mrf.mxu0
      %3733 = vmatprep.mubr.bf16.mxu0 0
      %3734 = vmatmul.mubr.bf16.gmra.mxu0 %v2255
      %v3735 = vpop.f32.mrf.mxu0
      %v3736 = vadd.f32 0.0, %v3735
      %v3737 = vpop.f32.mrf.mxu0
      %v3738 = vpop.f32.mrf.mxu0
      %v3739 = vadd.f32 0.0, %v3738
      %v3740 = vpop.f32.mrf.mxu0
      %3741 = vmatprep.mubr.bf16.mxu0 0
      %3742 = vmatmul.mubr.bf16.gmra.mxu0 %v2258
      %v3743 = vpop.f32.mrf.mxu0
      %v3744 = vadd.f32 0.0, %v3743
      %v3745 = vpop.f32.mrf.mxu0
      %v3746 = vpop.f32.mrf.mxu0
      %v3747 = vadd.f32 0.0, %v3746
      %v3748 = vpop.f32.mrf.mxu0
      %3749 = vmatprep.mubr.bf16.mxu0 0
      %3750 = vmatmul.mubr.bf16.gmra.mxu0 %v2261
      %v3751 = vpop.f32.mrf.mxu0
      %v3752 = vadd.f32 0.0, %v3751
      %v3753 = vpop.f32.mrf.mxu0
      %v3754 = vpop.f32.mrf.mxu0
      %v3755 = vadd.f32 0.0, %v3754
      %v3756 = vpop.f32.mrf.mxu0
      %3757 = vmatprep.mubr.bf16.mxu0 0
      %3758 = vmatmul.mubr.bf16.gmra.mxu0 %v2264
      %v3759 = vpop.f32.mrf.mxu0
      %v3760 = vadd.f32 0.0, %v3759
      %v3761 = vpop.f32.mrf.mxu0
      %v3762 = vpop.f32.mrf.mxu0
      %v3763 = vadd.f32 0.0, %v3762
      %v3764 = vpop.f32.mrf.mxu0
      %3765 = vmatprep.mubr.bf16.mxu0 0
      %3766 = vmatmul.mubr.bf16.gmra.mxu0 %v2267
      %v3767 = vpop.f32.mrf.mxu0
      %v3768 = vadd.f32 0.0, %v3767
      %v3769 = vpop.f32.mrf.mxu0
      %v3770 = vpop.f32.mrf.mxu0
      %v3771 = vadd.f32 0.0, %v3770
      %v3772 = vpop.f32.mrf.mxu0
      %3773 = vmatprep.mubr.bf16.mxu0 0
      %3774 = vmatmul.mubr.bf16.gmra.mxu0 %v2270
      %v3775 = vpop.f32.mrf.mxu0
      %v3776 = vadd.f32 0.0, %v3775
      %v3777 = vpop.f32.mrf.mxu0
      %v3778 = vpop.f32.mrf.mxu0
      %v3779 = vadd.f32 0.0, %v3778
      %v3780 = vpop.f32.mrf.mxu0
      %3781 = vmatprep.mubr.bf16.mxu0 0
      %3782 = vmatmul.mubr.bf16.gmra.mxu0 %v2273
      %v3783 = vpop.f32.mrf.mxu0
      %v3784 = vadd.f32 0.0, %v3783
      %v3785 = vpop.f32.mrf.mxu0
      %v3786 = vpop.f32.mrf.mxu0
      %v3787 = vpop.f32.mrf.mxu0
      %3788 = vdwg.mxu0
      %v3805 = vrot.slane %v3723, 2
      %v3806 = vrot.slane %v3728, 2
      %v3807 = vsel %vm1048, %v3805, %v3806
      %v3808 = vrot.slane %v3731, 2
      %v3809 = vsel %vm1048, %v3806, %v3808
      %v3810 = vrot.slane %v3736, 2
      %v3811 = vsel %vm1048, %v3808, %v3810
      %v3812 = vrot.slane %v3739, 2
      %v3813 = vsel %vm1048, %v3810, %v3812
      %v3814 = vrot.slane %v3744, 2
      %v3815 = vsel %vm1048, %v3812, %v3814
      %v3816 = vrot.slane %v3747, 2
      %v3817 = vsel %vm1048, %v3814, %v3816
      %v3818 = vrot.slane %v3752, 2
      %v3819 = vsel %vm1048, %v3816, %v3818
      %v3820 = vrot.slane %v3755, 2
      %v3821 = vsel %vm1048, %v3818, %v3820
      %v3822 = vrot.slane %v3760, 2
      %v3823 = vsel %vm1048, %v3820, %v3822
      %v3824 = vrot.slane %v3763, 2
      %v3825 = vsel %vm1048, %v3822, %v3824
      %v3826 = vrot.slane %v3768, 2
      %v3827 = vsel %vm1048, %v3824, %v3826
      %v3828 = vrot.slane %v3771, 2
      %v3829 = vsel %vm1048, %v3826, %v3828
      %v3830 = vrot.slane %v3776, 2
      %v3831 = vsel %vm1048, %v3828, %v3830
      %v3832 = vrot.slane %v3779, 2
      %v3833 = vsel %vm1048, %v3830, %v3832
      %v3834 = vrot.slane %v3784, 2
      %v3835 = vsel %vm1048, %v3832, %v3834
      %v3851 = vadd.f32 %v3660, %v3807
      %v3852 = vadd.f32 %v3661, %v3809
      %v3853 = vadd.f32 %v3662, %v3811
      %v3854 = vadd.f32 %v3663, %v3813
      %v3855 = vadd.f32 %v3664, %v3815
      %v3856 = vadd.f32 %v3665, %v3817
      %v3857 = vadd.f32 %v3666, %v3819
      %v3858 = vadd.f32 %v3667, %v3821
      %v3859 = vadd.f32 %v3668, %v3823
      %v3860 = vadd.f32 %v3669, %v3825
      %v3861 = vadd.f32 %v3670, %v3827
      %v3862 = vadd.f32 %v3671, %v3829
      %v3863 = vadd.f32 %v3672, %v3831
      %v3864 = vadd.f32 %v3673, %v3833
      %v3865 = vadd.f32 %v3674, %v3835
      %s3866 = scalar_lea.vmem %s3, 72
      %v3867 = vld [vmem:[%s3866] sm:$0xf]
      %v3887 = vunpack.c.l.b16 %v500
      %v3888 = vunpack.c.l.b16 %v501
      %v3889 = vunpack.c.l.b16 %v502
      %v3890 = vunpack.c.l.b16 %v503
      %v3891 = vunpack.c.l.b16 %v504
      %v3892 = vunpack.c.l.b16 %v505
      %v3893 = vunpack.c.l.b16 %v506
      %v3894 = vunpack.c.l.b16 %v507
      %v3895 = vunpack.c.l.b16 %v508
      %v3896 = vunpack.c.l.b16 %v509
      %v3897 = vunpack.c.l.b16 %v510
      %v3898 = vunpack.c.l.b16 %v511
      %v3899 = vunpack.c.l.b16 %v512
      %v3900 = vunpack.c.l.b16 %v513
      %v3901 = vunpack.c.l.b16 %v514
      %v3902 = vunpack.c.l.b16 %v515
      %v3903 = vunpack.c.l.b16 %v516
      %v3904 = vunpack.c.l.b16 %v517
      %v3905 = vunpack.c.l.b16 %v518
      %v3906 = vpack.c.b16 %v3888, %v3887
      %v3907 = vpack.c.b16 %v3890, %v3889
      %v3908 = vpack.c.b16 %v3892, %v3891
      %v3909 = vpack.c.b16 %v3894, %v3893
      %v3910 = vpack.c.b16 %v3896, %v3895
      %v3911 = vpack.c.b16 %v3898, %v3897
      %v3912 = vpack.c.b16 %v3900, %v3899
      %v3913 = vpack.c.b16 %v3902, %v3901
      %v3914 = vpack.c.b16 %v3904, %v3903
      %v3915 = vpack.c.b16 %v3905, %v3905
      %v3917 = vsel %vm568, %v3906, 0
      %v3920 = vsel %vm568, %v3907, 0
      %v3923 = vsel %vm568, %v3908, 0
      %v3926 = vsel %vm568, %v3909, 0
      %v3929 = vsel %vm568, %v3910, 0
      %v3932 = vsel %vm568, %v3911, 0
      %v3935 = vsel %vm568, %v3912, 0
      %v3938 = vsel %vm568, %v3913, 0
      %v3941 = vsel %vm568, %v3914, 0
      %v3944 = vsel %vm568, %v3915, 0
      %v3947 = vsel %vm599, %v3867, 0
      %3949 = vmatprep.subr.bf16.mxu0 0
      %3950 = vmatpush1.bf16.msra.mxu0 0
      %3951 = vmatprep.subr.bf16.mxu0 0
      %3952 = vmatpush1.bf16.msra.mxu0 0
      %3953 = vmatprep.subr.bf16.mxu0 0
      %3954 = vmatpush1.bf16.msra.mxu0 0
      %3955 = vmatprep.subr.bf16.mxu0 0
      %3956 = vmatpush1.bf16.msra.mxu0 0
      %3957 = vmatprep.subr.bf16.mxu0 0
      %3958 = vmatpush1.bf16.msra.mxu0 0
      %3959 = vmatprep.subr.bf16.mxu0 0
      %3960 = vmatpush1.bf16.msra.mxu0 0
      %3961 = vmatprep.subr.bf16.mxu0 0
      %3962 = vmatpush1.bf16.msra.mxu0 0
      %3963 = vmatprep.subr.bf16.mxu0 0
      %3964 = vmatpush1.bf16.msra.mxu0 %v3947
      %3965 = vmatprep.subr.bf16.mxu0 0
      %3966 = vmatpush2.bf16.msra.mxu0 0
      %3967 = vmatprep.subr.bf16.mxu0 0
      %3968 = vmatpush2.bf16.msra.mxu0 0
      %3969 = vmatprep.subr.bf16.mxu0 0
      %3970 = vmatpush2.bf16.msra.mxu0 0
      %3971 = vmatprep.subr.bf16.mxu0 0
      %3972 = vmatpush2.bf16.msra.mxu0 0
      %3973 = vmatprep.subr.bf16.mxu0 0
      %3974 = vmatpush2.bf16.msra.mxu0 0
      %3975 = vmatprep.subr.bf16.mxu0 0
      %3976 = vmatpush2.bf16.msra.mxu0 0
      %3977 = vmatprep.subr.bf16.mxu0 0
      %3978 = vmatpush2.bf16.msra.mxu0 0
      %3979 = vmatprep.subr.bf16.mxu0 0
      %3980 = vmatpush2.bf16.msra.mxu0 0
      %3981 = vmatprep.mubr.bf16.mxu0 0
      %3982 = vmatmul.mubr.bf16.gmra.mxu0 %v3917
      %v3983 = vpop.f32.mrf.mxu0
      %v3984 = vadd.f32 0.0, %v3983
      %v3985 = vpop.f32.mrf.mxu0
      %v3986 = vpop.f32.mrf.mxu0
      %v3987 = vadd.f32 0.0, %v3986
      %v3988 = vpop.f32.mrf.mxu0
      %3989 = vmatprep.mubr.bf16.mxu0 0
      %3990 = vmatmul.mubr.bf16.gmra.mxu0 %v3920
      %v3991 = vpop.f32.mrf.mxu0
      %v3992 = vadd.f32 0.0, %v3991
      %v3993 = vpop.f32.mrf.mxu0
      %v3994 = vpop.f32.mrf.mxu0
      %v3995 = vadd.f32 0.0, %v3994
      %v3996 = vpop.f32.mrf.mxu0
      %3997 = vmatprep.mubr.bf16.mxu0 0
      %3998 = vmatmul.mubr.bf16.gmra.mxu0 %v3923
      %v3999 = vpop.f32.mrf.mxu0
      %v4000 = vadd.f32 0.0, %v3999
      %v4001 = vpop.f32.mrf.mxu0
      %v4002 = vpop.f32.mrf.mxu0
      %v4003 = vadd.f32 0.0, %v4002
      %v4004 = vpop.f32.mrf.mxu0
      %4005 = vmatprep.mubr.bf16.mxu0 0
      %4006 = vmatmul.mubr.bf16.gmra.mxu0 %v3926
      %v4007 = vpop.f32.mrf.mxu0
      %v4008 = vadd.f32 0.0, %v4007
      %v4009 = vpop.f32.mrf.mxu0
      %v4010 = vpop.f32.mrf.mxu0
      %v4011 = vadd.f32 0.0, %v4010
      %v4012 = vpop.f32.mrf.mxu0
      %4013 = vmatprep.mubr.bf16.mxu0 0
      %4014 = vmatmul.mubr.bf16.gmra.mxu0 %v3929
      %v4015 = vpop.f32.mrf.mxu0
      %v4016 = vadd.f32 0.0, %v4015
      %v4017 = vpop.f32.mrf.mxu0
      %v4018 = vpop.f32.mrf.mxu0
      %v4019 = vadd.f32 0.0, %v4018
      %v4020 = vpop.f32.mrf.mxu0
      %4021 = vmatprep.mubr.bf16.mxu0 0
      %4022 = vmatmul.mubr.bf16.gmra.mxu0 %v3932
      %v4023 = vpop.f32.mrf.mxu0
      %v4024 = vadd.f32 0.0, %v4023
      %v4025 = vpop.f32.mrf.mxu0
      %v4026 = vpop.f32.mrf.mxu0
      %v4027 = vadd.f32 0.0, %v4026
      %v4028 = vpop.f32.mrf.mxu0
      %4029 = vmatprep.mubr.bf16.mxu0 0
      %4030 = vmatmul.mubr.bf16.gmra.mxu0 %v3935
      %v4031 = vpop.f32.mrf.mxu0
      %v4032 = vadd.f32 0.0, %v4031
      %v4033 = vpop.f32.mrf.mxu0
      %v4034 = vpop.f32.mrf.mxu0
      %v4035 = vadd.f32 0.0, %v4034
      %v4036 = vpop.f32.mrf.mxu0
      %4037 = vmatprep.mubr.bf16.mxu0 0
      %4038 = vmatmul.mubr.bf16.gmra.mxu0 %v3938
      %v4039 = vpop.f32.mrf.mxu0
      %v4040 = vadd.f32 0.0, %v4039
      %v4041 = vpop.f32.mrf.mxu0
      %v4042 = vpop.f32.mrf.mxu0
      %v4043 = vpop.f32.mrf.mxu0
      %4044 = vmatprep.mubr.bf16.mxu0 0
      %4045 = vmatmul.mubr.bf16.gmra.mxu0 %v3941
      %v4046 = vpop.f32.mrf.mxu0
      %v4047 = vpop.f32.mrf.mxu0
      %v4048 = vpop.f32.mrf.mxu0
      %v4049 = vpop.f32.mrf.mxu0
      %4050 = vmatprep.mubr.bf16.mxu0 0
      %4051 = vmatmul.mubr.bf16.gmra.mxu0 %v3944
      %v4052 = vpop.f32.mrf.mxu0
      %v4053 = vpop.f32.mrf.mxu0
      %v4054 = vpop.f32.mrf.mxu0
      %v4055 = vpop.f32.mrf.mxu0
      %4056 = vdwg.mxu0
      %v4057 = vadd.f32 %v3851, %v3984
      %v4058 = vadd.f32 %v3852, %v3987
      %v4059 = vadd.f32 %v3853, %v3992
      %v4060 = vadd.f32 %v3854, %v3995
      %v4061 = vadd.f32 %v3855, %v4000
      %v4062 = vadd.f32 %v3856, %v4003
      %v4063 = vadd.f32 %v3857, %v4008
      %v4064 = vadd.f32 %v3858, %v4011
      %v4065 = vadd.f32 %v3859, %v4016
      %v4066 = vadd.f32 %v3860, %v4019
      %v4067 = vadd.f32 %v3861, %v4024
      %v4068 = vadd.f32 %v3862, %v4027
      %v4069 = vadd.f32 %v3863, %v4032
      %v4070 = vadd.f32 %v3864, %v4035
      %v4071 = vadd.f32 %v3865, %v4040
      %s4072 = scalar_lea.vmem %s3, 76
      %v4073 = vld [vmem:[%s4072] sm:$0xf]
      %v4075 = vsel %vm599, %v4073, 0
      %4077 = vmatprep.subr.bf16.mxu0 0
      %4078 = vmatpush1.bf16.msra.mxu0 0
      %4079 = vmatprep.subr.bf16.mxu0 0
      %4080 = vmatpush1.bf16.msra.mxu0 0
      %4081 = vmatprep.subr.bf16.mxu0 0
      %4082 = vmatpush1.bf16.msra.mxu0 0
      %4083 = vmatprep.subr.bf16.mxu0 0
      %4084 = vmatpush1.bf16.msra.mxu0 0
      %4085 = vmatprep.subr.bf16.mxu0 0
      %4086 = vmatpush1.bf16.msra.mxu0 0
      %4087 = vmatprep.subr.bf16.mxu0 0
      %4088 = vmatpush1.bf16.msra.mxu0 0
      %4089 = vmatprep.subr.bf16.mxu0 0
      %4090 = vmatpush1.bf16.msra.mxu0 0
      %4091 = vmatprep.subr.bf16.mxu0 0
      %4092 = vmatpush1.bf16.msra.mxu0 %v4075
      %4093 = vmatprep.subr.bf16.mxu0 0
      %4094 = vmatpush2.bf16.msra.mxu0 0
      %4095 = vmatprep.subr.bf16.mxu0 0
      %4096 = vmatpush2.bf16.msra.mxu0 0
      %4097 = vmatprep.subr.bf16.mxu0 0
      %4098 = vmatpush2.bf16.msra.mxu0 0
      %4099 = vmatprep.subr.bf16.mxu0 0
      %4100 = vmatpush2.bf16.msra.mxu0 0
      %4101 = vmatprep.subr.bf16.mxu0 0
      %4102 = vmatpush2.bf16.msra.mxu0 0
      %4103 = vmatprep.subr.bf16.mxu0 0
      %4104 = vmatpush2.bf16.msra.mxu0 0
      %4105 = vmatprep.subr.bf16.mxu0 0
      %4106 = vmatpush2.bf16.msra.mxu0 0
      %4107 = vmatprep.subr.bf16.mxu0 0
      %4108 = vmatpush2.bf16.msra.mxu0 0
      %4109 = vmatprep.mubr.bf16.mxu0 0
      %4110 = vmatmul.mubr.bf16.gmra.mxu0 %v3917
      %v4111 = vpop.f32.mrf.mxu0
      %v4112 = vadd.f32 0.0, %v4111
      %v4113 = vpop.f32.mrf.mxu0
      %v4114 = vpop.f32.mrf.mxu0
      %v4115 = vadd.f32 0.0, %v4114
      %v4116 = vpop.f32.mrf.mxu0
      %4117 = vmatprep.mubr.bf16.mxu0 0
      %4118 = vmatmul.mubr.bf16.gmra.mxu0 %v3920
      %v4119 = vpop.f32.mrf.mxu0
      %v4120 = vadd.f32 0.0, %v4119
      %v4121 = vpop.f32.mrf.mxu0
      %v4122 = vpop.f32.mrf.mxu0
      %v4123 = vadd.f32 0.0, %v4122
      %v4124 = vpop.f32.mrf.mxu0
      %4125 = vmatprep.mubr.bf16.mxu0 0
      %4126 = vmatmul.mubr.bf16.gmra.mxu0 %v3923
      %v4127 = vpop.f32.mrf.mxu0
      %v4128 = vadd.f32 0.0, %v4127
      %v4129 = vpop.f32.mrf.mxu0
      %v4130 = vpop.f32.mrf.mxu0
      %v4131 = vadd.f32 0.0, %v4130
      %v4132 = vpop.f32.mrf.mxu0
      %4133 = vmatprep.mubr.bf16.mxu0 0
      %4134 = vmatmul.mubr.bf16.gmra.mxu0 %v3926
      %v4135 = vpop.f32.mrf.mxu0
      %v4136 = vadd.f32 0.0, %v4135
      %v4137 = vpop.f32.mrf.mxu0
      %v4138 = vpop.f32.mrf.mxu0
      %v4139 = vadd.f32 0.0, %v4138
      %v4140 = vpop.f32.mrf.mxu0
      %4141 = vmatprep.mubr.bf16.mxu0 0
      %4142 = vmatmul.mubr.bf16.gmra.mxu0 %v3929
      %v4143 = vpop.f32.mrf.mxu0
      %v4144 = vadd.f32 0.0, %v4143
      %v4145 = vpop.f32.mrf.mxu0
      %v4146 = vpop.f32.mrf.mxu0
      %v4147 = vadd.f32 0.0, %v4146
      %v4148 = vpop.f32.mrf.mxu0
      %4149 = vmatprep.mubr.bf16.mxu0 0
      %4150 = vmatmul.mubr.bf16.gmra.mxu0 %v3932
      %v4151 = vpop.f32.mrf.mxu0
      %v4152 = vadd.f32 0.0, %v4151
      %v4153 = vpop.f32.mrf.mxu0
      %v4154 = vpop.f32.mrf.mxu0
      %v4155 = vadd.f32 0.0, %v4154
      %v4156 = vpop.f32.mrf.mxu0
      %4157 = vmatprep.mubr.bf16.mxu0 0
      %4158 = vmatmul.mubr.bf16.gmra.mxu0 %v3935
      %v4159 = vpop.f32.mrf.mxu0
      %v4160 = vadd.f32 0.0, %v4159
      %v4161 = vpop.f32.mrf.mxu0
      %v4162 = vpop.f32.mrf.mxu0
      %v4163 = vadd.f32 0.0, %v4162
      %v4164 = vpop.f32.mrf.mxu0
      %4165 = vmatprep.mubr.bf16.mxu0 0
      %4166 = vmatmul.mubr.bf16.gmra.mxu0 %v3938
      %v4167 = vpop.f32.mrf.mxu0
      %v4168 = vadd.f32 0.0, %v4167
      %v4169 = vpop.f32.mrf.mxu0
      %v4170 = vpop.f32.mrf.mxu0
      %v4171 = vadd.f32 0.0, %v4170
      %v4172 = vpop.f32.mrf.mxu0
      %4173 = vmatprep.mubr.bf16.mxu0 0
      %4174 = vmatmul.mubr.bf16.gmra.mxu0 %v3941
      %v4175 = vpop.f32.mrf.mxu0
      %v4176 = vpop.f32.mrf.mxu0
      %v4177 = vpop.f32.mrf.mxu0
      %v4178 = vpop.f32.mrf.mxu0
      %4179 = vmatprep.mubr.bf16.mxu0 0
      %4180 = vmatmul.mubr.bf16.gmra.mxu0 %v3944
      %v4181 = vpop.f32.mrf.mxu0
      %v4182 = vpop.f32.mrf.mxu0
      %v4183 = vpop.f32.mrf.mxu0
      %v4184 = vpop.f32.mrf.mxu0
      %4185 = vdwg.mxu0
      %v4202 = vrot.slane %v4112, 1
      %v4203 = vrot.slane %v4115, 1
      %v4204 = vsel %vm856, %v4202, %v4203
      %v4205 = vrot.slane %v4120, 1
      %v4206 = vsel %vm856, %v4203, %v4205
      %v4207 = vrot.slane %v4123, 1
      %v4208 = vsel %vm856, %v4205, %v4207
      %v4209 = vrot.slane %v4128, 1
      %v4210 = vsel %vm856, %v4207, %v4209
      %v4211 = vrot.slane %v4131, 1
      %v4212 = vsel %vm856, %v4209, %v4211
      %v4213 = vrot.slane %v4136, 1
      %v4214 = vsel %vm856, %v4211, %v4213
      %v4215 = vrot.slane %v4139, 1
      %v4216 = vsel %vm856, %v4213, %v4215
      %v4217 = vrot.slane %v4144, 1
      %v4218 = vsel %vm856, %v4215, %v4217
      %v4219 = vrot.slane %v4147, 1
      %v4220 = vsel %vm856, %v4217, %v4219
      %v4221 = vrot.slane %v4152, 1
      %v4222 = vsel %vm856, %v4219, %v4221
      %v4223 = vrot.slane %v4155, 1
      %v4224 = vsel %vm856, %v4221, %v4223
      %v4225 = vrot.slane %v4160, 1
      %v4226 = vsel %vm856, %v4223, %v4225
      %v4227 = vrot.slane %v4163, 1
      %v4228 = vsel %vm856, %v4225, %v4227
      %v4229 = vrot.slane %v4168, 1
      %v4230 = vsel %vm856, %v4227, %v4229
      %v4231 = vrot.slane %v4171, 1
      %v4232 = vsel %vm856, %v4229, %v4231
      %v4248 = vadd.f32 %v4057, %v4204
      %v4249 = vadd.f32 %v4058, %v4206
      %v4250 = vadd.f32 %v4059, %v4208
      %v4251 = vadd.f32 %v4060, %v4210
      %v4252 = vadd.f32 %v4061, %v4212
      %v4253 = vadd.f32 %v4062, %v4214
      %v4254 = vadd.f32 %v4063, %v4216
      %v4255 = vadd.f32 %v4064, %v4218
      %v4256 = vadd.f32 %v4065, %v4220
      %v4257 = vadd.f32 %v4066, %v4222
      %v4258 = vadd.f32 %v4067, %v4224
      %v4259 = vadd.f32 %v4068, %v4226
      %v4260 = vadd.f32 %v4069, %v4228
      %v4261 = vadd.f32 %v4070, %v4230
      %v4262 = vadd.f32 %v4071, %v4232
      %s4263 = scalar_lea.vmem %s3, 80
      %v4264 = vld [vmem:[%s4263] sm:$0xf]
      %v4266 = vsel %vm599, %v4264, 0
      %4268 = vmatprep.subr.bf16.mxu0 0
      %4269 = vmatpush1.bf16.msra.mxu0 0
      %4270 = vmatprep.subr.bf16.mxu0 0
      %4271 = vmatpush1.bf16.msra.mxu0 0
      %4272 = vmatprep.subr.bf16.mxu0 0
      %4273 = vmatpush1.bf16.msra.mxu0 0
      %4274 = vmatprep.subr.bf16.mxu0 0
      %4275 = vmatpush1.bf16.msra.mxu0 0
      %4276 = vmatprep.subr.bf16.mxu0 0
      %4277 = vmatpush1.bf16.msra.mxu0 0
      %4278 = vmatprep.subr.bf16.mxu0 0
      %4279 = vmatpush1.bf16.msra.mxu0 0
      %4280 = vmatprep.subr.bf16.mxu0 0
      %4281 = vmatpush1.bf16.msra.mxu0 0
      %4282 = vmatprep.subr.bf16.mxu0 0
      %4283 = vmatpush1.bf16.msra.mxu0 %v4266
      %4284 = vmatprep.subr.bf16.mxu0 0
      %4285 = vmatpush2.bf16.msra.mxu0 0
      %4286 = vmatprep.subr.bf16.mxu0 0
      %4287 = vmatpush2.bf16.msra.mxu0 0
      %4288 = vmatprep.subr.bf16.mxu0 0
      %4289 = vmatpush2.bf16.msra.mxu0 0
      %4290 = vmatprep.subr.bf16.mxu0 0
      %4291 = vmatpush2.bf16.msra.mxu0 0
      %4292 = vmatprep.subr.bf16.mxu0 0
      %4293 = vmatpush2.bf16.msra.mxu0 0
      %4294 = vmatprep.subr.bf16.mxu0 0
      %4295 = vmatpush2.bf16.msra.mxu0 0
      %4296 = vmatprep.subr.bf16.mxu0 0
      %4297 = vmatpush2.bf16.msra.mxu0 0
      %4298 = vmatprep.subr.bf16.mxu0 0
      %4299 = vmatpush2.bf16.msra.mxu0 0
      %4300 = vmatprep.mubr.bf16.mxu0 0
      %4301 = vmatmul.mubr.bf16.gmra.mxu0 %v3917
      %v4302 = vpop.f32.mrf.mxu0
      %v4303 = vadd.f32 0.0, %v4302
      %v4304 = vpop.f32.mrf.mxu0
      %v4305 = vpop.f32.mrf.mxu0
      %v4306 = vadd.f32 0.0, %v4305
      %v4307 = vpop.f32.mrf.mxu0
      %4308 = vmatprep.mubr.bf16.mxu0 0
      %4309 = vmatmul.mubr.bf16.gmra.mxu0 %v3920
      %v4310 = vpop.f32.mrf.mxu0
      %v4311 = vadd.f32 0.0, %v4310
      %v4312 = vpop.f32.mrf.mxu0
      %v4313 = vpop.f32.mrf.mxu0
      %v4314 = vadd.f32 0.0, %v4313
      %v4315 = vpop.f32.mrf.mxu0
      %4316 = vmatprep.mubr.bf16.mxu0 0
      %4317 = vmatmul.mubr.bf16.gmra.mxu0 %v3923
      %v4318 = vpop.f32.mrf.mxu0
      %v4319 = vadd.f32 0.0, %v4318
      %v4320 = vpop.f32.mrf.mxu0
      %v4321 = vpop.f32.mrf.mxu0
      %v4322 = vadd.f32 0.0, %v4321
      %v4323 = vpop.f32.mrf.mxu0
      %4324 = vmatprep.mubr.bf16.mxu0 0
      %4325 = vmatmul.mubr.bf16.gmra.mxu0 %v3926
      %v4326 = vpop.f32.mrf.mxu0
      %v4327 = vadd.f32 0.0, %v4326
      %v4328 = vpop.f32.mrf.mxu0
      %v4329 = vpop.f32.mrf.mxu0
      %v4330 = vadd.f32 0.0, %v4329
      %v4331 = vpop.f32.mrf.mxu0
      %4332 = vmatprep.mubr.bf16.mxu0 0
      %4333 = vmatmul.mubr.bf16.gmra.mxu0 %v3929
      %v4334 = vpop.f32.mrf.mxu0
      %v4335 = vadd.f32 0.0, %v4334
      %v4336 = vpop.f32.mrf.mxu0
      %v4337 = vpop.f32.mrf.mxu0
      %v4338 = vadd.f32 0.0, %v4337
      %v4339 = vpop.f32.mrf.mxu0
      %4340 = vmatprep.mubr.bf16.mxu0 0
      %4341 = vmatmul.mubr.bf16.gmra.mxu0 %v3932
      %v4342 = vpop.f32.mrf.mxu0
      %v4343 = vadd.f32 0.0, %v4342
      %v4344 = vpop.f32.mrf.mxu0
      %v4345 = vpop.f32.mrf.mxu0
      %v4346 = vadd.f32 0.0, %v4345
      %v4347 = vpop.f32.mrf.mxu0
      %4348 = vmatprep.mubr.bf16.mxu0 0
      %4349 = vmatmul.mubr.bf16.gmra.mxu0 %v3935
      %v4350 = vpop.f32.mrf.mxu0
      %v4351 = vadd.f32 0.0, %v4350
      %v4352 = vpop.f32.mrf.mxu0
      %v4353 = vpop.f32.mrf.mxu0
      %v4354 = vadd.f32 0.0, %v4353
      %v4355 = vpop.f32.mrf.mxu0
      %4356 = vmatprep.mubr.bf16.mxu0 0
      %4357 = vmatmul.mubr.bf16.gmra.mxu0 %v3938
      %v4358 = vpop.f32.mrf.mxu0
      %v4359 = vadd.f32 0.0, %v4358
      %v4360 = vpop.f32.mrf.mxu0
      %v4361 = vpop.f32.mrf.mxu0
      %v4362 = vadd.f32 0.0, %v4361
      %v4363 = vpop.f32.mrf.mxu0
      %4364 = vmatprep.mubr.bf16.mxu0 0
      %4365 = vmatmul.mubr.bf16.gmra.mxu0 %v3941
      %v4366 = vpop.f32.mrf.mxu0
      %v4367 = vpop.f32.mrf.mxu0
      %v4368 = vpop.f32.mrf.mxu0
      %v4369 = vpop.f32.mrf.mxu0
      %4370 = vmatprep.mubr.bf16.mxu0 0
      %4371 = vmatmul.mubr.bf16.gmra.mxu0 %v3944
      %v4372 = vpop.f32.mrf.mxu0
      %v4373 = vpop.f32.mrf.mxu0
      %v4374 = vpop.f32.mrf.mxu0
      %v4375 = vpop.f32.mrf.mxu0
      %4376 = vdwg.mxu0
      %v4393 = vrot.slane %v4303, 2
      %v4394 = vrot.slane %v4306, 2
      %v4395 = vsel %vm1048, %v4393, %v4394
      %v4396 = vrot.slane %v4311, 2
      %v4397 = vsel %vm1048, %v4394, %v4396
      %v4398 = vrot.slane %v4314, 2
      %v4399 = vsel %vm1048, %v4396, %v4398
      %v4400 = vrot.slane %v4319, 2
      %v4401 = vsel %vm1048, %v4398, %v4400
      %v4402 = vrot.slane %v4322, 2
      %v4403 = vsel %vm1048, %v4400, %v4402
      %v4404 = vrot.slane %v4327, 2
      %v4405 = vsel %vm1048, %v4402, %v4404
      %v4406 = vrot.slane %v4330, 2
      %v4407 = vsel %vm1048, %v4404, %v4406
      %v4408 = vrot.slane %v4335, 2
      %v4409 = vsel %vm1048, %v4406, %v4408
      %v4410 = vrot.slane %v4338, 2
      %v4411 = vsel %vm1048, %v4408, %v4410
      %v4412 = vrot.slane %v4343, 2
      %v4413 = vsel %vm1048, %v4410, %v4412
      %v4414 = vrot.slane %v4346, 2
      %v4415 = vsel %vm1048, %v4412, %v4414
      %v4416 = vrot.slane %v4351, 2
      %v4417 = vsel %vm1048, %v4414, %v4416
      %v4418 = vrot.slane %v4354, 2
      %v4419 = vsel %vm1048, %v4416, %v4418
      %v4420 = vrot.slane %v4359, 2
      %v4421 = vsel %vm1048, %v4418, %v4420
      %v4422 = vrot.slane %v4362, 2
      %v4423 = vsel %vm1048, %v4420, %v4422
      %v4439 = vadd.f32 %v4248, %v4395
      %v4440 = vadd.f32 %v4249, %v4397
      %v4441 = vadd.f32 %v4250, %v4399
      %v4442 = vadd.f32 %v4251, %v4401
      %v4443 = vadd.f32 %v4252, %v4403
      %v4444 = vadd.f32 %v4253, %v4405
      %v4445 = vadd.f32 %v4254, %v4407
      %v4446 = vadd.f32 %v4255, %v4409
      %v4447 = vadd.f32 %v4256, %v4411
      %v4448 = vadd.f32 %v4257, %v4413
      %v4449 = vadd.f32 %v4258, %v4415
      %v4450 = vadd.f32 %v4259, %v4417
      %v4451 = vadd.f32 %v4260, %v4419
      %v4452 = vadd.f32 %v4261, %v4421
      %v4453 = vadd.f32 %v4262, %v4423
      %s4454 = scalar_lea.vmem %s3, 84
      %v4455 = vld [vmem:[%s4454] sm:$0xf]
      %v4457 = vsel %vm599, %v4455, 0
      %4459 = vmatprep.subr.bf16.mxu0 0
      %4460 = vmatpush1.bf16.msra.mxu0 0
      %4461 = vmatprep.subr.bf16.mxu0 0
      %4462 = vmatpush1.bf16.msra.mxu0 0
      %4463 = vmatprep.subr.bf16.mxu0 0
      %4464 = vmatpush1.bf16.msra.mxu0 0
      %4465 = vmatprep.subr.bf16.mxu0 0
      %4466 = vmatpush1.bf16.msra.mxu0 0
      %4467 = vmatprep.subr.bf16.mxu0 0
      %4468 = vmatpush1.bf16.msra.mxu0 0
      %4469 = vmatprep.subr.bf16.mxu0 0
      %4470 = vmatpush1.bf16.msra.mxu0 0
      %4471 = vmatprep.subr.bf16.mxu0 0
      %4472 = vmatpush1.bf16.msra.mxu0 0
      %4473 = vmatprep.subr.bf16.mxu0 0
      %4474 = vmatpush1.bf16.msra.mxu0 %v4457
      %4475 = vmatprep.subr.bf16.mxu0 0
      %4476 = vmatpush2.bf16.msra.mxu0 0
      %4477 = vmatprep.subr.bf16.mxu0 0
      %4478 = vmatpush2.bf16.msra.mxu0 0
      %4479 = vmatprep.subr.bf16.mxu0 0
      %4480 = vmatpush2.bf16.msra.mxu0 0
      %4481 = vmatprep.subr.bf16.mxu0 0
      %4482 = vmatpush2.bf16.msra.mxu0 0
      %4483 = vmatprep.subr.bf16.mxu0 0
      %4484 = vmatpush2.bf16.msra.mxu0 0
      %4485 = vmatprep.subr.bf16.mxu0 0
      %4486 = vmatpush2.bf16.msra.mxu0 0
      %4487 = vmatprep.subr.bf16.mxu0 0
      %4488 = vmatpush2.bf16.msra.mxu0 0
      %4489 = vmatprep.subr.bf16.mxu0 0
      %4490 = vmatpush2.bf16.msra.mxu0 0
      %4491 = vmatprep.mubr.bf16.mxu0 0
      %4492 = vmatmul.mubr.bf16.gmra.mxu0 %v3917
      %v4493 = vpop.f32.mrf.mxu0
      %v4494 = vpop.f32.mrf.mxu0
      %v4495 = vpop.f32.mrf.mxu0
      %v4496 = vadd.f32 0.0, %v4495
      %v4497 = vpop.f32.mrf.mxu0
      %4498 = vmatprep.mubr.bf16.mxu0 0
      %4499 = vmatmul.mubr.bf16.gmra.mxu0 %v3920
      %v4500 = vpop.f32.mrf.mxu0
      %v4501 = vadd.f32 0.0, %v4500
      %v4502 = vpop.f32.mrf.mxu0
      %v4503 = vpop.f32.mrf.mxu0
      %v4504 = vadd.f32 0.0, %v4503
      %v4505 = vpop.f32.mrf.mxu0
      %4506 = vmatprep.mubr.bf16.mxu0 0
      %4507 = vmatmul.mubr.bf16.gmra.mxu0 %v3923
      %v4508 = vpop.f32.mrf.mxu0
      %v4509 = vadd.f32 0.0, %v4508
      %v4510 = vpop.f32.mrf.mxu0
      %v4511 = vpop.f32.mrf.mxu0
      %v4512 = vadd.f32 0.0, %v4511
      %v4513 = vpop.f32.mrf.mxu0
      %4514 = vmatprep.mubr.bf16.mxu0 0
      %4515 = vmatmul.mubr.bf16.gmra.mxu0 %v3926
      %v4516 = vpop.f32.mrf.mxu0
      %v4517 = vadd.f32 0.0, %v4516
      %v4518 = vpop.f32.mrf.mxu0
      %v4519 = vpop.f32.mrf.mxu0
      %v4520 = vadd.f32 0.0, %v4519
      %v4521 = vpop.f32.mrf.mxu0
      %4522 = vmatprep.mubr.bf16.mxu0 0
      %4523 = vmatmul.mubr.bf16.gmra.mxu0 %v3929
      %v4524 = vpop.f32.mrf.mxu0
      %v4525 = vadd.f32 0.0, %v4524
      %v4526 = vpop.f32.mrf.mxu0
      %v4527 = vpop.f32.mrf.mxu0
      %v4528 = vadd.f32 0.0, %v4527
      %v4529 = vpop.f32.mrf.mxu0
      %4530 = vmatprep.mubr.bf16.mxu0 0
      %4531 = vmatmul.mubr.bf16.gmra.mxu0 %v3932
      %v4532 = vpop.f32.mrf.mxu0
      %v4533 = vadd.f32 0.0, %v4532
      %v4534 = vpop.f32.mrf.mxu0
      %v4535 = vpop.f32.mrf.mxu0
      %v4536 = vadd.f32 0.0, %v4535
      %v4537 = vpop.f32.mrf.mxu0
      %4538 = vmatprep.mubr.bf16.mxu0 0
      %4539 = vmatmul.mubr.bf16.gmra.mxu0 %v3935
      %v4540 = vpop.f32.mrf.mxu0
      %v4541 = vadd.f32 0.0, %v4540
      %v4542 = vpop.f32.mrf.mxu0
      %v4543 = vpop.f32.mrf.mxu0
      %v4544 = vadd.f32 0.0, %v4543
      %v4545 = vpop.f32.mrf.mxu0
      %4546 = vmatprep.mubr.bf16.mxu0 0
      %4547 = vmatmul.mubr.bf16.gmra.mxu0 %v3938
      %v4548 = vpop.f32.mrf.mxu0
      %v4549 = vadd.f32 0.0, %v4548
      %v4550 = vpop.f32.mrf.mxu0
      %v4551 = vpop.f32.mrf.mxu0
      %v4552 = vadd.f32 0.0, %v4551
      %v4553 = vpop.f32.mrf.mxu0
      %4554 = vmatprep.mubr.bf16.mxu0 0
      %4555 = vmatmul.mubr.bf16.gmra.mxu0 %v3941
      %v4556 = vpop.f32.mrf.mxu0
      %v4557 = vadd.f32 0.0, %v4556
      %v4558 = vpop.f32.mrf.mxu0
      %v4559 = vpop.f32.mrf.mxu0
      %v4560 = vpop.f32.mrf.mxu0
      %4561 = vmatprep.mubr.bf16.mxu0 0
      %4562 = vmatmul.mubr.bf16.gmra.mxu0 %v3944
      %v4563 = vpop.f32.mrf.mxu0
      %v4564 = vpop.f32.mrf.mxu0
      %v4565 = vpop.f32.mrf.mxu0
      %v4566 = vpop.f32.mrf.mxu0
      %4567 = vdwg.mxu0
      %v4584 = vrot.slane %v4496, 4
      %v4585 = vrot.slane %v4501, 4
      %v4586 = vsel %vm599, %v4584, %v4585
      %v4587 = vrot.slane %v4504, 4
      %v4588 = vsel %vm599, %v4585, %v4587
      %v4589 = vrot.slane %v4509, 4
      %v4590 = vsel %vm599, %v4587, %v4589
      %v4591 = vrot.slane %v4512, 4
      %v4592 = vsel %vm599, %v4589, %v4591
      %v4593 = vrot.slane %v4517, 4
      %v4594 = vsel %vm599, %v4591, %v4593
      %v4595 = vrot.slane %v4520, 4
      %v4596 = vsel %vm599, %v4593, %v4595
      %v4597 = vrot.slane %v4525, 4
      %v4598 = vsel %vm599, %v4595, %v4597
      %v4599 = vrot.slane %v4528, 4
      %v4600 = vsel %vm599, %v4597, %v4599
      %v4601 = vrot.slane %v4533, 4
      %v4602 = vsel %vm599, %v4599, %v4601
      %v4603 = vrot.slane %v4536, 4
      %v4604 = vsel %vm599, %v4601, %v4603
      %v4605 = vrot.slane %v4541, 4
      %v4606 = vsel %vm599, %v4603, %v4605
      %v4607 = vrot.slane %v4544, 4
      %v4608 = vsel %vm599, %v4605, %v4607
      %v4609 = vrot.slane %v4549, 4
      %v4610 = vsel %vm599, %v4607, %v4609
      %v4611 = vrot.slane %v4552, 4
      %v4612 = vsel %vm599, %v4609, %v4611
      %v4613 = vrot.slane %v4557, 4
      %v4614 = vsel %vm599, %v4611, %v4613
      %v4630 = vadd.f32 %v4439, %v4586
      %v4631 = vadd.f32 %v4440, %v4588
      %v4632 = vadd.f32 %v4441, %v4590
      %v4633 = vadd.f32 %v4442, %v4592
      %v4634 = vadd.f32 %v4443, %v4594
      %v4635 = vadd.f32 %v4444, %v4596
      %v4636 = vadd.f32 %v4445, %v4598
      %v4637 = vadd.f32 %v4446, %v4600
      %v4638 = vadd.f32 %v4447, %v4602
      %v4639 = vadd.f32 %v4448, %v4604
      %v4640 = vadd.f32 %v4449, %v4606
      %v4641 = vadd.f32 %v4450, %v4608
      %v4642 = vadd.f32 %v4451, %v4610
      %v4643 = vadd.f32 %v4452, %v4612
      %v4644 = vadd.f32 %v4453, %v4614
      %s4645 = scalar_lea.vmem %s3, 88
      %v4646 = vld [vmem:[%s4645] sm:$0xf]
      %v4648 = vsel %vm599, %v4646, 0
      %4650 = vmatprep.subr.bf16.mxu0 0
      %4651 = vmatpush1.bf16.msra.mxu0 0
      %4652 = vmatprep.subr.bf16.mxu0 0
      %4653 = vmatpush1.bf16.msra.mxu0 0
      %4654 = vmatprep.subr.bf16.mxu0 0
      %4655 = vmatpush1.bf16.msra.mxu0 0
      %4656 = vmatprep.subr.bf16.mxu0 0
      %4657 = vmatpush1.bf16.msra.mxu0 0
      %4658 = vmatprep.subr.bf16.mxu0 0
      %4659 = vmatpush1.bf16.msra.mxu0 0
      %4660 = vmatprep.subr.bf16.mxu0 0
      %4661 = vmatpush1.bf16.msra.mxu0 0
      %4662 = vmatprep.subr.bf16.mxu0 0
      %4663 = vmatpush1.bf16.msra.mxu0 0
      %4664 = vmatprep.subr.bf16.mxu0 0
      %4665 = vmatpush1.bf16.msra.mxu0 %v4648
      %4666 = vmatprep.subr.bf16.mxu0 0
      %4667 = vmatpush2.bf16.msra.mxu0 0
      %4668 = vmatprep.subr.bf16.mxu0 0
      %4669 = vmatpush2.bf16.msra.mxu0 0
      %4670 = vmatprep.subr.bf16.mxu0 0
      %4671 = vmatpush2.bf16.msra.mxu0 0
      %4672 = vmatprep.subr.bf16.mxu0 0
      %4673 = vmatpush2.bf16.msra.mxu0 0
      %4674 = vmatprep.subr.bf16.mxu0 0
      %4675 = vmatpush2.bf16.msra.mxu0 0
      %4676 = vmatprep.subr.bf16.mxu0 0
      %4677 = vmatpush2.bf16.msra.mxu0 0
      %4678 = vmatprep.subr.bf16.mxu0 0
      %4679 = vmatpush2.bf16.msra.mxu0 0
      %4680 = vmatprep.subr.bf16.mxu0 0
      %4681 = vmatpush2.bf16.msra.mxu0 0
      %4682 = vmatprep.mubr.bf16.mxu0 0
      %4683 = vmatmul.mubr.bf16.gmra.mxu0 %v3917
      %v4684 = vpop.f32.mrf.mxu0
      %v4685 = vpop.f32.mrf.mxu0
      %v4686 = vpop.f32.mrf.mxu0
      %v4687 = vadd.f32 0.0, %v4686
      %v4688 = vpop.f32.mrf.mxu0
      %4689 = vmatprep.mubr.bf16.mxu0 0
      %4690 = vmatmul.mubr.bf16.gmra.mxu0 %v3920
      %v4691 = vpop.f32.mrf.mxu0
      %v4692 = vadd.f32 0.0, %v4691
      %v4693 = vpop.f32.mrf.mxu0
      %v4694 = vpop.f32.mrf.mxu0
      %v4695 = vadd.f32 0.0, %v4694
      %v4696 = vpop.f32.mrf.mxu0
      %4697 = vmatprep.mubr.bf16.mxu0 0
      %4698 = vmatmul.mubr.bf16.gmra.mxu0 %v3923
      %v4699 = vpop.f32.mrf.mxu0
      %v4700 = vadd.f32 0.0, %v4699
      %v4701 = vpop.f32.mrf.mxu0
      %v4702 = vpop.f32.mrf.mxu0
      %v4703 = vadd.f32 0.0, %v4702
      %v4704 = vpop.f32.mrf.mxu0
      %4705 = vmatprep.mubr.bf16.mxu0 0
      %4706 = vmatmul.mubr.bf16.gmra.mxu0 %v3926
      %v4707 = vpop.f32.mrf.mxu0
      %v4708 = vadd.f32 0.0, %v4707
      %v4709 = vpop.f32.mrf.mxu0
      %v4710 = vpop.f32.mrf.mxu0
      %v4711 = vadd.f32 0.0, %v4710
      %v4712 = vpop.f32.mrf.mxu0
      %4713 = vmatprep.mubr.bf16.mxu0 0
      %4714 = vmatmul.mubr.bf16.gmra.mxu0 %v3929
      %v4715 = vpop.f32.mrf.mxu0
      %v4716 = vadd.f32 0.0, %v4715
      %v4717 = vpop.f32.mrf.mxu0
      %v4718 = vpop.f32.mrf.mxu0
      %v4719 = vadd.f32 0.0, %v4718
      %v4720 = vpop.f32.mrf.mxu0
      %4721 = vmatprep.mubr.bf16.mxu0 0
      %4722 = vmatmul.mubr.bf16.gmra.mxu0 %v3932
      %v4723 = vpop.f32.mrf.mxu0
      %v4724 = vadd.f32 0.0, %v4723
      %v4725 = vpop.f32.mrf.mxu0
      %v4726 = vpop.f32.mrf.mxu0
      %v4727 = vadd.f32 0.0, %v4726
      %v4728 = vpop.f32.mrf.mxu0
      %4729 = vmatprep.mubr.bf16.mxu0 0
      %4730 = vmatmul.mubr.bf16.gmra.mxu0 %v3935
      %v4731 = vpop.f32.mrf.mxu0
      %v4732 = vadd.f32 0.0, %v4731
      %v4733 = vpop.f32.mrf.mxu0
      %v4734 = vpop.f32.mrf.mxu0
      %v4735 = vadd.f32 0.0, %v4734
      %v4736 = vpop.f32.mrf.mxu0
      %4737 = vmatprep.mubr.bf16.mxu0 0
      %4738 = vmatmul.mubr.bf16.gmra.mxu0 %v3938
      %v4739 = vpop.f32.mrf.mxu0
      %v4740 = vadd.f32 0.0, %v4739
      %v4741 = vpop.f32.mrf.mxu0
      %v4742 = vpop.f32.mrf.mxu0
      %v4743 = vadd.f32 0.0, %v4742
      %v4744 = vpop.f32.mrf.mxu0
      %4745 = vmatprep.mubr.bf16.mxu0 0
      %4746 = vmatmul.mubr.bf16.gmra.mxu0 %v3941
      %v4747 = vpop.f32.mrf.mxu0
      %v4748 = vadd.f32 0.0, %v4747
      %v4749 = vpop.f32.mrf.mxu0
      %v4750 = vpop.f32.mrf.mxu0
      %v4751 = vpop.f32.mrf.mxu0
      %4752 = vmatprep.mubr.bf16.mxu0 0
      %4753 = vmatmul.mubr.bf16.gmra.mxu0 %v3944
      %v4754 = vpop.f32.mrf.mxu0
      %v4755 = vpop.f32.mrf.mxu0
      %v4756 = vpop.f32.mrf.mxu0
      %v4757 = vpop.f32.mrf.mxu0
      %4758 = vdwg.mxu0
      %v4775 = vrot.slane %v4687, 5
      %v4776 = vrot.slane %v4692, 5
      %v4777 = vsel %vm1431, %v4775, %v4776
      %v4778 = vrot.slane %v4695, 5
      %v4779 = vsel %vm1431, %v4776, %v4778
      %v4780 = vrot.slane %v4700, 5
      %v4781 = vsel %vm1431, %v4778, %v4780
      %v4782 = vrot.slane %v4703, 5
      %v4783 = vsel %vm1431, %v4780, %v4782
      %v4784 = vrot.slane %v4708, 5
      %v4785 = vsel %vm1431, %v4782, %v4784
      %v4786 = vrot.slane %v4711, 5
      %v4787 = vsel %vm1431, %v4784, %v4786
      %v4788 = vrot.slane %v4716, 5
      %v4789 = vsel %vm1431, %v4786, %v4788
      %v4790 = vrot.slane %v4719, 5
      %v4791 = vsel %vm1431, %v4788, %v4790
      %v4792 = vrot.slane %v4724, 5
      %v4793 = vsel %vm1431, %v4790, %v4792
      %v4794 = vrot.slane %v4727, 5
      %v4795 = vsel %vm1431, %v4792, %v4794
      %v4796 = vrot.slane %v4732, 5
      %v4797 = vsel %vm1431, %v4794, %v4796
      %v4798 = vrot.slane %v4735, 5
      %v4799 = vsel %vm1431, %v4796, %v4798
      %v4800 = vrot.slane %v4740, 5
      %v4801 = vsel %vm1431, %v4798, %v4800
      %v4802 = vrot.slane %v4743, 5
      %v4803 = vsel %vm1431, %v4800, %v4802
      %v4804 = vrot.slane %v4748, 5
      %v4805 = vsel %vm1431, %v4802, %v4804
      %v4821 = vadd.f32 %v4630, %v4777
      %v4822 = vadd.f32 %v4631, %v4779
      %v4823 = vadd.f32 %v4632, %v4781
      %v4824 = vadd.f32 %v4633, %v4783
      %v4825 = vadd.f32 %v4634, %v4785
      %v4826 = vadd.f32 %v4635, %v4787
      %v4827 = vadd.f32 %v4636, %v4789
      %v4828 = vadd.f32 %v4637, %v4791
      %v4829 = vadd.f32 %v4638, %v4793
      %v4830 = vadd.f32 %v4639, %v4795
      %v4831 = vadd.f32 %v4640, %v4797
      %v4832 = vadd.f32 %v4641, %v4799
      %v4833 = vadd.f32 %v4642, %v4801
      %v4834 = vadd.f32 %v4643, %v4803
      %v4835 = vadd.f32 %v4644, %v4805
      %s4836 = scalar_lea.vmem %s3, 92
      %v4837 = vld [vmem:[%s4836] sm:$0xf]
      %v4839 = vsel %vm599, %v4837, 0
      %4841 = vmatprep.subr.bf16.mxu0 0
      %4842 = vmatpush1.bf16.msra.mxu0 0
      %4843 = vmatprep.subr.bf16.mxu0 0
      %4844 = vmatpush1.bf16.msra.mxu0 0
      %4845 = vmatprep.subr.bf16.mxu0 0
      %4846 = vmatpush1.bf16.msra.mxu0 0
      %4847 = vmatprep.subr.bf16.mxu0 0
      %4848 = vmatpush1.bf16.msra.mxu0 0
      %4849 = vmatprep.subr.bf16.mxu0 0
      %4850 = vmatpush1.bf16.msra.mxu0 0
      %4851 = vmatprep.subr.bf16.mxu0 0
      %4852 = vmatpush1.bf16.msra.mxu0 0
      %4853 = vmatprep.subr.bf16.mxu0 0
      %4854 = vmatpush1.bf16.msra.mxu0 0
      %4855 = vmatprep.subr.bf16.mxu0 0
      %4856 = vmatpush1.bf16.msra.mxu0 %v4839
      %4857 = vmatprep.subr.bf16.mxu0 0
      %4858 = vmatpush2.bf16.msra.mxu0 0
      %4859 = vmatprep.subr.bf16.mxu0 0
      %4860 = vmatpush2.bf16.msra.mxu0 0
      %4861 = vmatprep.subr.bf16.mxu0 0
      %4862 = vmatpush2.bf16.msra.mxu0 0
      %4863 = vmatprep.subr.bf16.mxu0 0
      %4864 = vmatpush2.bf16.msra.mxu0 0
      %4865 = vmatprep.subr.bf16.mxu0 0
      %4866 = vmatpush2.bf16.msra.mxu0 0
      %4867 = vmatprep.subr.bf16.mxu0 0
      %4868 = vmatpush2.bf16.msra.mxu0 0
      %4869 = vmatprep.subr.bf16.mxu0 0
      %4870 = vmatpush2.bf16.msra.mxu0 0
      %4871 = vmatprep.subr.bf16.mxu0 0
      %4872 = vmatpush2.bf16.msra.mxu0 0
      %4873 = vmatprep.mubr.bf16.mxu0 0
      %4874 = vmatmul.mubr.bf16.gmra.mxu0 %v3917
      %v4875 = vpop.f32.mrf.mxu0
      %v4876 = vpop.f32.mrf.mxu0
      %v4877 = vpop.f32.mrf.mxu0
      %v4878 = vadd.f32 0.0, %v4877
      %v4879 = vpop.f32.mrf.mxu0
      %4880 = vmatprep.mubr.bf16.mxu0 0
      %4881 = vmatmul.mubr.bf16.gmra.mxu0 %v3920
      %v4882 = vpop.f32.mrf.mxu0
      %v4883 = vadd.f32 0.0, %v4882
      %v4884 = vpop.f32.mrf.mxu0
      %v4885 = vpop.f32.mrf.mxu0
      %v4886 = vadd.f32 0.0, %v4885
      %v4887 = vpop.f32.mrf.mxu0
      %4888 = vmatprep.mubr.bf16.mxu0 0
      %4889 = vmatmul.mubr.bf16.gmra.mxu0 %v3923
      %v4890 = vpop.f32.mrf.mxu0
      %v4891 = vadd.f32 0.0, %v4890
      %v4892 = vpop.f32.mrf.mxu0
      %v4893 = vpop.f32.mrf.mxu0
      %v4894 = vadd.f32 0.0, %v4893
      %v4895 = vpop.f32.mrf.mxu0
      %4896 = vmatprep.mubr.bf16.mxu0 0
      %4897 = vmatmul.mubr.bf16.gmra.mxu0 %v3926
      %v4898 = vpop.f32.mrf.mxu0
      %v4899 = vadd.f32 0.0, %v4898
      %v4900 = vpop.f32.mrf.mxu0
      %v4901 = vpop.f32.mrf.mxu0
      %v4902 = vadd.f32 0.0, %v4901
      %v4903 = vpop.f32.mrf.mxu0
      %4904 = vmatprep.mubr.bf16.mxu0 0
      %4905 = vmatmul.mubr.bf16.gmra.mxu0 %v3929
      %v4906 = vpop.f32.mrf.mxu0
      %v4907 = vadd.f32 0.0, %v4906
      %v4908 = vpop.f32.mrf.mxu0
      %v4909 = vpop.f32.mrf.mxu0
      %v4910 = vadd.f32 0.0, %v4909
      %v4911 = vpop.f32.mrf.mxu0
      %4912 = vmatprep.mubr.bf16.mxu0 0
      %4913 = vmatmul.mubr.bf16.gmra.mxu0 %v3932
      %v4914 = vpop.f32.mrf.mxu0
      %v4915 = vadd.f32 0.0, %v4914
      %v4916 = vpop.f32.mrf.mxu0
      %v4917 = vpop.f32.mrf.mxu0
      %v4918 = vadd.f32 0.0, %v4917
      %v4919 = vpop.f32.mrf.mxu0
      %4920 = vmatprep.mubr.bf16.mxu0 0
      %4921 = vmatmul.mubr.bf16.gmra.mxu0 %v3935
      %v4922 = vpop.f32.mrf.mxu0
      %v4923 = vadd.f32 0.0, %v4922
      %v4924 = vpop.f32.mrf.mxu0
      %v4925 = vpop.f32.mrf.mxu0
      %v4926 = vadd.f32 0.0, %v4925
      %v4927 = vpop.f32.mrf.mxu0
      %4928 = vmatprep.mubr.bf16.mxu0 0
      %4929 = vmatmul.mubr.bf16.gmra.mxu0 %v3938
      %v4930 = vpop.f32.mrf.mxu0
      %v4931 = vadd.f32 0.0, %v4930
      %v4932 = vpop.f32.mrf.mxu0
      %v4933 = vpop.f32.mrf.mxu0
      %v4934 = vadd.f32 0.0, %v4933
      %v4935 = vpop.f32.mrf.mxu0
      %4936 = vmatprep.mubr.bf16.mxu0 0
      %4937 = vmatmul.mubr.bf16.gmra.mxu0 %v3941
      %v4938 = vpop.f32.mrf.mxu0
      %v4939 = vadd.f32 0.0, %v4938
      %v4940 = vpop.f32.mrf.mxu0
      %v4941 = vpop.f32.mrf.mxu0
      %v4942 = vpop.f32.mrf.mxu0
      %4943 = vmatprep.mubr.bf16.mxu0 0
      %4944 = vmatmul.mubr.bf16.gmra.mxu0 %v3944
      %v4945 = vpop.f32.mrf.mxu0
      %v4946 = vpop.f32.mrf.mxu0
      %v4947 = vpop.f32.mrf.mxu0
      %v4948 = vpop.f32.mrf.mxu0
      %4949 = vdwg.mxu0
      %v4966 = vrot.slane %v4878, 6
      %v4967 = vrot.slane %v4883, 6
      %v4968 = vsel %vm1623, %v4966, %v4967
      %v4969 = vrot.slane %v4886, 6
      %v4970 = vsel %vm1623, %v4967, %v4969
      %v4971 = vrot.slane %v4891, 6
      %v4972 = vsel %vm1623, %v4969, %v4971
      %v4973 = vrot.slane %v4894, 6
      %v4974 = vsel %vm1623, %v4971, %v4973
      %v4975 = vrot.slane %v4899, 6
      %v4976 = vsel %vm1623, %v4973, %v4975
      %v4977 = vrot.slane %v4902, 6
      %v4978 = vsel %vm1623, %v4975, %v4977
      %v4979 = vrot.slane %v4907, 6
      %v4980 = vsel %vm1623, %v4977, %v4979
      %v4981 = vrot.slane %v4910, 6
      %v4982 = vsel %vm1623, %v4979, %v4981
      %v4983 = vrot.slane %v4915, 6
      %v4984 = vsel %vm1623, %v4981, %v4983
      %v4985 = vrot.slane %v4918, 6
      %v4986 = vsel %vm1623, %v4983, %v4985
      %v4987 = vrot.slane %v4923, 6
      %v4988 = vsel %vm1623, %v4985, %v4987
      %v4989 = vrot.slane %v4926, 6
      %v4990 = vsel %vm1623, %v4987, %v4989
      %v4991 = vrot.slane %v4931, 6
      %v4992 = vsel %vm1623, %v4989, %v4991
      %v4993 = vrot.slane %v4934, 6
      %v4994 = vsel %vm1623, %v4991, %v4993
      %v4995 = vrot.slane %v4939, 6
      %v4996 = vsel %vm1623, %v4993, %v4995
      %v5012 = vadd.f32 %v4821, %v4968
      %v5013 = vadd.f32 %v4822, %v4970
      %v5014 = vadd.f32 %v4823, %v4972
      %v5015 = vadd.f32 %v4824, %v4974
      %v5016 = vadd.f32 %v4825, %v4976
      %v5017 = vadd.f32 %v4826, %v4978
      %v5018 = vadd.f32 %v4827, %v4980
      %v5019 = vadd.f32 %v4828, %v4982
      %v5020 = vadd.f32 %v4829, %v4984
      %v5021 = vadd.f32 %v4830, %v4986
      %v5022 = vadd.f32 %v4831, %v4988
      %v5023 = vadd.f32 %v4832, %v4990
      %v5024 = vadd.f32 %v4833, %v4992
      %v5025 = vadd.f32 %v4834, %v4994
      %v5026 = vadd.f32 %v4835, %v4996
      %s5027 = scalar_lea.vmem %s3, 96
      %v5028 = vld [vmem:[%s5027] sm:$0xf]
      %v5030 = vsel %vm599, %v5028, 0
      %5032 = vmatprep.subr.bf16.mxu0 0
      %5033 = vmatpush1.bf16.msra.mxu0 0
      %5034 = vmatprep.subr.bf16.mxu0 0
      %5035 = vmatpush1.bf16.msra.mxu0 0
      %5036 = vmatprep.subr.bf16.mxu0 0
      %5037 = vmatpush1.bf16.msra.mxu0 0
      %5038 = vmatprep.subr.bf16.mxu0 0
      %5039 = vmatpush1.bf16.msra.mxu0 0
      %5040 = vmatprep.subr.bf16.mxu0 0
      %5041 = vmatpush1.bf16.msra.mxu0 0
      %5042 = vmatprep.subr.bf16.mxu0 0
      %5043 = vmatpush1.bf16.msra.mxu0 0
      %5044 = vmatprep.subr.bf16.mxu0 0
      %5045 = vmatpush1.bf16.msra.mxu0 0
      %5046 = vmatprep.subr.bf16.mxu0 0
      %5047 = vmatpush1.bf16.msra.mxu0 %v5030
      %5048 = vmatprep.subr.bf16.mxu0 0
      %5049 = vmatpush2.bf16.msra.mxu0 0
      %5050 = vmatprep.subr.bf16.mxu0 0
      %5051 = vmatpush2.bf16.msra.mxu0 0
      %5052 = vmatprep.subr.bf16.mxu0 0
      %5053 = vmatpush2.bf16.msra.mxu0 0
      %5054 = vmatprep.subr.bf16.mxu0 0
      %5055 = vmatpush2.bf16.msra.mxu0 0
      %5056 = vmatprep.subr.bf16.mxu0 0
      %5057 = vmatpush2.bf16.msra.mxu0 0
      %5058 = vmatprep.subr.bf16.mxu0 0
      %5059 = vmatpush2.bf16.msra.mxu0 0
      %5060 = vmatprep.subr.bf16.mxu0 0
      %5061 = vmatpush2.bf16.msra.mxu0 0
      %5062 = vmatprep.subr.bf16.mxu0 0
      %5063 = vmatpush2.bf16.msra.mxu0 0
      %5064 = vmatprep.mubr.bf16.mxu0 0
      %5065 = vmatmul.mubr.bf16.gmra.mxu0 %v3917
      %v5066 = vpop.f32.mrf.mxu0
      %v5067 = vpop.f32.mrf.mxu0
      %v5068 = vpop.f32.mrf.mxu0
      %v5069 = vpop.f32.mrf.mxu0
      %5070 = vmatprep.mubr.bf16.mxu0 0
      %5071 = vmatmul.mubr.bf16.gmra.mxu0 %v3920
      %v5072 = vpop.f32.mrf.mxu0
      %v5073 = vpop.f32.mrf.mxu0
      %v5074 = vpop.f32.mrf.mxu0
      %v5075 = vadd.f32 0.0, %v5074
      %v5076 = vpop.f32.mrf.mxu0
      %5077 = vmatprep.mubr.bf16.mxu0 0
      %5078 = vmatmul.mubr.bf16.gmra.mxu0 %v3923
      %v5079 = vpop.f32.mrf.mxu0
      %v5080 = vadd.f32 0.0, %v5079
      %v5081 = vpop.f32.mrf.mxu0
      %v5082 = vpop.f32.mrf.mxu0
      %v5083 = vadd.f32 0.0, %v5082
      %v5084 = vpop.f32.mrf.mxu0
      %5085 = vmatprep.mubr.bf16.mxu0 0
      %5086 = vmatmul.mubr.bf16.gmra.mxu0 %v3926
      %v5087 = vpop.f32.mrf.mxu0
      %v5088 = vadd.f32 0.0, %v5087
      %v5089 = vpop.f32.mrf.mxu0
      %v5090 = vpop.f32.mrf.mxu0
      %v5091 = vadd.f32 0.0, %v5090
      %v5092 = vpop.f32.mrf.mxu0
      %5093 = vmatprep.mubr.bf16.mxu0 0
      %5094 = vmatmul.mubr.bf16.gmra.mxu0 %v3929
      %v5095 = vpop.f32.mrf.mxu0
      %v5096 = vadd.f32 0.0, %v5095
      %v5097 = vpop.f32.mrf.mxu0
      %v5098 = vpop.f32.mrf.mxu0
      %v5099 = vadd.f32 0.0, %v5098
      %v5100 = vpop.f32.mrf.mxu0
      %5101 = vmatprep.mubr.bf16.mxu0 0
      %5102 = vmatmul.mubr.bf16.gmra.mxu0 %v3932
      %v5103 = vpop.f32.mrf.mxu0
      %v5104 = vadd.f32 0.0, %v5103
      %v5105 = vpop.f32.mrf.mxu0
      %v5106 = vpop.f32.mrf.mxu0
      %v5107 = vadd.f32 0.0, %v5106
      %v5108 = vpop.f32.mrf.mxu0
      %5109 = vmatprep.mubr.bf16.mxu0 0
      %5110 = vmatmul.mubr.bf16.gmra.mxu0 %v3935
      %v5111 = vpop.f32.mrf.mxu0
      %v5112 = vadd.f32 0.0, %v5111
      %v5113 = vpop.f32.mrf.mxu0
      %v5114 = vpop.f32.mrf.mxu0
      %v5115 = vadd.f32 0.0, %v5114
      %v5116 = vpop.f32.mrf.mxu0
      %5117 = vmatprep.mubr.bf16.mxu0 0
      %5118 = vmatmul.mubr.bf16.gmra.mxu0 %v3938
      %v5119 = vpop.f32.mrf.mxu0
      %v5120 = vadd.f32 0.0, %v5119
      %v5121 = vpop.f32.mrf.mxu0
      %v5122 = vpop.f32.mrf.mxu0
      %v5123 = vadd.f32 0.0, %v5122
      %v5124 = vpop.f32.mrf.mxu0
      %5125 = vmatprep.mubr.bf16.mxu0 0
      %5126 = vmatmul.mubr.bf16.gmra.mxu0 %v3941
      %v5127 = vpop.f32.mrf.mxu0
      %v5128 = vadd.f32 0.0, %v5127
      %v5129 = vpop.f32.mrf.mxu0
      %v5130 = vpop.f32.mrf.mxu0
      %v5131 = vadd.f32 0.0, %v5130
      %v5132 = vpop.f32.mrf.mxu0
      %5133 = vmatprep.mubr.bf16.mxu0 0
      %5134 = vmatmul.mubr.bf16.gmra.mxu0 %v3944
      %v5135 = vpop.f32.mrf.mxu0
      %v5136 = vpop.f32.mrf.mxu0
      %v5137 = vpop.f32.mrf.mxu0
      %v5138 = vpop.f32.mrf.mxu0
      %5139 = vdwg.mxu0
      %v5140 = vadd.f32 %v5012, %v5075
      %v5141 = vadd.f32 %v5013, %v5080
      %v5142 = vadd.f32 %v5014, %v5083
      %v5143 = vadd.f32 %v5015, %v5088
      %v5144 = vadd.f32 %v5016, %v5091
      %v5145 = vadd.f32 %v5017, %v5096
      %v5146 = vadd.f32 %v5018, %v5099
      %v5147 = vadd.f32 %v5019, %v5104
      %v5148 = vadd.f32 %v5020, %v5107
      %v5149 = vadd.f32 %v5021, %v5112
      %v5150 = vadd.f32 %v5022, %v5115
      %v5151 = vadd.f32 %v5023, %v5120
      %v5152 = vadd.f32 %v5024, %v5123
      %v5153 = vadd.f32 %v5025, %v5128
      %v5154 = vadd.f32 %v5026, %v5131
      %s5155 = scalar_lea.vmem %s3, 100
      %v5156 = vld [vmem:[%s5155] sm:$0xf]
      %v5158 = vsel %vm599, %v5156, 0
      %5160 = vmatprep.subr.bf16.mxu0 0
      %5161 = vmatpush1.bf16.msra.mxu0 0
      %5162 = vmatprep.subr.bf16.mxu0 0
      %5163 = vmatpush1.bf16.msra.mxu0 0
      %5164 = vmatprep.subr.bf16.mxu0 0
      %5165 = vmatpush1.bf16.msra.mxu0 0
      %5166 = vmatprep.subr.bf16.mxu0 0
      %5167 = vmatpush1.bf16.msra.mxu0 0
      %5168 = vmatprep.subr.bf16.mxu0 0
      %5169 = vmatpush1.bf16.msra.mxu0 0
      %5170 = vmatprep.subr.bf16.mxu0 0
      %5171 = vmatpush1.bf16.msra.mxu0 0
      %5172 = vmatprep.subr.bf16.mxu0 0
      %5173 = vmatpush1.bf16.msra.mxu0 0
      %5174 = vmatprep.subr.bf16.mxu0 0
      %5175 = vmatpush1.bf16.msra.mxu0 %v5158
      %5176 = vmatprep.subr.bf16.mxu0 0
      %5177 = vmatpush2.bf16.msra.mxu0 0
      %5178 = vmatprep.subr.bf16.mxu0 0
      %5179 = vmatpush2.bf16.msra.mxu0 0
      %5180 = vmatprep.subr.bf16.mxu0 0
      %5181 = vmatpush2.bf16.msra.mxu0 0
      %5182 = vmatprep.subr.bf16.mxu0 0
      %5183 = vmatpush2.bf16.msra.mxu0 0
      %5184 = vmatprep.subr.bf16.mxu0 0
      %5185 = vmatpush2.bf16.msra.mxu0 0
      %5186 = vmatprep.subr.bf16.mxu0 0
      %5187 = vmatpush2.bf16.msra.mxu0 0
      %5188 = vmatprep.subr.bf16.mxu0 0
      %5189 = vmatpush2.bf16.msra.mxu0 0
      %5190 = vmatprep.subr.bf16.mxu0 0
      %5191 = vmatpush2.bf16.msra.mxu0 0
      %5192 = vmatprep.mubr.bf16.mxu0 0
      %5193 = vmatmul.mubr.bf16.gmra.mxu0 %v3917
      %v5194 = vpop.f32.mrf.mxu0
      %v5195 = vpop.f32.mrf.mxu0
      %v5196 = vpop.f32.mrf.mxu0
      %v5197 = vpop.f32.mrf.mxu0
      %5198 = vmatprep.mubr.bf16.mxu0 0
      %5199 = vmatmul.mubr.bf16.gmra.mxu0 %v3920
      %v5200 = vpop.f32.mrf.mxu0
      %v5201 = vpop.f32.mrf.mxu0
      %v5202 = vpop.f32.mrf.mxu0
      %v5203 = vadd.f32 0.0, %v5202
      %v5204 = vpop.f32.mrf.mxu0
      %5205 = vmatprep.mubr.bf16.mxu0 0
      %5206 = vmatmul.mubr.bf16.gmra.mxu0 %v3923
      %v5207 = vpop.f32.mrf.mxu0
      %v5208 = vadd.f32 0.0, %v5207
      %v5209 = vpop.f32.mrf.mxu0
      %v5210 = vpop.f32.mrf.mxu0
      %v5211 = vadd.f32 0.0, %v5210
      %v5212 = vpop.f32.mrf.mxu0
      %5213 = vmatprep.mubr.bf16.mxu0 0
      %5214 = vmatmul.mubr.bf16.gmra.mxu0 %v3926
      %v5215 = vpop.f32.mrf.mxu0
      %v5216 = vadd.f32 0.0, %v5215
      %v5217 = vpop.f32.mrf.mxu0
      %v5218 = vpop.f32.mrf.mxu0
      %v5219 = vadd.f32 0.0, %v5218
      %v5220 = vpop.f32.mrf.mxu0
      %5221 = vmatprep.mubr.bf16.mxu0 0
      %5222 = vmatmul.mubr.bf16.gmra.mxu0 %v3929
      %v5223 = vpop.f32.mrf.mxu0
      %v5224 = vadd.f32 0.0, %v5223
      %v5225 = vpop.f32.mrf.mxu0
      %v5226 = vpop.f32.mrf.mxu0
      %v5227 = vadd.f32 0.0, %v5226
      %v5228 = vpop.f32.mrf.mxu0
      %5229 = vmatprep.mubr.bf16.mxu0 0
      %5230 = vmatmul.mubr.bf16.gmra.mxu0 %v3932
      %v5231 = vpop.f32.mrf.mxu0
      %v5232 = vadd.f32 0.0, %v5231
      %v5233 = vpop.f32.mrf.mxu0
      %v5234 = vpop.f32.mrf.mxu0
      %v5235 = vadd.f32 0.0, %v5234
      %v5236 = vpop.f32.mrf.mxu0
      %5237 = vmatprep.mubr.bf16.mxu0 0
      %5238 = vmatmul.mubr.bf16.gmra.mxu0 %v3935
      %v5239 = vpop.f32.mrf.mxu0
      %v5240 = vadd.f32 0.0, %v5239
      %v5241 = vpop.f32.mrf.mxu0
      %v5242 = vpop.f32.mrf.mxu0
      %v5243 = vadd.f32 0.0, %v5242
      %v5244 = vpop.f32.mrf.mxu0
      %5245 = vmatprep.mubr.bf16.mxu0 0
      %5246 = vmatmul.mubr.bf16.gmra.mxu0 %v3938
      %v5247 = vpop.f32.mrf.mxu0
      %v5248 = vadd.f32 0.0, %v5247
      %v5249 = vpop.f32.mrf.mxu0
      %v5250 = vpop.f32.mrf.mxu0
      %v5251 = vadd.f32 0.0, %v5250
      %v5252 = vpop.f32.mrf.mxu0
      %5253 = vmatprep.mubr.bf16.mxu0 0
      %5254 = vmatmul.mubr.bf16.gmra.mxu0 %v3941
      %v5255 = vpop.f32.mrf.mxu0
      %v5256 = vadd.f32 0.0, %v5255
      %v5257 = vpop.f32.mrf.mxu0
      %v5258 = vpop.f32.mrf.mxu0
      %v5259 = vadd.f32 0.0, %v5258
      %v5260 = vpop.f32.mrf.mxu0
      %5261 = vmatprep.mubr.bf16.mxu0 0
      %5262 = vmatmul.mubr.bf16.gmra.mxu0 %v3944
      %v5263 = vpop.f32.mrf.mxu0
      %v5264 = vadd.f32 0.0, %v5263
      %v5265 = vpop.f32.mrf.mxu0
      %v5266 = vpop.f32.mrf.mxu0
      %v5267 = vpop.f32.mrf.mxu0
      %5268 = vdwg.mxu0
      %v5285 = vrot.slane %v5203, 1
      %v5286 = vrot.slane %v5208, 1
      %v5287 = vsel %vm856, %v5285, %v5286
      %v5288 = vrot.slane %v5211, 1
      %v5289 = vsel %vm856, %v5286, %v5288
      %v5290 = vrot.slane %v5216, 1
      %v5291 = vsel %vm856, %v5288, %v5290
      %v5292 = vrot.slane %v5219, 1
      %v5293 = vsel %vm856, %v5290, %v5292
      %v5294 = vrot.slane %v5224, 1
      %v5295 = vsel %vm856, %v5292, %v5294
      %v5296 = vrot.slane %v5227, 1
      %v5297 = vsel %vm856, %v5294, %v5296
      %v5298 = vrot.slane %v5232, 1
      %v5299 = vsel %vm856, %v5296, %v5298
      %v5300 = vrot.slane %v5235, 1
      %v5301 = vsel %vm856, %v5298, %v5300
      %v5302 = vrot.slane %v5240, 1
      %v5303 = vsel %vm856, %v5300, %v5302
      %v5304 = vrot.slane %v5243, 1
      %v5305 = vsel %vm856, %v5302, %v5304
      %v5306 = vrot.slane %v5248, 1
      %v5307 = vsel %vm856, %v5304, %v5306
      %v5308 = vrot.slane %v5251, 1
      %v5309 = vsel %vm856, %v5306, %v5308
      %v5310 = vrot.slane %v5256, 1
      %v5311 = vsel %vm856, %v5308, %v5310
      %v5312 = vrot.slane %v5259, 1
      %v5313 = vsel %vm856, %v5310, %v5312
      %v5314 = vrot.slane %v5264, 1
      %v5315 = vsel %vm856, %v5312, %v5314
      %v5331 = vadd.f32 %v5140, %v5287
      %v5332 = vadd.f32 %v5141, %v5289
      %v5333 = vadd.f32 %v5142, %v5291
      %v5334 = vadd.f32 %v5143, %v5293
      %v5335 = vadd.f32 %v5144, %v5295
      %v5336 = vadd.f32 %v5145, %v5297
      %v5337 = vadd.f32 %v5146, %v5299
      %v5338 = vadd.f32 %v5147, %v5301
      %v5339 = vadd.f32 %v5148, %v5303
      %v5340 = vadd.f32 %v5149, %v5305
      %v5341 = vadd.f32 %v5150, %v5307
      %v5342 = vadd.f32 %v5151, %v5309
      %v5343 = vadd.f32 %v5152, %v5311
      %v5344 = vadd.f32 %v5153, %v5313
      %v5345 = vadd.f32 %v5154, %v5315
      %s5346 = scalar_lea.vmem %s3, 104
      %v5347 = vld [vmem:[%s5346] sm:$0xf]
      %v5349 = vsel %vm599, %v5347, 0
      %5351 = vmatprep.subr.bf16.mxu0 0
      %5352 = vmatpush1.bf16.msra.mxu0 0
      %5353 = vmatprep.subr.bf16.mxu0 0
      %5354 = vmatpush1.bf16.msra.mxu0 0
      %5355 = vmatprep.subr.bf16.mxu0 0
      %5356 = vmatpush1.bf16.msra.mxu0 0
      %5357 = vmatprep.subr.bf16.mxu0 0
      %5358 = vmatpush1.bf16.msra.mxu0 0
      %5359 = vmatprep.subr.bf16.mxu0 0
      %5360 = vmatpush1.bf16.msra.mxu0 0
      %5361 = vmatprep.subr.bf16.mxu0 0
      %5362 = vmatpush1.bf16.msra.mxu0 0
      %5363 = vmatprep.subr.bf16.mxu0 0
      %5364 = vmatpush1.bf16.msra.mxu0 0
      %5365 = vmatprep.subr.bf16.mxu0 0
      %5366 = vmatpush1.bf16.msra.mxu0 %v5349
      %5367 = vmatprep.subr.bf16.mxu0 0
      %5368 = vmatpush2.bf16.msra.mxu0 0
      %5369 = vmatprep.subr.bf16.mxu0 0
      %5370 = vmatpush2.bf16.msra.mxu0 0
      %5371 = vmatprep.subr.bf16.mxu0 0
      %5372 = vmatpush2.bf16.msra.mxu0 0
      %5373 = vmatprep.subr.bf16.mxu0 0
      %5374 = vmatpush2.bf16.msra.mxu0 0
      %5375 = vmatprep.subr.bf16.mxu0 0
      %5376 = vmatpush2.bf16.msra.mxu0 0
      %5377 = vmatprep.subr.bf16.mxu0 0
      %5378 = vmatpush2.bf16.msra.mxu0 0
      %5379 = vmatprep.subr.bf16.mxu0 0
      %5380 = vmatpush2.bf16.msra.mxu0 0
      %5381 = vmatprep.subr.bf16.mxu0 0
      %5382 = vmatpush2.bf16.msra.mxu0 0
      %5383 = vmatprep.mubr.bf16.mxu0 0
      %5384 = vmatmul.mubr.bf16.gmra.mxu0 %v3917
      %v5385 = vpop.f32.mrf.mxu0
      %v5386 = vpop.f32.mrf.mxu0
      %v5387 = vpop.f32.mrf.mxu0
      %v5388 = vpop.f32.mrf.mxu0
      %5389 = vmatprep.mubr.bf16.mxu0 0
      %5390 = vmatmul.mubr.bf16.gmra.mxu0 %v3920
      %v5391 = vpop.f32.mrf.mxu0
      %v5392 = vpop.f32.mrf.mxu0
      %v5393 = vpop.f32.mrf.mxu0
      %v5394 = vadd.f32 0.0, %v5393
      %v5395 = vpop.f32.mrf.mxu0
      %5396 = vmatprep.mubr.bf16.mxu0 0
      %5397 = vmatmul.mubr.bf16.gmra.mxu0 %v3923
      %v5398 = vpop.f32.mrf.mxu0
      %v5399 = vadd.f32 0.0, %v5398
      %v5400 = vpop.f32.mrf.mxu0
      %v5401 = vpop.f32.mrf.mxu0
      %v5402 = vadd.f32 0.0, %v5401
      %v5403 = vpop.f32.mrf.mxu0
      %5404 = vmatprep.mubr.bf16.mxu0 0
      %5405 = vmatmul.mubr.bf16.gmra.mxu0 %v3926
      %v5406 = vpop.f32.mrf.mxu0
      %v5407 = vadd.f32 0.0, %v5406
      %v5408 = vpop.f32.mrf.mxu0
      %v5409 = vpop.f32.mrf.mxu0
      %v5410 = vadd.f32 0.0, %v5409
      %v5411 = vpop.f32.mrf.mxu0
      %5412 = vmatprep.mubr.bf16.mxu0 0
      %5413 = vmatmul.mubr.bf16.gmra.mxu0 %v3929
      %v5414 = vpop.f32.mrf.mxu0
      %v5415 = vadd.f32 0.0, %v5414
      %v5416 = vpop.f32.mrf.mxu0
      %v5417 = vpop.f32.mrf.mxu0
      %v5418 = vadd.f32 0.0, %v5417
      %v5419 = vpop.f32.mrf.mxu0
      %5420 = vmatprep.mubr.bf16.mxu0 0
      %5421 = vmatmul.mubr.bf16.gmra.mxu0 %v3932
      %v5422 = vpop.f32.mrf.mxu0
      %v5423 = vadd.f32 0.0, %v5422
      %v5424 = vpop.f32.mrf.mxu0
      %v5425 = vpop.f32.mrf.mxu0
      %v5426 = vadd.f32 0.0, %v5425
      %v5427 = vpop.f32.mrf.mxu0
      %5428 = vmatprep.mubr.bf16.mxu0 0
      %5429 = vmatmul.mubr.bf16.gmra.mxu0 %v3935
      %v5430 = vpop.f32.mrf.mxu0
      %v5431 = vadd.f32 0.0, %v5430
      %v5432 = vpop.f32.mrf.mxu0
      %v5433 = vpop.f32.mrf.mxu0
      %v5434 = vadd.f32 0.0, %v5433
      %v5435 = vpop.f32.mrf.mxu0
      %5436 = vmatprep.mubr.bf16.mxu0 0
      %5437 = vmatmul.mubr.bf16.gmra.mxu0 %v3938
      %v5438 = vpop.f32.mrf.mxu0
      %v5439 = vadd.f32 0.0, %v5438
      %v5440 = vpop.f32.mrf.mxu0
      %v5441 = vpop.f32.mrf.mxu0
      %v5442 = vadd.f32 0.0, %v5441
      %v5443 = vpop.f32.mrf.mxu0
      %5444 = vmatprep.mubr.bf16.mxu0 0
      %5445 = vmatmul.mubr.bf16.gmra.mxu0 %v3941
      %v5446 = vpop.f32.mrf.mxu0
      %v5447 = vadd.f32 0.0, %v5446
      %v5448 = vpop.f32.mrf.mxu0
      %v5449 = vpop.f32.mrf.mxu0
      %v5450 = vadd.f32 0.0, %v5449
      %v5451 = vpop.f32.mrf.mxu0
      %5452 = vmatprep.mubr.bf16.mxu0 0
      %5453 = vmatmul.mubr.bf16.gmra.mxu0 %v3944
      %v5454 = vpop.f32.mrf.mxu0
      %v5455 = vadd.f32 0.0, %v5454
      %v5456 = vpop.f32.mrf.mxu0
      %v5457 = vpop.f32.mrf.mxu0
      %v5458 = vpop.f32.mrf.mxu0
      %5459 = vdwg.mxu0
      %v5476 = vrot.slane %v5394, 2
      %v5477 = vrot.slane %v5399, 2
      %v5478 = vsel %vm1048, %v5476, %v5477
      %v5479 = vrot.slane %v5402, 2
      %v5480 = vsel %vm1048, %v5477, %v5479
      %v5481 = vrot.slane %v5407, 2
      %v5482 = vsel %vm1048, %v5479, %v5481
      %v5483 = vrot.slane %v5410, 2
      %v5484 = vsel %vm1048, %v5481, %v5483
      %v5485 = vrot.slane %v5415, 2
      %v5486 = vsel %vm1048, %v5483, %v5485
      %v5487 = vrot.slane %v5418, 2
      %v5488 = vsel %vm1048, %v5485, %v5487
      %v5489 = vrot.slane %v5423, 2
      %v5490 = vsel %vm1048, %v5487, %v5489
      %v5491 = vrot.slane %v5426, 2
      %v5492 = vsel %vm1048, %v5489, %v5491
      %v5493 = vrot.slane %v5431, 2
      %v5494 = vsel %vm1048, %v5491, %v5493
      %v5495 = vrot.slane %v5434, 2
      %v5496 = vsel %vm1048, %v5493, %v5495
      %v5497 = vrot.slane %v5439, 2
      %v5498 = vsel %vm1048, %v5495, %v5497
      %v5499 = vrot.slane %v5442, 2
      %v5500 = vsel %vm1048, %v5497, %v5499
      %v5501 = vrot.slane %v5447, 2
      %v5502 = vsel %vm1048, %v5499, %v5501
      %v5503 = vrot.slane %v5450, 2
      %v5504 = vsel %vm1048, %v5501, %v5503
      %v5505 = vrot.slane %v5455, 2
      %v5506 = vsel %vm1048, %v5503, %v5505
      %v5522 = vadd.f32 %v5331, %v5478
      %v5523 = vadd.f32 %v5332, %v5480
      %v5524 = vadd.f32 %v5333, %v5482
      %v5525 = vadd.f32 %v5334, %v5484
      %v5526 = vadd.f32 %v5335, %v5486
      %v5527 = vadd.f32 %v5336, %v5488
      %v5528 = vadd.f32 %v5337, %v5490
      %v5529 = vadd.f32 %v5338, %v5492
      %v5530 = vadd.f32 %v5339, %v5494
      %v5531 = vadd.f32 %v5340, %v5496
      %v5532 = vadd.f32 %v5341, %v5498
      %v5533 = vadd.f32 %v5342, %v5500
      %v5534 = vadd.f32 %v5343, %v5502
      %v5535 = vadd.f32 %v5344, %v5504
      %v5536 = vadd.f32 %v5345, %v5506
      %v5537 = vld [vmem:[%s4] sm:$0x1]
      %v5539 = vlaneseq
      %v5540 = vshrl.u32 %v5539, 7
      %v5541 = vsub.s32 0, %v5540
      %v5542 = vrot.slane %v5537, %v5541
      %v5544 = vadd.f32 %v5522, %v5542
      %v5545 = vadd.f32 %v5523, %v5542
      %v5546 = vadd.f32 %v5524, %v5542
      %v5547 = vadd.f32 %v5525, %v5542
      %v5548 = vadd.f32 %v5526, %v5542
      %v5549 = vadd.f32 %v5527, %v5542
      %v5550 = vadd.f32 %v5528, %v5542
      %v5551 = vadd.f32 %v5529, %v5542
      %v5552 = vadd.f32 %v5530, %v5542
      %v5553 = vadd.f32 %v5531, %v5542
      %v5554 = vadd.f32 %v5532, %v5542
      %v5555 = vadd.f32 %v5533, %v5542
      %v5556 = vadd.f32 %v5534, %v5542
      %v5557 = vadd.f32 %v5535, %v5542
      %v5558 = vadd.f32 %v5536, %v5542
      %v5559 = vmax.f32 %v5544, 0.0
      %v5560 = vmax.f32 %v5545, 0.0
      %v5561 = vmax.f32 %v5546, 0.0
      %v5562 = vmax.f32 %v5547, 0.0
      %v5563 = vmax.f32 %v5548, 0.0
      %v5564 = vmax.f32 %v5549, 0.0
      %v5565 = vmax.f32 %v5550, 0.0
      %v5566 = vmax.f32 %v5551, 0.0
      %v5567 = vmax.f32 %v5552, 0.0
      %v5568 = vmax.f32 %v5553, 0.0
      %v5569 = vmax.f32 %v5554, 0.0
      %v5570 = vmax.f32 %v5555, 0.0
      %v5571 = vmax.f32 %v5556, 0.0
      %v5572 = vmax.f32 %v5557, 0.0
      %v5573 = vmax.f32 %v5558, 0.0
      %v5574 = vpack.c.bf16 %v5560, %v5559
      %v5575 = vpack.c.bf16 %v5562, %v5561
      %v5576 = vpack.c.bf16 %v5564, %v5563
      %v5577 = vpack.c.bf16 %v5566, %v5565
      %v5578 = vpack.c.bf16 %v5568, %v5567
      %v5579 = vpack.c.bf16 %v5570, %v5569
      %v5580 = vpack.c.bf16 %v5572, %v5571
      %v5581 = vpack.c.bf16 %v5573, %v5573
      %v5590 = vunpack.c.l.b16 %v5574
      %v5591 = vunpack.c.h.b16 %v5574
      %v5592 = vunpack.c.l.b16 %v5575
      %v5593 = vunpack.c.h.b16 %v5575
      %v5594 = vunpack.c.l.b16 %v5576
      %v5595 = vunpack.c.h.b16 %v5576
      %v5596 = vunpack.c.l.b16 %v5577
      %v5597 = vunpack.c.h.b16 %v5577
      %v5598 = vunpack.c.l.b16 %v5578
      %v5599 = vunpack.c.h.b16 %v5578
      %v5600 = vunpack.c.l.b16 %v5579
      %v5601 = vunpack.c.h.b16 %v5579
      %v5602 = vunpack.c.l.b16 %v5580
      %v5603 = vunpack.c.h.b16 %v5580
      %v5604 = vunpack.c.l.b16 %v5581
      %v5605 = vpack.c.b16 %v5590, %v5590
      %v5606 = vpack.c.b16 %v5591, %v5591
      %v5607 = vpack.c.b16 %v5592, %v5592
      %v5608 = vpack.c.b16 %v5593, %v5593
      %v5609 = vpack.c.b16 %v5594, %v5594
      %v5610 = vpack.c.b16 %v5595, %v5595
      %v5611 = vpack.c.b16 %v5596, %v5596
      %v5612 = vpack.c.b16 %v5597, %v5597
      %v5613 = vpack.c.b16 %v5598, %v5598
      %v5614 = vpack.c.b16 %v5599, %v5599
      %v5615 = vpack.c.b16 %v5600, %v5600
      %v5616 = vpack.c.b16 %v5601, %v5601
      %v5617 = vpack.c.b16 %v5602, %v5602
      %v5618 = vpack.c.b16 %v5603, %v5603
      %v5619 = vpack.c.b16 %v5604, %v5604
      %5635 = vst [vmem:[%s446] sm:$0xf] %v5605
      %5636 = vst [vmem:[%s446 + $0x4] sm:$0xf] %v5606
      %5637 = vst [vmem:[%s446 + $0x8] sm:$0xf] %v5607
      %5638 = vst [vmem:[%s446 + $0xc] sm:$0xf] %v5608
      %5639 = vst [vmem:[%s446 + $0x10] sm:$0xf] %v5609
      %5640 = vst [vmem:[%s446 + $0x14] sm:$0xf] %v5610
      %5641 = vst [vmem:[%s446 + $0x18] sm:$0xf] %v5611
      %5642 = vst [vmem:[%s446 + $0x1c] sm:$0xf] %v5612
      %5643 = vst [vmem:[%s446 + $0x20] sm:$0xf] %v5613
      %5644 = vst [vmem:[%s446 + $0x24] sm:$0xf] %v5614
      %5645 = vst [vmem:[%s446 + $0x28] sm:$0xf] %v5615
      %5646 = vst [vmem:[%s446 + $0x2c] sm:$0xf] %v5616
      %5647 = vst [vmem:[%s446 + $0x30] sm:$0xf] %v5617
      %5648 = vst [vmem:[%s446 + $0x34] sm:$0xf] %v5618
      %5649 = vst [vmem:[%s446 + $0x38] sm:$0xf] %v5619
      %v5650 = vld [vmem:[%s5] sm:$0xff]
      %v5651 = vld [vmem:[%s5 + $0x8] sm:$0xff]
      %v5652 = vld [vmem:[%s5 + $0x10] sm:$0xff]
      %v5653 = vld [vmem:[%s5 + $0x18] sm:$0xff]
      %v5654 = vld [vmem:[%s5 + $0x20] sm:$0xff]
      %v5655 = vld [vmem:[%s5 + $0x28] sm:$0xff]
      %v5656 = vld [vmem:[%s5 + $0x30] sm:$0xff]
      %v5657 = vld [vmem:[%s5 + $0x38] sm:$0xff]
      %v5658 = vld [vmem:[%s5 + $0x40] sm:$0xff]
      %v5659 = vld [vmem:[%s5 + $0x48] sm:$0xff]
      %v5660 = vld [vmem:[%s5 + $0x50] sm:$0xff]
      %v5661 = vld [vmem:[%s5 + $0x58] sm:$0xff]
      %v5662 = vld [vmem:[%s5 + $0x60] sm:$0xff]
      %v5663 = vld [vmem:[%s5 + $0x68] sm:$0xff]
      %v5664 = vld [vmem:[%s5 + $0x70] sm:$0xff]
      %5666 = vset.pattern.permute.xlu0 0
      %5667 = vperm.xlu0 %5666, %v5650
      %v5668 = vpop.permute.xlu0 %5667
      %5671 = vset.pattern.permute.xlu0 0
      %5672 = vperm.xlu0 %5671, %v5651
      %v5673 = vpop.permute.xlu0 %5672
      %5676 = vset.pattern.permute.xlu0 0
      %5677 = vperm.xlu0 %5676, %v5652
      %v5678 = vpop.permute.xlu0 %5677
      %5681 = vset.pattern.permute.xlu0 0
      %5682 = vperm.xlu0 %5681, %v5653
      %v5683 = vpop.permute.xlu0 %5682
      %5686 = vset.pattern.permute.xlu0 0
      %5687 = vperm.xlu0 %5686, %v5654
      %v5688 = vpop.permute.xlu0 %5687
      %5691 = vset.pattern.permute.xlu0 0
      %5692 = vperm.xlu0 %5691, %v5655
      %v5693 = vpop.permute.xlu0 %5692
      %5696 = vset.pattern.permute.xlu0 0
      %5697 = vperm.xlu0 %5696, %v5656
      %v5698 = vpop.permute.xlu0 %5697
      %5701 = vset.pattern.permute.xlu0 0
      %5702 = vperm.xlu0 %5701, %v5657
      %v5703 = vpop.permute.xlu0 %5702
      %5706 = vset.pattern.permute.xlu0 0
      %5707 = vperm.xlu0 %5706, %v5658
      %v5708 = vpop.permute.xlu0 %5707
      %5711 = vset.pattern.permute.xlu0 0
      %5712 = vperm.xlu0 %5711, %v5659
      %v5713 = vpop.permute.xlu0 %5712
      %5716 = vset.pattern.permute.xlu0 0
      %5717 = vperm.xlu0 %5716, %v5660
      %v5718 = vpop.permute.xlu0 %5717
      %5721 = vset.pattern.permute.xlu0 0
      %5722 = vperm.xlu0 %5721, %v5661
      %v5723 = vpop.permute.xlu0 %5722
      %5726 = vset.pattern.permute.xlu0 0
      %5727 = vperm.xlu0 %5726, %v5662
      %v5728 = vpop.permute.xlu0 %5727
      %5731 = vset.pattern.permute.xlu0 0
      %5732 = vperm.xlu0 %5731, %v5663
      %v5733 = vpop.permute.xlu0 %5732
      %5736 = vset.pattern.permute.xlu0 0
      %5737 = vperm.xlu0 %5736, %v5664
      %v5738 = vpop.permute.xlu0 %5737
      %v5740 = vmul.f32 %v5559, %v5668
      %v5741 = vmul.f32 %v5560, %v5673
      %v5742 = vmul.f32 %v5561, %v5678
      %v5743 = vmul.f32 %v5562, %v5683
      %v5744 = vmul.f32 %v5563, %v5688
      %v5745 = vmul.f32 %v5564, %v5693
      %v5746 = vmul.f32 %v5565, %v5698
      %v5747 = vmul.f32 %v5566, %v5703
      %v5748 = vmul.f32 %v5567, %v5708
      %v5749 = vmul.f32 %v5568, %v5713
      %v5750 = vmul.f32 %v5569, %v5718
      %v5751 = vmul.f32 %v5570, %v5723
      %v5752 = vmul.f32 %v5571, %v5728
      %v5753 = vmul.f32 %v5572, %v5733
      %v5754 = vmul.f32 %v5573, %v5738
      %v5755 = vadd.f32 %v5740, %v5741
      %v5756 = vadd.f32 %v5755, %v5742
      %v5757 = vadd.f32 %v5756, %v5743
      %v5758 = vadd.f32 %v5757, %v5744
      %v5759 = vadd.f32 %v5758, %v5745
      %v5760 = vadd.f32 %v5759, %v5746
      %v5761 = vadd.f32 %v5760, %v5747
      %v5762 = vadd.f32 %v5761, %v5748
      %v5763 = vadd.f32 %v5762, %v5749
      %v5764 = vadd.f32 %v5763, %v5750
      %v5765 = vadd.f32 %v5764, %v5751
      %v5766 = vadd.f32 %v5765, %v5752
      %v5767 = vadd.f32 %v5766, %v5753
      %v5768 = vadd.f32 %v5767, %v5754
      %v5769 = vrot.slane %v5768, 4
      %v5770 = vadd.f32 %v5768, %v5769
      %v5771 = vrot.slane %v5770, 2
      %v5772 = vadd.f32 %v5770, %v5771
      %v5773 = vrot.slane %v5772, 1
      %v5774 = vadd.f32 %v5772, %v5773
      %5775 = vst [vmem:[%s453] sm:$0x1] %v5774
      %v5776 = vmul.f32 %v5740, %v5740
      %v5777 = vmul.f32 %v5741, %v5741
      %v5778 = vmul.f32 %v5742, %v5742
      %v5779 = vmul.f32 %v5743, %v5743
      %v5780 = vmul.f32 %v5744, %v5744
      %v5781 = vmul.f32 %v5745, %v5745
      %v5782 = vmul.f32 %v5746, %v5746
      %v5783 = vmul.f32 %v5747, %v5747
      %v5784 = vmul.f32 %v5748, %v5748
      %v5785 = vmul.f32 %v5749, %v5749
      %v5786 = vmul.f32 %v5750, %v5750
      %v5787 = vmul.f32 %v5751, %v5751
      %v5788 = vmul.f32 %v5752, %v5752
      %v5789 = vmul.f32 %v5753, %v5753
      %v5790 = vmul.f32 %v5754, %v5754
      %v5791 = vadd.f32 %v5776, %v5777
      %v5792 = vadd.f32 %v5791, %v5778
      %v5793 = vadd.f32 %v5792, %v5779
      %v5794 = vadd.f32 %v5793, %v5780
      %v5795 = vadd.f32 %v5794, %v5781
      %v5796 = vadd.f32 %v5795, %v5782
      %v5797 = vadd.f32 %v5796, %v5783
      %v5798 = vadd.f32 %v5797, %v5784
      %v5799 = vadd.f32 %v5798, %v5785
      %v5800 = vadd.f32 %v5799, %v5786
      %v5801 = vadd.f32 %v5800, %v5787
      %v5802 = vadd.f32 %v5801, %v5788
      %v5803 = vadd.f32 %v5802, %v5789
      %v5804 = vadd.f32 %v5803, %v5790
      %v5805 = vrot.slane %v5804, 4
      %v5806 = vadd.f32 %v5804, %v5805
      %v5807 = vrot.slane %v5806, 2
      %v5808 = vadd.f32 %v5806, %v5807
      %v5809 = vrot.slane %v5808, 1
      %v5810 = vadd.f32 %v5808, %v5809
      %5811 = vst [vmem:[%s460] sm:$0x1] %v5810
      %p5812 = scmp.lt.s32.totalorder %s24, 1
      %s5813 = scalar_select %p5812, %s24, 1
      %p5814 = scmp.lt.s32.totalorder %s25, 9
      %s5815 = scalar_select %p5814, %s25, 9
      %s5816 = smul.addr %s5815, 15
      %s5817 = smul.addr %s5813, 150
      %s5818 = sadd.s32 %s5816, %s5817
      %s5819 = smul.addr %s5818, 4
      %s5820 = scalar_lea.vmem %s6, %s5819
      %p5821 = scmp.lt.s32.totalorder %s24, 1
      %s5822 = scalar_select %p5821, %s24, 1
      %p5823 = scmp.lt.s32.totalorder %s25, 9
      %s5824 = scalar_select %p5823, %s25, 9
      %s5825 = smul.addr %s5822, 10
      %s5826 = sadd.s32 %s5824, %s5825
      %s5827 = scalar_lea.vmem %s7, %s5826
      %p5828 = scmp.lt.s32.totalorder %s24, 1
      %s5829 = scalar_select %p5828, %s24, 1
      %p5830 = scmp.lt.s32.totalorder %s25, 9
      %s5831 = scalar_select %p5830, %s25, 9
      %s5832 = smul.addr %s5829, 10
      %s5833 = sadd.s32 %s5831, %s5832
      %s5834 = scalar_lea.vmem %s8, %s5833
      // Predicated region
      $region45: #{stack_conv_norm_nonlin.3} parent=43 // pred_check
        %p5835 = pneg %p203
      $region46: #{stack_conv_norm_nonlin.3} parent=43 // pred_check_branch
        %5837 = sbr.rel (%p5835) target = $region48
      $region47: #{stack_conv_norm_nonlin.3} parent=43 // pred_region
        _
      $region48: #{stack_conv_norm_nonlin.3} parent=43 // pred_fallthru
        _
      // Predicated region
      $region49: #{stack_conv_norm_nonlin.3} parent=43 // pred_check
        %p5838 = pneg %p231
      $region50: #{stack_conv_norm_nonlin.3} parent=43 // pred_check_branch
        %5840 = sbr.rel (%p5838) target = $region52
      $region51: #{stack_conv_norm_nonlin.3} parent=43 // pred_region
        _
      $region52: #{stack_conv_norm_nonlin.3} parent=43 // pred_fallthru
        _
      // Predicated region
      $region53: #{stack_conv_norm_nonlin.3} parent=43 // pred_check
        %p5841 = pneg %p259
      $region54: #{stack_conv_norm_nonlin.3} parent=43 // pred_check_branch
        %5843 = sbr.rel (%p5841) target = $region56
      $region55: #{stack_conv_norm_nonlin.3} parent=43 // pred_region
        _
      $region56: #{stack_conv_norm_nonlin.3} parent=43 // pred_fallthru
        _
    $region44: #{stack_conv_norm_nonlin.3} parent=5 // pred_fallthru
      _
    %p5844 = scmp.le.s32.totalorder 2, %s15
    // Predicated region
    $region57: #{stack_conv_norm_nonlin.3} parent=5 // pred_check
      %p5845 = pneg %p5844
    $region58: #{stack_conv_norm_nonlin.3} parent=5 // pred_check_branch
      %5847 = sbr.rel (%p5845) target = $region60
    $region59: #{stack_conv_norm_nonlin.3} parent=5 // pred_region
      %s5848 = ssub.s32 %s15, 2
      // Predicated region
      $region61: #{stack_conv_norm_nonlin.3} parent=59 // pred_check
        %p5849 = pneg %p209
      $region62: #{stack_conv_norm_nonlin.3} parent=59 // pred_check_branch
        %5851 = sbr.rel (%p5849) target = $region64
      $region63: #{stack_conv_norm_nonlin.3} parent=59 // pred_region
        %p5852 = scmp.lt.s32.totalorder %s26, 1
        %s5853 = scalar_select %p5852, %s26, 1
        %p5854 = scmp.lt.s32.totalorder %s27, 9
        %s5855 = scalar_select %p5854, %s27, 9
        %s5856 = smul.addr %s5855, 15
        %s5857 = smul.addr %s5853, 150
        %s5858 = sadd.s32 %s5856, %s5857
        %s5859 = smul.addr %s5858, 4
        %s5860 = scalar_lea.vmem %s6, %s5859
      $region64: #{stack_conv_norm_nonlin.3} parent=59 // pred_fallthru
        _
      // Predicated region
      $region65: #{stack_conv_norm_nonlin.3} parent=59 // pred_check
        %p5861 = pneg %p237
      $region66: #{stack_conv_norm_nonlin.3} parent=59 // pred_check_branch
        %5863 = sbr.rel (%p5861) target = $region68
      $region67: #{stack_conv_norm_nonlin.3} parent=59 // pred_region
        %p5864 = scmp.lt.s32.totalorder %s26, 1
        %s5865 = scalar_select %p5864, %s26, 1
        %p5866 = scmp.lt.s32.totalorder %s27, 9
        %s5867 = scalar_select %p5866, %s27, 9
        %s5868 = smul.addr %s5865, 10
        %s5869 = sadd.s32 %s5867, %s5868
        %s5870 = scalar_lea.vmem %s7, %s5869
      $region68: #{stack_conv_norm_nonlin.3} parent=59 // pred_fallthru
        _
      // Predicated region
      $region69: #{stack_conv_norm_nonlin.3} parent=59 // pred_check
        %p5871 = pneg %p265
      $region70: #{stack_conv_norm_nonlin.3} parent=59 // pred_check_branch
        %5873 = sbr.rel (%p5871) target = $region72
      $region71: #{stack_conv_norm_nonlin.3} parent=59 // pred_region
        %p5874 = scmp.lt.s32.totalorder %s26, 1
        %s5875 = scalar_select %p5874, %s26, 1
        %p5876 = scmp.lt.s32.totalorder %s27, 9
        %s5877 = scalar_select %p5876, %s27, 9
        %s5878 = smul.addr %s5875, 10
        %s5879 = sadd.s32 %s5877, %s5878
        %s5880 = scalar_lea.vmem %s8, %s5879
      $region72: #{stack_conv_norm_nonlin.3} parent=59 // pred_fallthru
        _
    $region60: #{stack_conv_norm_nonlin.3} parent=5 // pred_fallthru
      _
  $region6: #{stack_conv_norm_nonlin.3} parent=0 // loop_footer
    %s19 = sadd.s32 1, %s15
  $region7: #{stack_conv_norm_nonlin.3} parent=0 // loop_footer_branch
    %14 = sbr.rel target = $region3
  $region8: #{stack_conv_norm_nonlin.3} parent=0 // loop_exit
    _

</llo_original>
